<compile_context>
chip_gen: v6e
topology: v6e:2x2x1
jax: 0.10.0
libtpu: 0.0.40
codegen_flags: <defaults>
</compile_context>

<pallas_src>
from functools import partial

import jax
import jax.numpy as jnp
from jax import lax
from jax.experimental import pallas as pl
from jax.experimental.pallas import tpu as pltpu


def _round_up(x, m):
    return (x + m - 1) // m * m


# ----------------------------------------------------------------------------
# Fused ASPP kernel: 4 conv branches + BN + ReLU + 1x1 projection + BN + ReLU
# ----------------------------------------------------------------------------
def _aspp_fused_kernel(x_ref, w0_ref, w3_ref, bsc_ref, bsh_ref, wp_ref,
                       psc_ref, psh_ref, o_ref,
                       *, dilations, halo, TH, Wout):
    """One (batch, row-tile) grid step of the fused ASPP forward.

    x_ref   : (1, Hp, Wp, Cp)    zero-padded NHWC image of this batch element
    w0_ref  : (Cp, Co)           1x1 branch weights
    w3_ref  : (3, 9, Cp, Co)     dilated 3x3 branch weights, tap-major
    bsc_ref : (4, Co)  f32       folded-BN scales for branches 0..3
    bsh_ref : (4, Co)  f32       folded-BN shifts for branches 0..3
    wp_ref  : (4, Co, Co)        projection weight slab per branch
    psc_ref : (1, Co)  f32       projection folded-BN scale
    psh_ref : (1, 1, Co) f32     projection shift incl. folded global-pool branch
    o_ref   : (1, TH, Wout, Co)  output row tile (lane-dense Co)
    """
    Cp, Co = w0_ref.shape
    M = TH * Wout
    h0 = pl.multiple_of(pl.program_id(1) * TH, TH)

    bsc = bsc_ref[...]
    bsh = bsh_ref[...]

    def tap(dh, dw):
        # (TH, Wout, Cp) window of the padded image; dw is static, dh is the
        # dynamic row-tile offset plus a static tap offset.  Wout % 8 == 0 and
        # Cp % 128 == 0, so the reshape to (M, Cp) is layout-preserving (no
        # VMEM copy); operands stay in the input dtype for the MXU.
        xs = x_ref[0, pl.ds(h0 + dh, TH), pl.ds(dw, Wout), :]
        return xs.reshape(M, Cp)

    def bn_relu(acc, k):
        return jnp.maximum(acc * bsc[k:k + 1, :] + bsh[k:k + 1, :], 0.0)

    # Branch 0: 1x1 conv + BN + ReLU, fed straight into the projection.
    b0 = bn_relu(jnp.dot(tap(halo, halo), w0_ref[...],
                         preferred_element_type=jnp.float32), 0)
    proj = jnp.dot(b0, wp_ref[0], preferred_element_type=jnp.float32)

    # Branches 1..3: dilated 3x3 convs (padding == dilation) + BN + ReLU,
    # each accumulated straight into the projection (no concat tensor).
    for bi, d in enumerate(dilations):
        base = halo - d
        acc = None
        for kh in range(3):
            for kw in range(3):
                t = jnp.dot(tap(base + kh * d, base + kw * d),
                            w3_ref[bi, kh * 3 + kw],
                            preferred_element_type=jnp.float32)
                acc = t if acc is None else acc + t
        proj = proj + jnp.dot(bn_relu(acc, bi + 1), wp_ref[bi + 1],
                              preferred_element_type=jnp.float32)

    # Projection folded-BN (+ the global-pool branch already folded into the
    # per-batch shift) + ReLU.  Dropout(0.1) is identity at inference.
    out = jnp.maximum(proj * psc_ref[...] + psh_ref[0], 0.0)
    o_ref[0] = out.reshape(TH, Wout, Co).astype(o_ref.dtype)


# ----------------------------------------------------------------------------
# ASPP forward (NCHW in / NCHW out, matching the PyTorch module)
# ----------------------------------------------------------------------------
def aspp_forward(x_nchw, params, atrous_rates, *, row_tile=None):
    N, Cin, H, W = x_nchw.shape
    OC = params["w0"].shape[0]
    r1, r2, r3 = (int(r) for r in atrous_rates)
    if min(r1, r2, r3) < 1 or H < 1 or W < 1:
        raise ValueError("invalid atrous rates / spatial size")
    if OC % 128:
        raise ValueError("out_channels must be a multiple of 128 (ASPP uses 256)")

    x = jnp.transpose(x_nchw, (0, 2, 3, 1))                        # NHWC
    cdtype = x.dtype
    itemsize = jnp.dtype(cdtype).itemsize

    # Alignment: lane-dense channels, 8-aligned output width (sublane axis),
    # row tiles dividing the (padded) output height.
    Cp = _round_up(Cin, 128)
    Wout_p = _round_up(W, 8)
    if row_tile is None:
        # ~512 output rows per tile (bounds the f32 accumulators) and at least
        # two row tiles so the row axis can shard across v7x's 2 TensorCores.
        row_tile = max(1, min(max(1, 512 // Wout_p), -(-H // 2)))
    TH = max(1, min(int(row_tile), H))
    Hout_p = _round_up(H, TH)
    P = max(r1, r2, r3)                                            # shared halo
    Hp = Hout_p + 2 * P
    Wp = Wout_p + 2 * P

    xp = jnp.pad(x, ((0, 0), (P, P + Hout_p - H), (P, P + Wout_p - W),
                     (0, Cp - Cin)))

    hp = lax.Precision.HIGHEST

    def w1x1(w):                         # (OC, Ci, 1, 1) -> (Cp, OC)
        wt = jnp.transpose(w[:, :, 0, 0], (1, 0))
        return jnp.pad(wt, ((0, Cp - Cin), (0, 0))).astype(cdtype)

    def w3x3(w):                         # (OC, Ci, 3, 3) -> (9, Cp, OC)
        wt = jnp.transpose(w, (2, 3, 1, 0)).reshape(9, Cin, OC)
        return jnp.pad(wt, ((0, 0), (0, Cp - Cin), (0, 0))).astype(cdtype)

    w0 = w1x1(params["w0"])
    w3 = jnp.stack([w3x3(params["w1"]), w3x3(params["w2"]), w3x3(params["w3"])])
    bsc = jnp.stack([params["s0"], params["s1"], params["s2"],
                     params["s3"]]).astype(jnp.float32)
    bsh = jnp.stack([params["t0"], params["t1"], params["t2"],
                     params["t3"]]).astype(jnp.float32)

    # Projection weight as (5*OC, OC): slabs 0..3 go to the kernel, slab 4
    # (the global-pool branch) is folded into the per-batch shift below.
    wp_mat = jnp.transpose(params["wp"][:, :, 0, 0], (1, 0))
    wp_slabs = wp_mat[:4 * OC].reshape(4, OC, OC).astype(jnp.float32)
    wp4 = wp_mat[4 * OC:].astype(jnp.float32)                      # (OC, OC)

    # Global-average-pool branch: AdaptiveAvgPool2d(1) + 1x1 conv + BN + ReLU;
    # bilinear upsample from 1x1 is a broadcast, i.e. spatially constant, so
    # fold it through the projection into a per-batch shift (plain-JAX glue,
    # the reduction crosses every spatial tile).
    pooled = jnp.mean(x.astype(jnp.float32), axis=(1, 2))          # (N, Cin)
    w4 = jnp.transpose(params["w4"][:, :, 0, 0], (1, 0)).astype(jnp.float32)
    b4 = jnp.maximum(jnp.dot(pooled, w4, precision=hp)
                     * params["s4"][None, :] + params["t4"][None, :], 0.0)
    psh = (params["tp"][None, :]
           + params["sp"][None, :] * jnp.dot(b4, wp4, precision=hp))
    psh = psh.reshape(N, 1, OC).astype(jnp.float32)                # (N, 1, OC)
    psc = params["sp"].reshape(1, OC).astype(jnp.float32)

    # VMEM budget: resident padded image + all weights (double-buffered by the
    # pipeline) + output tile + in-kernel f32 temporaries, capped by physical
    # VMEM (v5e/v6e 128 MiB, v7x 64 MiB/core).
    m_rows = TH * Wout_p
    est = (2 * Hp * Wp * Cp * itemsize
           + 2 * 28 * Cp * OC * itemsize
           + 2 * (4 * OC * OC + 10 * OC) * 4
           + 2 * m_rows * OC * itemsize
           + m_rows * (Cp + 3 * OC) * 4 + Cp * OC * itemsize)
    try:
        phys = int(pltpu.get_tpu_info().vmem_capacity_bytes)
    except Exception:
        phys = 64 * 1024 * 1024
    cap = min(100 * 1024 * 1024, int(phys * 0.85))
    vmem_limit = int(min(max(2 * est, 32 * 1024 * 1024), cap))

    flops = int(2 * N * Hout_p * Wout_p * (28 * Cp * OC + 4 * OC * OC))
    bytes_accessed = int(xp.size * itemsize + w0.size * itemsize
                         + w3.size * itemsize + wp_slabs.size * 4
                         + N * Hout_p * Wout_p * OC * itemsize)

    kernel = partial(_aspp_fused_kernel, dilations=(r1, r2, r3), halo=P,
                     TH=TH, Wout=Wout_p)

    out = pl.pallas_call(
        kernel,
        out_shape=jax.ShapeDtypeStruct((N, Hout_p, Wout_p, OC), cdtype),
        grid_spec=pltpu.PrefetchScalarGridSpec(
            num_scalar_prefetch=0,
            grid=(N, Hout_p // TH),
            in_specs=[
                pl.BlockSpec((1, Hp, Wp, Cp), lambda n, r: (n, 0, 0, 0)),
                pl.BlockSpec((Cp, OC), lambda n, r: (0, 0)),
                pl.BlockSpec((3, 9, Cp, OC), lambda n, r: (0, 0, 0, 0)),
                pl.BlockSpec((4, OC), lambda n, r: (0, 0)),
                pl.BlockSpec((4, OC), lambda n, r: (0, 0)),
                pl.BlockSpec((4, OC, OC), lambda n, r: (0, 0, 0)),
                pl.BlockSpec((1, OC), lambda n, r: (0, 0)),
                pl.BlockSpec((1, 1, OC), lambda n, r: (n, 0, 0)),
            ],
            out_specs=pl.BlockSpec((1, TH, Wout_p, OC),
                                   lambda n, r: (n, r, 0, 0)),
        ),
        compiler_params=pltpu.CompilerParams(
            dimension_semantics=("parallel", "parallel"),
            vmem_limit_bytes=vmem_limit),
        cost_estimate=pl.CostEstimate(flops=flops, transcendentals=0,
                                      bytes_accessed=bytes_accessed),
    )(xp, w0, w3, bsc, bsh, wp_slabs, psc, psh)

    out = out[:, :H, :W, :]
    return jnp.transpose(out, (0, 3, 1, 2))


# ----------------------------------------------------------------------------
# Pure-JAX reference (NCHW), mirroring the (5-branch) ASPP forward
# ----------------------------------------------------------------------------
def _aspp_reference(x_nchw, params, atrous_rates):
    hp = lax.Precision.HIGHEST

    def conv(x, w, dilation=1, padding=0):
        return lax.conv_general_dilated(
            x, w, window_strides=(1, 1),
            padding=((padding, padding), (padding, padding)),
            rhs_dilation=(dilation, dilation),
            dimension_numbers=("NCHW", "OIHW", "NCHW"),
            precision=hp)

    def bn_relu(y, s, t):
        return jnp.maximum(y * s.reshape(1, -1, 1, 1) + t.reshape(1, -1, 1, 1),
                           0.0)

    r1, r2, r3 = atrous_rates
    b0 = bn_relu(conv(x_nchw, params["w0"]), params["s0"], params["t0"])
    b1 = bn_relu(conv(x_nchw, params["w1"], r1, r1), params["s1"], params["t1"])
    b2 = bn_relu(conv(x_nchw, params["w2"], r2, r2), params["s2"], params["t2"])
    b3 = bn_relu(conv(x_nchw, params["w3"], r3, r3), params["s3"], params["t3"])
    pooled = jnp.mean(x_nchw, axis=(2, 3), keepdims=True)
    b4 = bn_relu(conv(pooled, params["w4"]), params["s4"], params["t4"])
    b4 = jnp.broadcast_to(b4, b0.shape)
    cat = jnp.concatenate([b0, b1, b2, b3, b4], axis=1)
    return bn_relu(conv(cat, params["wp"]), params["sp"], params["tp"])


if __name__ == "__main__":
    in_channels = 4
    out_channels = 256            # hardcoded by the ASPP module
    atrous_rates = (2, 4, 6)
    N, H, W = 2, 16, 16
    eps = 1e-5

    key = jax.random.PRNGKey(0)
    keys = jax.random.split(key, 16)
    kit = iter(keys)

    def conv_w(k, oc, ic, ks):
        fan_in = ic * ks * ks
        return (jax.random.normal(k, (oc, ic, ks, ks), jnp.float32)
                * jnp.sqrt(2.0 / fan_in))

    def bn_fold(k, c):
        kg, kb, km, kv = jax.random.split(k, 4)
        gamma = jax.random.uniform(kg, (c,), jnp.float32, 0.5, 1.5)
        beta = jax.random.normal(kb, (c,), jnp.float32) * 0.1
        mean = jax.random.normal(km, (c,), jnp.float32) * 0.1
        var = jax.random.uniform(kv, (c,), jnp.float32, 0.5, 1.5)
        scale = gamma / jnp.sqrt(var + eps)
        shift = beta - mean * scale
        return scale, shift

    params = {}
    params["w0"] = conv_w(next(kit), out_channels, in_channels, 1)
    params["s0"], params["t0"] = bn_fold(next(kit), out_channels)
    params["w1"] = conv_w(next(kit), out_channels, in_channels, 3)
    params["s1"], params["t1"] = bn_fold(next(kit), out_channels)
    params["w2"] = conv_w(next(kit), out_channels, in_channels, 3)
    params["s2"], params["t2"] = bn_fold(next(kit), out_channels)
    params["w3"] = conv_w(next(kit), out_channels, in_channels, 3)
    params["s3"], params["t3"] = bn_fold(next(kit), out_channels)
    params["w4"] = conv_w(next(kit), out_channels, in_channels, 1)
    params["s4"], params["t4"] = bn_fold(next(kit), out_channels)
    params["wp"] = conv_w(next(kit), out_channels, 5 * out_channels, 1)
    params["sp"], params["tp"] = bn_fold(next(kit), out_channels)

    x = jax.random.normal(next(kit), (N, in_channels, H, W), jnp.float32)

    fwd = jax.jit(partial(aspp_forward, atrous_rates=atrous_rates))
    out = jax.block_until_ready(fwd(x, params))

    ref = _aspp_reference(x, params, atrous_rates)
    assert out.shape == ref.shape == (N, out_channels, H, W), (out.shape,
                                                               ref.shape)
    max_err = float(jnp.max(jnp.abs(out - ref)))
    assert jnp.allclose(out, ref, atol=2e-3, rtol=2e-3), max_err

    print("KERNEL_OK")
</pallas_src>

<mosaic_0001>
module attributes {stable_mosaic.version = 11 : i64} {
  func.func @_aspp_fused_kernel(%arg0: i32, %arg1: i32, %arg2: memref<1x28x28x128xf32, #tpu.memory_space<vmem>>, %arg3: memref<128x256xf32, #tpu.memory_space<vmem>>, %arg4: memref<3x9x128x256xf32, #tpu.memory_space<vmem>>, %arg5: memref<4x256xf32, #tpu.memory_space<vmem>>, %arg6: memref<4x256xf32, #tpu.memory_space<vmem>>, %arg7: memref<4x256x256xf32, #tpu.memory_space<vmem>>, %arg8: memref<1x256xf32, #tpu.memory_space<vmem>>, %arg9: memref<1x1x256xf32, #tpu.memory_space<vmem>>, %arg10: memref<1x8x16x256xf32, #tpu.memory_space<vmem>>) attributes {dimension_semantics = [#tpu.dimension_semantics<parallel>, #tpu.dimension_semantics<parallel>], iteration_bounds = array<i64: 2, 2>, scalar_prefetch = 0 : i64, scratch_operands = 0 : i64, tpu.core_type = #tpu.core_type<tc>, window_params = [{transform_indices = @transform_0, window_bounds = array<i64: 1, 28, 28, 128>}, {pipeline_mode = #tpu.pipeline_mode<synchronous>, transform_indices = @transform_1, window_bounds = array<i64: 128, 256>}, {pipeline_mode = #tpu.pipeline_mode<synchronous>, transform_indices = @transform_2, window_bounds = array<i64: 3, 9, 128, 256>}, {pipeline_mode = #tpu.pipeline_mode<synchronous>, transform_indices = @transform_3, window_bounds = array<i64: 4, 256>}, {pipeline_mode = #tpu.pipeline_mode<synchronous>, transform_indices = @transform_4, window_bounds = array<i64: 4, 256>}, {pipeline_mode = #tpu.pipeline_mode<synchronous>, transform_indices = @transform_5, window_bounds = array<i64: 4, 256, 256>}, {pipeline_mode = #tpu.pipeline_mode<synchronous>, transform_indices = @transform_6, window_bounds = array<i64: 1, 256>}, {transform_indices = @transform_7, window_bounds = array<i64: 1, 1, 256>}, {transform_indices = @transform_8, window_bounds = array<i64: 1, 8, 16, 256>}]} {
    %c8_i32 = arith.constant 8 : i32
    %0 = arith.muli %arg1, %c8_i32 : i32
    %1 = tpu.assume_multiple %0, 8 : i32
    %c0 = arith.constant 0 : index
    %c0_0 = arith.constant 0 : index
    %2 = vector.load %arg5[%c0, %c0_0] : memref<4x256xf32, #tpu.memory_space<vmem>>, vector<4x256xf32>
    %c0_1 = arith.constant 0 : index
    %c0_2 = arith.constant 0 : index
    %3 = vector.load %arg6[%c0_1, %c0_2] : memref<4x256xf32, #tpu.memory_space<vmem>>, vector<4x256xf32>
    %c6_i32 = arith.constant 6 : i32
    %4 = arith.addi %1, %c6_i32 : i32
    %c0_3 = arith.constant 0 : index
    %5 = arith.index_cast %4 : i32 to index
    %c6 = arith.constant 6 : index
    %c0_4 = arith.constant 0 : index
    %6 = vector.load %arg2[%c0_3, %5, %c6, %c0_4] : memref<1x28x28x128xf32, #tpu.memory_space<vmem>>, vector<1x8x16x128xf32>
    %7 = vector.shape_cast %6 : vector<1x8x16x128xf32> to vector<8x16x128xf32>
    %8 = vector.shape_cast %7 : vector<8x16x128xf32> to vector<128x128xf32>
    %c0_5 = arith.constant 0 : index
    %c0_6 = arith.constant 0 : index
    %9 = vector.load %arg3[%c0_5, %c0_6] : memref<128x256xf32, #tpu.memory_space<vmem>>, vector<128x256xf32>
    %cst = arith.constant dense<0.000000e+00> : vector<128x256xf32>
    %10 = tpu.matmul %8, %9, %cst {dimension_numbers = #tpu.dot_dimension_numbers<[1], [0], [0], [1], [0, 0, 1, 1], [], []>} : vector<128x128xf32>, vector<128x256xf32>, vector<128x256xf32> -> vector<128x256xf32>
    %11 = vector.extract_strided_slice %2 {offsets = [0, 0], sizes = [1, 256], strides = [1, 1]} : vector<4x256xf32> to vector<1x256xf32>
    %12 = vector.broadcast %11 : vector<1x256xf32> to vector<128x256xf32>
    %13 = arith.mulf %10, %12 : vector<128x256xf32>
    %14 = vector.extract_strided_slice %3 {offsets = [0, 0], sizes = [1, 256], strides = [1, 1]} : vector<4x256xf32> to vector<1x256xf32>
    %15 = vector.broadcast %14 : vector<1x256xf32> to vector<128x256xf32>
    %16 = arith.addf %13, %15 : vector<128x256xf32>
    %cst_7 = arith.constant 0.000000e+00 : f32
    %17 = vector.broadcast %cst_7 : f32 to vector<128x256xf32>
    %18 = arith.maximumf %16, %17 : vector<128x256xf32>
    %c0_8 = arith.constant 0 : index
    %c0_9 = arith.constant 0 : index
    %c0_10 = arith.constant 0 : index
    %19 = vector.load %arg7[%c0_8, %c0_9, %c0_10] : memref<4x256x256xf32, #tpu.memory_space<vmem>>, vector<1x256x256xf32>
    %20 = vector.shape_cast %19 : vector<1x256x256xf32> to vector<256x256xf32>
    %cst_11 = arith.constant dense<0.000000e+00> : vector<128x256xf32>
    %21 = tpu.matmul %18, %20, %cst_11 {dimension_numbers = #tpu.dot_dimension_numbers<[1], [0], [0], [1], [0, 0, 1, 1], [], []>} : vector<128x256xf32>, vector<256x256xf32>, vector<128x256xf32> -> vector<128x256xf32>
    %c4_i32 = arith.constant 4 : i32
    %22 = arith.addi %1, %c4_i32 : i32
    %c0_12 = arith.constant 0 : index
    %23 = arith.index_cast %22 : i32 to index
    %c4 = arith.constant 4 : index
    %c0_13 = arith.constant 0 : index
    %24 = vector.load %arg2[%c0_12, %23, %c4, %c0_13] : memref<1x28x28x128xf32, #tpu.memory_space<vmem>>, vector<1x8x16x128xf32>
    %25 = vector.shape_cast %24 : vector<1x8x16x128xf32> to vector<8x16x128xf32>
    %26 = vector.shape_cast %25 : vector<8x16x128xf32> to vector<128x128xf32>
    %c0_14 = arith.constant 0 : index
    %c0_15 = arith.constant 0 : index
    %c0_16 = arith.constant 0 : index
    %c0_17 = arith.constant 0 : index
    %27 = vector.load %arg4[%c0_14, %c0_15, %c0_16, %c0_17] : memref<3x9x128x256xf32, #tpu.memory_space<vmem>>, vector<1x1x128x256xf32>
    %28 = vector.shape_cast %27 : vector<1x1x128x256xf32> to vector<128x256xf32>
    %cst_18 = arith.constant dense<0.000000e+00> : vector<128x256xf32>
    %29 = tpu.matmul %26, %28, %cst_18 {dimension_numbers = #tpu.dot_dimension_numbers<[1], [0], [0], [1], [0, 0, 1, 1], [], []>} : vector<128x128xf32>, vector<128x256xf32>, vector<128x256xf32> -> vector<128x256xf32>
    %c4_i32_19 = arith.constant 4 : i32
    %30 = arith.addi %1, %c4_i32_19 : i32
    %c0_20 = arith.constant 0 : index
    %31 = arith.index_cast %30 : i32 to index
    %c6_21 = arith.constant 6 : index
    %c0_22 = arith.constant 0 : index
    %32 = vector.load %arg2[%c0_20, %31, %c6_21, %c0_22] : memref<1x28x28x128xf32, #tpu.memory_space<vmem>>, vector<1x8x16x128xf32>
    %33 = vector.shape_cast %32 : vector<1x8x16x128xf32> to vector<8x16x128xf32>
    %34 = vector.shape_cast %33 : vector<8x16x128xf32> to vector<128x128xf32>
    %c0_23 = arith.constant 0 : index
    %c1 = arith.constant 1 : index
    %c0_24 = arith.constant 0 : index
    %c0_25 = arith.constant 0 : index
    %35 = vector.load %arg4[%c0_23, %c1, %c0_24, %c0_25] : memref<3x9x128x256xf32, #tpu.memory_space<vmem>>, vector<1x1x128x256xf32>
    %36 = vector.shape_cast %35 : vector<1x1x128x256xf32> to vector<128x256xf32>
    %cst_26 = arith.constant dense<0.000000e+00> : vector<128x256xf32>
    %37 = tpu.matmul %34, %36, %cst_26 {dimension_numbers = #tpu.dot_dimension_numbers<[1], [0], [0], [1], [0, 0, 1, 1], [], []>} : vector<128x128xf32>, vector<128x256xf32>, vector<128x256xf32> -> vector<128x256xf32>
    %38 = arith.addf %29, %37 : vector<128x256xf32>
    %c4_i32_27 = arith.constant 4 : i32
    %39 = arith.addi %1, %c4_i32_27 : i32
    %c0_28 = arith.constant 0 : index
    %40 = arith.index_cast %39 : i32 to index
    %c8 = arith.constant 8 : index
    %c0_29 = arith.constant 0 : index
    %41 = vector.load %arg2[%c0_28, %40, %c8, %c0_29] : memref<1x28x28x128xf32, #tpu.memory_space<vmem>>, vector<1x8x16x128xf32>
    %42 = vector.shape_cast %41 : vector<1x8x16x128xf32> to vector<8x16x128xf32>
    %43 = vector.shape_cast %42 : vector<8x16x128xf32> to vector<128x128xf32>
    %c0_30 = arith.constant 0 : index
    %c2 = arith.constant 2 : index
    %c0_31 = arith.constant 0 : index
    %c0_32 = arith.constant 0 : index
    %44 = vector.load %arg4[%c0_30, %c2, %c0_31, %c0_32] : memref<3x9x128x256xf32, #tpu.memory_space<vmem>>, vector<1x1x128x256xf32>
    %45 = vector.shape_cast %44 : vector<1x1x128x256xf32> to vector<128x256xf32>
    %cst_33 = arith.constant dense<0.000000e+00> : vector<128x256xf32>
    %46 = tpu.matmul %43, %45, %cst_33 {dimension_numbers = #tpu.dot_dimension_numbers<[1], [0], [0], [1], [0, 0, 1, 1], [], []>} : vector<128x128xf32>, vector<128x256xf32>, vector<128x256xf32> -> vector<128x256xf32>
    %47 = arith.addf %38, %46 : vector<128x256xf32>
    %c6_i32_34 = arith.constant 6 : i32
    %48 = arith.addi %1, %c6_i32_34 : i32
    %c0_35 = arith.constant 0 : index
    %49 = arith.index_cast %48 : i32 to index
    %c4_36 = arith.constant 4 : index
    %c0_37 = arith.constant 0 : index
    %50 = vector.load %arg2[%c0_35, %49, %c4_36, %c0_37] : memref<1x28x28x128xf32, #tpu.memory_space<vmem>>, vector<1x8x16x128xf32>
    %51 = vector.shape_cast %50 : vector<1x8x16x128xf32> to vector<8x16x128xf32>
    %52 = vector.shape_cast %51 : vector<8x16x128xf32> to vector<128x128xf32>
    %c0_38 = arith.constant 0 : index
    %c3 = arith.constant 3 : index
    %c0_39 = arith.constant 0 : index
    %c0_40 = arith.constant 0 : index
    %53 = vector.load %arg4[%c0_38, %c3, %c0_39, %c0_40] : memref<3x9x128x256xf32, #tpu.memory_space<vmem>>, vector<1x1x128x256xf32>
    %54 = vector.shape_cast %53 : vector<1x1x128x256xf32> to vector<128x256xf32>
    %cst_41 = arith.constant dense<0.000000e+00> : vector<128x256xf32>
    %55 = tpu.matmul %52, %54, %cst_41 {dimension_numbers = #tpu.dot_dimension_numbers<[1], [0], [0], [1], [0, 0, 1, 1], [], []>} : vector<128x128xf32>, vector<128x256xf32>, vector<128x256xf32> -> vector<128x256xf32>
    %56 = arith.addf %47, %55 : vector<128x256xf32>
    %c6_i32_42 = arith.constant 6 : i32
    %57 = arith.addi %1, %c6_i32_42 : i32
    %c0_43 = arith.constant 0 : index
    %58 = arith.index_cast %57 : i32 to index
    %c6_44 = arith.constant 6 : index
    %c0_45 = arith.constant 0 : index
    %59 = vector.load %arg2[%c0_43, %58, %c6_44, %c0_45] : memref<1x28x28x128xf32, #tpu.memory_space<vmem>>, vector<1x8x16x128xf32>
    %60 = vector.shape_cast %59 : vector<1x8x16x128xf32> to vector<8x16x128xf32>
    %61 = vector.shape_cast %60 : vector<8x16x128xf32> to vector<128x128xf32>
    %c0_46 = arith.constant 0 : index
    %c4_47 = arith.constant 4 : index
    %c0_48 = arith.constant 0 : index
    %c0_49 = arith.constant 0 : index
    %62 = vector.load %arg4[%c0_46, %c4_47, %c0_48, %c0_49] : memref<3x9x128x256xf32, #tpu.memory_space<vmem>>, vector<1x1x128x256xf32>
    %63 = vector.shape_cast %62 : vector<1x1x128x256xf32> to vector<128x256xf32>
    %cst_50 = arith.constant dense<0.000000e+00> : vector<128x256xf32>
    %64 = tpu.matmul %61, %63, %cst_50 {dimension_numbers = #tpu.dot_dimension_numbers<[1], [0], [0], [1], [0, 0, 1, 1], [], []>} : vector<128x128xf32>, vector<128x256xf32>, vector<128x256xf32> -> vector<128x256xf32>
    %65 = arith.addf %56, %64 : vector<128x256xf32>
    %c6_i32_51 = arith.constant 6 : i32
    %66 = arith.addi %1, %c6_i32_51 : i32
    %c0_52 = arith.constant 0 : index
    %67 = arith.index_cast %66 : i32 to index
    %c8_53 = arith.constant 8 : index
    %c0_54 = arith.constant 0 : index
    %68 = vector.load %arg2[%c0_52, %67, %c8_53, %c0_54] : memref<1x28x28x128xf32, #tpu.memory_space<vmem>>, vector<1x8x16x128xf32>
    %69 = vector.shape_cast %68 : vector<1x8x16x128xf32> to vector<8x16x128xf32>
    %70 = vector.shape_cast %69 : vector<8x16x128xf32> to vector<128x128xf32>
    %c0_55 = arith.constant 0 : index
    %c5 = arith.constant 5 : index
    %c0_56 = arith.constant 0 : index
    %c0_57 = arith.constant 0 : index
    %71 = vector.load %arg4[%c0_55, %c5, %c0_56, %c0_57] : memref<3x9x128x256xf32, #tpu.memory_space<vmem>>, vector<1x1x128x256xf32>
    %72 = vector.shape_cast %71 : vector<1x1x128x256xf32> to vector<128x256xf32>
    %cst_58 = arith.constant dense<0.000000e+00> : vector<128x256xf32>
    %73 = tpu.matmul %70, %72, %cst_58 {dimension_numbers = #tpu.dot_dimension_numbers<[1], [0], [0], [1], [0, 0, 1, 1], [], []>} : vector<128x128xf32>, vector<128x256xf32>, vector<128x256xf32> -> vector<128x256xf32>
    %74 = arith.addf %65, %73 : vector<128x256xf32>
    %c8_i32_59 = arith.constant 8 : i32
    %75 = arith.addi %1, %c8_i32_59 : i32
    %c0_60 = arith.constant 0 : index
    %76 = arith.index_cast %75 : i32 to index
    %c4_61 = arith.constant 4 : index
    %c0_62 = arith.constant 0 : index
    %77 = vector.load %arg2[%c0_60, %76, %c4_61, %c0_62] : memref<1x28x28x128xf32, #tpu.memory_space<vmem>>, vector<1x8x16x128xf32>
    %78 = vector.shape_cast %77 : vector<1x8x16x128xf32> to vector<8x16x128xf32>
    %79 = vector.shape_cast %78 : vector<8x16x128xf32> to vector<128x128xf32>
    %c0_63 = arith.constant 0 : index
    %c6_64 = arith.constant 6 : index
    %c0_65 = arith.constant 0 : index
    %c0_66 = arith.constant 0 : index
    %80 = vector.load %arg4[%c0_63, %c6_64, %c0_65, %c0_66] : memref<3x9x128x256xf32, #tpu.memory_space<vmem>>, vector<1x1x128x256xf32>
    %81 = vector.shape_cast %80 : vector<1x1x128x256xf32> to vector<128x256xf32>
    %cst_67 = arith.constant dense<0.000000e+00> : vector<128x256xf32>
    %82 = tpu.matmul %79, %81, %cst_67 {dimension_numbers = #tpu.dot_dimension_numbers<[1], [0], [0], [1], [0, 0, 1, 1], [], []>} : vector<128x128xf32>, vector<128x256xf32>, vector<128x256xf32> -> vector<128x256xf32>
    %83 = arith.addf %74, %82 : vector<128x256xf32>
    %c8_i32_68 = arith.constant 8 : i32
    %84 = arith.addi %1, %c8_i32_68 : i32
    %c0_69 = arith.constant 0 : index
    %85 = arith.index_cast %84 : i32 to index
    %c6_70 = arith.constant 6 : index
    %c0_71 = arith.constant 0 : index
    %86 = vector.load %arg2[%c0_69, %85, %c6_70, %c0_71] : memref<1x28x28x128xf32, #tpu.memory_space<vmem>>, vector<1x8x16x128xf32>
    %87 = vector.shape_cast %86 : vector<1x8x16x128xf32> to vector<8x16x128xf32>
    %88 = vector.shape_cast %87 : vector<8x16x128xf32> to vector<128x128xf32>
    %c0_72 = arith.constant 0 : index
    %c7 = arith.constant 7 : index
    %c0_73 = arith.constant 0 : index
    %c0_74 = arith.constant 0 : index
    %89 = vector.load %arg4[%c0_72, %c7, %c0_73, %c0_74] : memref<3x9x128x256xf32, #tpu.memory_space<vmem>>, vector<1x1x128x256xf32>
    %90 = vector.shape_cast %89 : vector<1x1x128x256xf32> to vector<128x256xf32>
    %cst_75 = arith.constant dense<0.000000e+00> : vector<128x256xf32>
    %91 = tpu.matmul %88, %90, %cst_75 {dimension_numbers = #tpu.dot_dimension_numbers<[1], [0], [0], [1], [0, 0, 1, 1], [], []>} : vector<128x128xf32>, vector<128x256xf32>, vector<128x256xf32> -> vector<128x256xf32>
    %92 = arith.addf %83, %91 : vector<128x256xf32>
    %c8_i32_76 = arith.constant 8 : i32
    %93 = arith.addi %1, %c8_i32_76 : i32
    %c0_77 = arith.constant 0 : index
    %94 = arith.index_cast %93 : i32 to index
    %c8_78 = arith.constant 8 : index
    %c0_79 = arith.constant 0 : index
    %95 = vector.load %arg2[%c0_77, %94, %c8_78, %c0_79] : memref<1x28x28x128xf32, #tpu.memory_space<vmem>>, vector<1x8x16x128xf32>
    %96 = vector.shape_cast %95 : vector<1x8x16x128xf32> to vector<8x16x128xf32>
    %97 = vector.shape_cast %96 : vector<8x16x128xf32> to vector<128x128xf32>
    %c0_80 = arith.constant 0 : index
    %c8_81 = arith.constant 8 : index
    %c0_82 = arith.constant 0 : index
    %c0_83 = arith.constant 0 : index
    %98 = vector.load %arg4[%c0_80, %c8_81, %c0_82, %c0_83] : memref<3x9x128x256xf32, #tpu.memory_space<vmem>>, vector<1x1x128x256xf32>
    %99 = vector.shape_cast %98 : vector<1x1x128x256xf32> to vector<128x256xf32>
    %cst_84 = arith.constant dense<0.000000e+00> : vector<128x256xf32>
    %100 = tpu.matmul %97, %99, %cst_84 {dimension_numbers = #tpu.dot_dimension_numbers<[1], [0], [0], [1], [0, 0, 1, 1], [], []>} : vector<128x128xf32>, vector<128x256xf32>, vector<128x256xf32> -> vector<128x256xf32>
    %101 = arith.addf %92, %100 : vector<128x256xf32>
    %102 = vector.extract_strided_slice %2 {offsets = [1, 0], sizes = [1, 256], strides = [1, 1]} : vector<4x256xf32> to vector<1x256xf32>
    %103 = vector.broadcast %102 : vector<1x256xf32> to vector<128x256xf32>
    %104 = arith.mulf %101, %103 : vector<128x256xf32>
    %105 = vector.extract_strided_slice %3 {offsets = [1, 0], sizes = [1, 256], strides = [1, 1]} : vector<4x256xf32> to vector<1x256xf32>
    %106 = vector.broadcast %105 : vector<1x256xf32> to vector<128x256xf32>
    %107 = arith.addf %104, %106 : vector<128x256xf32>
    %cst_85 = arith.constant 0.000000e+00 : f32
    %108 = vector.broadcast %cst_85 : f32 to vector<128x256xf32>
    %109 = arith.maximumf %107, %108 : vector<128x256xf32>
    %c1_86 = arith.constant 1 : index
    %c0_87 = arith.constant 0 : index
    %c0_88 = arith.constant 0 : index
    %110 = vector.load %arg7[%c1_86, %c0_87, %c0_88] : memref<4x256x256xf32, #tpu.memory_space<vmem>>, vector<1x256x256xf32>
    %111 = vector.shape_cast %110 : vector<1x256x256xf32> to vector<256x256xf32>
    %cst_89 = arith.constant dense<0.000000e+00> : vector<128x256xf32>
    %112 = tpu.matmul %109, %111, %cst_89 {dimension_numbers = #tpu.dot_dimension_numbers<[1], [0], [0], [1], [0, 0, 1, 1], [], []>} : vector<128x256xf32>, vector<256x256xf32>, vector<128x256xf32> -> vector<128x256xf32>
    %113 = arith.addf %21, %112 : vector<128x256xf32>
    %c2_i32 = arith.constant 2 : i32
    %114 = arith.addi %1, %c2_i32 : i32
    %c0_90 = arith.constant 0 : index
    %115 = arith.index_cast %114 : i32 to index
    %c2_91 = arith.constant 2 : index
    %c0_92 = arith.constant 0 : index
    %116 = vector.load %arg2[%c0_90, %115, %c2_91, %c0_92] : memref<1x28x28x128xf32, #tpu.memory_space<vmem>>, vector<1x8x16x128xf32>
    %117 = vector.shape_cast %116 : vector<1x8x16x128xf32> to vector<8x16x128xf32>
    %118 = vector.shape_cast %117 : vector<8x16x128xf32> to vector<128x128xf32>
    %c1_93 = arith.constant 1 : index
    %c0_94 = arith.constant 0 : index
    %c0_95 = arith.constant 0 : index
    %c0_96 = arith.constant 0 : index
    %119 = vector.load %arg4[%c1_93, %c0_94, %c0_95, %c0_96] : memref<3x9x128x256xf32, #tpu.memory_space<vmem>>, vector<1x1x128x256xf32>
    %120 = vector.shape_cast %119 : vector<1x1x128x256xf32> to vector<128x256xf32>
    %cst_97 = arith.constant dense<0.000000e+00> : vector<128x256xf32>
    %121 = tpu.matmul %118, %120, %cst_97 {dimension_numbers = #tpu.dot_dimension_numbers<[1], [0], [0], [1], [0, 0, 1, 1], [], []>} : vector<128x128xf32>, vector<128x256xf32>, vector<128x256xf32> -> vector<128x256xf32>
    %c2_i32_98 = arith.constant 2 : i32
    %122 = arith.addi %1, %c2_i32_98 : i32
    %c0_99 = arith.constant 0 : index
    %123 = arith.index_cast %122 : i32 to index
    %c6_100 = arith.constant 6 : index
    %c0_101 = arith.constant 0 : index
    %124 = vector.load %arg2[%c0_99, %123, %c6_100, %c0_101] : memref<1x28x28x128xf32, #tpu.memory_space<vmem>>, vector<1x8x16x128xf32>
    %125 = vector.shape_cast %124 : vector<1x8x16x128xf32> to vector<8x16x128xf32>
    %126 = vector.shape_cast %125 : vector<8x16x128xf32> to vector<128x128xf32>
    %c1_102 = arith.constant 1 : index
    %c1_103 = arith.constant 1 : index
    %c0_104 = arith.constant 0 : index
    %c0_105 = arith.constant 0 : index
    %127 = vector.load %arg4[%c1_102, %c1_103, %c0_104, %c0_105] : memref<3x9x128x256xf32, #tpu.memory_space<vmem>>, vector<1x1x128x256xf32>
    %128 = vector.shape_cast %127 : vector<1x1x128x256xf32> to vector<128x256xf32>
    %cst_106 = arith.constant dense<0.000000e+00> : vector<128x256xf32>
    %129 = tpu.matmul %126, %128, %cst_106 {dimension_numbers = #tpu.dot_dimension_numbers<[1], [0], [0], [1], [0, 0, 1, 1], [], []>} : vector<128x128xf32>, vector<128x256xf32>, vector<128x256xf32> -> vector<128x256xf32>
    %130 = arith.addf %121, %129 : vector<128x256xf32>
    %c2_i32_107 = arith.constant 2 : i32
    %131 = arith.addi %1, %c2_i32_107 : i32
    %c0_108 = arith.constant 0 : index
    %132 = arith.index_cast %131 : i32 to index
    %c10 = arith.constant 10 : index
    %c0_109 = arith.constant 0 : index
    %133 = vector.load %arg2[%c0_108, %132, %c10, %c0_109] : memref<1x28x28x128xf32, #tpu.memory_space<vmem>>, vector<1x8x16x128xf32>
    %134 = vector.shape_cast %133 : vector<1x8x16x128xf32> to vector<8x16x128xf32>
    %135 = vector.shape_cast %134 : vector<8x16x128xf32> to vector<128x128xf32>
    %c1_110 = arith.constant 1 : index
    %c2_111 = arith.constant 2 : index
    %c0_112 = arith.constant 0 : index
    %c0_113 = arith.constant 0 : index
    %136 = vector.load %arg4[%c1_110, %c2_111, %c0_112, %c0_113] : memref<3x9x128x256xf32, #tpu.memory_space<vmem>>, vector<1x1x128x256xf32>
    %137 = vector.shape_cast %136 : vector<1x1x128x256xf32> to vector<128x256xf32>
    %cst_114 = arith.constant dense<0.000000e+00> : vector<128x256xf32>
    %138 = tpu.matmul %135, %137, %cst_114 {dimension_numbers = #tpu.dot_dimension_numbers<[1], [0], [0], [1], [0, 0, 1, 1], [], []>} : vector<128x128xf32>, vector<128x256xf32>, vector<128x256xf32> -> vector<128x256xf32>
    %139 = arith.addf %130, %138 : vector<128x256xf32>
    %c6_i32_115 = arith.constant 6 : i32
    %140 = arith.addi %1, %c6_i32_115 : i32
    %c0_116 = arith.constant 0 : index
    %141 = arith.index_cast %140 : i32 to index
    %c2_117 = arith.constant 2 : index
    %c0_118 = arith.constant 0 : index
    %142 = vector.load %arg2[%c0_116, %141, %c2_117, %c0_118] : memref<1x28x28x128xf32, #tpu.memory_space<vmem>>, vector<1x8x16x128xf32>
    %143 = vector.shape_cast %142 : vector<1x8x16x128xf32> to vector<8x16x128xf32>
    %144 = vector.shape_cast %143 : vector<8x16x128xf32> to vector<128x128xf32>
    %c1_119 = arith.constant 1 : index
    %c3_120 = arith.constant 3 : index
    %c0_121 = arith.constant 0 : index
    %c0_122 = arith.constant 0 : index
    %145 = vector.load %arg4[%c1_119, %c3_120, %c0_121, %c0_122] : memref<3x9x128x256xf32, #tpu.memory_space<vmem>>, vector<1x1x128x256xf32>
    %146 = vector.shape_cast %145 : vector<1x1x128x256xf32> to vector<128x256xf32>
    %cst_123 = arith.constant dense<0.000000e+00> : vector<128x256xf32>
    %147 = tpu.matmul %144, %146, %cst_123 {dimension_numbers = #tpu.dot_dimension_numbers<[1], [0], [0], [1], [0, 0, 1, 1], [], []>} : vector<128x128xf32>, vector<128x256xf32>, vector<128x256xf32> -> vector<128x256xf32>
    %148 = arith.addf %139, %147 : vector<128x256xf32>
    %c6_i32_124 = arith.constant 6 : i32
    %149 = arith.addi %1, %c6_i32_124 : i32
    %c0_125 = arith.constant 0 : index
    %150 = arith.index_cast %149 : i32 to index
    %c6_126 = arith.constant 6 : index
    %c0_127 = arith.constant 0 : index
    %151 = vector.load %arg2[%c0_125, %150, %c6_126, %c0_127] : memref<1x28x28x128xf32, #tpu.memory_space<vmem>>, vector<1x8x16x128xf32>
    %152 = vector.shape_cast %151 : vector<1x8x16x128xf32> to vector<8x16x128xf32>
    %153 = vector.shape_cast %152 : vector<8x16x128xf32> to vector<128x128xf32>
    %c1_128 = arith.constant 1 : index
    %c4_129 = arith.constant 4 : index
    %c0_130 = arith.constant 0 : index
    %c0_131 = arith.constant 0 : index
    %154 = vector.load %arg4[%c1_128, %c4_129, %c0_130, %c0_131] : memref<3x9x128x256xf32, #tpu.memory_space<vmem>>, vector<1x1x128x256xf32>
    %155 = vector.shape_cast %154 : vector<1x1x128x256xf32> to vector<128x256xf32>
    %cst_132 = arith.constant dense<0.000000e+00> : vector<128x256xf32>
    %156 = tpu.matmul %153, %155, %cst_132 {dimension_numbers = #tpu.dot_dimension_numbers<[1], [0], [0], [1], [0, 0, 1, 1], [], []>} : vector<128x128xf32>, vector<128x256xf32>, vector<128x256xf32> -> vector<128x256xf32>
    %157 = arith.addf %148, %156 : vector<128x256xf32>
    %c6_i32_133 = arith.constant 6 : i32
    %158 = arith.addi %1, %c6_i32_133 : i32
    %c0_134 = arith.constant 0 : index
    %159 = arith.index_cast %158 : i32 to index
    %c10_135 = arith.constant 10 : index
    %c0_136 = arith.constant 0 : index
    %160 = vector.load %arg2[%c0_134, %159, %c10_135, %c0_136] : memref<1x28x28x128xf32, #tpu.memory_space<vmem>>, vector<1x8x16x128xf32>
    %161 = vector.shape_cast %160 : vector<1x8x16x128xf32> to vector<8x16x128xf32>
    %162 = vector.shape_cast %161 : vector<8x16x128xf32> to vector<128x128xf32>
    %c1_137 = arith.constant 1 : index
    %c5_138 = arith.constant 5 : index
    %c0_139 = arith.constant 0 : index
    %c0_140 = arith.constant 0 : index
    %163 = vector.load %arg4[%c1_137, %c5_138, %c0_139, %c0_140] : memref<3x9x128x256xf32, #tpu.memory_space<vmem>>, vector<1x1x128x256xf32>
    %164 = vector.shape_cast %163 : vector<1x1x128x256xf32> to vector<128x256xf32>
    %cst_141 = arith.constant dense<0.000000e+00> : vector<128x256xf32>
    %165 = tpu.matmul %162, %164, %cst_141 {dimension_numbers = #tpu.dot_dimension_numbers<[1], [0], [0], [1], [0, 0, 1, 1], [], []>} : vector<128x128xf32>, vector<128x256xf32>, vector<128x256xf32> -> vector<128x256xf32>
    %166 = arith.addf %157, %165 : vector<128x256xf32>
    %c10_i32 = arith.constant 10 : i32
    %167 = arith.addi %1, %c10_i32 : i32
    %c0_142 = arith.constant 0 : index
    %168 = arith.index_cast %167 : i32 to index
    %c2_143 = arith.constant 2 : index
    %c0_144 = arith.constant 0 : index
    %169 = vector.load %arg2[%c0_142, %168, %c2_143, %c0_144] : memref<1x28x28x128xf32, #tpu.memory_space<vmem>>, vector<1x8x16x128xf32>
    %170 = vector.shape_cast %169 : vector<1x8x16x128xf32> to vector<8x16x128xf32>
    %171 = vector.shape_cast %170 : vector<8x16x128xf32> to vector<128x128xf32>
    %c1_145 = arith.constant 1 : index
    %c6_146 = arith.constant 6 : index
    %c0_147 = arith.constant 0 : index
    %c0_148 = arith.constant 0 : index
    %172 = vector.load %arg4[%c1_145, %c6_146, %c0_147, %c0_148] : memref<3x9x128x256xf32, #tpu.memory_space<vmem>>, vector<1x1x128x256xf32>
    %173 = vector.shape_cast %172 : vector<1x1x128x256xf32> to vector<128x256xf32>
    %cst_149 = arith.constant dense<0.000000e+00> : vector<128x256xf32>
    %174 = tpu.matmul %171, %173, %cst_149 {dimension_numbers = #tpu.dot_dimension_numbers<[1], [0], [0], [1], [0, 0, 1, 1], [], []>} : vector<128x128xf32>, vector<128x256xf32>, vector<128x256xf32> -> vector<128x256xf32>
    %175 = arith.addf %166, %174 : vector<128x256xf32>
    %c10_i32_150 = arith.constant 10 : i32
    %176 = arith.addi %1, %c10_i32_150 : i32
    %c0_151 = arith.constant 0 : index
    %177 = arith.index_cast %176 : i32 to index
    %c6_152 = arith.constant 6 : index
    %c0_153 = arith.constant 0 : index
    %178 = vector.load %arg2[%c0_151, %177, %c6_152, %c0_153] : memref<1x28x28x128xf32, #tpu.memory_space<vmem>>, vector<1x8x16x128xf32>
    %179 = vector.shape_cast %178 : vector<1x8x16x128xf32> to vector<8x16x128xf32>
    %180 = vector.shape_cast %179 : vector<8x16x128xf32> to vector<128x128xf32>
    %c1_154 = arith.constant 1 : index
    %c7_155 = arith.constant 7 : index
    %c0_156 = arith.constant 0 : index
    %c0_157 = arith.constant 0 : index
    %181 = vector.load %arg4[%c1_154, %c7_155, %c0_156, %c0_157] : memref<3x9x128x256xf32, #tpu.memory_space<vmem>>, vector<1x1x128x256xf32>
    %182 = vector.shape_cast %181 : vector<1x1x128x256xf32> to vector<128x256xf32>
    %cst_158 = arith.constant dense<0.000000e+00> : vector<128x256xf32>
    %183 = tpu.matmul %180, %182, %cst_158 {dimension_numbers = #tpu.dot_dimension_numbers<[1], [0], [0], [1], [0, 0, 1, 1], [], []>} : vector<128x128xf32>, vector<128x256xf32>, vector<128x256xf32> -> vector<128x256xf32>
    %184 = arith.addf %175, %183 : vector<128x256xf32>
    %c10_i32_159 = arith.constant 10 : i32
    %185 = arith.addi %1, %c10_i32_159 : i32
    %c0_160 = arith.constant 0 : index
    %186 = arith.index_cast %185 : i32 to index
    %c10_161 = arith.constant 10 : index
    %c0_162 = arith.constant 0 : index
    %187 = vector.load %arg2[%c0_160, %186, %c10_161, %c0_162] : memref<1x28x28x128xf32, #tpu.memory_space<vmem>>, vector<1x8x16x128xf32>
    %188 = vector.shape_cast %187 : vector<1x8x16x128xf32> to vector<8x16x128xf32>
    %189 = vector.shape_cast %188 : vector<8x16x128xf32> to vector<128x128xf32>
    %c1_163 = arith.constant 1 : index
    %c8_164 = arith.constant 8 : index
    %c0_165 = arith.constant 0 : index
    %c0_166 = arith.constant 0 : index
    %190 = vector.load %arg4[%c1_163, %c8_164, %c0_165, %c0_166] : memref<3x9x128x256xf32, #tpu.memory_space<vmem>>, vector<1x1x128x256xf32>
    %191 = vector.shape_cast %190 : vector<1x1x128x256xf32> to vector<128x256xf32>
    %cst_167 = arith.constant dense<0.000000e+00> : vector<128x256xf32>
    %192 = tpu.matmul %189, %191, %cst_167 {dimension_numbers = #tpu.dot_dimension_numbers<[1], [0], [0], [1], [0, 0, 1, 1], [], []>} : vector<128x128xf32>, vector<128x256xf32>, vector<128x256xf32> -> vector<128x256xf32>
    %193 = arith.addf %184, %192 : vector<128x256xf32>
    %194 = vector.extract_strided_slice %2 {offsets = [2, 0], sizes = [1, 256], strides = [1, 1]} : vector<4x256xf32> to vector<1x256xf32>
    %195 = vector.broadcast %194 : vector<1x256xf32> to vector<128x256xf32>
    %196 = arith.mulf %193, %195 : vector<128x256xf32>
    %197 = vector.extract_strided_slice %3 {offsets = [2, 0], sizes = [1, 256], strides = [1, 1]} : vector<4x256xf32> to vector<1x256xf32>
    %198 = vector.broadcast %197 : vector<1x256xf32> to vector<128x256xf32>
    %199 = arith.addf %196, %198 : vector<128x256xf32>
    %cst_168 = arith.constant 0.000000e+00 : f32
    %200 = vector.broadcast %cst_168 : f32 to vector<128x256xf32>
    %201 = arith.maximumf %199, %200 : vector<128x256xf32>
    %c2_169 = arith.constant 2 : index
    %c0_170 = arith.constant 0 : index
    %c0_171 = arith.constant 0 : index
    %202 = vector.load %arg7[%c2_169, %c0_170, %c0_171] : memref<4x256x256xf32, #tpu.memory_space<vmem>>, vector<1x256x256xf32>
    %203 = vector.shape_cast %202 : vector<1x256x256xf32> to vector<256x256xf32>
    %cst_172 = arith.constant dense<0.000000e+00> : vector<128x256xf32>
    %204 = tpu.matmul %201, %203, %cst_172 {dimension_numbers = #tpu.dot_dimension_numbers<[1], [0], [0], [1], [0, 0, 1, 1], [], []>} : vector<128x256xf32>, vector<256x256xf32>, vector<128x256xf32> -> vector<128x256xf32>
    %205 = arith.addf %113, %204 : vector<128x256xf32>
    %c0_i32 = arith.constant 0 : i32
    %206 = arith.addi %1, %c0_i32 : i32
    %c0_173 = arith.constant 0 : index
    %207 = arith.index_cast %206 : i32 to index
    %c0_174 = arith.constant 0 : index
    %c0_175 = arith.constant 0 : index
    %208 = vector.load %arg2[%c0_173, %207, %c0_174, %c0_175] : memref<1x28x28x128xf32, #tpu.memory_space<vmem>>, vector<1x8x16x128xf32>
    %209 = vector.shape_cast %208 : vector<1x8x16x128xf32> to vector<8x16x128xf32>
    %210 = vector.shape_cast %209 : vector<8x16x128xf32> to vector<128x128xf32>
    %c2_176 = arith.constant 2 : index
    %c0_177 = arith.constant 0 : index
    %c0_178 = arith.constant 0 : index
    %c0_179 = arith.constant 0 : index
    %211 = vector.load %arg4[%c2_176, %c0_177, %c0_178, %c0_179] : memref<3x9x128x256xf32, #tpu.memory_space<vmem>>, vector<1x1x128x256xf32>
    %212 = vector.shape_cast %211 : vector<1x1x128x256xf32> to vector<128x256xf32>
    %cst_180 = arith.constant dense<0.000000e+00> : vector<128x256xf32>
    %213 = tpu.matmul %210, %212, %cst_180 {dimension_numbers = #tpu.dot_dimension_numbers<[1], [0], [0], [1], [0, 0, 1, 1], [], []>} : vector<128x128xf32>, vector<128x256xf32>, vector<128x256xf32> -> vector<128x256xf32>
    %c0_i32_181 = arith.constant 0 : i32
    %214 = arith.addi %1, %c0_i32_181 : i32
    %c0_182 = arith.constant 0 : index
    %215 = arith.index_cast %214 : i32 to index
    %c6_183 = arith.constant 6 : index
    %c0_184 = arith.constant 0 : index
    %216 = vector.load %arg2[%c0_182, %215, %c6_183, %c0_184] : memref<1x28x28x128xf32, #tpu.memory_space<vmem>>, vector<1x8x16x128xf32>
    %217 = vector.shape_cast %216 : vector<1x8x16x128xf32> to vector<8x16x128xf32>
    %218 = vector.shape_cast %217 : vector<8x16x128xf32> to vector<128x128xf32>
    %c2_185 = arith.constant 2 : index
    %c1_186 = arith.constant 1 : index
    %c0_187 = arith.constant 0 : index
    %c0_188 = arith.constant 0 : index
    %219 = vector.load %arg4[%c2_185, %c1_186, %c0_187, %c0_188] : memref<3x9x128x256xf32, #tpu.memory_space<vmem>>, vector<1x1x128x256xf32>
    %220 = vector.shape_cast %219 : vector<1x1x128x256xf32> to vector<128x256xf32>
    %cst_189 = arith.constant dense<0.000000e+00> : vector<128x256xf32>
    %221 = tpu.matmul %218, %220, %cst_189 {dimension_numbers = #tpu.dot_dimension_numbers<[1], [0], [0], [1], [0, 0, 1, 1], [], []>} : vector<128x128xf32>, vector<128x256xf32>, vector<128x256xf32> -> vector<128x256xf32>
    %222 = arith.addf %213, %221 : vector<128x256xf32>
    %c0_i32_190 = arith.constant 0 : i32
    %223 = arith.addi %1, %c0_i32_190 : i32
    %c0_191 = arith.constant 0 : index
    %224 = arith.index_cast %223 : i32 to index
    %c12 = arith.constant 12 : index
    %c0_192 = arith.constant 0 : index
    %225 = vector.load %arg2[%c0_191, %224, %c12, %c0_192] : memref<1x28x28x128xf32, #tpu.memory_space<vmem>>, vector<1x8x16x128xf32>
    %226 = vector.shape_cast %225 : vector<1x8x16x128xf32> to vector<8x16x128xf32>
    %227 = vector.shape_cast %226 : vector<8x16x128xf32> to vector<128x128xf32>
    %c2_193 = arith.constant 2 : index
    %c2_194 = arith.constant 2 : index
    %c0_195 = arith.constant 0 : index
    %c0_196 = arith.constant 0 : index
    %228 = vector.load %arg4[%c2_193, %c2_194, %c0_195, %c0_196] : memref<3x9x128x256xf32, #tpu.memory_space<vmem>>, vector<1x1x128x256xf32>
    %229 = vector.shape_cast %228 : vector<1x1x128x256xf32> to vector<128x256xf32>
    %cst_197 = arith.constant dense<0.000000e+00> : vector<128x256xf32>
    %230 = tpu.matmul %227, %229, %cst_197 {dimension_numbers = #tpu.dot_dimension_numbers<[1], [0], [0], [1], [0, 0, 1, 1], [], []>} : vector<128x128xf32>, vector<128x256xf32>, vector<128x256xf32> -> vector<128x256xf32>
    %231 = arith.addf %222, %230 : vector<128x256xf32>
    %c6_i32_198 = arith.constant 6 : i32
    %232 = arith.addi %1, %c6_i32_198 : i32
    %c0_199 = arith.constant 0 : index
    %233 = arith.index_cast %232 : i32 to index
    %c0_200 = arith.constant 0 : index
    %c0_201 = arith.constant 0 : index
    %234 = vector.load %arg2[%c0_199, %233, %c0_200, %c0_201] : memref<1x28x28x128xf32, #tpu.memory_space<vmem>>, vector<1x8x16x128xf32>
    %235 = vector.shape_cast %234 : vector<1x8x16x128xf32> to vector<8x16x128xf32>
    %236 = vector.shape_cast %235 : vector<8x16x128xf32> to vector<128x128xf32>
    %c2_202 = arith.constant 2 : index
    %c3_203 = arith.constant 3 : index
    %c0_204 = arith.constant 0 : index
    %c0_205 = arith.constant 0 : index
    %237 = vector.load %arg4[%c2_202, %c3_203, %c0_204, %c0_205] : memref<3x9x128x256xf32, #tpu.memory_space<vmem>>, vector<1x1x128x256xf32>
    %238 = vector.shape_cast %237 : vector<1x1x128x256xf32> to vector<128x256xf32>
    %cst_206 = arith.constant dense<0.000000e+00> : vector<128x256xf32>
    %239 = tpu.matmul %236, %238, %cst_206 {dimension_numbers = #tpu.dot_dimension_numbers<[1], [0], [0], [1], [0, 0, 1, 1], [], []>} : vector<128x128xf32>, vector<128x256xf32>, vector<128x256xf32> -> vector<128x256xf32>
    %240 = arith.addf %231, %239 : vector<128x256xf32>
    %c6_i32_207 = arith.constant 6 : i32
    %241 = arith.addi %1, %c6_i32_207 : i32
    %c0_208 = arith.constant 0 : index
    %242 = arith.index_cast %241 : i32 to index
    %c6_209 = arith.constant 6 : index
    %c0_210 = arith.constant 0 : index
    %243 = vector.load %arg2[%c0_208, %242, %c6_209, %c0_210] : memref<1x28x28x128xf32, #tpu.memory_space<vmem>>, vector<1x8x16x128xf32>
    %244 = vector.shape_cast %243 : vector<1x8x16x128xf32> to vector<8x16x128xf32>
    %245 = vector.shape_cast %244 : vector<8x16x128xf32> to vector<128x128xf32>
    %c2_211 = arith.constant 2 : index
    %c4_212 = arith.constant 4 : index
    %c0_213 = arith.constant 0 : index
    %c0_214 = arith.constant 0 : index
    %246 = vector.load %arg4[%c2_211, %c4_212, %c0_213, %c0_214] : memref<3x9x128x256xf32, #tpu.memory_space<vmem>>, vector<1x1x128x256xf32>
    %247 = vector.shape_cast %246 : vector<1x1x128x256xf32> to vector<128x256xf32>
    %cst_215 = arith.constant dense<0.000000e+00> : vector<128x256xf32>
    %248 = tpu.matmul %245, %247, %cst_215 {dimension_numbers = #tpu.dot_dimension_numbers<[1], [0], [0], [1], [0, 0, 1, 1], [], []>} : vector<128x128xf32>, vector<128x256xf32>, vector<128x256xf32> -> vector<128x256xf32>
    %249 = arith.addf %240, %248 : vector<128x256xf32>
    %c6_i32_216 = arith.constant 6 : i32
    %250 = arith.addi %1, %c6_i32_216 : i32
    %c0_217 = arith.constant 0 : index
    %251 = arith.index_cast %250 : i32 to index
    %c12_218 = arith.constant 12 : index
    %c0_219 = arith.constant 0 : index
    %252 = vector.load %arg2[%c0_217, %251, %c12_218, %c0_219] : memref<1x28x28x128xf32, #tpu.memory_space<vmem>>, vector<1x8x16x128xf32>
    %253 = vector.shape_cast %252 : vector<1x8x16x128xf32> to vector<8x16x128xf32>
    %254 = vector.shape_cast %253 : vector<8x16x128xf32> to vector<128x128xf32>
    %c2_220 = arith.constant 2 : index
    %c5_221 = arith.constant 5 : index
    %c0_222 = arith.constant 0 : index
    %c0_223 = arith.constant 0 : index
    %255 = vector.load %arg4[%c2_220, %c5_221, %c0_222, %c0_223] : memref<3x9x128x256xf32, #tpu.memory_space<vmem>>, vector<1x1x128x256xf32>
    %256 = vector.shape_cast %255 : vector<1x1x128x256xf32> to vector<128x256xf32>
    %cst_224 = arith.constant dense<0.000000e+00> : vector<128x256xf32>
    %257 = tpu.matmul %254, %256, %cst_224 {dimension_numbers = #tpu.dot_dimension_numbers<[1], [0], [0], [1], [0, 0, 1, 1], [], []>} : vector<128x128xf32>, vector<128x256xf32>, vector<128x256xf32> -> vector<128x256xf32>
    %258 = arith.addf %249, %257 : vector<128x256xf32>
    %c12_i32 = arith.constant 12 : i32
    %259 = arith.addi %1, %c12_i32 : i32
    %c0_225 = arith.constant 0 : index
    %260 = arith.index_cast %259 : i32 to index
    %c0_226 = arith.constant 0 : index
    %c0_227 = arith.constant 0 : index
    %261 = vector.load %arg2[%c0_225, %260, %c0_226, %c0_227] : memref<1x28x28x128xf32, #tpu.memory_space<vmem>>, vector<1x8x16x128xf32>
    %262 = vector.shape_cast %261 : vector<1x8x16x128xf32> to vector<8x16x128xf32>
    %263 = vector.shape_cast %262 : vector<8x16x128xf32> to vector<128x128xf32>
    %c2_228 = arith.constant 2 : index
    %c6_229 = arith.constant 6 : index
    %c0_230 = arith.constant 0 : index
    %c0_231 = arith.constant 0 : index
    %264 = vector.load %arg4[%c2_228, %c6_229, %c0_230, %c0_231] : memref<3x9x128x256xf32, #tpu.memory_space<vmem>>, vector<1x1x128x256xf32>
    %265 = vector.shape_cast %264 : vector<1x1x128x256xf32> to vector<128x256xf32>
    %cst_232 = arith.constant dense<0.000000e+00> : vector<128x256xf32>
    %266 = tpu.matmul %263, %265, %cst_232 {dimension_numbers = #tpu.dot_dimension_numbers<[1], [0], [0], [1], [0, 0, 1, 1], [], []>} : vector<128x128xf32>, vector<128x256xf32>, vector<128x256xf32> -> vector<128x256xf32>
    %267 = arith.addf %258, %266 : vector<128x256xf32>
    %c12_i32_233 = arith.constant 12 : i32
    %268 = arith.addi %1, %c12_i32_233 : i32
    %c0_234 = arith.constant 0 : index
    %269 = arith.index_cast %268 : i32 to index
    %c6_235 = arith.constant 6 : index
    %c0_236 = arith.constant 0 : index
    %270 = vector.load %arg2[%c0_234, %269, %c6_235, %c0_236] : memref<1x28x28x128xf32, #tpu.memory_space<vmem>>, vector<1x8x16x128xf32>
    %271 = vector.shape_cast %270 : vector<1x8x16x128xf32> to vector<8x16x128xf32>
    %272 = vector.shape_cast %271 : vector<8x16x128xf32> to vector<128x128xf32>
    %c2_237 = arith.constant 2 : index
    %c7_238 = arith.constant 7 : index
    %c0_239 = arith.constant 0 : index
    %c0_240 = arith.constant 0 : index
    %273 = vector.load %arg4[%c2_237, %c7_238, %c0_239, %c0_240] : memref<3x9x128x256xf32, #tpu.memory_space<vmem>>, vector<1x1x128x256xf32>
    %274 = vector.shape_cast %273 : vector<1x1x128x256xf32> to vector<128x256xf32>
    %cst_241 = arith.constant dense<0.000000e+00> : vector<128x256xf32>
    %275 = tpu.matmul %272, %274, %cst_241 {dimension_numbers = #tpu.dot_dimension_numbers<[1], [0], [0], [1], [0, 0, 1, 1], [], []>} : vector<128x128xf32>, vector<128x256xf32>, vector<128x256xf32> -> vector<128x256xf32>
    %276 = arith.addf %267, %275 : vector<128x256xf32>
    %c12_i32_242 = arith.constant 12 : i32
    %277 = arith.addi %1, %c12_i32_242 : i32
    %c0_243 = arith.constant 0 : index
    %278 = arith.index_cast %277 : i32 to index
    %c12_244 = arith.constant 12 : index
    %c0_245 = arith.constant 0 : index
    %279 = vector.load %arg2[%c0_243, %278, %c12_244, %c0_245] : memref<1x28x28x128xf32, #tpu.memory_space<vmem>>, vector<1x8x16x128xf32>
    %280 = vector.shape_cast %279 : vector<1x8x16x128xf32> to vector<8x16x128xf32>
    %281 = vector.shape_cast %280 : vector<8x16x128xf32> to vector<128x128xf32>
    %c2_246 = arith.constant 2 : index
    %c8_247 = arith.constant 8 : index
    %c0_248 = arith.constant 0 : index
    %c0_249 = arith.constant 0 : index
    %282 = vector.load %arg4[%c2_246, %c8_247, %c0_248, %c0_249] : memref<3x9x128x256xf32, #tpu.memory_space<vmem>>, vector<1x1x128x256xf32>
    %283 = vector.shape_cast %282 : vector<1x1x128x256xf32> to vector<128x256xf32>
    %cst_250 = arith.constant dense<0.000000e+00> : vector<128x256xf32>
    %284 = tpu.matmul %281, %283, %cst_250 {dimension_numbers = #tpu.dot_dimension_numbers<[1], [0], [0], [1], [0, 0, 1, 1], [], []>} : vector<128x128xf32>, vector<128x256xf32>, vector<128x256xf32> -> vector<128x256xf32>
    %285 = arith.addf %276, %284 : vector<128x256xf32>
    %286 = vector.extract_strided_slice %2 {offsets = [3, 0], sizes = [1, 256], strides = [1, 1]} : vector<4x256xf32> to vector<1x256xf32>
    %287 = vector.broadcast %286 : vector<1x256xf32> to vector<128x256xf32>
    %288 = arith.mulf %285, %287 : vector<128x256xf32>
    %289 = vector.extract_strided_slice %3 {offsets = [3, 0], sizes = [1, 256], strides = [1, 1]} : vector<4x256xf32> to vector<1x256xf32>
    %290 = vector.broadcast %289 : vector<1x256xf32> to vector<128x256xf32>
    %291 = arith.addf %288, %290 : vector<128x256xf32>
    %cst_251 = arith.constant 0.000000e+00 : f32
    %292 = vector.broadcast %cst_251 : f32 to vector<128x256xf32>
    %293 = arith.maximumf %291, %292 : vector<128x256xf32>
    %c3_252 = arith.constant 3 : index
    %c0_253 = arith.constant 0 : index
    %c0_254 = arith.constant 0 : index
    %294 = vector.load %arg7[%c3_252, %c0_253, %c0_254] : memref<4x256x256xf32, #tpu.memory_space<vmem>>, vector<1x256x256xf32>
    %295 = vector.shape_cast %294 : vector<1x256x256xf32> to vector<256x256xf32>
    %cst_255 = arith.constant dense<0.000000e+00> : vector<128x256xf32>
    %296 = tpu.matmul %293, %295, %cst_255 {dimension_numbers = #tpu.dot_dimension_numbers<[1], [0], [0], [1], [0, 0, 1, 1], [], []>} : vector<128x256xf32>, vector<256x256xf32>, vector<128x256xf32> -> vector<128x256xf32>
    %297 = arith.addf %205, %296 : vector<128x256xf32>
    %c0_256 = arith.constant 0 : index
    %c0_257 = arith.constant 0 : index
    %298 = vector.load %arg8[%c0_256, %c0_257] : memref<1x256xf32, #tpu.memory_space<vmem>>, vector<1x256xf32>
    %299 = vector.broadcast %298 : vector<1x256xf32> to vector<128x256xf32>
    %300 = arith.mulf %297, %299 : vector<128x256xf32>
    %c0_258 = arith.constant 0 : index
    %c0_259 = arith.constant 0 : index
    %c0_260 = arith.constant 0 : index
    %301 = vector.load %arg9[%c0_258, %c0_259, %c0_260] : memref<1x1x256xf32, #tpu.memory_space<vmem>>, vector<1x1x256xf32>
    %302 = vector.shape_cast %301 : vector<1x1x256xf32> to vector<1x256xf32>
    %303 = vector.broadcast %302 : vector<1x256xf32> to vector<128x256xf32>
    %304 = arith.addf %300, %303 : vector<128x256xf32>
    %cst_261 = arith.constant 0.000000e+00 : f32
    %305 = vector.broadcast %cst_261 : f32 to vector<128x256xf32>
    %306 = arith.maximumf %304, %305 : vector<128x256xf32>
    %307 = vector.shape_cast %306 : vector<128x256xf32> to vector<8x16x256xf32>
    %c0_262 = arith.constant 0 : index
    %c0_263 = arith.constant 0 : index
    %c0_264 = arith.constant 0 : index
    %c0_265 = arith.constant 0 : index
    %308 = vector.load %arg10[%c0_262, %c0_263, %c0_264, %c0_265] : memref<1x8x16x256xf32, #tpu.memory_space<vmem>>, vector<1x8x16x256xf32>
    %309 = vector.shape_cast %308 : vector<1x8x16x256xf32> to vector<8x16x256xf32>
    %310 = vector.shape_cast %307 : vector<8x16x256xf32> to vector<1x8x16x256xf32>
    tpu.vector_store %arg10[%c0_262, %c0_263, %c0_264, %c0_265], %310 {strides = array<i32>} : memref<1x8x16x256xf32, #tpu.memory_space<vmem>>, vector<1x8x16x256xf32>,
    return
  }
  func.func @transform_0(%arg0: i32, %arg1: i32) -> (i32, i32, i32, i32) {
    %c0_i32 = arith.constant 0 : i32
    %c0_i32_0 = arith.constant 0 : i32
    %c0_i32_1 = arith.constant 0 : i32
    %c0_i32_2 = arith.constant 0 : i32
    return %arg0, %c0_i32, %c0_i32_0, %c0_i32_1 : i32, i32, i32, i32
  }
  func.func @transform_1(%arg0: i32, %arg1: i32) -> (i32, i32) {
    %c0_i32 = arith.constant 0 : i32
    %c0_i32_0 = arith.constant 0 : i32
    %c0_i32_1 = arith.constant 0 : i32
    return %c0_i32, %c0_i32_0 : i32, i32
  }
  func.func @transform_2(%arg0: i32, %arg1: i32) -> (i32, i32, i32, i32) {
    %c0_i32 = arith.constant 0 : i32
    %c0_i32_0 = arith.constant 0 : i32
    %c0_i32_1 = arith.constant 0 : i32
    %c0_i32_2 = arith.constant 0 : i32
    %c0_i32_3 = arith.constant 0 : i32
    return %c0_i32, %c0_i32_0, %c0_i32_1, %c0_i32_2 : i32, i32, i32, i32
  }
  func.func @transform_3(%arg0: i32, %arg1: i32) -> (i32, i32) {
    %c0_i32 = arith.constant 0 : i32
    %c0_i32_0 = arith.constant 0 : i32
    %c0_i32_1 = arith.constant 0 : i32
    return %c0_i32, %c0_i32_0 : i32, i32
  }
  func.func @transform_4(%arg0: i32, %arg1: i32) -> (i32, i32) {
    %c0_i32 = arith.constant 0 : i32
    %c0_i32_0 = arith.constant 0 : i32
    %c0_i32_1 = arith.constant 0 : i32
    return %c0_i32, %c0_i32_0 : i32, i32
  }
  func.func @transform_5(%arg0: i32, %arg1: i32) -> (i32, i32, i32) {
    %c0_i32 = arith.constant 0 : i32
    %c0_i32_0 = arith.constant 0 : i32
    %c0_i32_1 = arith.constant 0 : i32
    %c0_i32_2 = arith.constant 0 : i32
    return %c0_i32, %c0_i32_0, %c0_i32_1 : i32, i32, i32
  }
  func.func @transform_6(%arg0: i32, %arg1: i32) -> (i32, i32) {
    %c0_i32 = arith.constant 0 : i32
    %c0_i32_0 = arith.constant 0 : i32
    %c0_i32_1 = arith.constant 0 : i32
    return %c0_i32, %c0_i32_0 : i32, i32
  }
  func.func @transform_7(%arg0: i32, %arg1: i32) -> (i32, i32, i32) {
    %c0_i32 = arith.constant 0 : i32
    %c0_i32_0 = arith.constant 0 : i32
    %c0_i32_1 = arith.constant 0 : i32
    return %arg0, %c0_i32, %c0_i32_0 : i32, i32, i32
  }
  func.func @transform_8(%arg0: i32, %arg1: i32) -> (i32, i32, i32, i32) {
    %c0_i32 = arith.constant 0 : i32
    %c0_i32_0 = arith.constant 0 : i32
    %c0_i32_1 = arith.constant 0 : i32
    return %arg0, %arg1, %c0_i32, %c0_i32_0 : i32, i32, i32, i32
  }
}

</mosaic_0001>

<llo_original>
// kernel: aspp_forward.1
$region0: #{aspp_forward.1}
  #allocation0 [shape = 'u32[]', space=smem, size = 0x4, offset = 0x4, fixed_abs, tag = 'smem constant byte address 0x4 - core index']
  #allocation1 [shape = 'u32[144,128]{1,0:T(1,128)}', space=vmem, size = 0x12000, scoped, tag = 'internal scratch']
  %s0 = inlined_call_operand.vmem [shape: f32[2,28,28,128], index: 0, kind: input, shape index: {}]
  %s1 = inlined_call_operand.vmem [shape: f32[128,256], index: 1, kind: input, shape index: {}]
  %s2 = inlined_call_operand.vmem [shape: f32[3,9,128,256], index: 2, kind: input, shape index: {}]
  %s3 = inlined_call_operand.vmem [shape: f32[4,256], index: 3, kind: input, shape index: {}]
  %s4 = inlined_call_operand.vmem [shape: f32[4,256], index: 4, kind: input, shape index: {}]
  %s5 = inlined_call_operand.vmem [shape: f32[4,256,256], index: 5, kind: input, shape index: {}]
  %s6 = inlined_call_operand.vmem [shape: f32[1,256], index: 6, kind: input, shape index: {}]
  %s7 = inlined_call_operand.vmem [shape: f32[2,1,256], index: 7, kind: input, shape index: {}]
  %s8 = inlined_call_operand.hbm [shape: f32[2,16,16,256], index: 8, kind: output, shape index: {}]
  %s9 = sld [smem:[#allocation0]]
  $region65: #{aspp_forward.1} parent=0
    _
  %s11 = ssub.s32 1, %s9
  %s12 = scalar_select 0, %s11, %s9
  $region1: #{aspp_forward.1} parent=0
    #allocation2 [shape = 'u8[262144]{0}', space=vmem, size = 0x40000, scoped, tag = 'output window, operand 0']
    #allocation3 [shape = 's32[2]{0}', space=sflag, size = 0x8, scoped, tag = 'scoped memory for aspp_forward.1']
    %13 = vsyncpa [#allocation3], 0
    %s14 = scalar_lea.sflag [#allocation3], 1
    %15 = vsyncpa %s14, 0
    loop: start=0, step=1, limit=6
    $region2: #{aspp_forward.1} parent=1 // loop_pre_header
      _
    $region3: #{aspp_forward.1} parent=1 // loop_header
      %s17 = sphi 0, %s21
      %p18 = scmp.ge.s32.totalorder %s17, 6
      %s24 = sphi 0, %s36
      %s25 = sphi 0, %s32
      %s26 = sphi 0, %s24
      %s27 = sphi 0, %s25
      %s28 = sphi 0, %s26
      %s29 = sphi 0, %s27
      %s39 = sphi 0, %s41
      %s42 = sphi 0, %s39
      %s43 = sphi 0, %s42
      %s59 = sphi 0, %s43
      %s63 = sphi 0, %s63
      %s65 = sphi 0, %s63
      %s66 = sphi 0, %s65
      %s80 = sphi 0, %s66
      %s84 = sphi 0, %s84
      %s86 = sphi 0, %s84
      %s87 = sphi 0, %s86
      %s101 = sphi 0, %s87
      %s105 = sphi 0, %s105
      %s107 = sphi 0, %s105
      %s108 = sphi 0, %s107
      %s122 = sphi 0, %s108
      %s126 = sphi 0, %s126
      %s128 = sphi 0, %s126
      %s129 = sphi 0, %s128
      %s143 = sphi 0, %s129
      %s147 = sphi 0, %s147
      %s149 = sphi 0, %s147
      %s150 = sphi 0, %s149
      %s164 = sphi 0, %s150
      %s168 = sphi 0, %s168
      %s170 = sphi 0, %s168
      %s171 = sphi 0, %s170
      %s185 = sphi 0, %s171
      %s191 = sphi 0, %s193
      %s194 = sphi 0, %s191
      %s195 = sphi 0, %s194
      %s211 = sphi 0, %s195
      %s219 = sphi 0, %s221
      %s222 = sphi 0, %s219
      %s223 = sphi 0, %s222
      %s239 = sphi 0, %s223
    $region4: #{aspp_forward.1} parent=1 // loop_header_branch
      %20 = sbr.rel (%p18) target = $region8
    $region5: #{aspp_forward.1} parent=1 // loop_body
      %s22 = ssub.s32 %s17, 1
      %s23 = ssub.s32 %s17, 2
      %s30 = sadd.s32 1, %s25
      %p31 = scmp.ge.s32.totalorder %s30, 2
      %s32 = scalar_select %p31, 0, %s30
      %s33 = sadd.s32 1, %s24
      %s34 = scalar_select %p31, %s33, %s24
      %p35 = scmp.ge.s32.totalorder %s34, 2
      %s36 = scalar_select %p35, 0, %s34
      %s37 = ssub.s32 %s24, %s36
      %p38 = scmp.eq.s32.totalorder %s37, 0
      %s40 = sadd.s32 %s39, 1
      %s41 = scalar_select %p38, %s39, %s40
      %p44 = pneg %p38
      %p45 = scmp.eq.s32.totalorder %s17, 3
      %p46 = por %p44, %p45
      %p47 = scmp.ne.s32.totalorder %s39, %s42
      %p48 = scmp.eq.s32.totalorder %s17, 0
      %p49 = por %p47, %p48
      %p50 = scmp.ne.s32.totalorder %s39, %s42
      %p51 = scmp.eq.s32.totalorder %s22, 3
      %p52 = por %p50, %p51
      %p53 = scmp.ne.s32.totalorder %s42, %s43
      %p54 = scmp.eq.s32.totalorder %s22, 0
      %p55 = por %p53, %p54
      %p56 = scmp.ne.s32.totalorder %s42, %s43
      %p57 = scmp.eq.s32.totalorder %s23, 3
      %p58 = por %p56, %p57
      %p60 = scmp.ne.s32.totalorder %s43, %s59
      %p61 = scmp.eq.s32.totalorder %s23, 0
      %p62 = por %p60, %p61
      %s64 = sadd.s32 %s63, 1
      %p67 = scmp.eq.s32.totalorder %s17, 3
      %p68 = scmp.ne.s32.totalorder %s63, %s65
      %p69 = scmp.eq.s32.totalorder %s17, 0
      %p70 = por %p68, %p69
      %p71 = scmp.ne.s32.totalorder %s63, %s65
      %p72 = scmp.eq.s32.totalorder %s22, 3
      %p73 = por %p71, %p72
      %p74 = scmp.ne.s32.totalorder %s65, %s66
      %p75 = scmp.eq.s32.totalorder %s22, 0
      %p76 = por %p74, %p75
      %p77 = scmp.ne.s32.totalorder %s65, %s66
      %p78 = scmp.eq.s32.totalorder %s23, 3
      %p79 = por %p77, %p78
      %p81 = scmp.ne.s32.totalorder %s66, %s80
      %p82 = scmp.eq.s32.totalorder %s23, 0
      %p83 = por %p81, %p82
      %s85 = sadd.s32 %s84, 1
      %p88 = scmp.eq.s32.totalorder %s17, 3
      %p89 = scmp.ne.s32.totalorder %s84, %s86
      %p90 = scmp.eq.s32.totalorder %s17, 0
      %p91 = por %p89, %p90
      %p92 = scmp.ne.s32.totalorder %s84, %s86
      %p93 = scmp.eq.s32.totalorder %s22, 3
      %p94 = por %p92, %p93
      %p95 = scmp.ne.s32.totalorder %s86, %s87
      %p96 = scmp.eq.s32.totalorder %s22, 0
      %p97 = por %p95, %p96
      %p98 = scmp.ne.s32.totalorder %s86, %s87
      %p99 = scmp.eq.s32.totalorder %s23, 3
      %p100 = por %p98, %p99
      %p102 = scmp.ne.s32.totalorder %s87, %s101
      %p103 = scmp.eq.s32.totalorder %s23, 0
      %p104 = por %p102, %p103
      %s106 = sadd.s32 %s105, 1
      %p109 = scmp.eq.s32.totalorder %s17, 3
      %p110 = scmp.ne.s32.totalorder %s105, %s107
      %p111 = scmp.eq.s32.totalorder %s17, 0
      %p112 = por %p110, %p111
      %p113 = scmp.ne.s32.totalorder %s105, %s107
      %p114 = scmp.eq.s32.totalorder %s22, 3
      %p115 = por %p113, %p114
      %p116 = scmp.ne.s32.totalorder %s107, %s108
      %p117 = scmp.eq.s32.totalorder %s22, 0
      %p118 = por %p116, %p117
      %p119 = scmp.ne.s32.totalorder %s107, %s108
      %p120 = scmp.eq.s32.totalorder %s23, 3
      %p121 = por %p119, %p120
      %p123 = scmp.ne.s32.totalorder %s108, %s122
      %p124 = scmp.eq.s32.totalorder %s23, 0
      %p125 = por %p123, %p124
      %s127 = sadd.s32 %s126, 1
      %p130 = scmp.eq.s32.totalorder %s17, 3
      %p131 = scmp.ne.s32.totalorder %s126, %s128
      %p132 = scmp.eq.s32.totalorder %s17, 0
      %p133 = por %p131, %p132
      %p134 = scmp.ne.s32.totalorder %s126, %s128
      %p135 = scmp.eq.s32.totalorder %s22, 3
      %p136 = por %p134, %p135
      %p137 = scmp.ne.s32.totalorder %s128, %s129
      %p138 = scmp.eq.s32.totalorder %s22, 0
      %p139 = por %p137, %p138
      %p140 = scmp.ne.s32.totalorder %s128, %s129
      %p141 = scmp.eq.s32.totalorder %s23, 3
      %p142 = por %p140, %p141
      %p144 = scmp.ne.s32.totalorder %s129, %s143
      %p145 = scmp.eq.s32.totalorder %s23, 0
      %p146 = por %p144, %p145
      %s148 = sadd.s32 %s147, 1
      %p151 = scmp.eq.s32.totalorder %s17, 3
      %p152 = scmp.ne.s32.totalorder %s147, %s149
      %p153 = scmp.eq.s32.totalorder %s17, 0
      %p154 = por %p152, %p153
      %p155 = scmp.ne.s32.totalorder %s147, %s149
      %p156 = scmp.eq.s32.totalorder %s22, 3
      %p157 = por %p155, %p156
      %p158 = scmp.ne.s32.totalorder %s149, %s150
      %p159 = scmp.eq.s32.totalorder %s22, 0
      %p160 = por %p158, %p159
      %p161 = scmp.ne.s32.totalorder %s149, %s150
      %p162 = scmp.eq.s32.totalorder %s23, 3
      %p163 = por %p161, %p162
      %p165 = scmp.ne.s32.totalorder %s150, %s164
      %p166 = scmp.eq.s32.totalorder %s23, 0
      %p167 = por %p165, %p166
      %s169 = sadd.s32 %s168, 1
      %p172 = scmp.eq.s32.totalorder %s17, 3
      %p173 = scmp.ne.s32.totalorder %s168, %s170
      %p174 = scmp.eq.s32.totalorder %s17, 0
      %p175 = por %p173, %p174
      %p176 = scmp.ne.s32.totalorder %s168, %s170
      %p177 = scmp.eq.s32.totalorder %s22, 3
      %p178 = por %p176, %p177
      %p179 = scmp.ne.s32.totalorder %s170, %s171
      %p180 = scmp.eq.s32.totalorder %s22, 0
      %p181 = por %p179, %p180
      %p182 = scmp.ne.s32.totalorder %s170, %s171
      %p183 = scmp.eq.s32.totalorder %s23, 3
      %p184 = por %p182, %p183
      %p186 = scmp.ne.s32.totalorder %s171, %s185
      %p187 = scmp.eq.s32.totalorder %s23, 0
      %p188 = por %p186, %p187
      %s189 = ssub.s32 %s24, %s36
      %p190 = scmp.eq.s32.totalorder %s189, 0
      %s192 = sadd.s32 %s191, 1
      %s193 = scalar_select %p190, %s191, %s192
      %p196 = pneg %p190
      %p197 = scmp.eq.s32.totalorder %s17, 3
      %p198 = por %p196, %p197
      %p199 = scmp.ne.s32.totalorder %s191, %s194
      %p200 = scmp.eq.s32.totalorder %s17, 0
      %p201 = por %p199, %p200
      %p202 = scmp.ne.s32.totalorder %s191, %s194
      %p203 = scmp.eq.s32.totalorder %s22, 3
      %p204 = por %p202, %p203
      %p205 = scmp.ne.s32.totalorder %s194, %s195
      %p206 = scmp.eq.s32.totalorder %s22, 0
      %p207 = por %p205, %p206
      %p208 = scmp.ne.s32.totalorder %s194, %s195
      %p209 = scmp.eq.s32.totalorder %s23, 3
      %p210 = por %p208, %p209
      %p212 = scmp.ne.s32.totalorder %s195, %s211
      %p213 = scmp.eq.s32.totalorder %s23, 0
      %p214 = por %p212, %p213
      %s215 = ssub.s32 %s24, %s36
      %s216 = ssub.s32 %s25, %s32
      %s217 = sor.u32 %s215, %s216
      %p218 = scmp.eq.s32.totalorder %s217, 0
      %s220 = sadd.s32 %s219, 1
      %s221 = scalar_select %p218, %s219, %s220
      %p224 = pneg %p218
      %p225 = scmp.eq.s32.totalorder %s17, 3
      %p226 = por %p224, %p225
      %p227 = scmp.ne.s32.totalorder %s219, %s222
      %p228 = scmp.eq.s32.totalorder %s17, 0
      %p229 = por %p227, %p228
      %p230 = scmp.ne.s32.totalorder %s219, %s222
      %p231 = scmp.eq.s32.totalorder %s22, 3
      %p232 = por %p230, %p231
      %p233 = scmp.ne.s32.totalorder %s222, %s223
      %p234 = scmp.eq.s32.totalorder %s22, 0
      %p235 = por %p233, %p234
      %p236 = scmp.ne.s32.totalorder %s222, %s223
      %p237 = scmp.eq.s32.totalorder %s23, 3
      %p238 = por %p236, %p237
      %p240 = scmp.ne.s32.totalorder %s223, %s239
      %p241 = scmp.eq.s32.totalorder %s23, 0
      %p242 = por %p240, %p241
      %p243 = scmp.le.s32.totalorder 1, %s17
      %p244 = scmp.lt.s32.totalorder %s17, 5
      %p245 = pnand %p243, %p244
      %p246 = pneg %p245
      // Predicated region
      $region9: #{aspp_forward.1} parent=5 // pred_check
        _
      $region10: #{aspp_forward.1} parent=5 // pred_check_branch
        %248 = sbr.rel (%p245) target = $region12
      $region11: #{aspp_forward.1} parent=5 // pred_region
        %s249 = ssub.s32 %s17, 1
        // Predicated region
        $region13: #{aspp_forward.1} parent=11 // pred_check
          %p250 = pneg %p76
        $region14: #{aspp_forward.1} parent=11 // pred_check_branch
          %252 = sbr.rel (%p250) target = $region16
        $region15: #{aspp_forward.1} parent=11 // pred_region
          _
        $region16: #{aspp_forward.1} parent=11 // pred_fallthru
          _
        // Predicated region
        $region17: #{aspp_forward.1} parent=11 // pred_check
          %p253 = pneg %p97
        $region18: #{aspp_forward.1} parent=11 // pred_check_branch
          %255 = sbr.rel (%p253) target = $region20
        $region19: #{aspp_forward.1} parent=11 // pred_region
          _
        $region20: #{aspp_forward.1} parent=11 // pred_fallthru
          _
        // Predicated region
        $region21: #{aspp_forward.1} parent=11 // pred_check
          %p256 = pneg %p118
        $region22: #{aspp_forward.1} parent=11 // pred_check_branch
          %258 = sbr.rel (%p256) target = $region24
        $region23: #{aspp_forward.1} parent=11 // pred_region
          _
        $region24: #{aspp_forward.1} parent=11 // pred_fallthru
          _
        // Predicated region
        $region25: #{aspp_forward.1} parent=11 // pred_check
          %p259 = pneg %p139
        $region26: #{aspp_forward.1} parent=11 // pred_check_branch
          %261 = sbr.rel (%p259) target = $region28
        $region27: #{aspp_forward.1} parent=11 // pred_region
          _
        $region28: #{aspp_forward.1} parent=11 // pred_fallthru
          _
        // Predicated region
        $region29: #{aspp_forward.1} parent=11 // pred_check
          %p262 = pneg %p160
        $region30: #{aspp_forward.1} parent=11 // pred_check_branch
          %264 = sbr.rel (%p262) target = $region32
        $region31: #{aspp_forward.1} parent=11 // pred_region
          _
        $region32: #{aspp_forward.1} parent=11 // pred_fallthru
          _
        // Predicated region
        $region33: #{aspp_forward.1} parent=11 // pred_check
          %p265 = pneg %p181
        $region34: #{aspp_forward.1} parent=11 // pred_check_branch
          %267 = sbr.rel (%p265) target = $region36
        $region35: #{aspp_forward.1} parent=11 // pred_region
          _
        $region36: #{aspp_forward.1} parent=11 // pred_fallthru
          _
      $region12: #{aspp_forward.1} parent=5 // pred_fallthru
        _
      %p268 = scmp.lt.s32.totalorder %s17, 4
      // Predicated region
      $region37: #{aspp_forward.1} parent=5 // pred_check
        %p269 = pneg %p268
      $region38: #{aspp_forward.1} parent=5 // pred_check_branch
        %271 = sbr.rel (%p269) target = $region40
      $region39: #{aspp_forward.1} parent=5 // pred_region
        // Predicated region
        $region41: #{aspp_forward.1} parent=39 // pred_check
          %p272 = pneg %p49
        $region42: #{aspp_forward.1} parent=39 // pred_check_branch
          %274 = sbr.rel (%p272) target = $region44
        $region43: #{aspp_forward.1} parent=39 // pred_region
          %p275 = scmp.lt.s32.totalorder %s24, 1
          %s276 = scalar_select %p275, %s24, 1
          %s277 = smul.addr %s276, 112
          %s278 = smul.addr %s277, 8
          %s279 = scalar_lea.vmem %s0, %s278
        $region44: #{aspp_forward.1} parent=39 // pred_fallthru
          _
        // Predicated region
        $region45: #{aspp_forward.1} parent=39 // pred_check
          %p280 = pneg %p201
        $region46: #{aspp_forward.1} parent=39 // pred_check_branch
          %282 = sbr.rel (%p280) target = $region48
        $region47: #{aspp_forward.1} parent=39 // pred_region
          %p283 = scmp.lt.s32.totalorder %s24, 1
          %s284 = scalar_select %p283, %s24, 1
          %s285 = smul.addr %s284, 2
          %s286 = scalar_lea.vmem %s7, %s285
        $region48: #{aspp_forward.1} parent=39 // pred_fallthru
          _
      $region40: #{aspp_forward.1} parent=5 // pred_fallthru
        _
      %p287 = scmp.le.s32.totalorder 1, %s17
      %p288 = scmp.lt.s32.totalorder %s17, 5
      %p289 = pnand %p287, %p288
      %p290 = pneg %p289
      // Predicated region
      $region49: #{aspp_forward.1} parent=5 // pred_check
        _
      $region50: #{aspp_forward.1} parent=5 // pred_check_branch
        %292 = sbr.rel (%p289) target = $region52
      $region51: #{aspp_forward.1} parent=5 // pred_region
        %s293 = ssub.s32 %s17, 1
        %p294 = scmp.lt.s32.totalorder %s26, 1
        %s295 = scalar_select %p294, %s26, 1
        %s296 = smul.addr %s295, 112
        %s297 = smul.addr %s296, 8
        %s298 = scalar_lea.vmem %s0, %s297
        %p299 = pneg %p55
        %p300 = pneg %p52
        %p301 = pneg %p76
        %p302 = pneg %p73
        %p303 = pneg %p97
        %p304 = pneg %p94
        %p305 = pneg %p118
        %p306 = pneg %p115
        %p307 = pneg %p139
        %p308 = pneg %p136
        %p309 = pneg %p160
        %p310 = pneg %p157
        %p311 = pneg %p181
        %p312 = pneg %p178
        %p313 = scmp.lt.s32.totalorder %s26, 1
        %s314 = scalar_select %p313, %s26, 1
        %s315 = smul.addr %s314, 2
        %s316 = scalar_lea.vmem %s7, %s315
        %p317 = pneg %p207
        %p318 = pneg %p204
        %p319 = pneg %p235
        %p320 = pneg %p232
        %s321 = sand.u32 %s222, 1
        %s322 = scalar_lea.sflag [#allocation3], %s321
        %s323 = sand.u32 %s222, 1
        %s324 = smul.addr %s323, 256
        %s325 = scalar_lea.vmem [#allocation2], %s324
        %p326 = scmp.lt.s32.totalorder %s26, 1
        %s327 = scalar_select %p326, %s26, 1
        %s328 = smul.addr %s327, 112
        %s329 = smul.addr %s328, 8
        %s330 = scalar_lea.vmem %s0, %s329
        %p331 = scmp.lt.s32.totalorder %s26, 1
        %s332 = scalar_select %p331, %s26, 1
        %s333 = smul.addr %s332, 2
        %s334 = scalar_lea.vmem %s7, %s333
        %s335 = smul.u32 8, %s27
        %s336 = smul.u32 %s27, 8
        %v337 = vld [vmem:[%s3] sm:$0xff]
        %v338 = vld [vmem:[%s4] sm:$0xff]
        %s339 = sadd.s32 %s336, 6
        %s340 = smul.u32 %s339, 32
        %s341 = scalar_lea.vmem %s330, %s340
        %v342 = vld [vmem:[%s341 + $0x6] sm:$0xff]
        %v343 = vld [vmem:[%s341 + $0xe] sm:$0xff]
        %v344 = vld [vmem:[%s341 + $0x26] sm:$0xff]
        %v345 = vld [vmem:[%s341 + $0x2e] sm:$0xff]
        %v346 = vld [vmem:[%s341 + $0x46] sm:$0xff]
        %v347 = vld [vmem:[%s341 + $0x4e] sm:$0xff]
        %v348 = vld [vmem:[%s341 + $0x66] sm:$0xff]
        %v349 = vld [vmem:[%s341 + $0x6e] sm:$0xff]
        %v350 = vld [vmem:[%s341 + $0x86] sm:$0xff]
        %v351 = vld [vmem:[%s341 + $0x8e] sm:$0xff]
        %v352 = vld [vmem:[%s341 + $0xa6] sm:$0xff]
        %v353 = vld [vmem:[%s341 + $0xae] sm:$0xff]
        %v354 = vld [vmem:[%s341 + $0xc6] sm:$0xff]
        %v355 = vld [vmem:[%s341 + $0xce] sm:$0xff]
        %v356 = vld [vmem:[%s341 + $0xe6] sm:$0xff]
        %v357 = vld [vmem:[%s341 + $0xee] sm:$0xff]
        %v358 = vld [vmem:[%s1] sm:$0xff]
        %v359 = vld [vmem:[%s1 + $0x8] sm:$0xff]
        %v360 = vld [vmem:[%s1 + $0x10] sm:$0xff]
        %v361 = vld [vmem:[%s1 + $0x18] sm:$0xff]
        %v362 = vld [vmem:[%s1 + $0x20] sm:$0xff]
        %v363 = vld [vmem:[%s1 + $0x28] sm:$0xff]
        %v364 = vld [vmem:[%s1 + $0x30] sm:$0xff]
        %v365 = vld [vmem:[%s1 + $0x38] sm:$0xff]
        %v366 = vld [vmem:[%s1 + $0x40] sm:$0xff]
        %v367 = vld [vmem:[%s1 + $0x48] sm:$0xff]
        %v368 = vld [vmem:[%s1 + $0x50] sm:$0xff]
        %v369 = vld [vmem:[%s1 + $0x58] sm:$0xff]
        %v370 = vld [vmem:[%s1 + $0x60] sm:$0xff]
        %v371 = vld [vmem:[%s1 + $0x68] sm:$0xff]
        %v372 = vld [vmem:[%s1 + $0x70] sm:$0xff]
        %v373 = vld [vmem:[%s1 + $0x78] sm:$0xff]
        %v374 = vld [vmem:[%s1 + $0x80] sm:$0xff]
        %v375 = vld [vmem:[%s1 + $0x88] sm:$0xff]
        %v376 = vld [vmem:[%s1 + $0x90] sm:$0xff]
        %v377 = vld [vmem:[%s1 + $0x98] sm:$0xff]
        %v378 = vld [vmem:[%s1 + $0xa0] sm:$0xff]
        %v379 = vld [vmem:[%s1 + $0xa8] sm:$0xff]
        %v380 = vld [vmem:[%s1 + $0xb0] sm:$0xff]
        %v381 = vld [vmem:[%s1 + $0xb8] sm:$0xff]
        %v382 = vld [vmem:[%s1 + $0xc0] sm:$0xff]
        %v383 = vld [vmem:[%s1 + $0xc8] sm:$0xff]
        %v384 = vld [vmem:[%s1 + $0xd0] sm:$0xff]
        %v385 = vld [vmem:[%s1 + $0xd8] sm:$0xff]
        %v386 = vld [vmem:[%s1 + $0xe0] sm:$0xff]
        %v387 = vld [vmem:[%s1 + $0xe8] sm:$0xff]
        %v388 = vld [vmem:[%s1 + $0xf0] sm:$0xff]
        %v389 = vld [vmem:[%s1 + $0xf8] sm:$0xff]
        %390 = vmatprep.subr.mxu0 %v389
        %391 = vmatpush1.msra.mxu0 %v388
        %392 = vmatprep.subr.mxu0 %v387
        %393 = vmatpush1.msra.mxu0 %v386
        %394 = vmatprep.subr.mxu0 %v385
        %395 = vmatpush1.msra.mxu0 %v384
        %396 = vmatprep.subr.mxu0 %v383
        %397 = vmatpush1.msra.mxu0 %v382
        %398 = vmatprep.subr.mxu0 %v381
        %399 = vmatpush1.msra.mxu0 %v380
        %400 = vmatprep.subr.mxu0 %v379
        %401 = vmatpush1.msra.mxu0 %v378
        %402 = vmatprep.subr.mxu0 %v377
        %403 = vmatpush1.msra.mxu0 %v376
        %404 = vmatprep.subr.mxu0 %v375
        %405 = vmatpush1.msra.mxu0 %v374
        %406 = vmatprep.subr.mxu0 %v373
        %407 = vmatpush1.msra.mxu0 %v372
        %408 = vmatprep.subr.mxu0 %v371
        %409 = vmatpush1.msra.mxu0 %v370
        %410 = vmatprep.subr.mxu0 %v369
        %411 = vmatpush1.msra.mxu0 %v368
        %412 = vmatprep.subr.mxu0 %v367
        %413 = vmatpush1.msra.mxu0 %v366
        %414 = vmatprep.subr.mxu0 %v365
        %415 = vmatpush1.msra.mxu0 %v364
        %416 = vmatprep.subr.mxu0 %v363
        %417 = vmatpush1.msra.mxu0 %v362
        %418 = vmatprep.subr.mxu0 %v361
        %419 = vmatpush1.msra.mxu0 %v360
        %420 = vmatprep.subr.mxu0 %v359
        %421 = vmatpush1.msra.mxu0 %v358
        %422 = vmatprep.subr.mxu0 0.0
        %423 = vmatpush2.msra.mxu0 0.0
        %424 = vmatprep.subr.mxu0 0.0
        %425 = vmatpush2.msra.mxu0 0.0
        %426 = vmatprep.subr.mxu0 0.0
        %427 = vmatpush2.msra.mxu0 0.0
        %428 = vmatprep.subr.mxu0 0.0
        %429 = vmatpush2.msra.mxu0 0.0
        %430 = vmatprep.subr.mxu0 0.0
        %431 = vmatpush2.msra.mxu0 0.0
        %432 = vmatprep.subr.mxu0 0.0
        %433 = vmatpush2.msra.mxu0 0.0
        %434 = vmatprep.subr.mxu0 0.0
        %435 = vmatpush2.msra.mxu0 0.0
        %436 = vmatprep.subr.mxu0 0.0
        %437 = vmatpush2.msra.mxu0 0.0
        %438 = vmatprep.subr.mxu0 0.0
        %439 = vmatpush2.msra.mxu0 0.0
        %440 = vmatprep.subr.mxu0 0.0
        %441 = vmatpush2.msra.mxu0 0.0
        %442 = vmatprep.subr.mxu0 0.0
        %443 = vmatpush2.msra.mxu0 0.0
        %444 = vmatprep.subr.mxu0 0.0
        %445 = vmatpush2.msra.mxu0 0.0
        %446 = vmatprep.subr.mxu0 0.0
        %447 = vmatpush2.msra.mxu0 0.0
        %448 = vmatprep.subr.mxu0 0.0
        %449 = vmatpush2.msra.mxu0 0.0
        %450 = vmatprep.subr.mxu0 0.0
        %451 = vmatpush2.msra.mxu0 0.0
        %452 = vmatprep.subr.mxu0 0.0
        %453 = vmatpush2.msra.mxu0 0.0
        %454 = vmatprep.mubr.f32.mxu0 0.0
        %455 = vmatmul.mubr.f32.gmra.mxu0 %v342
        %v456 = vpop.f32.mrf.mxu0
        %v457 = vadd.f32 0.0, %v456
        %v458 = vpop.f32.mrf.mxu0
        %v459 = vadd.f32 0.0, %v458
        %460 = vmatprep.mubr.f32.mxu0 0.0
        %461 = vmatmul.mubr.f32.gmra.mxu0 %v343
        %v462 = vpop.f32.mrf.mxu0
        %v463 = vadd.f32 0.0, %v462
        %v464 = vpop.f32.mrf.mxu0
        %v465 = vadd.f32 0.0, %v464
        %466 = vmatprep.mubr.f32.mxu0 0.0
        %467 = vmatmul.mubr.f32.gmra.mxu0 %v344
        %v468 = vpop.f32.mrf.mxu0
        %v469 = vadd.f32 0.0, %v468
        %v470 = vpop.f32.mrf.mxu0
        %v471 = vadd.f32 0.0, %v470
        %472 = vmatprep.mubr.f32.mxu0 0.0
        %473 = vmatmul.mubr.f32.gmra.mxu0 %v345
        %v474 = vpop.f32.mrf.mxu0
        %v475 = vadd.f32 0.0, %v474
        %v476 = vpop.f32.mrf.mxu0
        %v477 = vadd.f32 0.0, %v476
        %478 = vmatprep.mubr.f32.mxu0 0.0
        %479 = vmatmul.mubr.f32.gmra.mxu0 %v346
        %v480 = vpop.f32.mrf.mxu0
        %v481 = vadd.f32 0.0, %v480
        %v482 = vpop.f32.mrf.mxu0
        %v483 = vadd.f32 0.0, %v482
        %484 = vmatprep.mubr.f32.mxu0 0.0
        %485 = vmatmul.mubr.f32.gmra.mxu0 %v347
        %v486 = vpop.f32.mrf.mxu0
        %v487 = vadd.f32 0.0, %v486
        %v488 = vpop.f32.mrf.mxu0
        %v489 = vadd.f32 0.0, %v488
        %490 = vmatprep.mubr.f32.mxu0 0.0
        %491 = vmatmul.mubr.f32.gmra.mxu0 %v348
        %v492 = vpop.f32.mrf.mxu0
        %v493 = vadd.f32 0.0, %v492
        %v494 = vpop.f32.mrf.mxu0
        %v495 = vadd.f32 0.0, %v494
        %496 = vmatprep.mubr.f32.mxu0 0.0
        %497 = vmatmul.mubr.f32.gmra.mxu0 %v349
        %v498 = vpop.f32.mrf.mxu0
        %v499 = vadd.f32 0.0, %v498
        %v500 = vpop.f32.mrf.mxu0
        %v501 = vadd.f32 0.0, %v500
        %502 = vmatprep.mubr.f32.mxu0 0.0
        %503 = vmatmul.mubr.f32.gmra.mxu0 %v350
        %v504 = vpop.f32.mrf.mxu0
        %v505 = vadd.f32 0.0, %v504
        %v506 = vpop.f32.mrf.mxu0
        %v507 = vadd.f32 0.0, %v506
        %508 = vmatprep.mubr.f32.mxu0 0.0
        %509 = vmatmul.mubr.f32.gmra.mxu0 %v351
        %v510 = vpop.f32.mrf.mxu0
        %v511 = vadd.f32 0.0, %v510
        %v512 = vpop.f32.mrf.mxu0
        %v513 = vadd.f32 0.0, %v512
        %514 = vmatprep.mubr.f32.mxu0 0.0
        %515 = vmatmul.mubr.f32.gmra.mxu0 %v352
        %v516 = vpop.f32.mrf.mxu0
        %v517 = vadd.f32 0.0, %v516
        %v518 = vpop.f32.mrf.mxu0
        %v519 = vadd.f32 0.0, %v518
        %520 = vmatprep.mubr.f32.mxu0 0.0
        %521 = vmatmul.mubr.f32.gmra.mxu0 %v353
        %v522 = vpop.f32.mrf.mxu0
        %v523 = vadd.f32 0.0, %v522
        %v524 = vpop.f32.mrf.mxu0
        %v525 = vadd.f32 0.0, %v524
        %526 = vmatprep.mubr.f32.mxu0 0.0
        %527 = vmatmul.mubr.f32.gmra.mxu0 %v354
        %v528 = vpop.f32.mrf.mxu0
        %v529 = vadd.f32 0.0, %v528
        %v530 = vpop.f32.mrf.mxu0
        %v531 = vadd.f32 0.0, %v530
        %532 = vmatprep.mubr.f32.mxu0 0.0
        %533 = vmatmul.mubr.f32.gmra.mxu0 %v355
        %v534 = vpop.f32.mrf.mxu0
        %v535 = vadd.f32 0.0, %v534
        %v536 = vpop.f32.mrf.mxu0
        %v537 = vadd.f32 0.0, %v536
        %538 = vmatprep.mubr.f32.mxu0 0.0
        %539 = vmatmul.mubr.f32.gmra.mxu0 %v356
        %v540 = vpop.f32.mrf.mxu0
        %v541 = vadd.f32 0.0, %v540
        %v542 = vpop.f32.mrf.mxu0
        %v543 = vadd.f32 0.0, %v542
        %544 = vmatprep.mubr.f32.mxu0 0.0
        %545 = vmatmul.mubr.f32.gmra.mxu0 %v357
        %v546 = vpop.f32.mrf.mxu0
        %v547 = vadd.f32 0.0, %v546
        %v548 = vpop.f32.mrf.mxu0
        %v549 = vadd.f32 0.0, %v548
        %550 = vdwg.mxu0
        %v552 = vlaneseq
        %v553 = vshrl.u32 %v552, 7
        %v554 = vsub.s32 0, %v553
        %v555 = vrot.slane %v337, %v554
        %v556 = vlaneseq
        %v557 = vshrl.u32 %v556, 7
        %v558 = vsub.s32 4, %v557
        %v559 = vrot.slane %v337, %v558
        %v562 = vlaneseq
        %v563 = vshrl.u32 %v562, 7
        %v564 = vsub.s32 0, %v563
        %v565 = vrot.slane %v555, %v564
        %v566 = vlaneseq
        %v567 = vshrl.u32 %v566, 7
        %v568 = vsub.s32 0, %v567
        %v569 = vrot.slane %v559, %v568
        %v570 = vmul.f32 %v457, %v565
        %v571 = vmul.f32 %v459, %v569
        %v572 = vmul.f32 %v463, %v565
        %v573 = vmul.f32 %v465, %v569
        %v574 = vmul.f32 %v469, %v565
        %v575 = vmul.f32 %v471, %v569
        %v576 = vmul.f32 %v475, %v565
        %v577 = vmul.f32 %v477, %v569
        %v578 = vmul.f32 %v481, %v565
        %v579 = vmul.f32 %v483, %v569
        %v580 = vmul.f32 %v487, %v565
        %v581 = vmul.f32 %v489, %v569
        %v582 = vmul.f32 %v493, %v565
        %v583 = vmul.f32 %v495, %v569
        %v584 = vmul.f32 %v499, %v565
        %v585 = vmul.f32 %v501, %v569
        %v586 = vmul.f32 %v505, %v565
        %v587 = vmul.f32 %v507, %v569
        %v588 = vmul.f32 %v511, %v565
        %v589 = vmul.f32 %v513, %v569
        %v590 = vmul.f32 %v517, %v565
        %v591 = vmul.f32 %v519, %v569
        %v592 = vmul.f32 %v523, %v565
        %v593 = vmul.f32 %v525, %v569
        %v594 = vmul.f32 %v529, %v565
        %v595 = vmul.f32 %v531, %v569
        %v596 = vmul.f32 %v535, %v565
        %v597 = vmul.f32 %v537, %v569
        %v598 = vmul.f32 %v541, %v565
        %v599 = vmul.f32 %v543, %v569
        %v600 = vmul.f32 %v547, %v565
        %v601 = vmul.f32 %v549, %v569
        %v603 = vlaneseq
        %v604 = vshrl.u32 %v603, 7
        %v605 = vsub.s32 0, %v604
        %v606 = vrot.slane %v338, %v605
        %v607 = vlaneseq
        %v608 = vshrl.u32 %v607, 7
        %v609 = vsub.s32 4, %v608
        %v610 = vrot.slane %v338, %v609
        %v613 = vlaneseq
        %v614 = vshrl.u32 %v613, 7
        %v615 = vsub.s32 0, %v614
        %v616 = vrot.slane %v606, %v615
        %v617 = vlaneseq
        %v618 = vshrl.u32 %v617, 7
        %v619 = vsub.s32 0, %v618
        %v620 = vrot.slane %v610, %v619
        %v621 = vadd.f32 %v570, %v616
        %v622 = vadd.f32 %v571, %v620
        %v623 = vadd.f32 %v572, %v616
        %v624 = vadd.f32 %v573, %v620
        %v625 = vadd.f32 %v574, %v616
        %v626 = vadd.f32 %v575, %v620
        %v627 = vadd.f32 %v576, %v616
        %v628 = vadd.f32 %v577, %v620
        %v629 = vadd.f32 %v578, %v616
        %v630 = vadd.f32 %v579, %v620
        %v631 = vadd.f32 %v580, %v616
        %v632 = vadd.f32 %v581, %v620
        %v633 = vadd.f32 %v582, %v616
        %v634 = vadd.f32 %v583, %v620
        %v635 = vadd.f32 %v584, %v616
        %v636 = vadd.f32 %v585, %v620
        %v637 = vadd.f32 %v586, %v616
        %v638 = vadd.f32 %v587, %v620
        %v639 = vadd.f32 %v588, %v616
        %v640 = vadd.f32 %v589, %v620
        %v641 = vadd.f32 %v590, %v616
        %v642 = vadd.f32 %v591, %v620
        %v643 = vadd.f32 %v592, %v616
        %v644 = vadd.f32 %v593, %v620
        %v645 = vadd.f32 %v594, %v616
        %v646 = vadd.f32 %v595, %v620
        %v647 = vadd.f32 %v596, %v616
        %v648 = vadd.f32 %v597, %v620
        %v649 = vadd.f32 %v598, %v616
        %v650 = vadd.f32 %v599, %v620
        %v651 = vadd.f32 %v600, %v616
        %v652 = vadd.f32 %v601, %v620
        %v653 = vmax.f32 %v621, 0.0
        %v654 = vmax.f32 %v622, 0.0
        %v655 = vmax.f32 %v623, 0.0
        %v656 = vmax.f32 %v624, 0.0
        %v657 = vmax.f32 %v625, 0.0
        %v658 = vmax.f32 %v626, 0.0
        %v659 = vmax.f32 %v627, 0.0
        %v660 = vmax.f32 %v628, 0.0
        %v661 = vmax.f32 %v629, 0.0
        %v662 = vmax.f32 %v630, 0.0
        %v663 = vmax.f32 %v631, 0.0
        %v664 = vmax.f32 %v632, 0.0
        %v665 = vmax.f32 %v633, 0.0
        %v666 = vmax.f32 %v634, 0.0
        %v667 = vmax.f32 %v635, 0.0
        %v668 = vmax.f32 %v636, 0.0
        %v669 = vmax.f32 %v637, 0.0
        %v670 = vmax.f32 %v638, 0.0
        %v671 = vmax.f32 %v639, 0.0
        %v672 = vmax.f32 %v640, 0.0
        %v673 = vmax.f32 %v641, 0.0
        %v674 = vmax.f32 %v642, 0.0
        %v675 = vmax.f32 %v643, 0.0
        %v676 = vmax.f32 %v644, 0.0
        %v677 = vmax.f32 %v645, 0.0
        %v678 = vmax.f32 %v646, 0.0
        %v679 = vmax.f32 %v647, 0.0
        %v680 = vmax.f32 %v648, 0.0
        %v681 = vmax.f32 %v649, 0.0
        %v682 = vmax.f32 %v650, 0.0
        %v683 = vmax.f32 %v651, 0.0
        %v684 = vmax.f32 %v652, 0.0
        %v685 = vld [vmem:[%s5] sm:$0xff]
        %v686 = vld [vmem:[%s5 + $0x8] sm:$0xff]
        %v687 = vld [vmem:[%s5 + $0x10] sm:$0xff]
        %v688 = vld [vmem:[%s5 + $0x18] sm:$0xff]
        %v689 = vld [vmem:[%s5 + $0x20] sm:$0xff]
        %v690 = vld [vmem:[%s5 + $0x28] sm:$0xff]
        %v691 = vld [vmem:[%s5 + $0x30] sm:$0xff]
        %v692 = vld [vmem:[%s5 + $0x38] sm:$0xff]
        %v693 = vld [vmem:[%s5 + $0x40] sm:$0xff]
        %v694 = vld [vmem:[%s5 + $0x48] sm:$0xff]
        %v695 = vld [vmem:[%s5 + $0x50] sm:$0xff]
        %v696 = vld [vmem:[%s5 + $0x58] sm:$0xff]
        %v697 = vld [vmem:[%s5 + $0x60] sm:$0xff]
        %v698 = vld [vmem:[%s5 + $0x68] sm:$0xff]
        %v699 = vld [vmem:[%s5 + $0x70] sm:$0xff]
        %v700 = vld [vmem:[%s5 + $0x78] sm:$0xff]
        %v701 = vld [vmem:[%s5 + $0x80] sm:$0xff]
        %v702 = vld [vmem:[%s5 + $0x88] sm:$0xff]
        %v703 = vld [vmem:[%s5 + $0x90] sm:$0xff]
        %v704 = vld [vmem:[%s5 + $0x98] sm:$0xff]
        %v705 = vld [vmem:[%s5 + $0xa0] sm:$0xff]
        %v706 = vld [vmem:[%s5 + $0xa8] sm:$0xff]
        %v707 = vld [vmem:[%s5 + $0xb0] sm:$0xff]
        %v708 = vld [vmem:[%s5 + $0xb8] sm:$0xff]
        %v709 = vld [vmem:[%s5 + $0xc0] sm:$0xff]
        %v710 = vld [vmem:[%s5 + $0xc8] sm:$0xff]
        %v711 = vld [vmem:[%s5 + $0xd0] sm:$0xff]
        %v712 = vld [vmem:[%s5 + $0xd8] sm:$0xff]
        %v713 = vld [vmem:[%s5 + $0xe0] sm:$0xff]
        %v714 = vld [vmem:[%s5 + $0xe8] sm:$0xff]
        %v715 = vld [vmem:[%s5 + $0xf0] sm:$0xff]
        %v716 = vld [vmem:[%s5 + $0xf8] sm:$0xff]
        %v717 = vld [vmem:[%s5 + $0x100] sm:$0xff]
        %v718 = vld [vmem:[%s5 + $0x108] sm:$0xff]
        %v719 = vld [vmem:[%s5 + $0x110] sm:$0xff]
        %v720 = vld [vmem:[%s5 + $0x118] sm:$0xff]
        %v721 = vld [vmem:[%s5 + $0x120] sm:$0xff]
        %v722 = vld [vmem:[%s5 + $0x128] sm:$0xff]
        %v723 = vld [vmem:[%s5 + $0x130] sm:$0xff]
        %v724 = vld [vmem:[%s5 + $0x138] sm:$0xff]
        %v725 = vld [vmem:[%s5 + $0x140] sm:$0xff]
        %v726 = vld [vmem:[%s5 + $0x148] sm:$0xff]
        %v727 = vld [vmem:[%s5 + $0x150] sm:$0xff]
        %v728 = vld [vmem:[%s5 + $0x158] sm:$0xff]
        %v729 = vld [vmem:[%s5 + $0x160] sm:$0xff]
        %v730 = vld [vmem:[%s5 + $0x168] sm:$0xff]
        %v731 = vld [vmem:[%s5 + $0x170] sm:$0xff]
        %v732 = vld [vmem:[%s5 + $0x178] sm:$0xff]
        %v733 = vld [vmem:[%s5 + $0x180] sm:$0xff]
        %v734 = vld [vmem:[%s5 + $0x188] sm:$0xff]
        %v735 = vld [vmem:[%s5 + $0x190] sm:$0xff]
        %v736 = vld [vmem:[%s5 + $0x198] sm:$0xff]
        %v737 = vld [vmem:[%s5 + $0x1a0] sm:$0xff]
        %v738 = vld [vmem:[%s5 + $0x1a8] sm:$0xff]
        %v739 = vld [vmem:[%s5 + $0x1b0] sm:$0xff]
        %v740 = vld [vmem:[%s5 + $0x1b8] sm:$0xff]
        %v741 = vld [vmem:[%s5 + $0x1c0] sm:$0xff]
        %v742 = vld [vmem:[%s5 + $0x1c8] sm:$0xff]
        %v743 = vld [vmem:[%s5 + $0x1d0] sm:$0xff]
        %v744 = vld [vmem:[%s5 + $0x1d8] sm:$0xff]
        %v745 = vld [vmem:[%s5 + $0x1e0] sm:$0xff]
        %v746 = vld [vmem:[%s5 + $0x1e8] sm:$0xff]
        %v747 = vld [vmem:[%s5 + $0x1f0] sm:$0xff]
        %v748 = vld [vmem:[%s5 + $0x1f8] sm:$0xff]
        %s749 = sadd.s32 %s336, 4
        %s750 = smul.u32 %s749, 32
        %s751 = scalar_lea.vmem %s330, %s750
        %v752 = vld [vmem:[%s751 + $0x4] sm:$0xff]
        %v753 = vld [vmem:[%s751 + $0xc] sm:$0xff]
        %v754 = vld [vmem:[%s751 + $0x24] sm:$0xff]
        %v755 = vld [vmem:[%s751 + $0x2c] sm:$0xff]
        %v756 = vld [vmem:[%s751 + $0x44] sm:$0xff]
        %v757 = vld [vmem:[%s751 + $0x4c] sm:$0xff]
        %v758 = vld [vmem:[%s751 + $0x64] sm:$0xff]
        %v759 = vld [vmem:[%s751 + $0x6c] sm:$0xff]
        %v760 = vld [vmem:[%s751 + $0x84] sm:$0xff]
        %v761 = vld [vmem:[%s751 + $0x8c] sm:$0xff]
        %v762 = vld [vmem:[%s751 + $0xa4] sm:$0xff]
        %v763 = vld [vmem:[%s751 + $0xac] sm:$0xff]
        %v764 = vld [vmem:[%s751 + $0xc4] sm:$0xff]
        %v765 = vld [vmem:[%s751 + $0xcc] sm:$0xff]
        %v766 = vld [vmem:[%s751 + $0xe4] sm:$0xff]
        %v767 = vld [vmem:[%s751 + $0xec] sm:$0xff]
        %v768 = vld [vmem:[%s2] sm:$0xff]
        %v769 = vld [vmem:[%s2 + $0x8] sm:$0xff]
        %v770 = vld [vmem:[%s2 + $0x10] sm:$0xff]
        %v771 = vld [vmem:[%s2 + $0x18] sm:$0xff]
        %v772 = vld [vmem:[%s2 + $0x20] sm:$0xff]
        %v773 = vld [vmem:[%s2 + $0x28] sm:$0xff]
        %v774 = vld [vmem:[%s2 + $0x30] sm:$0xff]
        %v775 = vld [vmem:[%s2 + $0x38] sm:$0xff]
        %v776 = vld [vmem:[%s2 + $0x40] sm:$0xff]
        %v777 = vld [vmem:[%s2 + $0x48] sm:$0xff]
        %v778 = vld [vmem:[%s2 + $0x50] sm:$0xff]
        %v779 = vld [vmem:[%s2 + $0x58] sm:$0xff]
        %v780 = vld [vmem:[%s2 + $0x60] sm:$0xff]
        %v781 = vld [vmem:[%s2 + $0x68] sm:$0xff]
        %v782 = vld [vmem:[%s2 + $0x70] sm:$0xff]
        %v783 = vld [vmem:[%s2 + $0x78] sm:$0xff]
        %v784 = vld [vmem:[%s2 + $0x80] sm:$0xff]
        %v785 = vld [vmem:[%s2 + $0x88] sm:$0xff]
        %v786 = vld [vmem:[%s2 + $0x90] sm:$0xff]
        %v787 = vld [vmem:[%s2 + $0x98] sm:$0xff]
        %v788 = vld [vmem:[%s2 + $0xa0] sm:$0xff]
        %v789 = vld [vmem:[%s2 + $0xa8] sm:$0xff]
        %v790 = vld [vmem:[%s2 + $0xb0] sm:$0xff]
        %v791 = vld [vmem:[%s2 + $0xb8] sm:$0xff]
        %v792 = vld [vmem:[%s2 + $0xc0] sm:$0xff]
        %v793 = vld [vmem:[%s2 + $0xc8] sm:$0xff]
        %v794 = vld [vmem:[%s2 + $0xd0] sm:$0xff]
        %v795 = vld [vmem:[%s2 + $0xd8] sm:$0xff]
        %v796 = vld [vmem:[%s2 + $0xe0] sm:$0xff]
        %v797 = vld [vmem:[%s2 + $0xe8] sm:$0xff]
        %v798 = vld [vmem:[%s2 + $0xf0] sm:$0xff]
        %v799 = vld [vmem:[%s2 + $0xf8] sm:$0xff]
        %v800 = vld [vmem:[%s751 + $0x6] sm:$0xff]
        %v801 = vld [vmem:[%s751 + $0xe] sm:$0xff]
        %v802 = vld [vmem:[%s751 + $0x26] sm:$0xff]
        %v803 = vld [vmem:[%s751 + $0x2e] sm:$0xff]
        %v804 = vld [vmem:[%s751 + $0x46] sm:$0xff]
        %v805 = vld [vmem:[%s751 + $0x4e] sm:$0xff]
        %v806 = vld [vmem:[%s751 + $0x66] sm:$0xff]
        %v807 = vld [vmem:[%s751 + $0x6e] sm:$0xff]
        %v808 = vld [vmem:[%s751 + $0x86] sm:$0xff]
        %v809 = vld [vmem:[%s751 + $0x8e] sm:$0xff]
        %v810 = vld [vmem:[%s751 + $0xa6] sm:$0xff]
        %v811 = vld [vmem:[%s751 + $0xae] sm:$0xff]
        %v812 = vld [vmem:[%s751 + $0xc6] sm:$0xff]
        %v813 = vld [vmem:[%s751 + $0xce] sm:$0xff]
        %v814 = vld [vmem:[%s751 + $0xe6] sm:$0xff]
        %v815 = vld [vmem:[%s751 + $0xee] sm:$0xff]
        %s816 = scalar_lea.vmem %s2, 256
        %v817 = vld [vmem:[%s816] sm:$0xff]
        %v818 = vld [vmem:[%s816 + $0x8] sm:$0xff]
        %v819 = vld [vmem:[%s816 + $0x10] sm:$0xff]
        %v820 = vld [vmem:[%s816 + $0x18] sm:$0xff]
        %v821 = vld [vmem:[%s816 + $0x20] sm:$0xff]
        %v822 = vld [vmem:[%s816 + $0x28] sm:$0xff]
        %v823 = vld [vmem:[%s816 + $0x30] sm:$0xff]
        %v824 = vld [vmem:[%s816 + $0x38] sm:$0xff]
        %v825 = vld [vmem:[%s816 + $0x40] sm:$0xff]
        %v826 = vld [vmem:[%s816 + $0x48] sm:$0xff]
        %v827 = vld [vmem:[%s816 + $0x50] sm:$0xff]
        %v828 = vld [vmem:[%s816 + $0x58] sm:$0xff]
        %v829 = vld [vmem:[%s816 + $0x60] sm:$0xff]
        %v830 = vld [vmem:[%s816 + $0x68] sm:$0xff]
        %v831 = vld [vmem:[%s816 + $0x70] sm:$0xff]
        %v832 = vld [vmem:[%s816 + $0x78] sm:$0xff]
        %v833 = vld [vmem:[%s816 + $0x80] sm:$0xff]
        %v834 = vld [vmem:[%s816 + $0x88] sm:$0xff]
        %v835 = vld [vmem:[%s816 + $0x90] sm:$0xff]
        %v836 = vld [vmem:[%s816 + $0x98] sm:$0xff]
        %v837 = vld [vmem:[%s816 + $0xa0] sm:$0xff]
        %v838 = vld [vmem:[%s816 + $0xa8] sm:$0xff]
        %v839 = vld [vmem:[%s816 + $0xb0] sm:$0xff]
        %v840 = vld [vmem:[%s816 + $0xb8] sm:$0xff]
        %v841 = vld [vmem:[%s816 + $0xc0] sm:$0xff]
        %v842 = vld [vmem:[%s816 + $0xc8] sm:$0xff]
        %v843 = vld [vmem:[%s816 + $0xd0] sm:$0xff]
        %v844 = vld [vmem:[%s816 + $0xd8] sm:$0xff]
        %v845 = vld [vmem:[%s816 + $0xe0] sm:$0xff]
        %v846 = vld [vmem:[%s816 + $0xe8] sm:$0xff]
        %v847 = vld [vmem:[%s816 + $0xf0] sm:$0xff]
        %v848 = vld [vmem:[%s816 + $0xf8] sm:$0xff]
        %849 = vmatprep.subr.mxu0 %v848
        %850 = vmatpush1.msra.mxu0 %v847
        %851 = vmatprep.subr.mxu0 %v846
        %852 = vmatpush1.msra.mxu0 %v845
        %853 = vmatprep.subr.mxu0 %v844
        %854 = vmatpush1.msra.mxu0 %v843
        %855 = vmatprep.subr.mxu0 %v842
        %856 = vmatpush1.msra.mxu0 %v841
        %857 = vmatprep.subr.mxu0 %v840
        %858 = vmatpush1.msra.mxu0 %v839
        %859 = vmatprep.subr.mxu0 %v838
        %860 = vmatpush1.msra.mxu0 %v837
        %861 = vmatprep.subr.mxu0 %v836
        %862 = vmatpush1.msra.mxu0 %v835
        %863 = vmatprep.subr.mxu0 %v834
        %864 = vmatpush1.msra.mxu0 %v833
        %865 = vmatprep.subr.mxu0 %v832
        %866 = vmatpush1.msra.mxu0 %v831
        %867 = vmatprep.subr.mxu0 %v830
        %868 = vmatpush1.msra.mxu0 %v829
        %869 = vmatprep.subr.mxu0 %v828
        %870 = vmatpush1.msra.mxu0 %v827
        %871 = vmatprep.subr.mxu0 %v826
        %872 = vmatpush1.msra.mxu0 %v825
        %873 = vmatprep.subr.mxu0 %v824
        %874 = vmatpush1.msra.mxu0 %v823
        %875 = vmatprep.subr.mxu0 %v822
        %876 = vmatpush1.msra.mxu0 %v821
        %877 = vmatprep.subr.mxu0 %v820
        %878 = vmatpush1.msra.mxu0 %v819
        %879 = vmatprep.subr.mxu0 %v818
        %880 = vmatpush1.msra.mxu0 %v817
        %881 = vmatprep.subr.mxu0 0.0
        %882 = vmatpush2.msra.mxu0 0.0
        %883 = vmatprep.subr.mxu0 0.0
        %884 = vmatpush2.msra.mxu0 0.0
        %885 = vmatprep.subr.mxu0 0.0
        %886 = vmatpush2.msra.mxu0 0.0
        %887 = vmatprep.subr.mxu0 0.0
        %888 = vmatpush2.msra.mxu0 0.0
        %889 = vmatprep.subr.mxu0 0.0
        %890 = vmatpush2.msra.mxu0 0.0
        %891 = vmatprep.subr.mxu0 0.0
        %892 = vmatpush2.msra.mxu0 0.0
        %893 = vmatprep.subr.mxu0 0.0
        %894 = vmatpush2.msra.mxu0 0.0
        %895 = vmatprep.subr.mxu0 0.0
        %896 = vmatpush2.msra.mxu0 0.0
        %897 = vmatprep.subr.mxu0 0.0
        %898 = vmatpush2.msra.mxu0 0.0
        %899 = vmatprep.subr.mxu0 0.0
        %900 = vmatpush2.msra.mxu0 0.0
        %901 = vmatprep.subr.mxu0 0.0
        %902 = vmatpush2.msra.mxu0 0.0
        %903 = vmatprep.subr.mxu0 0.0
        %904 = vmatpush2.msra.mxu0 0.0
        %905 = vmatprep.subr.mxu0 0.0
        %906 = vmatpush2.msra.mxu0 0.0
        %907 = vmatprep.subr.mxu0 0.0
        %908 = vmatpush2.msra.mxu0 0.0
        %909 = vmatprep.subr.mxu0 0.0
        %910 = vmatpush2.msra.mxu0 0.0
        %911 = vmatprep.subr.mxu0 0.0
        %912 = vmatpush2.msra.mxu0 0.0
        %913 = vmatprep.mubr.f32.mxu0 0.0
        %914 = vmatmul.mubr.f32.gmra.mxu0 %v800
        %v915 = vpop.f32.mrf.mxu0
        %v916 = vadd.f32 0.0, %v915
        %v917 = vpop.f32.mrf.mxu0
        %v918 = vadd.f32 0.0, %v917
        %919 = vmatprep.mubr.f32.mxu0 0.0
        %920 = vmatmul.mubr.f32.gmra.mxu0 %v801
        %v921 = vpop.f32.mrf.mxu0
        %v922 = vadd.f32 0.0, %v921
        %v923 = vpop.f32.mrf.mxu0
        %v924 = vadd.f32 0.0, %v923
        %925 = vmatprep.mubr.f32.mxu0 0.0
        %926 = vmatmul.mubr.f32.gmra.mxu0 %v802
        %v927 = vpop.f32.mrf.mxu0
        %v928 = vadd.f32 0.0, %v927
        %v929 = vpop.f32.mrf.mxu0
        %v930 = vadd.f32 0.0, %v929
        %931 = vmatprep.mubr.f32.mxu0 0.0
        %932 = vmatmul.mubr.f32.gmra.mxu0 %v803
        %v933 = vpop.f32.mrf.mxu0
        %v934 = vadd.f32 0.0, %v933
        %v935 = vpop.f32.mrf.mxu0
        %v936 = vadd.f32 0.0, %v935
        %937 = vmatprep.mubr.f32.mxu0 0.0
        %938 = vmatmul.mubr.f32.gmra.mxu0 %v804
        %v939 = vpop.f32.mrf.mxu0
        %v940 = vadd.f32 0.0, %v939
        %v941 = vpop.f32.mrf.mxu0
        %v942 = vadd.f32 0.0, %v941
        %943 = vmatprep.mubr.f32.mxu0 0.0
        %944 = vmatmul.mubr.f32.gmra.mxu0 %v805
        %v945 = vpop.f32.mrf.mxu0
        %v946 = vadd.f32 0.0, %v945
        %v947 = vpop.f32.mrf.mxu0
        %v948 = vadd.f32 0.0, %v947
        %949 = vmatprep.mubr.f32.mxu0 0.0
        %950 = vmatmul.mubr.f32.gmra.mxu0 %v806
        %v951 = vpop.f32.mrf.mxu0
        %v952 = vadd.f32 0.0, %v951
        %v953 = vpop.f32.mrf.mxu0
        %v954 = vadd.f32 0.0, %v953
        %955 = vmatprep.mubr.f32.mxu0 0.0
        %956 = vmatmul.mubr.f32.gmra.mxu0 %v807
        %v957 = vpop.f32.mrf.mxu0
        %v958 = vadd.f32 0.0, %v957
        %v959 = vpop.f32.mrf.mxu0
        %v960 = vadd.f32 0.0, %v959
        %961 = vmatprep.mubr.f32.mxu0 0.0
        %962 = vmatmul.mubr.f32.gmra.mxu0 %v808
        %v963 = vpop.f32.mrf.mxu0
        %v964 = vadd.f32 0.0, %v963
        %v965 = vpop.f32.mrf.mxu0
        %v966 = vadd.f32 0.0, %v965
        %967 = vmatprep.mubr.f32.mxu0 0.0
        %968 = vmatmul.mubr.f32.gmra.mxu0 %v809
        %v969 = vpop.f32.mrf.mxu0
        %v970 = vadd.f32 0.0, %v969
        %v971 = vpop.f32.mrf.mxu0
        %v972 = vadd.f32 0.0, %v971
        %973 = vmatprep.mubr.f32.mxu0 0.0
        %974 = vmatmul.mubr.f32.gmra.mxu0 %v810
        %v975 = vpop.f32.mrf.mxu0
        %v976 = vadd.f32 0.0, %v975
        %v977 = vpop.f32.mrf.mxu0
        %v978 = vadd.f32 0.0, %v977
        %979 = vmatprep.mubr.f32.mxu0 0.0
        %980 = vmatmul.mubr.f32.gmra.mxu0 %v811
        %v981 = vpop.f32.mrf.mxu0
        %v982 = vadd.f32 0.0, %v981
        %v983 = vpop.f32.mrf.mxu0
        %v984 = vadd.f32 0.0, %v983
        %985 = vmatprep.mubr.f32.mxu0 0.0
        %986 = vmatmul.mubr.f32.gmra.mxu0 %v812
        %v987 = vpop.f32.mrf.mxu0
        %v988 = vadd.f32 0.0, %v987
        %v989 = vpop.f32.mrf.mxu0
        %v990 = vadd.f32 0.0, %v989
        %991 = vmatprep.mubr.f32.mxu0 0.0
        %992 = vmatmul.mubr.f32.gmra.mxu0 %v813
        %v993 = vpop.f32.mrf.mxu0
        %v994 = vadd.f32 0.0, %v993
        %v995 = vpop.f32.mrf.mxu0
        %v996 = vadd.f32 0.0, %v995
        %997 = vmatprep.mubr.f32.mxu0 0.0
        %998 = vmatmul.mubr.f32.gmra.mxu0 %v814
        %v999 = vpop.f32.mrf.mxu0
        %v1000 = vadd.f32 0.0, %v999
        %v1001 = vpop.f32.mrf.mxu0
        %v1002 = vadd.f32 0.0, %v1001
        %1003 = vmatprep.mubr.f32.mxu0 0.0
        %1004 = vmatmul.mubr.f32.gmra.mxu0 %v815
        %v1005 = vpop.f32.mrf.mxu0
        %v1006 = vadd.f32 0.0, %v1005
        %v1007 = vpop.f32.mrf.mxu0
        %v1008 = vadd.f32 0.0, %v1007
        %1009 = vdwg.mxu0
        %1010 = vmatprep.subr.mxu0 %v799
        %1011 = vmatpush1.msra.mxu0 %v798
        %1012 = vmatprep.subr.mxu0 %v797
        %1013 = vmatpush1.msra.mxu0 %v796
        %1014 = vmatprep.subr.mxu0 %v795
        %1015 = vmatpush1.msra.mxu0 %v794
        %1016 = vmatprep.subr.mxu0 %v793
        %1017 = vmatpush1.msra.mxu0 %v792
        %1018 = vmatprep.subr.mxu0 %v791
        %1019 = vmatpush1.msra.mxu0 %v790
        %1020 = vmatprep.subr.mxu0 %v789
        %1021 = vmatpush1.msra.mxu0 %v788
        %1022 = vmatprep.subr.mxu0 %v787
        %1023 = vmatpush1.msra.mxu0 %v786
        %1024 = vmatprep.subr.mxu0 %v785
        %1025 = vmatpush1.msra.mxu0 %v784
        %1026 = vmatprep.subr.mxu0 %v783
        %1027 = vmatpush1.msra.mxu0 %v782
        %1028 = vmatprep.subr.mxu0 %v781
        %1029 = vmatpush1.msra.mxu0 %v780
        %1030 = vmatprep.subr.mxu0 %v779
        %1031 = vmatpush1.msra.mxu0 %v778
        %1032 = vmatprep.subr.mxu0 %v777
        %1033 = vmatpush1.msra.mxu0 %v776
        %1034 = vmatprep.subr.mxu0 %v775
        %1035 = vmatpush1.msra.mxu0 %v774
        %1036 = vmatprep.subr.mxu0 %v773
        %1037 = vmatpush1.msra.mxu0 %v772
        %1038 = vmatprep.subr.mxu0 %v771
        %1039 = vmatpush1.msra.mxu0 %v770
        %1040 = vmatprep.subr.mxu0 %v769
        %1041 = vmatpush1.msra.mxu0 %v768
        %1042 = vmatprep.subr.mxu0 0.0
        %1043 = vmatpush2.msra.mxu0 0.0
        %1044 = vmatprep.subr.mxu0 0.0
        %1045 = vmatpush2.msra.mxu0 0.0
        %1046 = vmatprep.subr.mxu0 0.0
        %1047 = vmatpush2.msra.mxu0 0.0
        %1048 = vmatprep.subr.mxu0 0.0
        %1049 = vmatpush2.msra.mxu0 0.0
        %1050 = vmatprep.subr.mxu0 0.0
        %1051 = vmatpush2.msra.mxu0 0.0
        %1052 = vmatprep.subr.mxu0 0.0
        %1053 = vmatpush2.msra.mxu0 0.0
        %1054 = vmatprep.subr.mxu0 0.0
        %1055 = vmatpush2.msra.mxu0 0.0
        %1056 = vmatprep.subr.mxu0 0.0
        %1057 = vmatpush2.msra.mxu0 0.0
        %1058 = vmatprep.subr.mxu0 0.0
        %1059 = vmatpush2.msra.mxu0 0.0
        %1060 = vmatprep.subr.mxu0 0.0
        %1061 = vmatpush2.msra.mxu0 0.0
        %1062 = vmatprep.subr.mxu0 0.0
        %1063 = vmatpush2.msra.mxu0 0.0
        %1064 = vmatprep.subr.mxu0 0.0
        %1065 = vmatpush2.msra.mxu0 0.0
        %1066 = vmatprep.subr.mxu0 0.0
        %1067 = vmatpush2.msra.mxu0 0.0
        %1068 = vmatprep.subr.mxu0 0.0
        %1069 = vmatpush2.msra.mxu0 0.0
        %1070 = vmatprep.subr.mxu0 0.0
        %1071 = vmatpush2.msra.mxu0 0.0
        %1072 = vmatprep.subr.mxu0 0.0
        %1073 = vmatpush2.msra.mxu0 0.0
        %1074 = vmatprep.mubr.f32.mxu0 0.0
        %1075 = vmatmul.mubr.f32.gmra.mxu0 %v752
        %v1076 = vpop.f32.mrf.mxu0
        %v1077 = vadd.f32 %v916, %v1076
        %v1078 = vpop.f32.mrf.mxu0
        %v1079 = vadd.f32 %v918, %v1078
        %1080 = vmatprep.mubr.f32.mxu0 0.0
        %1081 = vmatmul.mubr.f32.gmra.mxu0 %v753
        %v1082 = vpop.f32.mrf.mxu0
        %v1083 = vadd.f32 %v922, %v1082
        %v1084 = vpop.f32.mrf.mxu0
        %v1085 = vadd.f32 %v924, %v1084
        %1086 = vmatprep.mubr.f32.mxu0 0.0
        %1087 = vmatmul.mubr.f32.gmra.mxu0 %v754
        %v1088 = vpop.f32.mrf.mxu0
        %v1089 = vadd.f32 %v928, %v1088
        %v1090 = vpop.f32.mrf.mxu0
        %v1091 = vadd.f32 %v930, %v1090
        %1092 = vmatprep.mubr.f32.mxu0 0.0
        %1093 = vmatmul.mubr.f32.gmra.mxu0 %v755
        %v1094 = vpop.f32.mrf.mxu0
        %v1095 = vadd.f32 %v934, %v1094
        %v1096 = vpop.f32.mrf.mxu0
        %v1097 = vadd.f32 %v936, %v1096
        %1098 = vmatprep.mubr.f32.mxu0 0.0
        %1099 = vmatmul.mubr.f32.gmra.mxu0 %v756
        %v1100 = vpop.f32.mrf.mxu0
        %v1101 = vadd.f32 %v940, %v1100
        %v1102 = vpop.f32.mrf.mxu0
        %v1103 = vadd.f32 %v942, %v1102
        %1104 = vmatprep.mubr.f32.mxu0 0.0
        %1105 = vmatmul.mubr.f32.gmra.mxu0 %v757
        %v1106 = vpop.f32.mrf.mxu0
        %v1107 = vadd.f32 %v946, %v1106
        %v1108 = vpop.f32.mrf.mxu0
        %v1109 = vadd.f32 %v948, %v1108
        %1110 = vmatprep.mubr.f32.mxu0 0.0
        %1111 = vmatmul.mubr.f32.gmra.mxu0 %v758
        %v1112 = vpop.f32.mrf.mxu0
        %v1113 = vadd.f32 %v952, %v1112
        %v1114 = vpop.f32.mrf.mxu0
        %v1115 = vadd.f32 %v954, %v1114
        %1116 = vmatprep.mubr.f32.mxu0 0.0
        %1117 = vmatmul.mubr.f32.gmra.mxu0 %v759
        %v1118 = vpop.f32.mrf.mxu0
        %v1119 = vadd.f32 %v958, %v1118
        %v1120 = vpop.f32.mrf.mxu0
        %v1121 = vadd.f32 %v960, %v1120
        %1122 = vmatprep.mubr.f32.mxu0 0.0
        %1123 = vmatmul.mubr.f32.gmra.mxu0 %v760
        %v1124 = vpop.f32.mrf.mxu0
        %v1125 = vadd.f32 %v964, %v1124
        %v1126 = vpop.f32.mrf.mxu0
        %v1127 = vadd.f32 %v966, %v1126
        %1128 = vmatprep.mubr.f32.mxu0 0.0
        %1129 = vmatmul.mubr.f32.gmra.mxu0 %v761
        %v1130 = vpop.f32.mrf.mxu0
        %v1131 = vadd.f32 %v970, %v1130
        %v1132 = vpop.f32.mrf.mxu0
        %v1133 = vadd.f32 %v972, %v1132
        %1134 = vmatprep.mubr.f32.mxu0 0.0
        %1135 = vmatmul.mubr.f32.gmra.mxu0 %v762
        %v1136 = vpop.f32.mrf.mxu0
        %v1137 = vadd.f32 %v976, %v1136
        %v1138 = vpop.f32.mrf.mxu0
        %v1139 = vadd.f32 %v978, %v1138
        %1140 = vmatprep.mubr.f32.mxu0 0.0
        %1141 = vmatmul.mubr.f32.gmra.mxu0 %v763
        %v1142 = vpop.f32.mrf.mxu0
        %v1143 = vadd.f32 %v982, %v1142
        %v1144 = vpop.f32.mrf.mxu0
        %v1145 = vadd.f32 %v984, %v1144
        %1146 = vmatprep.mubr.f32.mxu0 0.0
        %1147 = vmatmul.mubr.f32.gmra.mxu0 %v764
        %v1148 = vpop.f32.mrf.mxu0
        %v1149 = vadd.f32 %v988, %v1148
        %v1150 = vpop.f32.mrf.mxu0
        %v1151 = vadd.f32 %v990, %v1150
        %1152 = vmatprep.mubr.f32.mxu0 0.0
        %1153 = vmatmul.mubr.f32.gmra.mxu0 %v765
        %v1154 = vpop.f32.mrf.mxu0
        %v1155 = vadd.f32 %v994, %v1154
        %v1156 = vpop.f32.mrf.mxu0
        %v1157 = vadd.f32 %v996, %v1156
        %1158 = vmatprep.mubr.f32.mxu0 0.0
        %1159 = vmatmul.mubr.f32.gmra.mxu0 %v766
        %v1160 = vpop.f32.mrf.mxu0
        %v1161 = vadd.f32 %v1000, %v1160
        %v1162 = vpop.f32.mrf.mxu0
        %v1163 = vadd.f32 %v1002, %v1162
        %1164 = vmatprep.mubr.f32.mxu0 0.0
        %1165 = vmatmul.mubr.f32.gmra.mxu0 %v767
        %v1166 = vpop.f32.mrf.mxu0
        %v1167 = vadd.f32 %v1006, %v1166
        %v1168 = vpop.f32.mrf.mxu0
        %v1169 = vadd.f32 %v1008, %v1168
        %1170 = vdwg.mxu0
        %v1171 = vld [vmem:[%s751 + $0x8] sm:$0xff]
        %v1172 = vld [vmem:[%s751 + $0x10] sm:$0xff]
        %v1173 = vld [vmem:[%s751 + $0x28] sm:$0xff]
        %v1174 = vld [vmem:[%s751 + $0x30] sm:$0xff]
        %v1175 = vld [vmem:[%s751 + $0x48] sm:$0xff]
        %v1176 = vld [vmem:[%s751 + $0x50] sm:$0xff]
        %v1177 = vld [vmem:[%s751 + $0x68] sm:$0xff]
        %v1178 = vld [vmem:[%s751 + $0x70] sm:$0xff]
        %v1179 = vld [vmem:[%s751 + $0x88] sm:$0xff]
        %v1180 = vld [vmem:[%s751 + $0x90] sm:$0xff]
        %v1181 = vld [vmem:[%s751 + $0xa8] sm:$0xff]
        %v1182 = vld [vmem:[%s751 + $0xb0] sm:$0xff]
        %v1183 = vld [vmem:[%s751 + $0xc8] sm:$0xff]
        %v1184 = vld [vmem:[%s751 + $0xd0] sm:$0xff]
        %v1185 = vld [vmem:[%s751 + $0xe8] sm:$0xff]
        %v1186 = vld [vmem:[%s751 + $0xf0] sm:$0xff]
        %s1187 = scalar_lea.vmem %s2, 512
        %v1188 = vld [vmem:[%s1187] sm:$0xff]
        %v1189 = vld [vmem:[%s1187 + $0x8] sm:$0xff]
        %v1190 = vld [vmem:[%s1187 + $0x10] sm:$0xff]
        %v1191 = vld [vmem:[%s1187 + $0x18] sm:$0xff]
        %v1192 = vld [vmem:[%s1187 + $0x20] sm:$0xff]
        %v1193 = vld [vmem:[%s1187 + $0x28] sm:$0xff]
        %v1194 = vld [vmem:[%s1187 + $0x30] sm:$0xff]
        %v1195 = vld [vmem:[%s1187 + $0x38] sm:$0xff]
        %v1196 = vld [vmem:[%s1187 + $0x40] sm:$0xff]
        %v1197 = vld [vmem:[%s1187 + $0x48] sm:$0xff]
        %v1198 = vld [vmem:[%s1187 + $0x50] sm:$0xff]
        %v1199 = vld [vmem:[%s1187 + $0x58] sm:$0xff]
        %v1200 = vld [vmem:[%s1187 + $0x60] sm:$0xff]
        %v1201 = vld [vmem:[%s1187 + $0x68] sm:$0xff]
        %v1202 = vld [vmem:[%s1187 + $0x70] sm:$0xff]
        %v1203 = vld [vmem:[%s1187 + $0x78] sm:$0xff]
        %v1204 = vld [vmem:[%s1187 + $0x80] sm:$0xff]
        %v1205 = vld [vmem:[%s1187 + $0x88] sm:$0xff]
        %v1206 = vld [vmem:[%s1187 + $0x90] sm:$0xff]
        %v1207 = vld [vmem:[%s1187 + $0x98] sm:$0xff]
        %v1208 = vld [vmem:[%s1187 + $0xa0] sm:$0xff]
        %v1209 = vld [vmem:[%s1187 + $0xa8] sm:$0xff]
        %v1210 = vld [vmem:[%s1187 + $0xb0] sm:$0xff]
        %v1211 = vld [vmem:[%s1187 + $0xb8] sm:$0xff]
        %v1212 = vld [vmem:[%s1187 + $0xc0] sm:$0xff]
        %v1213 = vld [vmem:[%s1187 + $0xc8] sm:$0xff]
        %v1214 = vld [vmem:[%s1187 + $0xd0] sm:$0xff]
        %v1215 = vld [vmem:[%s1187 + $0xd8] sm:$0xff]
        %v1216 = vld [vmem:[%s1187 + $0xe0] sm:$0xff]
        %v1217 = vld [vmem:[%s1187 + $0xe8] sm:$0xff]
        %v1218 = vld [vmem:[%s1187 + $0xf0] sm:$0xff]
        %v1219 = vld [vmem:[%s1187 + $0xf8] sm:$0xff]
        %1220 = vmatprep.subr.mxu0 %v1219
        %1221 = vmatpush1.msra.mxu0 %v1218
        %1222 = vmatprep.subr.mxu0 %v1217
        %1223 = vmatpush1.msra.mxu0 %v1216
        %1224 = vmatprep.subr.mxu0 %v1215
        %1225 = vmatpush1.msra.mxu0 %v1214
        %1226 = vmatprep.subr.mxu0 %v1213
        %1227 = vmatpush1.msra.mxu0 %v1212
        %1228 = vmatprep.subr.mxu0 %v1211
        %1229 = vmatpush1.msra.mxu0 %v1210
        %1230 = vmatprep.subr.mxu0 %v1209
        %1231 = vmatpush1.msra.mxu0 %v1208
        %1232 = vmatprep.subr.mxu0 %v1207
        %1233 = vmatpush1.msra.mxu0 %v1206
        %1234 = vmatprep.subr.mxu0 %v1205
        %1235 = vmatpush1.msra.mxu0 %v1204
        %1236 = vmatprep.subr.mxu0 %v1203
        %1237 = vmatpush1.msra.mxu0 %v1202
        %1238 = vmatprep.subr.mxu0 %v1201
        %1239 = vmatpush1.msra.mxu0 %v1200
        %1240 = vmatprep.subr.mxu0 %v1199
        %1241 = vmatpush1.msra.mxu0 %v1198
        %1242 = vmatprep.subr.mxu0 %v1197
        %1243 = vmatpush1.msra.mxu0 %v1196
        %1244 = vmatprep.subr.mxu0 %v1195
        %1245 = vmatpush1.msra.mxu0 %v1194
        %1246 = vmatprep.subr.mxu0 %v1193
        %1247 = vmatpush1.msra.mxu0 %v1192
        %1248 = vmatprep.subr.mxu0 %v1191
        %1249 = vmatpush1.msra.mxu0 %v1190
        %1250 = vmatprep.subr.mxu0 %v1189
        %1251 = vmatpush1.msra.mxu0 %v1188
        %1252 = vmatprep.subr.mxu0 0.0
        %1253 = vmatpush2.msra.mxu0 0.0
        %1254 = vmatprep.subr.mxu0 0.0
        %1255 = vmatpush2.msra.mxu0 0.0
        %1256 = vmatprep.subr.mxu0 0.0
        %1257 = vmatpush2.msra.mxu0 0.0
        %1258 = vmatprep.subr.mxu0 0.0
        %1259 = vmatpush2.msra.mxu0 0.0
        %1260 = vmatprep.subr.mxu0 0.0
        %1261 = vmatpush2.msra.mxu0 0.0
        %1262 = vmatprep.subr.mxu0 0.0
        %1263 = vmatpush2.msra.mxu0 0.0
        %1264 = vmatprep.subr.mxu0 0.0
        %1265 = vmatpush2.msra.mxu0 0.0
        %1266 = vmatprep.subr.mxu0 0.0
        %1267 = vmatpush2.msra.mxu0 0.0
        %1268 = vmatprep.subr.mxu0 0.0
        %1269 = vmatpush2.msra.mxu0 0.0
        %1270 = vmatprep.subr.mxu0 0.0
        %1271 = vmatpush2.msra.mxu0 0.0
        %1272 = vmatprep.subr.mxu0 0.0
        %1273 = vmatpush2.msra.mxu0 0.0
        %1274 = vmatprep.subr.mxu0 0.0
        %1275 = vmatpush2.msra.mxu0 0.0
        %1276 = vmatprep.subr.mxu0 0.0
        %1277 = vmatpush2.msra.mxu0 0.0
        %1278 = vmatprep.subr.mxu0 0.0
        %1279 = vmatpush2.msra.mxu0 0.0
        %1280 = vmatprep.subr.mxu0 0.0
        %1281 = vmatpush2.msra.mxu0 0.0
        %1282 = vmatprep.subr.mxu0 0.0
        %1283 = vmatpush2.msra.mxu0 0.0
        %1284 = vmatprep.mubr.f32.mxu0 0.0
        %1285 = vmatmul.mubr.f32.gmra.mxu0 %v1171
        %v1286 = vpop.f32.mrf.mxu0
        %v1287 = vadd.f32 0.0, %v1286
        %v1288 = vpop.f32.mrf.mxu0
        %v1289 = vadd.f32 0.0, %v1288
        %1290 = vmatprep.mubr.f32.mxu0 0.0
        %1291 = vmatmul.mubr.f32.gmra.mxu0 %v1172
        %v1292 = vpop.f32.mrf.mxu0
        %v1293 = vadd.f32 0.0, %v1292
        %v1294 = vpop.f32.mrf.mxu0
        %v1295 = vadd.f32 0.0, %v1294
        %1296 = vmatprep.mubr.f32.mxu0 0.0
        %1297 = vmatmul.mubr.f32.gmra.mxu0 %v1173
        %v1298 = vpop.f32.mrf.mxu0
        %v1299 = vadd.f32 0.0, %v1298
        %v1300 = vpop.f32.mrf.mxu0
        %v1301 = vadd.f32 0.0, %v1300
        %1302 = vmatprep.mubr.f32.mxu0 0.0
        %1303 = vmatmul.mubr.f32.gmra.mxu0 %v1174
        %v1304 = vpop.f32.mrf.mxu0
        %v1305 = vadd.f32 0.0, %v1304
        %v1306 = vpop.f32.mrf.mxu0
        %v1307 = vadd.f32 0.0, %v1306
        %1308 = vmatprep.mubr.f32.mxu0 0.0
        %1309 = vmatmul.mubr.f32.gmra.mxu0 %v1175
        %v1310 = vpop.f32.mrf.mxu0
        %v1311 = vadd.f32 0.0, %v1310
        %v1312 = vpop.f32.mrf.mxu0
        %v1313 = vadd.f32 0.0, %v1312
        %1314 = vmatprep.mubr.f32.mxu0 0.0
        %1315 = vmatmul.mubr.f32.gmra.mxu0 %v1176
        %v1316 = vpop.f32.mrf.mxu0
        %v1317 = vadd.f32 0.0, %v1316
        %v1318 = vpop.f32.mrf.mxu0
        %v1319 = vadd.f32 0.0, %v1318
        %1320 = vmatprep.mubr.f32.mxu0 0.0
        %1321 = vmatmul.mubr.f32.gmra.mxu0 %v1177
        %v1322 = vpop.f32.mrf.mxu0
        %v1323 = vadd.f32 0.0, %v1322
        %v1324 = vpop.f32.mrf.mxu0
        %v1325 = vadd.f32 0.0, %v1324
        %1326 = vmatprep.mubr.f32.mxu0 0.0
        %1327 = vmatmul.mubr.f32.gmra.mxu0 %v1178
        %v1328 = vpop.f32.mrf.mxu0
        %v1329 = vadd.f32 0.0, %v1328
        %v1330 = vpop.f32.mrf.mxu0
        %v1331 = vadd.f32 0.0, %v1330
        %1332 = vmatprep.mubr.f32.mxu0 0.0
        %1333 = vmatmul.mubr.f32.gmra.mxu0 %v1179
        %v1334 = vpop.f32.mrf.mxu0
        %v1335 = vadd.f32 0.0, %v1334
        %v1336 = vpop.f32.mrf.mxu0
        %v1337 = vadd.f32 0.0, %v1336
        %1338 = vmatprep.mubr.f32.mxu0 0.0
        %1339 = vmatmul.mubr.f32.gmra.mxu0 %v1180
        %v1340 = vpop.f32.mrf.mxu0
        %v1341 = vadd.f32 0.0, %v1340
        %v1342 = vpop.f32.mrf.mxu0
        %v1343 = vadd.f32 0.0, %v1342
        %1344 = vmatprep.mubr.f32.mxu0 0.0
        %1345 = vmatmul.mubr.f32.gmra.mxu0 %v1181
        %v1346 = vpop.f32.mrf.mxu0
        %v1347 = vadd.f32 0.0, %v1346
        %v1348 = vpop.f32.mrf.mxu0
        %v1349 = vadd.f32 0.0, %v1348
        %1350 = vmatprep.mubr.f32.mxu0 0.0
        %1351 = vmatmul.mubr.f32.gmra.mxu0 %v1182
        %v1352 = vpop.f32.mrf.mxu0
        %v1353 = vadd.f32 0.0, %v1352
        %v1354 = vpop.f32.mrf.mxu0
        %v1355 = vadd.f32 0.0, %v1354
        %1356 = vmatprep.mubr.f32.mxu0 0.0
        %1357 = vmatmul.mubr.f32.gmra.mxu0 %v1183
        %v1358 = vpop.f32.mrf.mxu0
        %v1359 = vadd.f32 0.0, %v1358
        %v1360 = vpop.f32.mrf.mxu0
        %v1361 = vadd.f32 0.0, %v1360
        %1362 = vmatprep.mubr.f32.mxu0 0.0
        %1363 = vmatmul.mubr.f32.gmra.mxu0 %v1184
        %v1364 = vpop.f32.mrf.mxu0
        %v1365 = vadd.f32 0.0, %v1364
        %v1366 = vpop.f32.mrf.mxu0
        %v1367 = vadd.f32 0.0, %v1366
        %1368 = vmatprep.mubr.f32.mxu0 0.0
        %1369 = vmatmul.mubr.f32.gmra.mxu0 %v1185
        %v1370 = vpop.f32.mrf.mxu0
        %v1371 = vadd.f32 0.0, %v1370
        %v1372 = vpop.f32.mrf.mxu0
        %v1373 = vadd.f32 0.0, %v1372
        %1374 = vmatprep.mubr.f32.mxu0 0.0
        %1375 = vmatmul.mubr.f32.gmra.mxu0 %v1186
        %v1376 = vpop.f32.mrf.mxu0
        %v1377 = vadd.f32 0.0, %v1376
        %v1378 = vpop.f32.mrf.mxu0
        %v1379 = vadd.f32 0.0, %v1378
        %1380 = vdwg.mxu0
        %v1381 = vadd.f32 %v1077, %v1287
        %v1382 = vadd.f32 %v1079, %v1289
        %v1383 = vadd.f32 %v1083, %v1293
        %v1384 = vadd.f32 %v1085, %v1295
        %v1385 = vadd.f32 %v1089, %v1299
        %v1386 = vadd.f32 %v1091, %v1301
        %v1387 = vadd.f32 %v1095, %v1305
        %v1388 = vadd.f32 %v1097, %v1307
        %v1389 = vadd.f32 %v1101, %v1311
        %v1390 = vadd.f32 %v1103, %v1313
        %v1391 = vadd.f32 %v1107, %v1317
        %v1392 = vadd.f32 %v1109, %v1319
        %v1393 = vadd.f32 %v1113, %v1323
        %v1394 = vadd.f32 %v1115, %v1325
        %v1395 = vadd.f32 %v1119, %v1329
        %v1396 = vadd.f32 %v1121, %v1331
        %v1397 = vadd.f32 %v1125, %v1335
        %v1398 = vadd.f32 %v1127, %v1337
        %v1399 = vadd.f32 %v1131, %v1341
        %v1400 = vadd.f32 %v1133, %v1343
        %v1401 = vadd.f32 %v1137, %v1347
        %v1402 = vadd.f32 %v1139, %v1349
        %v1403 = vadd.f32 %v1143, %v1353
        %v1404 = vadd.f32 %v1145, %v1355
        %v1405 = vadd.f32 %v1149, %v1359
        %v1406 = vadd.f32 %v1151, %v1361
        %v1407 = vadd.f32 %v1155, %v1365
        %v1408 = vadd.f32 %v1157, %v1367
        %v1409 = vadd.f32 %v1161, %v1371
        %v1410 = vadd.f32 %v1163, %v1373
        %v1411 = vadd.f32 %v1167, %v1377
        %v1412 = vadd.f32 %v1169, %v1379
        %v1413 = vld [vmem:[%s341 + $0x4] sm:$0xff]
        %v1414 = vld [vmem:[%s341 + $0xc] sm:$0xff]
        %v1415 = vld [vmem:[%s341 + $0x24] sm:$0xff]
        %v1416 = vld [vmem:[%s341 + $0x2c] sm:$0xff]
        %v1417 = vld [vmem:[%s341 + $0x44] sm:$0xff]
        %v1418 = vld [vmem:[%s341 + $0x4c] sm:$0xff]
        %v1419 = vld [vmem:[%s341 + $0x64] sm:$0xff]
        %v1420 = vld [vmem:[%s341 + $0x6c] sm:$0xff]
        %v1421 = vld [vmem:[%s341 + $0x84] sm:$0xff]
        %v1422 = vld [vmem:[%s341 + $0x8c] sm:$0xff]
        %v1423 = vld [vmem:[%s341 + $0xa4] sm:$0xff]
        %v1424 = vld [vmem:[%s341 + $0xac] sm:$0xff]
        %v1425 = vld [vmem:[%s341 + $0xc4] sm:$0xff]
        %v1426 = vld [vmem:[%s341 + $0xcc] sm:$0xff]
        %v1427 = vld [vmem:[%s341 + $0xe4] sm:$0xff]
        %v1428 = vld [vmem:[%s341 + $0xec] sm:$0xff]
        %s1429 = scalar_lea.vmem %s2, 768
        %v1430 = vld [vmem:[%s1429] sm:$0xff]
        %v1431 = vld [vmem:[%s1429 + $0x8] sm:$0xff]
        %v1432 = vld [vmem:[%s1429 + $0x10] sm:$0xff]
        %v1433 = vld [vmem:[%s1429 + $0x18] sm:$0xff]
        %v1434 = vld [vmem:[%s1429 + $0x20] sm:$0xff]
        %v1435 = vld [vmem:[%s1429 + $0x28] sm:$0xff]
        %v1436 = vld [vmem:[%s1429 + $0x30] sm:$0xff]
        %v1437 = vld [vmem:[%s1429 + $0x38] sm:$0xff]
        %v1438 = vld [vmem:[%s1429 + $0x40] sm:$0xff]
        %v1439 = vld [vmem:[%s1429 + $0x48] sm:$0xff]
        %v1440 = vld [vmem:[%s1429 + $0x50] sm:$0xff]
        %v1441 = vld [vmem:[%s1429 + $0x58] sm:$0xff]
        %v1442 = vld [vmem:[%s1429 + $0x60] sm:$0xff]
        %v1443 = vld [vmem:[%s1429 + $0x68] sm:$0xff]
        %v1444 = vld [vmem:[%s1429 + $0x70] sm:$0xff]
        %v1445 = vld [vmem:[%s1429 + $0x78] sm:$0xff]
        %v1446 = vld [vmem:[%s1429 + $0x80] sm:$0xff]
        %v1447 = vld [vmem:[%s1429 + $0x88] sm:$0xff]
        %v1448 = vld [vmem:[%s1429 + $0x90] sm:$0xff]
        %v1449 = vld [vmem:[%s1429 + $0x98] sm:$0xff]
        %v1450 = vld [vmem:[%s1429 + $0xa0] sm:$0xff]
        %v1451 = vld [vmem:[%s1429 + $0xa8] sm:$0xff]
        %v1452 = vld [vmem:[%s1429 + $0xb0] sm:$0xff]
        %v1453 = vld [vmem:[%s1429 + $0xb8] sm:$0xff]
        %v1454 = vld [vmem:[%s1429 + $0xc0] sm:$0xff]
        %v1455 = vld [vmem:[%s1429 + $0xc8] sm:$0xff]
        %v1456 = vld [vmem:[%s1429 + $0xd0] sm:$0xff]
        %v1457 = vld [vmem:[%s1429 + $0xd8] sm:$0xff]
        %v1458 = vld [vmem:[%s1429 + $0xe0] sm:$0xff]
        %v1459 = vld [vmem:[%s1429 + $0xe8] sm:$0xff]
        %v1460 = vld [vmem:[%s1429 + $0xf0] sm:$0xff]
        %v1461 = vld [vmem:[%s1429 + $0xf8] sm:$0xff]
        %1462 = vmatprep.subr.mxu0 %v1461
        %1463 = vmatpush1.msra.mxu0 %v1460
        %1464 = vmatprep.subr.mxu0 %v1459
        %1465 = vmatpush1.msra.mxu0 %v1458
        %1466 = vmatprep.subr.mxu0 %v1457
        %1467 = vmatpush1.msra.mxu0 %v1456
        %1468 = vmatprep.subr.mxu0 %v1455
        %1469 = vmatpush1.msra.mxu0 %v1454
        %1470 = vmatprep.subr.mxu0 %v1453
        %1471 = vmatpush1.msra.mxu0 %v1452
        %1472 = vmatprep.subr.mxu0 %v1451
        %1473 = vmatpush1.msra.mxu0 %v1450
        %1474 = vmatprep.subr.mxu0 %v1449
        %1475 = vmatpush1.msra.mxu0 %v1448
        %1476 = vmatprep.subr.mxu0 %v1447
        %1477 = vmatpush1.msra.mxu0 %v1446
        %1478 = vmatprep.subr.mxu0 %v1445
        %1479 = vmatpush1.msra.mxu0 %v1444
        %1480 = vmatprep.subr.mxu0 %v1443
        %1481 = vmatpush1.msra.mxu0 %v1442
        %1482 = vmatprep.subr.mxu0 %v1441
        %1483 = vmatpush1.msra.mxu0 %v1440
        %1484 = vmatprep.subr.mxu0 %v1439
        %1485 = vmatpush1.msra.mxu0 %v1438
        %1486 = vmatprep.subr.mxu0 %v1437
        %1487 = vmatpush1.msra.mxu0 %v1436
        %1488 = vmatprep.subr.mxu0 %v1435
        %1489 = vmatpush1.msra.mxu0 %v1434
        %1490 = vmatprep.subr.mxu0 %v1433
        %1491 = vmatpush1.msra.mxu0 %v1432
        %1492 = vmatprep.subr.mxu0 %v1431
        %1493 = vmatpush1.msra.mxu0 %v1430
        %1494 = vmatprep.subr.mxu0 0.0
        %1495 = vmatpush2.msra.mxu0 0.0
        %1496 = vmatprep.subr.mxu0 0.0
        %1497 = vmatpush2.msra.mxu0 0.0
        %1498 = vmatprep.subr.mxu0 0.0
        %1499 = vmatpush2.msra.mxu0 0.0
        %1500 = vmatprep.subr.mxu0 0.0
        %1501 = vmatpush2.msra.mxu0 0.0
        %1502 = vmatprep.subr.mxu0 0.0
        %1503 = vmatpush2.msra.mxu0 0.0
        %1504 = vmatprep.subr.mxu0 0.0
        %1505 = vmatpush2.msra.mxu0 0.0
        %1506 = vmatprep.subr.mxu0 0.0
        %1507 = vmatpush2.msra.mxu0 0.0
        %1508 = vmatprep.subr.mxu0 0.0
        %1509 = vmatpush2.msra.mxu0 0.0
        %1510 = vmatprep.subr.mxu0 0.0
        %1511 = vmatpush2.msra.mxu0 0.0
        %1512 = vmatprep.subr.mxu0 0.0
        %1513 = vmatpush2.msra.mxu0 0.0
        %1514 = vmatprep.subr.mxu0 0.0
        %1515 = vmatpush2.msra.mxu0 0.0
        %1516 = vmatprep.subr.mxu0 0.0
        %1517 = vmatpush2.msra.mxu0 0.0
        %1518 = vmatprep.subr.mxu0 0.0
        %1519 = vmatpush2.msra.mxu0 0.0
        %1520 = vmatprep.subr.mxu0 0.0
        %1521 = vmatpush2.msra.mxu0 0.0
        %1522 = vmatprep.subr.mxu0 0.0
        %1523 = vmatpush2.msra.mxu0 0.0
        %1524 = vmatprep.subr.mxu0 0.0
        %1525 = vmatpush2.msra.mxu0 0.0
        %1526 = vmatprep.mubr.f32.mxu0 0.0
        %1527 = vmatmul.mubr.f32.gmra.mxu0 %v1413
        %v1528 = vpop.f32.mrf.mxu0
        %v1529 = vadd.f32 0.0, %v1528
        %v1530 = vpop.f32.mrf.mxu0
        %v1531 = vadd.f32 0.0, %v1530
        %1532 = vmatprep.mubr.f32.mxu0 0.0
        %1533 = vmatmul.mubr.f32.gmra.mxu0 %v1414
        %v1534 = vpop.f32.mrf.mxu0
        %v1535 = vadd.f32 0.0, %v1534
        %v1536 = vpop.f32.mrf.mxu0
        %v1537 = vadd.f32 0.0, %v1536
        %1538 = vmatprep.mubr.f32.mxu0 0.0
        %1539 = vmatmul.mubr.f32.gmra.mxu0 %v1415
        %v1540 = vpop.f32.mrf.mxu0
        %v1541 = vadd.f32 0.0, %v1540
        %v1542 = vpop.f32.mrf.mxu0
        %v1543 = vadd.f32 0.0, %v1542
        %1544 = vmatprep.mubr.f32.mxu0 0.0
        %1545 = vmatmul.mubr.f32.gmra.mxu0 %v1416
        %v1546 = vpop.f32.mrf.mxu0
        %v1547 = vadd.f32 0.0, %v1546
        %v1548 = vpop.f32.mrf.mxu0
        %v1549 = vadd.f32 0.0, %v1548
        %1550 = vmatprep.mubr.f32.mxu0 0.0
        %1551 = vmatmul.mubr.f32.gmra.mxu0 %v1417
        %v1552 = vpop.f32.mrf.mxu0
        %v1553 = vadd.f32 0.0, %v1552
        %v1554 = vpop.f32.mrf.mxu0
        %v1555 = vadd.f32 0.0, %v1554
        %1556 = vmatprep.mubr.f32.mxu0 0.0
        %1557 = vmatmul.mubr.f32.gmra.mxu0 %v1418
        %v1558 = vpop.f32.mrf.mxu0
        %v1559 = vadd.f32 0.0, %v1558
        %v1560 = vpop.f32.mrf.mxu0
        %v1561 = vadd.f32 0.0, %v1560
        %1562 = vmatprep.mubr.f32.mxu0 0.0
        %1563 = vmatmul.mubr.f32.gmra.mxu0 %v1419
        %v1564 = vpop.f32.mrf.mxu0
        %v1565 = vadd.f32 0.0, %v1564
        %v1566 = vpop.f32.mrf.mxu0
        %v1567 = vadd.f32 0.0, %v1566
        %1568 = vmatprep.mubr.f32.mxu0 0.0
        %1569 = vmatmul.mubr.f32.gmra.mxu0 %v1420
        %v1570 = vpop.f32.mrf.mxu0
        %v1571 = vadd.f32 0.0, %v1570
        %v1572 = vpop.f32.mrf.mxu0
        %v1573 = vadd.f32 0.0, %v1572
        %1574 = vmatprep.mubr.f32.mxu0 0.0
        %1575 = vmatmul.mubr.f32.gmra.mxu0 %v1421
        %v1576 = vpop.f32.mrf.mxu0
        %v1577 = vadd.f32 0.0, %v1576
        %v1578 = vpop.f32.mrf.mxu0
        %v1579 = vadd.f32 0.0, %v1578
        %1580 = vmatprep.mubr.f32.mxu0 0.0
        %1581 = vmatmul.mubr.f32.gmra.mxu0 %v1422
        %v1582 = vpop.f32.mrf.mxu0
        %v1583 = vadd.f32 0.0, %v1582
        %v1584 = vpop.f32.mrf.mxu0
        %v1585 = vadd.f32 0.0, %v1584
        %1586 = vmatprep.mubr.f32.mxu0 0.0
        %1587 = vmatmul.mubr.f32.gmra.mxu0 %v1423
        %v1588 = vpop.f32.mrf.mxu0
        %v1589 = vadd.f32 0.0, %v1588
        %v1590 = vpop.f32.mrf.mxu0
        %v1591 = vadd.f32 0.0, %v1590
        %1592 = vmatprep.mubr.f32.mxu0 0.0
        %1593 = vmatmul.mubr.f32.gmra.mxu0 %v1424
        %v1594 = vpop.f32.mrf.mxu0
        %v1595 = vadd.f32 0.0, %v1594
        %v1596 = vpop.f32.mrf.mxu0
        %v1597 = vadd.f32 0.0, %v1596
        %1598 = vmatprep.mubr.f32.mxu0 0.0
        %1599 = vmatmul.mubr.f32.gmra.mxu0 %v1425
        %v1600 = vpop.f32.mrf.mxu0
        %v1601 = vadd.f32 0.0, %v1600
        %v1602 = vpop.f32.mrf.mxu0
        %v1603 = vadd.f32 0.0, %v1602
        %1604 = vmatprep.mubr.f32.mxu0 0.0
        %1605 = vmatmul.mubr.f32.gmra.mxu0 %v1426
        %v1606 = vpop.f32.mrf.mxu0
        %v1607 = vadd.f32 0.0, %v1606
        %v1608 = vpop.f32.mrf.mxu0
        %v1609 = vadd.f32 0.0, %v1608
        %1610 = vmatprep.mubr.f32.mxu0 0.0
        %1611 = vmatmul.mubr.f32.gmra.mxu0 %v1427
        %v1612 = vpop.f32.mrf.mxu0
        %v1613 = vadd.f32 0.0, %v1612
        %v1614 = vpop.f32.mrf.mxu0
        %v1615 = vadd.f32 0.0, %v1614
        %1616 = vmatprep.mubr.f32.mxu0 0.0
        %1617 = vmatmul.mubr.f32.gmra.mxu0 %v1428
        %v1618 = vpop.f32.mrf.mxu0
        %v1619 = vadd.f32 0.0, %v1618
        %v1620 = vpop.f32.mrf.mxu0
        %v1621 = vadd.f32 0.0, %v1620
        %1622 = vdwg.mxu0
        %v1623 = vadd.f32 %v1381, %v1529
        %v1624 = vadd.f32 %v1382, %v1531
        %v1625 = vadd.f32 %v1383, %v1535
        %v1626 = vadd.f32 %v1384, %v1537
        %v1627 = vadd.f32 %v1385, %v1541
        %v1628 = vadd.f32 %v1386, %v1543
        %v1629 = vadd.f32 %v1387, %v1547
        %v1630 = vadd.f32 %v1388, %v1549
        %v1631 = vadd.f32 %v1389, %v1553
        %v1632 = vadd.f32 %v1390, %v1555
        %v1633 = vadd.f32 %v1391, %v1559
        %v1634 = vadd.f32 %v1392, %v1561
        %v1635 = vadd.f32 %v1393, %v1565
        %v1636 = vadd.f32 %v1394, %v1567
        %v1637 = vadd.f32 %v1395, %v1571
        %v1638 = vadd.f32 %v1396, %v1573
        %v1639 = vadd.f32 %v1397, %v1577
        %v1640 = vadd.f32 %v1398, %v1579
        %v1641 = vadd.f32 %v1399, %v1583
        %v1642 = vadd.f32 %v1400, %v1585
        %v1643 = vadd.f32 %v1401, %v1589
        %v1644 = vadd.f32 %v1402, %v1591
        %v1645 = vadd.f32 %v1403, %v1595
        %v1646 = vadd.f32 %v1404, %v1597
        %v1647 = vadd.f32 %v1405, %v1601
        %v1648 = vadd.f32 %v1406, %v1603
        %v1649 = vadd.f32 %v1407, %v1607
        %v1650 = vadd.f32 %v1408, %v1609
        %v1651 = vadd.f32 %v1409, %v1613
        %v1652 = vadd.f32 %v1410, %v1615
        %v1653 = vadd.f32 %v1411, %v1619
        %v1654 = vadd.f32 %v1412, %v1621
        %s1655 = scalar_lea.vmem %s2, 1024
        %v1656 = vld [vmem:[%s1655] sm:$0xff]
        %v1657 = vld [vmem:[%s1655 + $0x8] sm:$0xff]
        %v1658 = vld [vmem:[%s1655 + $0x10] sm:$0xff]
        %v1659 = vld [vmem:[%s1655 + $0x18] sm:$0xff]
        %v1660 = vld [vmem:[%s1655 + $0x20] sm:$0xff]
        %v1661 = vld [vmem:[%s1655 + $0x28] sm:$0xff]
        %v1662 = vld [vmem:[%s1655 + $0x30] sm:$0xff]
        %v1663 = vld [vmem:[%s1655 + $0x38] sm:$0xff]
        %v1664 = vld [vmem:[%s1655 + $0x40] sm:$0xff]
        %v1665 = vld [vmem:[%s1655 + $0x48] sm:$0xff]
        %v1666 = vld [vmem:[%s1655 + $0x50] sm:$0xff]
        %v1667 = vld [vmem:[%s1655 + $0x58] sm:$0xff]
        %v1668 = vld [vmem:[%s1655 + $0x60] sm:$0xff]
        %v1669 = vld [vmem:[%s1655 + $0x68] sm:$0xff]
        %v1670 = vld [vmem:[%s1655 + $0x70] sm:$0xff]
        %v1671 = vld [vmem:[%s1655 + $0x78] sm:$0xff]
        %v1672 = vld [vmem:[%s1655 + $0x80] sm:$0xff]
        %v1673 = vld [vmem:[%s1655 + $0x88] sm:$0xff]
        %v1674 = vld [vmem:[%s1655 + $0x90] sm:$0xff]
        %v1675 = vld [vmem:[%s1655 + $0x98] sm:$0xff]
        %v1676 = vld [vmem:[%s1655 + $0xa0] sm:$0xff]
        %v1677 = vld [vmem:[%s1655 + $0xa8] sm:$0xff]
        %v1678 = vld [vmem:[%s1655 + $0xb0] sm:$0xff]
        %v1679 = vld [vmem:[%s1655 + $0xb8] sm:$0xff]
        %v1680 = vld [vmem:[%s1655 + $0xc0] sm:$0xff]
        %v1681 = vld [vmem:[%s1655 + $0xc8] sm:$0xff]
        %v1682 = vld [vmem:[%s1655 + $0xd0] sm:$0xff]
        %v1683 = vld [vmem:[%s1655 + $0xd8] sm:$0xff]
        %v1684 = vld [vmem:[%s1655 + $0xe0] sm:$0xff]
        %v1685 = vld [vmem:[%s1655 + $0xe8] sm:$0xff]
        %v1686 = vld [vmem:[%s1655 + $0xf0] sm:$0xff]
        %v1687 = vld [vmem:[%s1655 + $0xf8] sm:$0xff]
        %1688 = vmatprep.subr.mxu0 %v1687
        %1689 = vmatpush1.msra.mxu0 %v1686
        %1690 = vmatprep.subr.mxu0 %v1685
        %1691 = vmatpush1.msra.mxu0 %v1684
        %1692 = vmatprep.subr.mxu0 %v1683
        %1693 = vmatpush1.msra.mxu0 %v1682
        %1694 = vmatprep.subr.mxu0 %v1681
        %1695 = vmatpush1.msra.mxu0 %v1680
        %1696 = vmatprep.subr.mxu0 %v1679
        %1697 = vmatpush1.msra.mxu0 %v1678
        %1698 = vmatprep.subr.mxu0 %v1677
        %1699 = vmatpush1.msra.mxu0 %v1676
        %1700 = vmatprep.subr.mxu0 %v1675
        %1701 = vmatpush1.msra.mxu0 %v1674
        %1702 = vmatprep.subr.mxu0 %v1673
        %1703 = vmatpush1.msra.mxu0 %v1672
        %1704 = vmatprep.subr.mxu0 %v1671
        %1705 = vmatpush1.msra.mxu0 %v1670
        %1706 = vmatprep.subr.mxu0 %v1669
        %1707 = vmatpush1.msra.mxu0 %v1668
        %1708 = vmatprep.subr.mxu0 %v1667
        %1709 = vmatpush1.msra.mxu0 %v1666
        %1710 = vmatprep.subr.mxu0 %v1665
        %1711 = vmatpush1.msra.mxu0 %v1664
        %1712 = vmatprep.subr.mxu0 %v1663
        %1713 = vmatpush1.msra.mxu0 %v1662
        %1714 = vmatprep.subr.mxu0 %v1661
        %1715 = vmatpush1.msra.mxu0 %v1660
        %1716 = vmatprep.subr.mxu0 %v1659
        %1717 = vmatpush1.msra.mxu0 %v1658
        %1718 = vmatprep.subr.mxu0 %v1657
        %1719 = vmatpush1.msra.mxu0 %v1656
        %1720 = vmatprep.subr.mxu0 0.0
        %1721 = vmatpush2.msra.mxu0 0.0
        %1722 = vmatprep.subr.mxu0 0.0
        %1723 = vmatpush2.msra.mxu0 0.0
        %1724 = vmatprep.subr.mxu0 0.0
        %1725 = vmatpush2.msra.mxu0 0.0
        %1726 = vmatprep.subr.mxu0 0.0
        %1727 = vmatpush2.msra.mxu0 0.0
        %1728 = vmatprep.subr.mxu0 0.0
        %1729 = vmatpush2.msra.mxu0 0.0
        %1730 = vmatprep.subr.mxu0 0.0
        %1731 = vmatpush2.msra.mxu0 0.0
        %1732 = vmatprep.subr.mxu0 0.0
        %1733 = vmatpush2.msra.mxu0 0.0
        %1734 = vmatprep.subr.mxu0 0.0
        %1735 = vmatpush2.msra.mxu0 0.0
        %1736 = vmatprep.subr.mxu0 0.0
        %1737 = vmatpush2.msra.mxu0 0.0
        %1738 = vmatprep.subr.mxu0 0.0
        %1739 = vmatpush2.msra.mxu0 0.0
        %1740 = vmatprep.subr.mxu0 0.0
        %1741 = vmatpush2.msra.mxu0 0.0
        %1742 = vmatprep.subr.mxu0 0.0
        %1743 = vmatpush2.msra.mxu0 0.0
        %1744 = vmatprep.subr.mxu0 0.0
        %1745 = vmatpush2.msra.mxu0 0.0
        %1746 = vmatprep.subr.mxu0 0.0
        %1747 = vmatpush2.msra.mxu0 0.0
        %1748 = vmatprep.subr.mxu0 0.0
        %1749 = vmatpush2.msra.mxu0 0.0
        %1750 = vmatprep.subr.mxu0 0.0
        %1751 = vmatpush2.msra.mxu0 0.0
        %1752 = vmatprep.mubr.f32.mxu0 0.0
        %1753 = vmatmul.mubr.f32.gmra.mxu0 %v342
        %v1754 = vpop.f32.mrf.mxu0
        %v1755 = vadd.f32 0.0, %v1754
        %v1756 = vpop.f32.mrf.mxu0
        %v1757 = vadd.f32 0.0, %v1756
        %1758 = vmatprep.mubr.f32.mxu0 0.0
        %1759 = vmatmul.mubr.f32.gmra.mxu0 %v343
        %v1760 = vpop.f32.mrf.mxu0
        %v1761 = vadd.f32 0.0, %v1760
        %v1762 = vpop.f32.mrf.mxu0
        %v1763 = vadd.f32 0.0, %v1762
        %1764 = vmatprep.mubr.f32.mxu0 0.0
        %1765 = vmatmul.mubr.f32.gmra.mxu0 %v344
        %v1766 = vpop.f32.mrf.mxu0
        %v1767 = vadd.f32 0.0, %v1766
        %v1768 = vpop.f32.mrf.mxu0
        %v1769 = vadd.f32 0.0, %v1768
        %1770 = vmatprep.mubr.f32.mxu0 0.0
        %1771 = vmatmul.mubr.f32.gmra.mxu0 %v345
        %v1772 = vpop.f32.mrf.mxu0
        %v1773 = vadd.f32 0.0, %v1772
        %v1774 = vpop.f32.mrf.mxu0
        %v1775 = vadd.f32 0.0, %v1774
        %1776 = vmatprep.mubr.f32.mxu0 0.0
        %1777 = vmatmul.mubr.f32.gmra.mxu0 %v346
        %v1778 = vpop.f32.mrf.mxu0
        %v1779 = vadd.f32 0.0, %v1778
        %v1780 = vpop.f32.mrf.mxu0
        %v1781 = vadd.f32 0.0, %v1780
        %1782 = vmatprep.mubr.f32.mxu0 0.0
        %1783 = vmatmul.mubr.f32.gmra.mxu0 %v347
        %v1784 = vpop.f32.mrf.mxu0
        %v1785 = vadd.f32 0.0, %v1784
        %v1786 = vpop.f32.mrf.mxu0
        %v1787 = vadd.f32 0.0, %v1786
        %1788 = vmatprep.mubr.f32.mxu0 0.0
        %1789 = vmatmul.mubr.f32.gmra.mxu0 %v348
        %v1790 = vpop.f32.mrf.mxu0
        %v1791 = vadd.f32 0.0, %v1790
        %v1792 = vpop.f32.mrf.mxu0
        %v1793 = vadd.f32 0.0, %v1792
        %1794 = vmatprep.mubr.f32.mxu0 0.0
        %1795 = vmatmul.mubr.f32.gmra.mxu0 %v349
        %v1796 = vpop.f32.mrf.mxu0
        %v1797 = vadd.f32 0.0, %v1796
        %v1798 = vpop.f32.mrf.mxu0
        %v1799 = vadd.f32 0.0, %v1798
        %1800 = vmatprep.mubr.f32.mxu0 0.0
        %1801 = vmatmul.mubr.f32.gmra.mxu0 %v350
        %v1802 = vpop.f32.mrf.mxu0
        %v1803 = vadd.f32 0.0, %v1802
        %v1804 = vpop.f32.mrf.mxu0
        %v1805 = vadd.f32 0.0, %v1804
        %1806 = vmatprep.mubr.f32.mxu0 0.0
        %1807 = vmatmul.mubr.f32.gmra.mxu0 %v351
        %v1808 = vpop.f32.mrf.mxu0
        %v1809 = vadd.f32 0.0, %v1808
        %v1810 = vpop.f32.mrf.mxu0
        %v1811 = vadd.f32 0.0, %v1810
        %1812 = vmatprep.mubr.f32.mxu0 0.0
        %1813 = vmatmul.mubr.f32.gmra.mxu0 %v352
        %v1814 = vpop.f32.mrf.mxu0
        %v1815 = vadd.f32 0.0, %v1814
        %v1816 = vpop.f32.mrf.mxu0
        %v1817 = vadd.f32 0.0, %v1816
        %1818 = vmatprep.mubr.f32.mxu0 0.0
        %1819 = vmatmul.mubr.f32.gmra.mxu0 %v353
        %v1820 = vpop.f32.mrf.mxu0
        %v1821 = vadd.f32 0.0, %v1820
        %v1822 = vpop.f32.mrf.mxu0
        %v1823 = vadd.f32 0.0, %v1822
        %1824 = vmatprep.mubr.f32.mxu0 0.0
        %1825 = vmatmul.mubr.f32.gmra.mxu0 %v354
        %v1826 = vpop.f32.mrf.mxu0
        %v1827 = vadd.f32 0.0, %v1826
        %v1828 = vpop.f32.mrf.mxu0
        %v1829 = vadd.f32 0.0, %v1828
        %1830 = vmatprep.mubr.f32.mxu0 0.0
        %1831 = vmatmul.mubr.f32.gmra.mxu0 %v355
        %v1832 = vpop.f32.mrf.mxu0
        %v1833 = vadd.f32 0.0, %v1832
        %v1834 = vpop.f32.mrf.mxu0
        %v1835 = vadd.f32 0.0, %v1834
        %1836 = vmatprep.mubr.f32.mxu0 0.0
        %1837 = vmatmul.mubr.f32.gmra.mxu0 %v356
        %v1838 = vpop.f32.mrf.mxu0
        %v1839 = vadd.f32 0.0, %v1838
        %v1840 = vpop.f32.mrf.mxu0
        %v1841 = vadd.f32 0.0, %v1840
        %1842 = vmatprep.mubr.f32.mxu0 0.0
        %1843 = vmatmul.mubr.f32.gmra.mxu0 %v357
        %v1844 = vpop.f32.mrf.mxu0
        %v1845 = vadd.f32 0.0, %v1844
        %v1846 = vpop.f32.mrf.mxu0
        %v1847 = vadd.f32 0.0, %v1846
        %1848 = vdwg.mxu0
        %v1849 = vadd.f32 %v1623, %v1755
        %v1850 = vadd.f32 %v1624, %v1757
        %v1851 = vadd.f32 %v1625, %v1761
        %v1852 = vadd.f32 %v1626, %v1763
        %v1853 = vadd.f32 %v1627, %v1767
        %v1854 = vadd.f32 %v1628, %v1769
        %v1855 = vadd.f32 %v1629, %v1773
        %v1856 = vadd.f32 %v1630, %v1775
        %v1857 = vadd.f32 %v1631, %v1779
        %v1858 = vadd.f32 %v1632, %v1781
        %v1859 = vadd.f32 %v1633, %v1785
        %v1860 = vadd.f32 %v1634, %v1787
        %v1861 = vadd.f32 %v1635, %v1791
        %v1862 = vadd.f32 %v1636, %v1793
        %v1863 = vadd.f32 %v1637, %v1797
        %v1864 = vadd.f32 %v1638, %v1799
        %v1865 = vadd.f32 %v1639, %v1803
        %v1866 = vadd.f32 %v1640, %v1805
        %v1867 = vadd.f32 %v1641, %v1809
        %v1868 = vadd.f32 %v1642, %v1811
        %v1869 = vadd.f32 %v1643, %v1815
        %v1870 = vadd.f32 %v1644, %v1817
        %v1871 = vadd.f32 %v1645, %v1821
        %v1872 = vadd.f32 %v1646, %v1823
        %v1873 = vadd.f32 %v1647, %v1827
        %v1874 = vadd.f32 %v1648, %v1829
        %v1875 = vadd.f32 %v1649, %v1833
        %v1876 = vadd.f32 %v1650, %v1835
        %v1877 = vadd.f32 %v1651, %v1839
        %v1878 = vadd.f32 %v1652, %v1841
        %v1879 = vadd.f32 %v1653, %v1845
        %v1880 = vadd.f32 %v1654, %v1847
        %v1881 = vld [vmem:[%s341 + $0x8] sm:$0xff]
        %v1882 = vld [vmem:[%s341 + $0x10] sm:$0xff]
        %v1883 = vld [vmem:[%s341 + $0x28] sm:$0xff]
        %v1884 = vld [vmem:[%s341 + $0x30] sm:$0xff]
        %v1885 = vld [vmem:[%s341 + $0x48] sm:$0xff]
        %v1886 = vld [vmem:[%s341 + $0x50] sm:$0xff]
        %v1887 = vld [vmem:[%s341 + $0x68] sm:$0xff]
        %v1888 = vld [vmem:[%s341 + $0x70] sm:$0xff]
        %v1889 = vld [vmem:[%s341 + $0x88] sm:$0xff]
        %v1890 = vld [vmem:[%s341 + $0x90] sm:$0xff]
        %v1891 = vld [vmem:[%s341 + $0xa8] sm:$0xff]
        %v1892 = vld [vmem:[%s341 + $0xb0] sm:$0xff]
        %v1893 = vld [vmem:[%s341 + $0xc8] sm:$0xff]
        %v1894 = vld [vmem:[%s341 + $0xd0] sm:$0xff]
        %v1895 = vld [vmem:[%s341 + $0xe8] sm:$0xff]
        %v1896 = vld [vmem:[%s341 + $0xf0] sm:$0xff]
        %s1897 = scalar_lea.vmem %s2, 1280
        %v1898 = vld [vmem:[%s1897] sm:$0xff]
        %v1899 = vld [vmem:[%s1897 + $0x8] sm:$0xff]
        %v1900 = vld [vmem:[%s1897 + $0x10] sm:$0xff]
        %v1901 = vld [vmem:[%s1897 + $0x18] sm:$0xff]
        %v1902 = vld [vmem:[%s1897 + $0x20] sm:$0xff]
        %v1903 = vld [vmem:[%s1897 + $0x28] sm:$0xff]
        %v1904 = vld [vmem:[%s1897 + $0x30] sm:$0xff]
        %v1905 = vld [vmem:[%s1897 + $0x38] sm:$0xff]
        %v1906 = vld [vmem:[%s1897 + $0x40] sm:$0xff]
        %v1907 = vld [vmem:[%s1897 + $0x48] sm:$0xff]
        %v1908 = vld [vmem:[%s1897 + $0x50] sm:$0xff]
        %v1909 = vld [vmem:[%s1897 + $0x58] sm:$0xff]
        %v1910 = vld [vmem:[%s1897 + $0x60] sm:$0xff]
        %v1911 = vld [vmem:[%s1897 + $0x68] sm:$0xff]
        %v1912 = vld [vmem:[%s1897 + $0x70] sm:$0xff]
        %v1913 = vld [vmem:[%s1897 + $0x78] sm:$0xff]
        %v1914 = vld [vmem:[%s1897 + $0x80] sm:$0xff]
        %v1915 = vld [vmem:[%s1897 + $0x88] sm:$0xff]
        %v1916 = vld [vmem:[%s1897 + $0x90] sm:$0xff]
        %v1917 = vld [vmem:[%s1897 + $0x98] sm:$0xff]
        %v1918 = vld [vmem:[%s1897 + $0xa0] sm:$0xff]
        %v1919 = vld [vmem:[%s1897 + $0xa8] sm:$0xff]
        %v1920 = vld [vmem:[%s1897 + $0xb0] sm:$0xff]
        %v1921 = vld [vmem:[%s1897 + $0xb8] sm:$0xff]
        %v1922 = vld [vmem:[%s1897 + $0xc0] sm:$0xff]
        %v1923 = vld [vmem:[%s1897 + $0xc8] sm:$0xff]
        %v1924 = vld [vmem:[%s1897 + $0xd0] sm:$0xff]
        %v1925 = vld [vmem:[%s1897 + $0xd8] sm:$0xff]
        %v1926 = vld [vmem:[%s1897 + $0xe0] sm:$0xff]
        %v1927 = vld [vmem:[%s1897 + $0xe8] sm:$0xff]
        %v1928 = vld [vmem:[%s1897 + $0xf0] sm:$0xff]
        %v1929 = vld [vmem:[%s1897 + $0xf8] sm:$0xff]
        %1930 = vmatprep.subr.mxu0 %v1929
        %1931 = vmatpush1.msra.mxu0 %v1928
        %1932 = vmatprep.subr.mxu0 %v1927
        %1933 = vmatpush1.msra.mxu0 %v1926
        %1934 = vmatprep.subr.mxu0 %v1925
        %1935 = vmatpush1.msra.mxu0 %v1924
        %1936 = vmatprep.subr.mxu0 %v1923
        %1937 = vmatpush1.msra.mxu0 %v1922
        %1938 = vmatprep.subr.mxu0 %v1921
        %1939 = vmatpush1.msra.mxu0 %v1920
        %1940 = vmatprep.subr.mxu0 %v1919
        %1941 = vmatpush1.msra.mxu0 %v1918
        %1942 = vmatprep.subr.mxu0 %v1917
        %1943 = vmatpush1.msra.mxu0 %v1916
        %1944 = vmatprep.subr.mxu0 %v1915
        %1945 = vmatpush1.msra.mxu0 %v1914
        %1946 = vmatprep.subr.mxu0 %v1913
        %1947 = vmatpush1.msra.mxu0 %v1912
        %1948 = vmatprep.subr.mxu0 %v1911
        %1949 = vmatpush1.msra.mxu0 %v1910
        %1950 = vmatprep.subr.mxu0 %v1909
        %1951 = vmatpush1.msra.mxu0 %v1908
        %1952 = vmatprep.subr.mxu0 %v1907
        %1953 = vmatpush1.msra.mxu0 %v1906
        %1954 = vmatprep.subr.mxu0 %v1905
        %1955 = vmatpush1.msra.mxu0 %v1904
        %1956 = vmatprep.subr.mxu0 %v1903
        %1957 = vmatpush1.msra.mxu0 %v1902
        %1958 = vmatprep.subr.mxu0 %v1901
        %1959 = vmatpush1.msra.mxu0 %v1900
        %1960 = vmatprep.subr.mxu0 %v1899
        %1961 = vmatpush1.msra.mxu0 %v1898
        %1962 = vmatprep.subr.mxu0 0.0
        %1963 = vmatpush2.msra.mxu0 0.0
        %1964 = vmatprep.subr.mxu0 0.0
        %1965 = vmatpush2.msra.mxu0 0.0
        %1966 = vmatprep.subr.mxu0 0.0
        %1967 = vmatpush2.msra.mxu0 0.0
        %1968 = vmatprep.subr.mxu0 0.0
        %1969 = vmatpush2.msra.mxu0 0.0
        %1970 = vmatprep.subr.mxu0 0.0
        %1971 = vmatpush2.msra.mxu0 0.0
        %1972 = vmatprep.subr.mxu0 0.0
        %1973 = vmatpush2.msra.mxu0 0.0
        %1974 = vmatprep.subr.mxu0 0.0
        %1975 = vmatpush2.msra.mxu0 0.0
        %1976 = vmatprep.subr.mxu0 0.0
        %1977 = vmatpush2.msra.mxu0 0.0
        %1978 = vmatprep.subr.mxu0 0.0
        %1979 = vmatpush2.msra.mxu0 0.0
        %1980 = vmatprep.subr.mxu0 0.0
        %1981 = vmatpush2.msra.mxu0 0.0
        %1982 = vmatprep.subr.mxu0 0.0
        %1983 = vmatpush2.msra.mxu0 0.0
        %1984 = vmatprep.subr.mxu0 0.0
        %1985 = vmatpush2.msra.mxu0 0.0
        %1986 = vmatprep.subr.mxu0 0.0
        %1987 = vmatpush2.msra.mxu0 0.0
        %1988 = vmatprep.subr.mxu0 0.0
        %1989 = vmatpush2.msra.mxu0 0.0
        %1990 = vmatprep.subr.mxu0 0.0
        %1991 = vmatpush2.msra.mxu0 0.0
        %1992 = vmatprep.subr.mxu0 0.0
        %1993 = vmatpush2.msra.mxu0 0.0
        %1994 = vmatprep.mubr.f32.mxu0 0.0
        %1995 = vmatmul.mubr.f32.gmra.mxu0 %v1881
        %v1996 = vpop.f32.mrf.mxu0
        %v1997 = vadd.f32 0.0, %v1996
        %v1998 = vpop.f32.mrf.mxu0
        %v1999 = vadd.f32 0.0, %v1998
        %2000 = vmatprep.mubr.f32.mxu0 0.0
        %2001 = vmatmul.mubr.f32.gmra.mxu0 %v1882
        %v2002 = vpop.f32.mrf.mxu0
        %v2003 = vadd.f32 0.0, %v2002
        %v2004 = vpop.f32.mrf.mxu0
        %v2005 = vadd.f32 0.0, %v2004
        %2006 = vmatprep.mubr.f32.mxu0 0.0
        %2007 = vmatmul.mubr.f32.gmra.mxu0 %v1883
        %v2008 = vpop.f32.mrf.mxu0
        %v2009 = vadd.f32 0.0, %v2008
        %v2010 = vpop.f32.mrf.mxu0
        %v2011 = vadd.f32 0.0, %v2010
        %2012 = vmatprep.mubr.f32.mxu0 0.0
        %2013 = vmatmul.mubr.f32.gmra.mxu0 %v1884
        %v2014 = vpop.f32.mrf.mxu0
        %v2015 = vadd.f32 0.0, %v2014
        %v2016 = vpop.f32.mrf.mxu0
        %v2017 = vadd.f32 0.0, %v2016
        %2018 = vmatprep.mubr.f32.mxu0 0.0
        %2019 = vmatmul.mubr.f32.gmra.mxu0 %v1885
        %v2020 = vpop.f32.mrf.mxu0
        %v2021 = vadd.f32 0.0, %v2020
        %v2022 = vpop.f32.mrf.mxu0
        %v2023 = vadd.f32 0.0, %v2022
        %2024 = vmatprep.mubr.f32.mxu0 0.0
        %2025 = vmatmul.mubr.f32.gmra.mxu0 %v1886
        %v2026 = vpop.f32.mrf.mxu0
        %v2027 = vadd.f32 0.0, %v2026
        %v2028 = vpop.f32.mrf.mxu0
        %v2029 = vadd.f32 0.0, %v2028
        %2030 = vmatprep.mubr.f32.mxu0 0.0
        %2031 = vmatmul.mubr.f32.gmra.mxu0 %v1887
        %v2032 = vpop.f32.mrf.mxu0
        %v2033 = vadd.f32 0.0, %v2032
        %v2034 = vpop.f32.mrf.mxu0
        %v2035 = vadd.f32 0.0, %v2034
        %2036 = vmatprep.mubr.f32.mxu0 0.0
        %2037 = vmatmul.mubr.f32.gmra.mxu0 %v1888
        %v2038 = vpop.f32.mrf.mxu0
        %v2039 = vadd.f32 0.0, %v2038
        %v2040 = vpop.f32.mrf.mxu0
        %v2041 = vadd.f32 0.0, %v2040
        %2042 = vmatprep.mubr.f32.mxu0 0.0
        %2043 = vmatmul.mubr.f32.gmra.mxu0 %v1889
        %v2044 = vpop.f32.mrf.mxu0
        %v2045 = vadd.f32 0.0, %v2044
        %v2046 = vpop.f32.mrf.mxu0
        %v2047 = vadd.f32 0.0, %v2046
        %2048 = vmatprep.mubr.f32.mxu0 0.0
        %2049 = vmatmul.mubr.f32.gmra.mxu0 %v1890
        %v2050 = vpop.f32.mrf.mxu0
        %v2051 = vadd.f32 0.0, %v2050
        %v2052 = vpop.f32.mrf.mxu0
        %v2053 = vadd.f32 0.0, %v2052
        %2054 = vmatprep.mubr.f32.mxu0 0.0
        %2055 = vmatmul.mubr.f32.gmra.mxu0 %v1891
        %v2056 = vpop.f32.mrf.mxu0
        %v2057 = vadd.f32 0.0, %v2056
        %v2058 = vpop.f32.mrf.mxu0
        %v2059 = vadd.f32 0.0, %v2058
        %2060 = vmatprep.mubr.f32.mxu0 0.0
        %2061 = vmatmul.mubr.f32.gmra.mxu0 %v1892
        %v2062 = vpop.f32.mrf.mxu0
        %v2063 = vadd.f32 0.0, %v2062
        %v2064 = vpop.f32.mrf.mxu0
        %v2065 = vadd.f32 0.0, %v2064
        %2066 = vmatprep.mubr.f32.mxu0 0.0
        %2067 = vmatmul.mubr.f32.gmra.mxu0 %v1893
        %v2068 = vpop.f32.mrf.mxu0
        %v2069 = vadd.f32 0.0, %v2068
        %v2070 = vpop.f32.mrf.mxu0
        %v2071 = vadd.f32 0.0, %v2070
        %2072 = vmatprep.mubr.f32.mxu0 0.0
        %2073 = vmatmul.mubr.f32.gmra.mxu0 %v1894
        %v2074 = vpop.f32.mrf.mxu0
        %v2075 = vadd.f32 0.0, %v2074
        %v2076 = vpop.f32.mrf.mxu0
        %v2077 = vadd.f32 0.0, %v2076
        %2078 = vmatprep.mubr.f32.mxu0 0.0
        %2079 = vmatmul.mubr.f32.gmra.mxu0 %v1895
        %v2080 = vpop.f32.mrf.mxu0
        %v2081 = vadd.f32 0.0, %v2080
        %v2082 = vpop.f32.mrf.mxu0
        %v2083 = vadd.f32 0.0, %v2082
        %2084 = vmatprep.mubr.f32.mxu0 0.0
        %2085 = vmatmul.mubr.f32.gmra.mxu0 %v1896
        %v2086 = vpop.f32.mrf.mxu0
        %v2087 = vadd.f32 0.0, %v2086
        %v2088 = vpop.f32.mrf.mxu0
        %v2089 = vadd.f32 0.0, %v2088
        %2090 = vdwg.mxu0
        %v2091 = vadd.f32 %v1849, %v1997
        %v2092 = vadd.f32 %v1850, %v1999
        %v2093 = vadd.f32 %v1851, %v2003
        %v2094 = vadd.f32 %v1852, %v2005
        %v2095 = vadd.f32 %v1853, %v2009
        %v2096 = vadd.f32 %v1854, %v2011
        %v2097 = vadd.f32 %v1855, %v2015
        %v2098 = vadd.f32 %v1856, %v2017
        %v2099 = vadd.f32 %v1857, %v2021
        %v2100 = vadd.f32 %v1858, %v2023
        %v2101 = vadd.f32 %v1859, %v2027
        %v2102 = vadd.f32 %v1860, %v2029
        %v2103 = vadd.f32 %v1861, %v2033
        %v2104 = vadd.f32 %v1862, %v2035
        %v2105 = vadd.f32 %v1863, %v2039
        %v2106 = vadd.f32 %v1864, %v2041
        %v2107 = vadd.f32 %v1865, %v2045
        %v2108 = vadd.f32 %v1866, %v2047
        %v2109 = vadd.f32 %v1867, %v2051
        %v2110 = vadd.f32 %v1868, %v2053
        %v2111 = vadd.f32 %v1869, %v2057
        %v2112 = vadd.f32 %v1870, %v2059
        %v2113 = vadd.f32 %v1871, %v2063
        %v2114 = vadd.f32 %v1872, %v2065
        %v2115 = vadd.f32 %v1873, %v2069
        %v2116 = vadd.f32 %v1874, %v2071
        %v2117 = vadd.f32 %v1875, %v2075
        %v2118 = vadd.f32 %v1876, %v2077
        %v2119 = vadd.f32 %v1877, %v2081
        %v2120 = vadd.f32 %v1878, %v2083
        %v2121 = vadd.f32 %v1879, %v2087
        %v2122 = vadd.f32 %v1880, %v2089
        %s2123 = sadd.s32 %s336, 8
        %s2124 = smul.u32 %s2123, 32
        %s2125 = scalar_lea.vmem %s330, %s2124
        %v2126 = vld [vmem:[%s2125 + $0x4] sm:$0xff]
        %v2127 = vld [vmem:[%s2125 + $0xc] sm:$0xff]
        %v2128 = vld [vmem:[%s2125 + $0x24] sm:$0xff]
        %v2129 = vld [vmem:[%s2125 + $0x2c] sm:$0xff]
        %v2130 = vld [vmem:[%s2125 + $0x44] sm:$0xff]
        %v2131 = vld [vmem:[%s2125 + $0x4c] sm:$0xff]
        %v2132 = vld [vmem:[%s2125 + $0x64] sm:$0xff]
        %v2133 = vld [vmem:[%s2125 + $0x6c] sm:$0xff]
        %v2134 = vld [vmem:[%s2125 + $0x84] sm:$0xff]
        %v2135 = vld [vmem:[%s2125 + $0x8c] sm:$0xff]
        %v2136 = vld [vmem:[%s2125 + $0xa4] sm:$0xff]
        %v2137 = vld [vmem:[%s2125 + $0xac] sm:$0xff]
        %v2138 = vld [vmem:[%s2125 + $0xc4] sm:$0xff]
        %v2139 = vld [vmem:[%s2125 + $0xcc] sm:$0xff]
        %v2140 = vld [vmem:[%s2125 + $0xe4] sm:$0xff]
        %v2141 = vld [vmem:[%s2125 + $0xec] sm:$0xff]
        %s2142 = scalar_lea.vmem %s2, 1536
        %v2143 = vld [vmem:[%s2142] sm:$0xff]
        %v2144 = vld [vmem:[%s2142 + $0x8] sm:$0xff]
        %v2145 = vld [vmem:[%s2142 + $0x10] sm:$0xff]
        %v2146 = vld [vmem:[%s2142 + $0x18] sm:$0xff]
        %v2147 = vld [vmem:[%s2142 + $0x20] sm:$0xff]
        %v2148 = vld [vmem:[%s2142 + $0x28] sm:$0xff]
        %v2149 = vld [vmem:[%s2142 + $0x30] sm:$0xff]
        %v2150 = vld [vmem:[%s2142 + $0x38] sm:$0xff]
        %v2151 = vld [vmem:[%s2142 + $0x40] sm:$0xff]
        %v2152 = vld [vmem:[%s2142 + $0x48] sm:$0xff]
        %v2153 = vld [vmem:[%s2142 + $0x50] sm:$0xff]
        %v2154 = vld [vmem:[%s2142 + $0x58] sm:$0xff]
        %v2155 = vld [vmem:[%s2142 + $0x60] sm:$0xff]
        %v2156 = vld [vmem:[%s2142 + $0x68] sm:$0xff]
        %v2157 = vld [vmem:[%s2142 + $0x70] sm:$0xff]
        %v2158 = vld [vmem:[%s2142 + $0x78] sm:$0xff]
        %v2159 = vld [vmem:[%s2142 + $0x80] sm:$0xff]
        %v2160 = vld [vmem:[%s2142 + $0x88] sm:$0xff]
        %v2161 = vld [vmem:[%s2142 + $0x90] sm:$0xff]
        %v2162 = vld [vmem:[%s2142 + $0x98] sm:$0xff]
        %v2163 = vld [vmem:[%s2142 + $0xa0] sm:$0xff]
        %v2164 = vld [vmem:[%s2142 + $0xa8] sm:$0xff]
        %v2165 = vld [vmem:[%s2142 + $0xb0] sm:$0xff]
        %v2166 = vld [vmem:[%s2142 + $0xb8] sm:$0xff]
        %v2167 = vld [vmem:[%s2142 + $0xc0] sm:$0xff]
        %v2168 = vld [vmem:[%s2142 + $0xc8] sm:$0xff]
        %v2169 = vld [vmem:[%s2142 + $0xd0] sm:$0xff]
        %v2170 = vld [vmem:[%s2142 + $0xd8] sm:$0xff]
        %v2171 = vld [vmem:[%s2142 + $0xe0] sm:$0xff]
        %v2172 = vld [vmem:[%s2142 + $0xe8] sm:$0xff]
        %v2173 = vld [vmem:[%s2142 + $0xf0] sm:$0xff]
        %v2174 = vld [vmem:[%s2142 + $0xf8] sm:$0xff]
        %2175 = vmatprep.subr.mxu0 %v2174
        %2176 = vmatpush1.msra.mxu0 %v2173
        %2177 = vmatprep.subr.mxu0 %v2172
        %2178 = vmatpush1.msra.mxu0 %v2171
        %2179 = vmatprep.subr.mxu0 %v2170
        %2180 = vmatpush1.msra.mxu0 %v2169
        %2181 = vmatprep.subr.mxu0 %v2168
        %2182 = vmatpush1.msra.mxu0 %v2167
        %2183 = vmatprep.subr.mxu0 %v2166
        %2184 = vmatpush1.msra.mxu0 %v2165
        %2185 = vmatprep.subr.mxu0 %v2164
        %2186 = vmatpush1.msra.mxu0 %v2163
        %2187 = vmatprep.subr.mxu0 %v2162
        %2188 = vmatpush1.msra.mxu0 %v2161
        %2189 = vmatprep.subr.mxu0 %v2160
        %2190 = vmatpush1.msra.mxu0 %v2159
        %2191 = vmatprep.subr.mxu0 %v2158
        %2192 = vmatpush1.msra.mxu0 %v2157
        %2193 = vmatprep.subr.mxu0 %v2156
        %2194 = vmatpush1.msra.mxu0 %v2155
        %2195 = vmatprep.subr.mxu0 %v2154
        %2196 = vmatpush1.msra.mxu0 %v2153
        %2197 = vmatprep.subr.mxu0 %v2152
        %2198 = vmatpush1.msra.mxu0 %v2151
        %2199 = vmatprep.subr.mxu0 %v2150
        %2200 = vmatpush1.msra.mxu0 %v2149
        %2201 = vmatprep.subr.mxu0 %v2148
        %2202 = vmatpush1.msra.mxu0 %v2147
        %2203 = vmatprep.subr.mxu0 %v2146
        %2204 = vmatpush1.msra.mxu0 %v2145
        %2205 = vmatprep.subr.mxu0 %v2144
        %2206 = vmatpush1.msra.mxu0 %v2143
        %2207 = vmatprep.subr.mxu0 0.0
        %2208 = vmatpush2.msra.mxu0 0.0
        %2209 = vmatprep.subr.mxu0 0.0
        %2210 = vmatpush2.msra.mxu0 0.0
        %2211 = vmatprep.subr.mxu0 0.0
        %2212 = vmatpush2.msra.mxu0 0.0
        %2213 = vmatprep.subr.mxu0 0.0
        %2214 = vmatpush2.msra.mxu0 0.0
        %2215 = vmatprep.subr.mxu0 0.0
        %2216 = vmatpush2.msra.mxu0 0.0
        %2217 = vmatprep.subr.mxu0 0.0
        %2218 = vmatpush2.msra.mxu0 0.0
        %2219 = vmatprep.subr.mxu0 0.0
        %2220 = vmatpush2.msra.mxu0 0.0
        %2221 = vmatprep.subr.mxu0 0.0
        %2222 = vmatpush2.msra.mxu0 0.0
        %2223 = vmatprep.subr.mxu0 0.0
        %2224 = vmatpush2.msra.mxu0 0.0
        %2225 = vmatprep.subr.mxu0 0.0
        %2226 = vmatpush2.msra.mxu0 0.0
        %2227 = vmatprep.subr.mxu0 0.0
        %2228 = vmatpush2.msra.mxu0 0.0
        %2229 = vmatprep.subr.mxu0 0.0
        %2230 = vmatpush2.msra.mxu0 0.0
        %2231 = vmatprep.subr.mxu0 0.0
        %2232 = vmatpush2.msra.mxu0 0.0
        %2233 = vmatprep.subr.mxu0 0.0
        %2234 = vmatpush2.msra.mxu0 0.0
        %2235 = vmatprep.subr.mxu0 0.0
        %2236 = vmatpush2.msra.mxu0 0.0
        %2237 = vmatprep.subr.mxu0 0.0
        %2238 = vmatpush2.msra.mxu0 0.0
        %2239 = vmatprep.mubr.f32.mxu0 0.0
        %2240 = vmatmul.mubr.f32.gmra.mxu0 %v2126
        %v2241 = vpop.f32.mrf.mxu0
        %v2242 = vadd.f32 0.0, %v2241
        %v2243 = vpop.f32.mrf.mxu0
        %v2244 = vadd.f32 0.0, %v2243
        %2245 = vmatprep.mubr.f32.mxu0 0.0
        %2246 = vmatmul.mubr.f32.gmra.mxu0 %v2127
        %v2247 = vpop.f32.mrf.mxu0
        %v2248 = vadd.f32 0.0, %v2247
        %v2249 = vpop.f32.mrf.mxu0
        %v2250 = vadd.f32 0.0, %v2249
        %2251 = vmatprep.mubr.f32.mxu0 0.0
        %2252 = vmatmul.mubr.f32.gmra.mxu0 %v2128
        %v2253 = vpop.f32.mrf.mxu0
        %v2254 = vadd.f32 0.0, %v2253
        %v2255 = vpop.f32.mrf.mxu0
        %v2256 = vadd.f32 0.0, %v2255
        %2257 = vmatprep.mubr.f32.mxu0 0.0
        %2258 = vmatmul.mubr.f32.gmra.mxu0 %v2129
        %v2259 = vpop.f32.mrf.mxu0
        %v2260 = vadd.f32 0.0, %v2259
        %v2261 = vpop.f32.mrf.mxu0
        %v2262 = vadd.f32 0.0, %v2261
        %2263 = vmatprep.mubr.f32.mxu0 0.0
        %2264 = vmatmul.mubr.f32.gmra.mxu0 %v2130
        %v2265 = vpop.f32.mrf.mxu0
        %v2266 = vadd.f32 0.0, %v2265
        %v2267 = vpop.f32.mrf.mxu0
        %v2268 = vadd.f32 0.0, %v2267
        %2269 = vmatprep.mubr.f32.mxu0 0.0
        %2270 = vmatmul.mubr.f32.gmra.mxu0 %v2131
        %v2271 = vpop.f32.mrf.mxu0
        %v2272 = vadd.f32 0.0, %v2271
        %v2273 = vpop.f32.mrf.mxu0
        %v2274 = vadd.f32 0.0, %v2273
        %2275 = vmatprep.mubr.f32.mxu0 0.0
        %2276 = vmatmul.mubr.f32.gmra.mxu0 %v2132
        %v2277 = vpop.f32.mrf.mxu0
        %v2278 = vadd.f32 0.0, %v2277
        %v2279 = vpop.f32.mrf.mxu0
        %v2280 = vadd.f32 0.0, %v2279
        %2281 = vmatprep.mubr.f32.mxu0 0.0
        %2282 = vmatmul.mubr.f32.gmra.mxu0 %v2133
        %v2283 = vpop.f32.mrf.mxu0
        %v2284 = vadd.f32 0.0, %v2283
        %v2285 = vpop.f32.mrf.mxu0
        %v2286 = vadd.f32 0.0, %v2285
        %2287 = vmatprep.mubr.f32.mxu0 0.0
        %2288 = vmatmul.mubr.f32.gmra.mxu0 %v2134
        %v2289 = vpop.f32.mrf.mxu0
        %v2290 = vadd.f32 0.0, %v2289
        %v2291 = vpop.f32.mrf.mxu0
        %v2292 = vadd.f32 0.0, %v2291
        %2293 = vmatprep.mubr.f32.mxu0 0.0
        %2294 = vmatmul.mubr.f32.gmra.mxu0 %v2135
        %v2295 = vpop.f32.mrf.mxu0
        %v2296 = vadd.f32 0.0, %v2295
        %v2297 = vpop.f32.mrf.mxu0
        %v2298 = vadd.f32 0.0, %v2297
        %2299 = vmatprep.mubr.f32.mxu0 0.0
        %2300 = vmatmul.mubr.f32.gmra.mxu0 %v2136
        %v2301 = vpop.f32.mrf.mxu0
        %v2302 = vadd.f32 0.0, %v2301
        %v2303 = vpop.f32.mrf.mxu0
        %v2304 = vadd.f32 0.0, %v2303
        %2305 = vmatprep.mubr.f32.mxu0 0.0
        %2306 = vmatmul.mubr.f32.gmra.mxu0 %v2137
        %v2307 = vpop.f32.mrf.mxu0
        %v2308 = vadd.f32 0.0, %v2307
        %v2309 = vpop.f32.mrf.mxu0
        %v2310 = vadd.f32 0.0, %v2309
        %2311 = vmatprep.mubr.f32.mxu0 0.0
        %2312 = vmatmul.mubr.f32.gmra.mxu0 %v2138
        %v2313 = vpop.f32.mrf.mxu0
        %v2314 = vadd.f32 0.0, %v2313
        %v2315 = vpop.f32.mrf.mxu0
        %v2316 = vadd.f32 0.0, %v2315
        %2317 = vmatprep.mubr.f32.mxu0 0.0
        %2318 = vmatmul.mubr.f32.gmra.mxu0 %v2139
        %v2319 = vpop.f32.mrf.mxu0
        %v2320 = vadd.f32 0.0, %v2319
        %v2321 = vpop.f32.mrf.mxu0
        %v2322 = vadd.f32 0.0, %v2321
        %2323 = vmatprep.mubr.f32.mxu0 0.0
        %2324 = vmatmul.mubr.f32.gmra.mxu0 %v2140
        %v2325 = vpop.f32.mrf.mxu0
        %v2326 = vadd.f32 0.0, %v2325
        %v2327 = vpop.f32.mrf.mxu0
        %v2328 = vadd.f32 0.0, %v2327
        %2329 = vmatprep.mubr.f32.mxu0 0.0
        %2330 = vmatmul.mubr.f32.gmra.mxu0 %v2141
        %v2331 = vpop.f32.mrf.mxu0
        %v2332 = vadd.f32 0.0, %v2331
        %v2333 = vpop.f32.mrf.mxu0
        %v2334 = vadd.f32 0.0, %v2333
        %2335 = vdwg.mxu0
        %v2336 = vadd.f32 %v2091, %v2242
        %v2337 = vadd.f32 %v2092, %v2244
        %v2338 = vadd.f32 %v2093, %v2248
        %v2339 = vadd.f32 %v2094, %v2250
        %v2340 = vadd.f32 %v2095, %v2254
        %v2341 = vadd.f32 %v2096, %v2256
        %v2342 = vadd.f32 %v2097, %v2260
        %v2343 = vadd.f32 %v2098, %v2262
        %v2344 = vadd.f32 %v2099, %v2266
        %v2345 = vadd.f32 %v2100, %v2268
        %v2346 = vadd.f32 %v2101, %v2272
        %v2347 = vadd.f32 %v2102, %v2274
        %v2348 = vadd.f32 %v2103, %v2278
        %v2349 = vadd.f32 %v2104, %v2280
        %v2350 = vadd.f32 %v2105, %v2284
        %v2351 = vadd.f32 %v2106, %v2286
        %v2352 = vadd.f32 %v2107, %v2290
        %v2353 = vadd.f32 %v2108, %v2292
        %v2354 = vadd.f32 %v2109, %v2296
        %v2355 = vadd.f32 %v2110, %v2298
        %v2356 = vadd.f32 %v2111, %v2302
        %v2357 = vadd.f32 %v2112, %v2304
        %v2358 = vadd.f32 %v2113, %v2308
        %v2359 = vadd.f32 %v2114, %v2310
        %v2360 = vadd.f32 %v2115, %v2314
        %v2361 = vadd.f32 %v2116, %v2316
        %v2362 = vadd.f32 %v2117, %v2320
        %v2363 = vadd.f32 %v2118, %v2322
        %v2364 = vadd.f32 %v2119, %v2326
        %v2365 = vadd.f32 %v2120, %v2328
        %v2366 = vadd.f32 %v2121, %v2332
        %v2367 = vadd.f32 %v2122, %v2334
        %v2368 = vld [vmem:[%s2125 + $0x6] sm:$0xff]
        %v2369 = vld [vmem:[%s2125 + $0xe] sm:$0xff]
        %v2370 = vld [vmem:[%s2125 + $0x26] sm:$0xff]
        %v2371 = vld [vmem:[%s2125 + $0x2e] sm:$0xff]
        %v2372 = vld [vmem:[%s2125 + $0x46] sm:$0xff]
        %v2373 = vld [vmem:[%s2125 + $0x4e] sm:$0xff]
        %v2374 = vld [vmem:[%s2125 + $0x66] sm:$0xff]
        %v2375 = vld [vmem:[%s2125 + $0x6e] sm:$0xff]
        %v2376 = vld [vmem:[%s2125 + $0x86] sm:$0xff]
        %v2377 = vld [vmem:[%s2125 + $0x8e] sm:$0xff]
        %v2378 = vld [vmem:[%s2125 + $0xa6] sm:$0xff]
        %v2379 = vld [vmem:[%s2125 + $0xae] sm:$0xff]
        %v2380 = vld [vmem:[%s2125 + $0xc6] sm:$0xff]
        %v2381 = vld [vmem:[%s2125 + $0xce] sm:$0xff]
        %v2382 = vld [vmem:[%s2125 + $0xe6] sm:$0xff]
        %v2383 = vld [vmem:[%s2125 + $0xee] sm:$0xff]
        %s2384 = scalar_lea.vmem %s2, 1792
        %v2385 = vld [vmem:[%s2384] sm:$0xff]
        %v2386 = vld [vmem:[%s2384 + $0x8] sm:$0xff]
        %v2387 = vld [vmem:[%s2384 + $0x10] sm:$0xff]
        %v2388 = vld [vmem:[%s2384 + $0x18] sm:$0xff]
        %v2389 = vld [vmem:[%s2384 + $0x20] sm:$0xff]
        %v2390 = vld [vmem:[%s2384 + $0x28] sm:$0xff]
        %v2391 = vld [vmem:[%s2384 + $0x30] sm:$0xff]
        %v2392 = vld [vmem:[%s2384 + $0x38] sm:$0xff]
        %v2393 = vld [vmem:[%s2384 + $0x40] sm:$0xff]
        %v2394 = vld [vmem:[%s2384 + $0x48] sm:$0xff]
        %v2395 = vld [vmem:[%s2384 + $0x50] sm:$0xff]
        %v2396 = vld [vmem:[%s2384 + $0x58] sm:$0xff]
        %v2397 = vld [vmem:[%s2384 + $0x60] sm:$0xff]
        %v2398 = vld [vmem:[%s2384 + $0x68] sm:$0xff]
        %v2399 = vld [vmem:[%s2384 + $0x70] sm:$0xff]
        %v2400 = vld [vmem:[%s2384 + $0x78] sm:$0xff]
        %v2401 = vld [vmem:[%s2384 + $0x80] sm:$0xff]
        %v2402 = vld [vmem:[%s2384 + $0x88] sm:$0xff]
        %v2403 = vld [vmem:[%s2384 + $0x90] sm:$0xff]
        %v2404 = vld [vmem:[%s2384 + $0x98] sm:$0xff]
        %v2405 = vld [vmem:[%s2384 + $0xa0] sm:$0xff]
        %v2406 = vld [vmem:[%s2384 + $0xa8] sm:$0xff]
        %v2407 = vld [vmem:[%s2384 + $0xb0] sm:$0xff]
        %v2408 = vld [vmem:[%s2384 + $0xb8] sm:$0xff]
        %v2409 = vld [vmem:[%s2384 + $0xc0] sm:$0xff]
        %v2410 = vld [vmem:[%s2384 + $0xc8] sm:$0xff]
        %v2411 = vld [vmem:[%s2384 + $0xd0] sm:$0xff]
        %v2412 = vld [vmem:[%s2384 + $0xd8] sm:$0xff]
        %v2413 = vld [vmem:[%s2384 + $0xe0] sm:$0xff]
        %v2414 = vld [vmem:[%s2384 + $0xe8] sm:$0xff]
        %v2415 = vld [vmem:[%s2384 + $0xf0] sm:$0xff]
        %v2416 = vld [vmem:[%s2384 + $0xf8] sm:$0xff]
        %2417 = vmatprep.subr.mxu0 %v2416
        %2418 = vmatpush1.msra.mxu0 %v2415
        %2419 = vmatprep.subr.mxu0 %v2414
        %2420 = vmatpush1.msra.mxu0 %v2413
        %2421 = vmatprep.subr.mxu0 %v2412
        %2422 = vmatpush1.msra.mxu0 %v2411
        %2423 = vmatprep.subr.mxu0 %v2410
        %2424 = vmatpush1.msra.mxu0 %v2409
        %2425 = vmatprep.subr.mxu0 %v2408
        %2426 = vmatpush1.msra.mxu0 %v2407
        %2427 = vmatprep.subr.mxu0 %v2406
        %2428 = vmatpush1.msra.mxu0 %v2405
        %2429 = vmatprep.subr.mxu0 %v2404
        %2430 = vmatpush1.msra.mxu0 %v2403
        %2431 = vmatprep.subr.mxu0 %v2402
        %2432 = vmatpush1.msra.mxu0 %v2401
        %2433 = vmatprep.subr.mxu0 %v2400
        %2434 = vmatpush1.msra.mxu0 %v2399
        %2435 = vmatprep.subr.mxu0 %v2398
        %2436 = vmatpush1.msra.mxu0 %v2397
        %2437 = vmatprep.subr.mxu0 %v2396
        %2438 = vmatpush1.msra.mxu0 %v2395
        %2439 = vmatprep.subr.mxu0 %v2394
        %2440 = vmatpush1.msra.mxu0 %v2393
        %2441 = vmatprep.subr.mxu0 %v2392
        %2442 = vmatpush1.msra.mxu0 %v2391
        %2443 = vmatprep.subr.mxu0 %v2390
        %2444 = vmatpush1.msra.mxu0 %v2389
        %2445 = vmatprep.subr.mxu0 %v2388
        %2446 = vmatpush1.msra.mxu0 %v2387
        %2447 = vmatprep.subr.mxu0 %v2386
        %2448 = vmatpush1.msra.mxu0 %v2385
        %2449 = vmatprep.subr.mxu0 0.0
        %2450 = vmatpush2.msra.mxu0 0.0
        %2451 = vmatprep.subr.mxu0 0.0
        %2452 = vmatpush2.msra.mxu0 0.0
        %2453 = vmatprep.subr.mxu0 0.0
        %2454 = vmatpush2.msra.mxu0 0.0
        %2455 = vmatprep.subr.mxu0 0.0
        %2456 = vmatpush2.msra.mxu0 0.0
        %2457 = vmatprep.subr.mxu0 0.0
        %2458 = vmatpush2.msra.mxu0 0.0
        %2459 = vmatprep.subr.mxu0 0.0
        %2460 = vmatpush2.msra.mxu0 0.0
        %2461 = vmatprep.subr.mxu0 0.0
        %2462 = vmatpush2.msra.mxu0 0.0
        %2463 = vmatprep.subr.mxu0 0.0
        %2464 = vmatpush2.msra.mxu0 0.0
        %2465 = vmatprep.subr.mxu0 0.0
        %2466 = vmatpush2.msra.mxu0 0.0
        %2467 = vmatprep.subr.mxu0 0.0
        %2468 = vmatpush2.msra.mxu0 0.0
        %2469 = vmatprep.subr.mxu0 0.0
        %2470 = vmatpush2.msra.mxu0 0.0
        %2471 = vmatprep.subr.mxu0 0.0
        %2472 = vmatpush2.msra.mxu0 0.0
        %2473 = vmatprep.subr.mxu0 0.0
        %2474 = vmatpush2.msra.mxu0 0.0
        %2475 = vmatprep.subr.mxu0 0.0
        %2476 = vmatpush2.msra.mxu0 0.0
        %2477 = vmatprep.subr.mxu0 0.0
        %2478 = vmatpush2.msra.mxu0 0.0
        %2479 = vmatprep.subr.mxu0 0.0
        %2480 = vmatpush2.msra.mxu0 0.0
        %2481 = vmatprep.mubr.f32.mxu0 0.0
        %2482 = vmatmul.mubr.f32.gmra.mxu0 %v2368
        %v2483 = vpop.f32.mrf.mxu0
        %v2484 = vadd.f32 0.0, %v2483
        %v2485 = vpop.f32.mrf.mxu0
        %v2486 = vadd.f32 0.0, %v2485
        %2487 = vmatprep.mubr.f32.mxu0 0.0
        %2488 = vmatmul.mubr.f32.gmra.mxu0 %v2369
        %v2489 = vpop.f32.mrf.mxu0
        %v2490 = vadd.f32 0.0, %v2489
        %v2491 = vpop.f32.mrf.mxu0
        %v2492 = vadd.f32 0.0, %v2491
        %2493 = vmatprep.mubr.f32.mxu0 0.0
        %2494 = vmatmul.mubr.f32.gmra.mxu0 %v2370
        %v2495 = vpop.f32.mrf.mxu0
        %v2496 = vadd.f32 0.0, %v2495
        %v2497 = vpop.f32.mrf.mxu0
        %v2498 = vadd.f32 0.0, %v2497
        %2499 = vmatprep.mubr.f32.mxu0 0.0
        %2500 = vmatmul.mubr.f32.gmra.mxu0 %v2371
        %v2501 = vpop.f32.mrf.mxu0
        %v2502 = vadd.f32 0.0, %v2501
        %v2503 = vpop.f32.mrf.mxu0
        %v2504 = vadd.f32 0.0, %v2503
        %2505 = vmatprep.mubr.f32.mxu0 0.0
        %2506 = vmatmul.mubr.f32.gmra.mxu0 %v2372
        %v2507 = vpop.f32.mrf.mxu0
        %v2508 = vadd.f32 0.0, %v2507
        %v2509 = vpop.f32.mrf.mxu0
        %v2510 = vadd.f32 0.0, %v2509
        %2511 = vmatprep.mubr.f32.mxu0 0.0
        %2512 = vmatmul.mubr.f32.gmra.mxu0 %v2373
        %v2513 = vpop.f32.mrf.mxu0
        %v2514 = vadd.f32 0.0, %v2513
        %v2515 = vpop.f32.mrf.mxu0
        %v2516 = vadd.f32 0.0, %v2515
        %2517 = vmatprep.mubr.f32.mxu0 0.0
        %2518 = vmatmul.mubr.f32.gmra.mxu0 %v2374
        %v2519 = vpop.f32.mrf.mxu0
        %v2520 = vadd.f32 0.0, %v2519
        %v2521 = vpop.f32.mrf.mxu0
        %v2522 = vadd.f32 0.0, %v2521
        %2523 = vmatprep.mubr.f32.mxu0 0.0
        %2524 = vmatmul.mubr.f32.gmra.mxu0 %v2375
        %v2525 = vpop.f32.mrf.mxu0
        %v2526 = vadd.f32 0.0, %v2525
        %v2527 = vpop.f32.mrf.mxu0
        %v2528 = vadd.f32 0.0, %v2527
        %2529 = vmatprep.mubr.f32.mxu0 0.0
        %2530 = vmatmul.mubr.f32.gmra.mxu0 %v2376
        %v2531 = vpop.f32.mrf.mxu0
        %v2532 = vadd.f32 0.0, %v2531
        %v2533 = vpop.f32.mrf.mxu0
        %v2534 = vadd.f32 0.0, %v2533
        %2535 = vmatprep.mubr.f32.mxu0 0.0
        %2536 = vmatmul.mubr.f32.gmra.mxu0 %v2377
        %v2537 = vpop.f32.mrf.mxu0
        %v2538 = vadd.f32 0.0, %v2537
        %v2539 = vpop.f32.mrf.mxu0
        %v2540 = vadd.f32 0.0, %v2539
        %2541 = vmatprep.mubr.f32.mxu0 0.0
        %2542 = vmatmul.mubr.f32.gmra.mxu0 %v2378
        %v2543 = vpop.f32.mrf.mxu0
        %v2544 = vadd.f32 0.0, %v2543
        %v2545 = vpop.f32.mrf.mxu0
        %v2546 = vadd.f32 0.0, %v2545
        %2547 = vmatprep.mubr.f32.mxu0 0.0
        %2548 = vmatmul.mubr.f32.gmra.mxu0 %v2379
        %v2549 = vpop.f32.mrf.mxu0
        %v2550 = vadd.f32 0.0, %v2549
        %v2551 = vpop.f32.mrf.mxu0
        %v2552 = vadd.f32 0.0, %v2551
        %2553 = vmatprep.mubr.f32.mxu0 0.0
        %2554 = vmatmul.mubr.f32.gmra.mxu0 %v2380
        %v2555 = vpop.f32.mrf.mxu0
        %v2556 = vadd.f32 0.0, %v2555
        %v2557 = vpop.f32.mrf.mxu0
        %v2558 = vadd.f32 0.0, %v2557
        %2559 = vmatprep.mubr.f32.mxu0 0.0
        %2560 = vmatmul.mubr.f32.gmra.mxu0 %v2381
        %v2561 = vpop.f32.mrf.mxu0
        %v2562 = vadd.f32 0.0, %v2561
        %v2563 = vpop.f32.mrf.mxu0
        %v2564 = vadd.f32 0.0, %v2563
        %2565 = vmatprep.mubr.f32.mxu0 0.0
        %2566 = vmatmul.mubr.f32.gmra.mxu0 %v2382
        %v2567 = vpop.f32.mrf.mxu0
        %v2568 = vadd.f32 0.0, %v2567
        %v2569 = vpop.f32.mrf.mxu0
        %v2570 = vadd.f32 0.0, %v2569
        %2571 = vmatprep.mubr.f32.mxu0 0.0
        %2572 = vmatmul.mubr.f32.gmra.mxu0 %v2383
        %v2573 = vpop.f32.mrf.mxu0
        %v2574 = vadd.f32 0.0, %v2573
        %v2575 = vpop.f32.mrf.mxu0
        %v2576 = vadd.f32 0.0, %v2575
        %2577 = vdwg.mxu0
        %v2578 = vadd.f32 %v2336, %v2484
        %v2579 = vadd.f32 %v2337, %v2486
        %v2580 = vadd.f32 %v2338, %v2490
        %v2581 = vadd.f32 %v2339, %v2492
        %v2582 = vadd.f32 %v2340, %v2496
        %v2583 = vadd.f32 %v2341, %v2498
        %v2584 = vadd.f32 %v2342, %v2502
        %v2585 = vadd.f32 %v2343, %v2504
        %v2586 = vadd.f32 %v2344, %v2508
        %v2587 = vadd.f32 %v2345, %v2510
        %v2588 = vadd.f32 %v2346, %v2514
        %v2589 = vadd.f32 %v2347, %v2516
        %v2590 = vadd.f32 %v2348, %v2520
        %v2591 = vadd.f32 %v2349, %v2522
        %v2592 = vadd.f32 %v2350, %v2526
        %v2593 = vadd.f32 %v2351, %v2528
        %v2594 = vadd.f32 %v2352, %v2532
        %v2595 = vadd.f32 %v2353, %v2534
        %v2596 = vadd.f32 %v2354, %v2538
        %v2597 = vadd.f32 %v2355, %v2540
        %v2598 = vadd.f32 %v2356, %v2544
        %v2599 = vadd.f32 %v2357, %v2546
        %v2600 = vadd.f32 %v2358, %v2550
        %v2601 = vadd.f32 %v2359, %v2552
        %v2602 = vadd.f32 %v2360, %v2556
        %v2603 = vadd.f32 %v2361, %v2558
        %v2604 = vadd.f32 %v2362, %v2562
        %v2605 = vadd.f32 %v2363, %v2564
        %v2606 = vadd.f32 %v2364, %v2568
        %v2607 = vadd.f32 %v2365, %v2570
        %v2608 = vadd.f32 %v2366, %v2574
        %v2609 = vadd.f32 %v2367, %v2576
        %v2610 = vld [vmem:[%s2125 + $0x8] sm:$0xff]
        %v2611 = vld [vmem:[%s2125 + $0x10] sm:$0xff]
        %v2612 = vld [vmem:[%s2125 + $0x28] sm:$0xff]
        %v2613 = vld [vmem:[%s2125 + $0x30] sm:$0xff]
        %v2614 = vld [vmem:[%s2125 + $0x48] sm:$0xff]
        %v2615 = vld [vmem:[%s2125 + $0x50] sm:$0xff]
        %v2616 = vld [vmem:[%s2125 + $0x68] sm:$0xff]
        %v2617 = vld [vmem:[%s2125 + $0x70] sm:$0xff]
        %v2618 = vld [vmem:[%s2125 + $0x88] sm:$0xff]
        %v2619 = vld [vmem:[%s2125 + $0x90] sm:$0xff]
        %v2620 = vld [vmem:[%s2125 + $0xa8] sm:$0xff]
        %v2621 = vld [vmem:[%s2125 + $0xb0] sm:$0xff]
        %v2622 = vld [vmem:[%s2125 + $0xc8] sm:$0xff]
        %v2623 = vld [vmem:[%s2125 + $0xd0] sm:$0xff]
        %v2624 = vld [vmem:[%s2125 + $0xe8] sm:$0xff]
        %v2625 = vld [vmem:[%s2125 + $0xf0] sm:$0xff]
        %s2626 = scalar_lea.vmem %s2, 2048
        %v2627 = vld [vmem:[%s2626] sm:$0xff]
        %v2628 = vld [vmem:[%s2626 + $0x8] sm:$0xff]
        %v2629 = vld [vmem:[%s2626 + $0x10] sm:$0xff]
        %v2630 = vld [vmem:[%s2626 + $0x18] sm:$0xff]
        %v2631 = vld [vmem:[%s2626 + $0x20] sm:$0xff]
        %v2632 = vld [vmem:[%s2626 + $0x28] sm:$0xff]
        %v2633 = vld [vmem:[%s2626 + $0x30] sm:$0xff]
        %v2634 = vld [vmem:[%s2626 + $0x38] sm:$0xff]
        %v2635 = vld [vmem:[%s2626 + $0x40] sm:$0xff]
        %v2636 = vld [vmem:[%s2626 + $0x48] sm:$0xff]
        %v2637 = vld [vmem:[%s2626 + $0x50] sm:$0xff]
        %v2638 = vld [vmem:[%s2626 + $0x58] sm:$0xff]
        %v2639 = vld [vmem:[%s2626 + $0x60] sm:$0xff]
        %v2640 = vld [vmem:[%s2626 + $0x68] sm:$0xff]
        %v2641 = vld [vmem:[%s2626 + $0x70] sm:$0xff]
        %v2642 = vld [vmem:[%s2626 + $0x78] sm:$0xff]
        %v2643 = vld [vmem:[%s2626 + $0x80] sm:$0xff]
        %v2644 = vld [vmem:[%s2626 + $0x88] sm:$0xff]
        %v2645 = vld [vmem:[%s2626 + $0x90] sm:$0xff]
        %v2646 = vld [vmem:[%s2626 + $0x98] sm:$0xff]
        %v2647 = vld [vmem:[%s2626 + $0xa0] sm:$0xff]
        %v2648 = vld [vmem:[%s2626 + $0xa8] sm:$0xff]
        %v2649 = vld [vmem:[%s2626 + $0xb0] sm:$0xff]
        %v2650 = vld [vmem:[%s2626 + $0xb8] sm:$0xff]
        %v2651 = vld [vmem:[%s2626 + $0xc0] sm:$0xff]
        %v2652 = vld [vmem:[%s2626 + $0xc8] sm:$0xff]
        %v2653 = vld [vmem:[%s2626 + $0xd0] sm:$0xff]
        %v2654 = vld [vmem:[%s2626 + $0xd8] sm:$0xff]
        %v2655 = vld [vmem:[%s2626 + $0xe0] sm:$0xff]
        %v2656 = vld [vmem:[%s2626 + $0xe8] sm:$0xff]
        %v2657 = vld [vmem:[%s2626 + $0xf0] sm:$0xff]
        %v2658 = vld [vmem:[%s2626 + $0xf8] sm:$0xff]
        %2659 = vmatprep.subr.mxu0 %v2658
        %2660 = vmatpush1.msra.mxu0 %v2657
        %2661 = vmatprep.subr.mxu0 %v2656
        %2662 = vmatpush1.msra.mxu0 %v2655
        %2663 = vmatprep.subr.mxu0 %v2654
        %2664 = vmatpush1.msra.mxu0 %v2653
        %2665 = vmatprep.subr.mxu0 %v2652
        %2666 = vmatpush1.msra.mxu0 %v2651
        %2667 = vmatprep.subr.mxu0 %v2650
        %2668 = vmatpush1.msra.mxu0 %v2649
        %2669 = vmatprep.subr.mxu0 %v2648
        %2670 = vmatpush1.msra.mxu0 %v2647
        %2671 = vmatprep.subr.mxu0 %v2646
        %2672 = vmatpush1.msra.mxu0 %v2645
        %2673 = vmatprep.subr.mxu0 %v2644
        %2674 = vmatpush1.msra.mxu0 %v2643
        %2675 = vmatprep.subr.mxu0 %v2642
        %2676 = vmatpush1.msra.mxu0 %v2641
        %2677 = vmatprep.subr.mxu0 %v2640
        %2678 = vmatpush1.msra.mxu0 %v2639
        %2679 = vmatprep.subr.mxu0 %v2638
        %2680 = vmatpush1.msra.mxu0 %v2637
        %2681 = vmatprep.subr.mxu0 %v2636
        %2682 = vmatpush1.msra.mxu0 %v2635
        %2683 = vmatprep.subr.mxu0 %v2634
        %2684 = vmatpush1.msra.mxu0 %v2633
        %2685 = vmatprep.subr.mxu0 %v2632
        %2686 = vmatpush1.msra.mxu0 %v2631
        %2687 = vmatprep.subr.mxu0 %v2630
        %2688 = vmatpush1.msra.mxu0 %v2629
        %2689 = vmatprep.subr.mxu0 %v2628
        %2690 = vmatpush1.msra.mxu0 %v2627
        %2691 = vmatprep.subr.mxu0 0.0
        %2692 = vmatpush2.msra.mxu0 0.0
        %2693 = vmatprep.subr.mxu0 0.0
        %2694 = vmatpush2.msra.mxu0 0.0
        %2695 = vmatprep.subr.mxu0 0.0
        %2696 = vmatpush2.msra.mxu0 0.0
        %2697 = vmatprep.subr.mxu0 0.0
        %2698 = vmatpush2.msra.mxu0 0.0
        %2699 = vmatprep.subr.mxu0 0.0
        %2700 = vmatpush2.msra.mxu0 0.0
        %2701 = vmatprep.subr.mxu0 0.0
        %2702 = vmatpush2.msra.mxu0 0.0
        %2703 = vmatprep.subr.mxu0 0.0
        %2704 = vmatpush2.msra.mxu0 0.0
        %2705 = vmatprep.subr.mxu0 0.0
        %2706 = vmatpush2.msra.mxu0 0.0
        %2707 = vmatprep.subr.mxu0 0.0
        %2708 = vmatpush2.msra.mxu0 0.0
        %2709 = vmatprep.subr.mxu0 0.0
        %2710 = vmatpush2.msra.mxu0 0.0
        %2711 = vmatprep.subr.mxu0 0.0
        %2712 = vmatpush2.msra.mxu0 0.0
        %2713 = vmatprep.subr.mxu0 0.0
        %2714 = vmatpush2.msra.mxu0 0.0
        %2715 = vmatprep.subr.mxu0 0.0
        %2716 = vmatpush2.msra.mxu0 0.0
        %2717 = vmatprep.subr.mxu0 0.0
        %2718 = vmatpush2.msra.mxu0 0.0
        %2719 = vmatprep.subr.mxu0 0.0
        %2720 = vmatpush2.msra.mxu0 0.0
        %2721 = vmatprep.subr.mxu0 0.0
        %2722 = vmatpush2.msra.mxu0 0.0
        %2723 = vmatprep.mubr.f32.mxu0 0.0
        %2724 = vmatmul.mubr.f32.gmra.mxu0 %v2610
        %v2725 = vpop.f32.mrf.mxu0
        %v2726 = vadd.f32 0.0, %v2725
        %v2727 = vpop.f32.mrf.mxu0
        %v2728 = vadd.f32 0.0, %v2727
        %2729 = vmatprep.mubr.f32.mxu0 0.0
        %2730 = vmatmul.mubr.f32.gmra.mxu0 %v2611
        %v2731 = vpop.f32.mrf.mxu0
        %v2732 = vadd.f32 0.0, %v2731
        %v2733 = vpop.f32.mrf.mxu0
        %v2734 = vadd.f32 0.0, %v2733
        %2735 = vmatprep.mubr.f32.mxu0 0.0
        %2736 = vmatmul.mubr.f32.gmra.mxu0 %v2612
        %v2737 = vpop.f32.mrf.mxu0
        %v2738 = vadd.f32 0.0, %v2737
        %v2739 = vpop.f32.mrf.mxu0
        %v2740 = vadd.f32 0.0, %v2739
        %2741 = vmatprep.mubr.f32.mxu0 0.0
        %2742 = vmatmul.mubr.f32.gmra.mxu0 %v2613
        %v2743 = vpop.f32.mrf.mxu0
        %v2744 = vadd.f32 0.0, %v2743
        %v2745 = vpop.f32.mrf.mxu0
        %v2746 = vadd.f32 0.0, %v2745
        %2747 = vmatprep.mubr.f32.mxu0 0.0
        %2748 = vmatmul.mubr.f32.gmra.mxu0 %v2614
        %v2749 = vpop.f32.mrf.mxu0
        %v2750 = vadd.f32 0.0, %v2749
        %v2751 = vpop.f32.mrf.mxu0
        %v2752 = vadd.f32 0.0, %v2751
        %2753 = vmatprep.mubr.f32.mxu0 0.0
        %2754 = vmatmul.mubr.f32.gmra.mxu0 %v2615
        %v2755 = vpop.f32.mrf.mxu0
        %v2756 = vadd.f32 0.0, %v2755
        %v2757 = vpop.f32.mrf.mxu0
        %v2758 = vadd.f32 0.0, %v2757
        %2759 = vmatprep.mubr.f32.mxu0 0.0
        %2760 = vmatmul.mubr.f32.gmra.mxu0 %v2616
        %v2761 = vpop.f32.mrf.mxu0
        %v2762 = vadd.f32 0.0, %v2761
        %v2763 = vpop.f32.mrf.mxu0
        %v2764 = vadd.f32 0.0, %v2763
        %2765 = vmatprep.mubr.f32.mxu0 0.0
        %2766 = vmatmul.mubr.f32.gmra.mxu0 %v2617
        %v2767 = vpop.f32.mrf.mxu0
        %v2768 = vadd.f32 0.0, %v2767
        %v2769 = vpop.f32.mrf.mxu0
        %v2770 = vadd.f32 0.0, %v2769
        %2771 = vmatprep.mubr.f32.mxu0 0.0
        %2772 = vmatmul.mubr.f32.gmra.mxu0 %v2618
        %v2773 = vpop.f32.mrf.mxu0
        %v2774 = vadd.f32 0.0, %v2773
        %v2775 = vpop.f32.mrf.mxu0
        %v2776 = vadd.f32 0.0, %v2775
        %2777 = vmatprep.mubr.f32.mxu0 0.0
        %2778 = vmatmul.mubr.f32.gmra.mxu0 %v2619
        %v2779 = vpop.f32.mrf.mxu0
        %v2780 = vadd.f32 0.0, %v2779
        %v2781 = vpop.f32.mrf.mxu0
        %v2782 = vadd.f32 0.0, %v2781
        %2783 = vmatprep.mubr.f32.mxu0 0.0
        %2784 = vmatmul.mubr.f32.gmra.mxu0 %v2620
        %v2785 = vpop.f32.mrf.mxu0
        %v2786 = vadd.f32 0.0, %v2785
        %v2787 = vpop.f32.mrf.mxu0
        %v2788 = vadd.f32 0.0, %v2787
        %2789 = vmatprep.mubr.f32.mxu0 0.0
        %2790 = vmatmul.mubr.f32.gmra.mxu0 %v2621
        %v2791 = vpop.f32.mrf.mxu0
        %v2792 = vadd.f32 0.0, %v2791
        %v2793 = vpop.f32.mrf.mxu0
        %v2794 = vadd.f32 0.0, %v2793
        %2795 = vmatprep.mubr.f32.mxu0 0.0
        %2796 = vmatmul.mubr.f32.gmra.mxu0 %v2622
        %v2797 = vpop.f32.mrf.mxu0
        %v2798 = vadd.f32 0.0, %v2797
        %v2799 = vpop.f32.mrf.mxu0
        %v2800 = vadd.f32 0.0, %v2799
        %2801 = vmatprep.mubr.f32.mxu0 0.0
        %2802 = vmatmul.mubr.f32.gmra.mxu0 %v2623
        %v2803 = vpop.f32.mrf.mxu0
        %v2804 = vadd.f32 0.0, %v2803
        %v2805 = vpop.f32.mrf.mxu0
        %v2806 = vadd.f32 0.0, %v2805
        %2807 = vmatprep.mubr.f32.mxu0 0.0
        %2808 = vmatmul.mubr.f32.gmra.mxu0 %v2624
        %v2809 = vpop.f32.mrf.mxu0
        %v2810 = vadd.f32 0.0, %v2809
        %v2811 = vpop.f32.mrf.mxu0
        %v2812 = vadd.f32 0.0, %v2811
        %2813 = vmatprep.mubr.f32.mxu0 0.0
        %2814 = vmatmul.mubr.f32.gmra.mxu0 %v2625
        %v2815 = vpop.f32.mrf.mxu0
        %v2816 = vadd.f32 0.0, %v2815
        %v2817 = vpop.f32.mrf.mxu0
        %v2818 = vadd.f32 0.0, %v2817
        %2819 = vdwg.mxu0
        %v2820 = vadd.f32 %v2578, %v2726
        %v2821 = vadd.f32 %v2579, %v2728
        %v2822 = vadd.f32 %v2580, %v2732
        %v2823 = vadd.f32 %v2581, %v2734
        %v2824 = vadd.f32 %v2582, %v2738
        %v2825 = vadd.f32 %v2583, %v2740
        %v2826 = vadd.f32 %v2584, %v2744
        %v2827 = vadd.f32 %v2585, %v2746
        %v2828 = vadd.f32 %v2586, %v2750
        %v2829 = vadd.f32 %v2587, %v2752
        %v2830 = vadd.f32 %v2588, %v2756
        %v2831 = vadd.f32 %v2589, %v2758
        %v2832 = vadd.f32 %v2590, %v2762
        %v2833 = vadd.f32 %v2591, %v2764
        %v2834 = vadd.f32 %v2592, %v2768
        %v2835 = vadd.f32 %v2593, %v2770
        %v2836 = vadd.f32 %v2594, %v2774
        %v2837 = vadd.f32 %v2595, %v2776
        %v2838 = vadd.f32 %v2596, %v2780
        %v2839 = vadd.f32 %v2597, %v2782
        %v2840 = vadd.f32 %v2598, %v2786
        %v2841 = vadd.f32 %v2599, %v2788
        %v2842 = vadd.f32 %v2600, %v2792
        %v2843 = vadd.f32 %v2601, %v2794
        %v2844 = vadd.f32 %v2602, %v2798
        %v2845 = vadd.f32 %v2603, %v2800
        %v2846 = vadd.f32 %v2604, %v2804
        %v2847 = vadd.f32 %v2605, %v2806
        %v2848 = vadd.f32 %v2606, %v2810
        %v2849 = vadd.f32 %v2607, %v2812
        %v2850 = vadd.f32 %v2608, %v2816
        %v2851 = vadd.f32 %v2609, %v2818
        %v2852 = vlaneseq
        %v2853 = vshrl.u32 %v2852, 7
        %v2854 = vsub.s32 1, %v2853
        %v2855 = vrot.slane %v337, %v2854
        %v2856 = vlaneseq
        %v2857 = vshrl.u32 %v2856, 7
        %v2858 = vsub.s32 5, %v2857
        %v2859 = vrot.slane %v337, %v2858
        %v2862 = vlaneseq
        %v2863 = vshrl.u32 %v2862, 7
        %v2864 = vsub.s32 1, %v2863
        %v2865 = vrot.slane %v2855, %v2864
        %v2866 = vlaneseq
        %v2867 = vshrl.u32 %v2866, 7
        %v2868 = vsub.s32 1, %v2867
        %v2869 = vrot.slane %v2859, %v2868
        %v2870 = vmul.f32 %v2820, %v2865
        %v2871 = vmul.f32 %v2821, %v2869
        %v2872 = vmul.f32 %v2822, %v2865
        %v2873 = vmul.f32 %v2823, %v2869
        %v2874 = vmul.f32 %v2824, %v2865
        %v2875 = vmul.f32 %v2825, %v2869
        %v2876 = vmul.f32 %v2826, %v2865
        %v2877 = vmul.f32 %v2827, %v2869
        %v2878 = vmul.f32 %v2828, %v2865
        %v2879 = vmul.f32 %v2829, %v2869
        %v2880 = vmul.f32 %v2830, %v2865
        %v2881 = vmul.f32 %v2831, %v2869
        %v2882 = vmul.f32 %v2832, %v2865
        %v2883 = vmul.f32 %v2833, %v2869
        %v2884 = vmul.f32 %v2834, %v2865
        %v2885 = vmul.f32 %v2835, %v2869
        %v2886 = vmul.f32 %v2836, %v2865
        %v2887 = vmul.f32 %v2837, %v2869
        %v2888 = vmul.f32 %v2838, %v2865
        %v2889 = vmul.f32 %v2839, %v2869
        %v2890 = vmul.f32 %v2840, %v2865
        %v2891 = vmul.f32 %v2841, %v2869
        %v2892 = vmul.f32 %v2842, %v2865
        %v2893 = vmul.f32 %v2843, %v2869
        %v2894 = vmul.f32 %v2844, %v2865
        %v2895 = vmul.f32 %v2845, %v2869
        %v2896 = vmul.f32 %v2846, %v2865
        %v2897 = vmul.f32 %v2847, %v2869
        %v2898 = vmul.f32 %v2848, %v2865
        %v2899 = vmul.f32 %v2849, %v2869
        %v2900 = vmul.f32 %v2850, %v2865
        %v2901 = vmul.f32 %v2851, %v2869
        %v2902 = vlaneseq
        %v2903 = vshrl.u32 %v2902, 7
        %v2904 = vsub.s32 1, %v2903
        %v2905 = vrot.slane %v338, %v2904
        %v2906 = vlaneseq
        %v2907 = vshrl.u32 %v2906, 7
        %v2908 = vsub.s32 5, %v2907
        %v2909 = vrot.slane %v338, %v2908
        %v2912 = vlaneseq
        %v2913 = vshrl.u32 %v2912, 7
        %v2914 = vsub.s32 1, %v2913
        %v2915 = vrot.slane %v2905, %v2914
        %v2916 = vlaneseq
        %v2917 = vshrl.u32 %v2916, 7
        %v2918 = vsub.s32 1, %v2917
        %v2919 = vrot.slane %v2909, %v2918
        %v2920 = vadd.f32 %v2870, %v2915
        %v2921 = vadd.f32 %v2871, %v2919
        %v2922 = vadd.f32 %v2872, %v2915
        %v2923 = vadd.f32 %v2873, %v2919
        %v2924 = vadd.f32 %v2874, %v2915
        %v2925 = vadd.f32 %v2875, %v2919
        %v2926 = vadd.f32 %v2876, %v2915
        %v2927 = vadd.f32 %v2877, %v2919
        %v2928 = vadd.f32 %v2878, %v2915
        %v2929 = vadd.f32 %v2879, %v2919
        %v2930 = vadd.f32 %v2880, %v2915
        %v2931 = vadd.f32 %v2881, %v2919
        %v2932 = vadd.f32 %v2882, %v2915
        %v2933 = vadd.f32 %v2883, %v2919
        %v2934 = vadd.f32 %v2884, %v2915
        %v2935 = vadd.f32 %v2885, %v2919
        %v2936 = vadd.f32 %v2886, %v2915
        %v2937 = vadd.f32 %v2887, %v2919
        %v2938 = vadd.f32 %v2888, %v2915
        %v2939 = vadd.f32 %v2889, %v2919
        %v2940 = vadd.f32 %v2890, %v2915
        %v2941 = vadd.f32 %v2891, %v2919
        %v2942 = vadd.f32 %v2892, %v2915
        %v2943 = vadd.f32 %v2893, %v2919
        %v2944 = vadd.f32 %v2894, %v2915
        %v2945 = vadd.f32 %v2895, %v2919
        %v2946 = vadd.f32 %v2896, %v2915
        %v2947 = vadd.f32 %v2897, %v2919
        %v2948 = vadd.f32 %v2898, %v2915
        %v2949 = vadd.f32 %v2899, %v2919
        %v2950 = vadd.f32 %v2900, %v2915
        %v2951 = vadd.f32 %v2901, %v2919
        %v2952 = vmax.f32 %v2920, 0.0
        %v2953 = vmax.f32 %v2921, 0.0
        %v2954 = vmax.f32 %v2922, 0.0
        %v2955 = vmax.f32 %v2923, 0.0
        %v2956 = vmax.f32 %v2924, 0.0
        %v2957 = vmax.f32 %v2925, 0.0
        %v2958 = vmax.f32 %v2926, 0.0
        %v2959 = vmax.f32 %v2927, 0.0
        %v2960 = vmax.f32 %v2928, 0.0
        %v2961 = vmax.f32 %v2929, 0.0
        %v2962 = vmax.f32 %v2930, 0.0
        %v2963 = vmax.f32 %v2931, 0.0
        %v2964 = vmax.f32 %v2932, 0.0
        %v2965 = vmax.f32 %v2933, 0.0
        %v2966 = vmax.f32 %v2934, 0.0
        %v2967 = vmax.f32 %v2935, 0.0
        %v2968 = vmax.f32 %v2936, 0.0
        %v2969 = vmax.f32 %v2937, 0.0
        %v2970 = vmax.f32 %v2938, 0.0
        %v2971 = vmax.f32 %v2939, 0.0
        %v2972 = vmax.f32 %v2940, 0.0
        %v2973 = vmax.f32 %v2941, 0.0
        %v2974 = vmax.f32 %v2942, 0.0
        %v2975 = vmax.f32 %v2943, 0.0
        %v2976 = vmax.f32 %v2944, 0.0
        %v2977 = vmax.f32 %v2945, 0.0
        %v2978 = vmax.f32 %v2946, 0.0
        %v2979 = vmax.f32 %v2947, 0.0
        %v2980 = vmax.f32 %v2948, 0.0
        %v2981 = vmax.f32 %v2949, 0.0
        %v2982 = vmax.f32 %v2950, 0.0
        %v2983 = vmax.f32 %v2951, 0.0
        %s2984 = scalar_lea.vmem %s5, 512
        %v2985 = vld [vmem:[%s2984] sm:$0xff]
        %v2986 = vld [vmem:[%s2984 + $0x8] sm:$0xff]
        %v2987 = vld [vmem:[%s2984 + $0x10] sm:$0xff]
        %v2988 = vld [vmem:[%s2984 + $0x18] sm:$0xff]
        %v2989 = vld [vmem:[%s2984 + $0x20] sm:$0xff]
        %v2990 = vld [vmem:[%s2984 + $0x28] sm:$0xff]
        %v2991 = vld [vmem:[%s2984 + $0x30] sm:$0xff]
        %v2992 = vld [vmem:[%s2984 + $0x38] sm:$0xff]
        %v2993 = vld [vmem:[%s2984 + $0x40] sm:$0xff]
        %v2994 = vld [vmem:[%s2984 + $0x48] sm:$0xff]
        %v2995 = vld [vmem:[%s2984 + $0x50] sm:$0xff]
        %v2996 = vld [vmem:[%s2984 + $0x58] sm:$0xff]
        %v2997 = vld [vmem:[%s2984 + $0x60] sm:$0xff]
        %v2998 = vld [vmem:[%s2984 + $0x68] sm:$0xff]
        %v2999 = vld [vmem:[%s2984 + $0x70] sm:$0xff]
        %v3000 = vld [vmem:[%s2984 + $0x78] sm:$0xff]
        %v3001 = vld [vmem:[%s2984 + $0x80] sm:$0xff]
        %v3002 = vld [vmem:[%s2984 + $0x88] sm:$0xff]
        %v3003 = vld [vmem:[%s2984 + $0x90] sm:$0xff]
        %v3004 = vld [vmem:[%s2984 + $0x98] sm:$0xff]
        %v3005 = vld [vmem:[%s2984 + $0xa0] sm:$0xff]
        %v3006 = vld [vmem:[%s2984 + $0xa8] sm:$0xff]
        %v3007 = vld [vmem:[%s2984 + $0xb0] sm:$0xff]
        %v3008 = vld [vmem:[%s2984 + $0xb8] sm:$0xff]
        %v3009 = vld [vmem:[%s2984 + $0xc0] sm:$0xff]
        %v3010 = vld [vmem:[%s2984 + $0xc8] sm:$0xff]
        %v3011 = vld [vmem:[%s2984 + $0xd0] sm:$0xff]
        %v3012 = vld [vmem:[%s2984 + $0xd8] sm:$0xff]
        %v3013 = vld [vmem:[%s2984 + $0xe0] sm:$0xff]
        %v3014 = vld [vmem:[%s2984 + $0xe8] sm:$0xff]
        %v3015 = vld [vmem:[%s2984 + $0xf0] sm:$0xff]
        %v3016 = vld [vmem:[%s2984 + $0xf8] sm:$0xff]
        %v3017 = vld [vmem:[%s2984 + $0x100] sm:$0xff]
        %v3018 = vld [vmem:[%s2984 + $0x108] sm:$0xff]
        %v3019 = vld [vmem:[%s2984 + $0x110] sm:$0xff]
        %v3020 = vld [vmem:[%s2984 + $0x118] sm:$0xff]
        %v3021 = vld [vmem:[%s2984 + $0x120] sm:$0xff]
        %v3022 = vld [vmem:[%s2984 + $0x128] sm:$0xff]
        %v3023 = vld [vmem:[%s2984 + $0x130] sm:$0xff]
        %v3024 = vld [vmem:[%s2984 + $0x138] sm:$0xff]
        %v3025 = vld [vmem:[%s2984 + $0x140] sm:$0xff]
        %v3026 = vld [vmem:[%s2984 + $0x148] sm:$0xff]
        %v3027 = vld [vmem:[%s2984 + $0x150] sm:$0xff]
        %v3028 = vld [vmem:[%s2984 + $0x158] sm:$0xff]
        %v3029 = vld [vmem:[%s2984 + $0x160] sm:$0xff]
        %v3030 = vld [vmem:[%s2984 + $0x168] sm:$0xff]
        %v3031 = vld [vmem:[%s2984 + $0x170] sm:$0xff]
        %v3032 = vld [vmem:[%s2984 + $0x178] sm:$0xff]
        %v3033 = vld [vmem:[%s2984 + $0x180] sm:$0xff]
        %v3034 = vld [vmem:[%s2984 + $0x188] sm:$0xff]
        %v3035 = vld [vmem:[%s2984 + $0x190] sm:$0xff]
        %v3036 = vld [vmem:[%s2984 + $0x198] sm:$0xff]
        %v3037 = vld [vmem:[%s2984 + $0x1a0] sm:$0xff]
        %v3038 = vld [vmem:[%s2984 + $0x1a8] sm:$0xff]
        %v3039 = vld [vmem:[%s2984 + $0x1b0] sm:$0xff]
        %v3040 = vld [vmem:[%s2984 + $0x1b8] sm:$0xff]
        %v3041 = vld [vmem:[%s2984 + $0x1c0] sm:$0xff]
        %v3042 = vld [vmem:[%s2984 + $0x1c8] sm:$0xff]
        %v3043 = vld [vmem:[%s2984 + $0x1d0] sm:$0xff]
        %v3044 = vld [vmem:[%s2984 + $0x1d8] sm:$0xff]
        %v3045 = vld [vmem:[%s2984 + $0x1e0] sm:$0xff]
        %v3046 = vld [vmem:[%s2984 + $0x1e8] sm:$0xff]
        %v3047 = vld [vmem:[%s2984 + $0x1f0] sm:$0xff]
        %v3048 = vld [vmem:[%s2984 + $0x1f8] sm:$0xff]
        %3049 = vmatprep.subr.mxu0 %v3016
        %3050 = vmatpush1.msra.mxu0 %v3015
        %3051 = vmatprep.subr.mxu0 %v3014
        %3052 = vmatpush1.msra.mxu0 %v3013
        %3053 = vmatprep.subr.mxu0 %v3012
        %3054 = vmatpush1.msra.mxu0 %v3011
        %3055 = vmatprep.subr.mxu0 %v3010
        %3056 = vmatpush1.msra.mxu0 %v3009
        %3057 = vmatprep.subr.mxu0 %v3008
        %3058 = vmatpush1.msra.mxu0 %v3007
        %3059 = vmatprep.subr.mxu0 %v3006
        %3060 = vmatpush1.msra.mxu0 %v3005
        %3061 = vmatprep.subr.mxu0 %v3004
        %3062 = vmatpush1.msra.mxu0 %v3003
        %3063 = vmatprep.subr.mxu0 %v3002
        %3064 = vmatpush1.msra.mxu0 %v3001
        %3065 = vmatprep.subr.mxu0 %v3000
        %3066 = vmatpush1.msra.mxu0 %v2999
        %3067 = vmatprep.subr.mxu0 %v2998
        %3068 = vmatpush1.msra.mxu0 %v2997
        %3069 = vmatprep.subr.mxu0 %v2996
        %3070 = vmatpush1.msra.mxu0 %v2995
        %3071 = vmatprep.subr.mxu0 %v2994
        %3072 = vmatpush1.msra.mxu0 %v2993
        %3073 = vmatprep.subr.mxu0 %v2992
        %3074 = vmatpush1.msra.mxu0 %v2991
        %3075 = vmatprep.subr.mxu0 %v2990
        %3076 = vmatpush1.msra.mxu0 %v2989
        %3077 = vmatprep.subr.mxu0 %v2988
        %3078 = vmatpush1.msra.mxu0 %v2987
        %3079 = vmatprep.subr.mxu0 %v2986
        %3080 = vmatpush1.msra.mxu0 %v2985
        %3081 = vmatprep.subr.mxu0 %v3048
        %3082 = vmatpush2.msra.mxu0 %v3047
        %3083 = vmatprep.subr.mxu0 %v3046
        %3084 = vmatpush2.msra.mxu0 %v3045
        %3085 = vmatprep.subr.mxu0 %v3044
        %3086 = vmatpush2.msra.mxu0 %v3043
        %3087 = vmatprep.subr.mxu0 %v3042
        %3088 = vmatpush2.msra.mxu0 %v3041
        %3089 = vmatprep.subr.mxu0 %v3040
        %3090 = vmatpush2.msra.mxu0 %v3039
        %3091 = vmatprep.subr.mxu0 %v3038
        %3092 = vmatpush2.msra.mxu0 %v3037
        %3093 = vmatprep.subr.mxu0 %v3036
        %3094 = vmatpush2.msra.mxu0 %v3035
        %3095 = vmatprep.subr.mxu0 %v3034
        %3096 = vmatpush2.msra.mxu0 %v3033
        %3097 = vmatprep.subr.mxu0 %v3032
        %3098 = vmatpush2.msra.mxu0 %v3031
        %3099 = vmatprep.subr.mxu0 %v3030
        %3100 = vmatpush2.msra.mxu0 %v3029
        %3101 = vmatprep.subr.mxu0 %v3028
        %3102 = vmatpush2.msra.mxu0 %v3027
        %3103 = vmatprep.subr.mxu0 %v3026
        %3104 = vmatpush2.msra.mxu0 %v3025
        %3105 = vmatprep.subr.mxu0 %v3024
        %3106 = vmatpush2.msra.mxu0 %v3023
        %3107 = vmatprep.subr.mxu0 %v3022
        %3108 = vmatpush2.msra.mxu0 %v3021
        %3109 = vmatprep.subr.mxu0 %v3020
        %3110 = vmatpush2.msra.mxu0 %v3019
        %3111 = vmatprep.subr.mxu0 %v3018
        %3112 = vmatpush2.msra.mxu0 %v3017
        %3113 = vmatprep.mubr.f32.mxu0 %v2953
        %3114 = vmatmul.mubr.f32.gmra.mxu0 %v2952
        %v3115 = vpop.f32.mrf.mxu0
        %v3116 = vadd.f32 0.0, %v3115
        %v3117 = vpop.f32.mrf.mxu0
        %v3118 = vadd.f32 0.0, %v3117
        %3119 = vmatprep.mubr.f32.mxu0 %v2955
        %3120 = vmatmul.mubr.f32.gmra.mxu0 %v2954
        %v3121 = vpop.f32.mrf.mxu0
        %v3122 = vadd.f32 0.0, %v3121
        %v3123 = vpop.f32.mrf.mxu0
        %v3124 = vadd.f32 0.0, %v3123
        %3125 = vmatprep.mubr.f32.mxu0 %v2957
        %3126 = vmatmul.mubr.f32.gmra.mxu0 %v2956
        %v3127 = vpop.f32.mrf.mxu0
        %v3128 = vadd.f32 0.0, %v3127
        %v3129 = vpop.f32.mrf.mxu0
        %v3130 = vadd.f32 0.0, %v3129
        %3131 = vmatprep.mubr.f32.mxu0 %v2959
        %3132 = vmatmul.mubr.f32.gmra.mxu0 %v2958
        %v3133 = vpop.f32.mrf.mxu0
        %v3134 = vadd.f32 0.0, %v3133
        %v3135 = vpop.f32.mrf.mxu0
        %v3136 = vadd.f32 0.0, %v3135
        %3137 = vmatprep.mubr.f32.mxu0 %v2961
        %3138 = vmatmul.mubr.f32.gmra.mxu0 %v2960
        %v3139 = vpop.f32.mrf.mxu0
        %v3140 = vadd.f32 0.0, %v3139
        %v3141 = vpop.f32.mrf.mxu0
        %v3142 = vadd.f32 0.0, %v3141
        %3143 = vmatprep.mubr.f32.mxu0 %v2963
        %3144 = vmatmul.mubr.f32.gmra.mxu0 %v2962
        %v3145 = vpop.f32.mrf.mxu0
        %v3146 = vadd.f32 0.0, %v3145
        %v3147 = vpop.f32.mrf.mxu0
        %v3148 = vadd.f32 0.0, %v3147
        %3149 = vmatprep.mubr.f32.mxu0 %v2965
        %3150 = vmatmul.mubr.f32.gmra.mxu0 %v2964
        %v3151 = vpop.f32.mrf.mxu0
        %v3152 = vadd.f32 0.0, %v3151
        %v3153 = vpop.f32.mrf.mxu0
        %v3154 = vadd.f32 0.0, %v3153
        %3155 = vmatprep.mubr.f32.mxu0 %v2967
        %3156 = vmatmul.mubr.f32.gmra.mxu0 %v2966
        %v3157 = vpop.f32.mrf.mxu0
        %v3158 = vadd.f32 0.0, %v3157
        %v3159 = vpop.f32.mrf.mxu0
        %v3160 = vadd.f32 0.0, %v3159
        %3161 = vmatprep.mubr.f32.mxu0 %v2969
        %3162 = vmatmul.mubr.f32.gmra.mxu0 %v2968
        %v3163 = vpop.f32.mrf.mxu0
        %v3164 = vadd.f32 0.0, %v3163
        %v3165 = vpop.f32.mrf.mxu0
        %v3166 = vadd.f32 0.0, %v3165
        %3167 = vmatprep.mubr.f32.mxu0 %v2971
        %3168 = vmatmul.mubr.f32.gmra.mxu0 %v2970
        %v3169 = vpop.f32.mrf.mxu0
        %v3170 = vadd.f32 0.0, %v3169
        %v3171 = vpop.f32.mrf.mxu0
        %v3172 = vadd.f32 0.0, %v3171
        %3173 = vmatprep.mubr.f32.mxu0 %v2973
        %3174 = vmatmul.mubr.f32.gmra.mxu0 %v2972
        %v3175 = vpop.f32.mrf.mxu0
        %v3176 = vadd.f32 0.0, %v3175
        %v3177 = vpop.f32.mrf.mxu0
        %v3178 = vadd.f32 0.0, %v3177
        %3179 = vmatprep.mubr.f32.mxu0 %v2975
        %3180 = vmatmul.mubr.f32.gmra.mxu0 %v2974
        %v3181 = vpop.f32.mrf.mxu0
        %v3182 = vadd.f32 0.0, %v3181
        %v3183 = vpop.f32.mrf.mxu0
        %v3184 = vadd.f32 0.0, %v3183
        %3185 = vmatprep.mubr.f32.mxu0 %v2977
        %3186 = vmatmul.mubr.f32.gmra.mxu0 %v2976
        %v3187 = vpop.f32.mrf.mxu0
        %v3188 = vadd.f32 0.0, %v3187
        %v3189 = vpop.f32.mrf.mxu0
        %v3190 = vadd.f32 0.0, %v3189
        %3191 = vmatprep.mubr.f32.mxu0 %v2979
        %3192 = vmatmul.mubr.f32.gmra.mxu0 %v2978
        %v3193 = vpop.f32.mrf.mxu0
        %v3194 = vadd.f32 0.0, %v3193
        %v3195 = vpop.f32.mrf.mxu0
        %v3196 = vadd.f32 0.0, %v3195
        %3197 = vmatprep.mubr.f32.mxu0 %v2981
        %3198 = vmatmul.mubr.f32.gmra.mxu0 %v2980
        %v3199 = vpop.f32.mrf.mxu0
        %v3200 = vadd.f32 0.0, %v3199
        %v3201 = vpop.f32.mrf.mxu0
        %v3202 = vadd.f32 0.0, %v3201
        %3203 = vmatprep.mubr.f32.mxu0 %v2983
        %3204 = vmatmul.mubr.f32.gmra.mxu0 %v2982
        %v3205 = vpop.f32.mrf.mxu0
        %v3206 = vadd.f32 0.0, %v3205
        %v3207 = vpop.f32.mrf.mxu0
        %v3208 = vadd.f32 0.0, %v3207
        %3209 = vdwg.mxu0
        %3210 = vmatprep.subr.mxu0 %v716
        %3211 = vmatpush1.msra.mxu0 %v715
        %3212 = vmatprep.subr.mxu0 %v714
        %3213 = vmatpush1.msra.mxu0 %v713
        %3214 = vmatprep.subr.mxu0 %v712
        %3215 = vmatpush1.msra.mxu0 %v711
        %3216 = vmatprep.subr.mxu0 %v710
        %3217 = vmatpush1.msra.mxu0 %v709
        %3218 = vmatprep.subr.mxu0 %v708
        %3219 = vmatpush1.msra.mxu0 %v707
        %3220 = vmatprep.subr.mxu0 %v706
        %3221 = vmatpush1.msra.mxu0 %v705
        %3222 = vmatprep.subr.mxu0 %v704
        %3223 = vmatpush1.msra.mxu0 %v703
        %3224 = vmatprep.subr.mxu0 %v702
        %3225 = vmatpush1.msra.mxu0 %v701
        %3226 = vmatprep.subr.mxu0 %v700
        %3227 = vmatpush1.msra.mxu0 %v699
        %3228 = vmatprep.subr.mxu0 %v698
        %3229 = vmatpush1.msra.mxu0 %v697
        %3230 = vmatprep.subr.mxu0 %v696
        %3231 = vmatpush1.msra.mxu0 %v695
        %3232 = vmatprep.subr.mxu0 %v694
        %3233 = vmatpush1.msra.mxu0 %v693
        %3234 = vmatprep.subr.mxu0 %v692
        %3235 = vmatpush1.msra.mxu0 %v691
        %3236 = vmatprep.subr.mxu0 %v690
        %3237 = vmatpush1.msra.mxu0 %v689
        %3238 = vmatprep.subr.mxu0 %v688
        %3239 = vmatpush1.msra.mxu0 %v687
        %3240 = vmatprep.subr.mxu0 %v686
        %3241 = vmatpush1.msra.mxu0 %v685
        %3242 = vmatprep.subr.mxu0 %v748
        %3243 = vmatpush2.msra.mxu0 %v747
        %3244 = vmatprep.subr.mxu0 %v746
        %3245 = vmatpush2.msra.mxu0 %v745
        %3246 = vmatprep.subr.mxu0 %v744
        %3247 = vmatpush2.msra.mxu0 %v743
        %3248 = vmatprep.subr.mxu0 %v742
        %3249 = vmatpush2.msra.mxu0 %v741
        %3250 = vmatprep.subr.mxu0 %v740
        %3251 = vmatpush2.msra.mxu0 %v739
        %3252 = vmatprep.subr.mxu0 %v738
        %3253 = vmatpush2.msra.mxu0 %v737
        %3254 = vmatprep.subr.mxu0 %v736
        %3255 = vmatpush2.msra.mxu0 %v735
        %3256 = vmatprep.subr.mxu0 %v734
        %3257 = vmatpush2.msra.mxu0 %v733
        %3258 = vmatprep.subr.mxu0 %v732
        %3259 = vmatpush2.msra.mxu0 %v731
        %3260 = vmatprep.subr.mxu0 %v730
        %3261 = vmatpush2.msra.mxu0 %v729
        %3262 = vmatprep.subr.mxu0 %v728
        %3263 = vmatpush2.msra.mxu0 %v727
        %3264 = vmatprep.subr.mxu0 %v726
        %3265 = vmatpush2.msra.mxu0 %v725
        %3266 = vmatprep.subr.mxu0 %v724
        %3267 = vmatpush2.msra.mxu0 %v723
        %3268 = vmatprep.subr.mxu0 %v722
        %3269 = vmatpush2.msra.mxu0 %v721
        %3270 = vmatprep.subr.mxu0 %v720
        %3271 = vmatpush2.msra.mxu0 %v719
        %3272 = vmatprep.subr.mxu0 %v718
        %3273 = vmatpush2.msra.mxu0 %v717
        %3274 = vmatprep.mubr.f32.mxu0 %v654
        %3275 = vmatmul.mubr.f32.gmra.mxu0 %v653
        %v3276 = vpop.f32.mrf.mxu0
        %v3277 = vadd.f32 %v3116, %v3276
        %v3278 = vpop.f32.mrf.mxu0
        %v3279 = vadd.f32 %v3118, %v3278
        %3280 = vmatprep.mubr.f32.mxu0 %v656
        %3281 = vmatmul.mubr.f32.gmra.mxu0 %v655
        %v3282 = vpop.f32.mrf.mxu0
        %v3283 = vadd.f32 %v3122, %v3282
        %v3284 = vpop.f32.mrf.mxu0
        %v3285 = vadd.f32 %v3124, %v3284
        %3286 = vmatprep.mubr.f32.mxu0 %v658
        %3287 = vmatmul.mubr.f32.gmra.mxu0 %v657
        %v3288 = vpop.f32.mrf.mxu0
        %v3289 = vadd.f32 %v3128, %v3288
        %v3290 = vpop.f32.mrf.mxu0
        %v3291 = vadd.f32 %v3130, %v3290
        %3292 = vmatprep.mubr.f32.mxu0 %v660
        %3293 = vmatmul.mubr.f32.gmra.mxu0 %v659
        %v3294 = vpop.f32.mrf.mxu0
        %v3295 = vadd.f32 %v3134, %v3294
        %v3296 = vpop.f32.mrf.mxu0
        %v3297 = vadd.f32 %v3136, %v3296
        %3298 = vmatprep.mubr.f32.mxu0 %v662
        %3299 = vmatmul.mubr.f32.gmra.mxu0 %v661
        %v3300 = vpop.f32.mrf.mxu0
        %v3301 = vadd.f32 %v3140, %v3300
        %v3302 = vpop.f32.mrf.mxu0
        %v3303 = vadd.f32 %v3142, %v3302
        %3304 = vmatprep.mubr.f32.mxu0 %v664
        %3305 = vmatmul.mubr.f32.gmra.mxu0 %v663
        %v3306 = vpop.f32.mrf.mxu0
        %v3307 = vadd.f32 %v3146, %v3306
        %v3308 = vpop.f32.mrf.mxu0
        %v3309 = vadd.f32 %v3148, %v3308
        %3310 = vmatprep.mubr.f32.mxu0 %v666
        %3311 = vmatmul.mubr.f32.gmra.mxu0 %v665
        %v3312 = vpop.f32.mrf.mxu0
        %v3313 = vadd.f32 %v3152, %v3312
        %v3314 = vpop.f32.mrf.mxu0
        %v3315 = vadd.f32 %v3154, %v3314
        %3316 = vmatprep.mubr.f32.mxu0 %v668
        %3317 = vmatmul.mubr.f32.gmra.mxu0 %v667
        %v3318 = vpop.f32.mrf.mxu0
        %v3319 = vadd.f32 %v3158, %v3318
        %v3320 = vpop.f32.mrf.mxu0
        %v3321 = vadd.f32 %v3160, %v3320
        %3322 = vmatprep.mubr.f32.mxu0 %v670
        %3323 = vmatmul.mubr.f32.gmra.mxu0 %v669
        %v3324 = vpop.f32.mrf.mxu0
        %v3325 = vadd.f32 %v3164, %v3324
        %v3326 = vpop.f32.mrf.mxu0
        %v3327 = vadd.f32 %v3166, %v3326
        %3328 = vmatprep.mubr.f32.mxu0 %v672
        %3329 = vmatmul.mubr.f32.gmra.mxu0 %v671
        %v3330 = vpop.f32.mrf.mxu0
        %v3331 = vadd.f32 %v3170, %v3330
        %v3332 = vpop.f32.mrf.mxu0
        %v3333 = vadd.f32 %v3172, %v3332
        %3334 = vmatprep.mubr.f32.mxu0 %v674
        %3335 = vmatmul.mubr.f32.gmra.mxu0 %v673
        %v3336 = vpop.f32.mrf.mxu0
        %v3337 = vadd.f32 %v3176, %v3336
        %v3338 = vpop.f32.mrf.mxu0
        %v3339 = vadd.f32 %v3178, %v3338
        %3340 = vmatprep.mubr.f32.mxu0 %v676
        %3341 = vmatmul.mubr.f32.gmra.mxu0 %v675
        %v3342 = vpop.f32.mrf.mxu0
        %v3343 = vadd.f32 %v3182, %v3342
        %v3344 = vpop.f32.mrf.mxu0
        %v3345 = vadd.f32 %v3184, %v3344
        %3346 = vmatprep.mubr.f32.mxu0 %v678
        %3347 = vmatmul.mubr.f32.gmra.mxu0 %v677
        %v3348 = vpop.f32.mrf.mxu0
        %v3349 = vadd.f32 %v3188, %v3348
        %v3350 = vpop.f32.mrf.mxu0
        %v3351 = vadd.f32 %v3190, %v3350
        %3352 = vmatprep.mubr.f32.mxu0 %v680
        %3353 = vmatmul.mubr.f32.gmra.mxu0 %v679
        %v3354 = vpop.f32.mrf.mxu0
        %v3355 = vadd.f32 %v3194, %v3354
        %v3356 = vpop.f32.mrf.mxu0
        %v3357 = vadd.f32 %v3196, %v3356
        %3358 = vmatprep.mubr.f32.mxu0 %v682
        %3359 = vmatmul.mubr.f32.gmra.mxu0 %v681
        %v3360 = vpop.f32.mrf.mxu0
        %v3361 = vadd.f32 %v3200, %v3360
        %v3362 = vpop.f32.mrf.mxu0
        %v3363 = vadd.f32 %v3202, %v3362
        %3364 = vmatprep.mubr.f32.mxu0 %v684
        %3365 = vmatmul.mubr.f32.gmra.mxu0 %v683
        %v3366 = vpop.f32.mrf.mxu0
        %v3367 = vadd.f32 %v3206, %v3366
        %v3368 = vpop.f32.mrf.mxu0
        %v3369 = vadd.f32 %v3208, %v3368
        %3370 = vdwg.mxu0
        %s3371 = sadd.s32 %s336, 2
        %s3372 = smul.u32 %s3371, 32
        %s3373 = scalar_lea.vmem %s330, %s3372
        %v3374 = vld [vmem:[%s3373 + $0x2] sm:$0xff]
        %v3375 = vld [vmem:[%s3373 + $0xa] sm:$0xff]
        %v3376 = vld [vmem:[%s3373 + $0x22] sm:$0xff]
        %v3377 = vld [vmem:[%s3373 + $0x2a] sm:$0xff]
        %v3378 = vld [vmem:[%s3373 + $0x42] sm:$0xff]
        %v3379 = vld [vmem:[%s3373 + $0x4a] sm:$0xff]
        %v3380 = vld [vmem:[%s3373 + $0x62] sm:$0xff]
        %v3381 = vld [vmem:[%s3373 + $0x6a] sm:$0xff]
        %v3382 = vld [vmem:[%s3373 + $0x82] sm:$0xff]
        %v3383 = vld [vmem:[%s3373 + $0x8a] sm:$0xff]
        %v3384 = vld [vmem:[%s3373 + $0xa2] sm:$0xff]
        %v3385 = vld [vmem:[%s3373 + $0xaa] sm:$0xff]
        %v3386 = vld [vmem:[%s3373 + $0xc2] sm:$0xff]
        %v3387 = vld [vmem:[%s3373 + $0xca] sm:$0xff]
        %v3388 = vld [vmem:[%s3373 + $0xe2] sm:$0xff]
        %v3389 = vld [vmem:[%s3373 + $0xea] sm:$0xff]
        %s3390 = scalar_lea.vmem %s2, 2304
        %v3391 = vld [vmem:[%s3390] sm:$0xff]
        %v3392 = vld [vmem:[%s3390 + $0x8] sm:$0xff]
        %v3393 = vld [vmem:[%s3390 + $0x10] sm:$0xff]
        %v3394 = vld [vmem:[%s3390 + $0x18] sm:$0xff]
        %v3395 = vld [vmem:[%s3390 + $0x20] sm:$0xff]
        %v3396 = vld [vmem:[%s3390 + $0x28] sm:$0xff]
        %v3397 = vld [vmem:[%s3390 + $0x30] sm:$0xff]
        %v3398 = vld [vmem:[%s3390 + $0x38] sm:$0xff]
        %v3399 = vld [vmem:[%s3390 + $0x40] sm:$0xff]
        %v3400 = vld [vmem:[%s3390 + $0x48] sm:$0xff]
        %v3401 = vld [vmem:[%s3390 + $0x50] sm:$0xff]
        %v3402 = vld [vmem:[%s3390 + $0x58] sm:$0xff]
        %v3403 = vld [vmem:[%s3390 + $0x60] sm:$0xff]
        %v3404 = vld [vmem:[%s3390 + $0x68] sm:$0xff]
        %v3405 = vld [vmem:[%s3390 + $0x70] sm:$0xff]
        %v3406 = vld [vmem:[%s3390 + $0x78] sm:$0xff]
        %v3407 = vld [vmem:[%s3390 + $0x80] sm:$0xff]
        %v3408 = vld [vmem:[%s3390 + $0x88] sm:$0xff]
        %v3409 = vld [vmem:[%s3390 + $0x90] sm:$0xff]
        %v3410 = vld [vmem:[%s3390 + $0x98] sm:$0xff]
        %v3411 = vld [vmem:[%s3390 + $0xa0] sm:$0xff]
        %v3412 = vld [vmem:[%s3390 + $0xa8] sm:$0xff]
        %v3413 = vld [vmem:[%s3390 + $0xb0] sm:$0xff]
        %v3414 = vld [vmem:[%s3390 + $0xb8] sm:$0xff]
        %v3415 = vld [vmem:[%s3390 + $0xc0] sm:$0xff]
        %v3416 = vld [vmem:[%s3390 + $0xc8] sm:$0xff]
        %v3417 = vld [vmem:[%s3390 + $0xd0] sm:$0xff]
        %v3418 = vld [vmem:[%s3390 + $0xd8] sm:$0xff]
        %v3419 = vld [vmem:[%s3390 + $0xe0] sm:$0xff]
        %v3420 = vld [vmem:[%s3390 + $0xe8] sm:$0xff]
        %v3421 = vld [vmem:[%s3390 + $0xf0] sm:$0xff]
        %v3422 = vld [vmem:[%s3390 + $0xf8] sm:$0xff]
        %v3423 = vld [vmem:[%s3373 + $0x6] sm:$0xff]
        %v3424 = vld [vmem:[%s3373 + $0xe] sm:$0xff]
        %v3425 = vld [vmem:[%s3373 + $0x26] sm:$0xff]
        %v3426 = vld [vmem:[%s3373 + $0x2e] sm:$0xff]
        %v3427 = vld [vmem:[%s3373 + $0x46] sm:$0xff]
        %v3428 = vld [vmem:[%s3373 + $0x4e] sm:$0xff]
        %v3429 = vld [vmem:[%s3373 + $0x66] sm:$0xff]
        %v3430 = vld [vmem:[%s3373 + $0x6e] sm:$0xff]
        %v3431 = vld [vmem:[%s3373 + $0x86] sm:$0xff]
        %v3432 = vld [vmem:[%s3373 + $0x8e] sm:$0xff]
        %v3433 = vld [vmem:[%s3373 + $0xa6] sm:$0xff]
        %v3434 = vld [vmem:[%s3373 + $0xae] sm:$0xff]
        %v3435 = vld [vmem:[%s3373 + $0xc6] sm:$0xff]
        %v3436 = vld [vmem:[%s3373 + $0xce] sm:$0xff]
        %v3437 = vld [vmem:[%s3373 + $0xe6] sm:$0xff]
        %v3438 = vld [vmem:[%s3373 + $0xee] sm:$0xff]
        %s3439 = scalar_lea.vmem %s2, 2560
        %v3440 = vld [vmem:[%s3439] sm:$0xff]
        %v3441 = vld [vmem:[%s3439 + $0x8] sm:$0xff]
        %v3442 = vld [vmem:[%s3439 + $0x10] sm:$0xff]
        %v3443 = vld [vmem:[%s3439 + $0x18] sm:$0xff]
        %v3444 = vld [vmem:[%s3439 + $0x20] sm:$0xff]
        %v3445 = vld [vmem:[%s3439 + $0x28] sm:$0xff]
        %v3446 = vld [vmem:[%s3439 + $0x30] sm:$0xff]
        %v3447 = vld [vmem:[%s3439 + $0x38] sm:$0xff]
        %v3448 = vld [vmem:[%s3439 + $0x40] sm:$0xff]
        %v3449 = vld [vmem:[%s3439 + $0x48] sm:$0xff]
        %v3450 = vld [vmem:[%s3439 + $0x50] sm:$0xff]
        %v3451 = vld [vmem:[%s3439 + $0x58] sm:$0xff]
        %v3452 = vld [vmem:[%s3439 + $0x60] sm:$0xff]
        %v3453 = vld [vmem:[%s3439 + $0x68] sm:$0xff]
        %v3454 = vld [vmem:[%s3439 + $0x70] sm:$0xff]
        %v3455 = vld [vmem:[%s3439 + $0x78] sm:$0xff]
        %v3456 = vld [vmem:[%s3439 + $0x80] sm:$0xff]
        %v3457 = vld [vmem:[%s3439 + $0x88] sm:$0xff]
        %v3458 = vld [vmem:[%s3439 + $0x90] sm:$0xff]
        %v3459 = vld [vmem:[%s3439 + $0x98] sm:$0xff]
        %v3460 = vld [vmem:[%s3439 + $0xa0] sm:$0xff]
        %v3461 = vld [vmem:[%s3439 + $0xa8] sm:$0xff]
        %v3462 = vld [vmem:[%s3439 + $0xb0] sm:$0xff]
        %v3463 = vld [vmem:[%s3439 + $0xb8] sm:$0xff]
        %v3464 = vld [vmem:[%s3439 + $0xc0] sm:$0xff]
        %v3465 = vld [vmem:[%s3439 + $0xc8] sm:$0xff]
        %v3466 = vld [vmem:[%s3439 + $0xd0] sm:$0xff]
        %v3467 = vld [vmem:[%s3439 + $0xd8] sm:$0xff]
        %v3468 = vld [vmem:[%s3439 + $0xe0] sm:$0xff]
        %v3469 = vld [vmem:[%s3439 + $0xe8] sm:$0xff]
        %v3470 = vld [vmem:[%s3439 + $0xf0] sm:$0xff]
        %v3471 = vld [vmem:[%s3439 + $0xf8] sm:$0xff]
        %3472 = vmatprep.subr.mxu0 %v3471
        %3473 = vmatpush1.msra.mxu0 %v3470
        %3474 = vmatprep.subr.mxu0 %v3469
        %3475 = vmatpush1.msra.mxu0 %v3468
        %3476 = vmatprep.subr.mxu0 %v3467
        %3477 = vmatpush1.msra.mxu0 %v3466
        %3478 = vmatprep.subr.mxu0 %v3465
        %3479 = vmatpush1.msra.mxu0 %v3464
        %3480 = vmatprep.subr.mxu0 %v3463
        %3481 = vmatpush1.msra.mxu0 %v3462
        %3482 = vmatprep.subr.mxu0 %v3461
        %3483 = vmatpush1.msra.mxu0 %v3460
        %3484 = vmatprep.subr.mxu0 %v3459
        %3485 = vmatpush1.msra.mxu0 %v3458
        %3486 = vmatprep.subr.mxu0 %v3457
        %3487 = vmatpush1.msra.mxu0 %v3456
        %3488 = vmatprep.subr.mxu0 %v3455
        %3489 = vmatpush1.msra.mxu0 %v3454
        %3490 = vmatprep.subr.mxu0 %v3453
        %3491 = vmatpush1.msra.mxu0 %v3452
        %3492 = vmatprep.subr.mxu0 %v3451
        %3493 = vmatpush1.msra.mxu0 %v3450
        %3494 = vmatprep.subr.mxu0 %v3449
        %3495 = vmatpush1.msra.mxu0 %v3448
        %3496 = vmatprep.subr.mxu0 %v3447
        %3497 = vmatpush1.msra.mxu0 %v3446
        %3498 = vmatprep.subr.mxu0 %v3445
        %3499 = vmatpush1.msra.mxu0 %v3444
        %3500 = vmatprep.subr.mxu0 %v3443
        %3501 = vmatpush1.msra.mxu0 %v3442
        %3502 = vmatprep.subr.mxu0 %v3441
        %3503 = vmatpush1.msra.mxu0 %v3440
        %3504 = vmatprep.subr.mxu0 0.0
        %3505 = vmatpush2.msra.mxu0 0.0
        %3506 = vmatprep.subr.mxu0 0.0
        %3507 = vmatpush2.msra.mxu0 0.0
        %3508 = vmatprep.subr.mxu0 0.0
        %3509 = vmatpush2.msra.mxu0 0.0
        %3510 = vmatprep.subr.mxu0 0.0
        %3511 = vmatpush2.msra.mxu0 0.0
        %3512 = vmatprep.subr.mxu0 0.0
        %3513 = vmatpush2.msra.mxu0 0.0
        %3514 = vmatprep.subr.mxu0 0.0
        %3515 = vmatpush2.msra.mxu0 0.0
        %3516 = vmatprep.subr.mxu0 0.0
        %3517 = vmatpush2.msra.mxu0 0.0
        %3518 = vmatprep.subr.mxu0 0.0
        %3519 = vmatpush2.msra.mxu0 0.0
        %3520 = vmatprep.subr.mxu0 0.0
        %3521 = vmatpush2.msra.mxu0 0.0
        %3522 = vmatprep.subr.mxu0 0.0
        %3523 = vmatpush2.msra.mxu0 0.0
        %3524 = vmatprep.subr.mxu0 0.0
        %3525 = vmatpush2.msra.mxu0 0.0
        %3526 = vmatprep.subr.mxu0 0.0
        %3527 = vmatpush2.msra.mxu0 0.0
        %3528 = vmatprep.subr.mxu0 0.0
        %3529 = vmatpush2.msra.mxu0 0.0
        %3530 = vmatprep.subr.mxu0 0.0
        %3531 = vmatpush2.msra.mxu0 0.0
        %3532 = vmatprep.subr.mxu0 0.0
        %3533 = vmatpush2.msra.mxu0 0.0
        %3534 = vmatprep.subr.mxu0 0.0
        %3535 = vmatpush2.msra.mxu0 0.0
        %3536 = vmatprep.mubr.f32.mxu0 0.0
        %3537 = vmatmul.mubr.f32.gmra.mxu0 %v3423
        %v3538 = vpop.f32.mrf.mxu0
        %v3539 = vadd.f32 0.0, %v3538
        %v3540 = vpop.f32.mrf.mxu0
        %v3541 = vadd.f32 0.0, %v3540
        %3542 = vmatprep.mubr.f32.mxu0 0.0
        %3543 = vmatmul.mubr.f32.gmra.mxu0 %v3424
        %v3544 = vpop.f32.mrf.mxu0
        %v3545 = vadd.f32 0.0, %v3544
        %v3546 = vpop.f32.mrf.mxu0
        %v3547 = vadd.f32 0.0, %v3546
        %3548 = vmatprep.mubr.f32.mxu0 0.0
        %3549 = vmatmul.mubr.f32.gmra.mxu0 %v3425
        %v3550 = vpop.f32.mrf.mxu0
        %v3551 = vadd.f32 0.0, %v3550
        %v3552 = vpop.f32.mrf.mxu0
        %v3553 = vadd.f32 0.0, %v3552
        %3554 = vmatprep.mubr.f32.mxu0 0.0
        %3555 = vmatmul.mubr.f32.gmra.mxu0 %v3426
        %v3556 = vpop.f32.mrf.mxu0
        %v3557 = vadd.f32 0.0, %v3556
        %v3558 = vpop.f32.mrf.mxu0
        %v3559 = vadd.f32 0.0, %v3558
        %3560 = vmatprep.mubr.f32.mxu0 0.0
        %3561 = vmatmul.mubr.f32.gmra.mxu0 %v3427
        %v3562 = vpop.f32.mrf.mxu0
        %v3563 = vadd.f32 0.0, %v3562
        %v3564 = vpop.f32.mrf.mxu0
        %v3565 = vadd.f32 0.0, %v3564
        %3566 = vmatprep.mubr.f32.mxu0 0.0
        %3567 = vmatmul.mubr.f32.gmra.mxu0 %v3428
        %v3568 = vpop.f32.mrf.mxu0
        %v3569 = vadd.f32 0.0, %v3568
        %v3570 = vpop.f32.mrf.mxu0
        %v3571 = vadd.f32 0.0, %v3570
        %3572 = vmatprep.mubr.f32.mxu0 0.0
        %3573 = vmatmul.mubr.f32.gmra.mxu0 %v3429
        %v3574 = vpop.f32.mrf.mxu0
        %v3575 = vadd.f32 0.0, %v3574
        %v3576 = vpop.f32.mrf.mxu0
        %v3577 = vadd.f32 0.0, %v3576
        %3578 = vmatprep.mubr.f32.mxu0 0.0
        %3579 = vmatmul.mubr.f32.gmra.mxu0 %v3430
        %v3580 = vpop.f32.mrf.mxu0
        %v3581 = vadd.f32 0.0, %v3580
        %v3582 = vpop.f32.mrf.mxu0
        %v3583 = vadd.f32 0.0, %v3582
        %3584 = vmatprep.mubr.f32.mxu0 0.0
        %3585 = vmatmul.mubr.f32.gmra.mxu0 %v3431
        %v3586 = vpop.f32.mrf.mxu0
        %v3587 = vadd.f32 0.0, %v3586
        %v3588 = vpop.f32.mrf.mxu0
        %v3589 = vadd.f32 0.0, %v3588
        %3590 = vmatprep.mubr.f32.mxu0 0.0
        %3591 = vmatmul.mubr.f32.gmra.mxu0 %v3432
        %v3592 = vpop.f32.mrf.mxu0
        %v3593 = vadd.f32 0.0, %v3592
        %v3594 = vpop.f32.mrf.mxu0
        %v3595 = vadd.f32 0.0, %v3594
        %3596 = vmatprep.mubr.f32.mxu0 0.0
        %3597 = vmatmul.mubr.f32.gmra.mxu0 %v3433
        %v3598 = vpop.f32.mrf.mxu0
        %v3599 = vadd.f32 0.0, %v3598
        %v3600 = vpop.f32.mrf.mxu0
        %v3601 = vadd.f32 0.0, %v3600
        %3602 = vmatprep.mubr.f32.mxu0 0.0
        %3603 = vmatmul.mubr.f32.gmra.mxu0 %v3434
        %v3604 = vpop.f32.mrf.mxu0
        %v3605 = vadd.f32 0.0, %v3604
        %v3606 = vpop.f32.mrf.mxu0
        %v3607 = vadd.f32 0.0, %v3606
        %3608 = vmatprep.mubr.f32.mxu0 0.0
        %3609 = vmatmul.mubr.f32.gmra.mxu0 %v3435
        %v3610 = vpop.f32.mrf.mxu0
        %v3611 = vadd.f32 0.0, %v3610
        %v3612 = vpop.f32.mrf.mxu0
        %v3613 = vadd.f32 0.0, %v3612
        %3614 = vmatprep.mubr.f32.mxu0 0.0
        %3615 = vmatmul.mubr.f32.gmra.mxu0 %v3436
        %v3616 = vpop.f32.mrf.mxu0
        %v3617 = vadd.f32 0.0, %v3616
        %v3618 = vpop.f32.mrf.mxu0
        %v3619 = vadd.f32 0.0, %v3618
        %3620 = vmatprep.mubr.f32.mxu0 0.0
        %3621 = vmatmul.mubr.f32.gmra.mxu0 %v3437
        %v3622 = vpop.f32.mrf.mxu0
        %v3623 = vadd.f32 0.0, %v3622
        %v3624 = vpop.f32.mrf.mxu0
        %v3625 = vadd.f32 0.0, %v3624
        %3626 = vmatprep.mubr.f32.mxu0 0.0
        %3627 = vmatmul.mubr.f32.gmra.mxu0 %v3438
        %v3628 = vpop.f32.mrf.mxu0
        %v3629 = vadd.f32 0.0, %v3628
        %v3630 = vpop.f32.mrf.mxu0
        %v3631 = vadd.f32 0.0, %v3630
        %3632 = vdwg.mxu0
        %3633 = vmatprep.subr.mxu0 %v3422
        %3634 = vmatpush1.msra.mxu0 %v3421
        %3635 = vmatprep.subr.mxu0 %v3420
        %3636 = vmatpush1.msra.mxu0 %v3419
        %3637 = vmatprep.subr.mxu0 %v3418
        %3638 = vmatpush1.msra.mxu0 %v3417
        %3639 = vmatprep.subr.mxu0 %v3416
        %3640 = vmatpush1.msra.mxu0 %v3415
        %3641 = vmatprep.subr.mxu0 %v3414
        %3642 = vmatpush1.msra.mxu0 %v3413
        %3643 = vmatprep.subr.mxu0 %v3412
        %3644 = vmatpush1.msra.mxu0 %v3411
        %3645 = vmatprep.subr.mxu0 %v3410
        %3646 = vmatpush1.msra.mxu0 %v3409
        %3647 = vmatprep.subr.mxu0 %v3408
        %3648 = vmatpush1.msra.mxu0 %v3407
        %3649 = vmatprep.subr.mxu0 %v3406
        %3650 = vmatpush1.msra.mxu0 %v3405
        %3651 = vmatprep.subr.mxu0 %v3404
        %3652 = vmatpush1.msra.mxu0 %v3403
        %3653 = vmatprep.subr.mxu0 %v3402
        %3654 = vmatpush1.msra.mxu0 %v3401
        %3655 = vmatprep.subr.mxu0 %v3400
        %3656 = vmatpush1.msra.mxu0 %v3399
        %3657 = vmatprep.subr.mxu0 %v3398
        %3658 = vmatpush1.msra.mxu0 %v3397
        %3659 = vmatprep.subr.mxu0 %v3396
        %3660 = vmatpush1.msra.mxu0 %v3395
        %3661 = vmatprep.subr.mxu0 %v3394
        %3662 = vmatpush1.msra.mxu0 %v3393
        %3663 = vmatprep.subr.mxu0 %v3392
        %3664 = vmatpush1.msra.mxu0 %v3391
        %3665 = vmatprep.subr.mxu0 0.0
        %3666 = vmatpush2.msra.mxu0 0.0
        %3667 = vmatprep.subr.mxu0 0.0
        %3668 = vmatpush2.msra.mxu0 0.0
        %3669 = vmatprep.subr.mxu0 0.0
        %3670 = vmatpush2.msra.mxu0 0.0
        %3671 = vmatprep.subr.mxu0 0.0
        %3672 = vmatpush2.msra.mxu0 0.0
        %3673 = vmatprep.subr.mxu0 0.0
        %3674 = vmatpush2.msra.mxu0 0.0
        %3675 = vmatprep.subr.mxu0 0.0
        %3676 = vmatpush2.msra.mxu0 0.0
        %3677 = vmatprep.subr.mxu0 0.0
        %3678 = vmatpush2.msra.mxu0 0.0
        %3679 = vmatprep.subr.mxu0 0.0
        %3680 = vmatpush2.msra.mxu0 0.0
        %3681 = vmatprep.subr.mxu0 0.0
        %3682 = vmatpush2.msra.mxu0 0.0
        %3683 = vmatprep.subr.mxu0 0.0
        %3684 = vmatpush2.msra.mxu0 0.0
        %3685 = vmatprep.subr.mxu0 0.0
        %3686 = vmatpush2.msra.mxu0 0.0
        %3687 = vmatprep.subr.mxu0 0.0
        %3688 = vmatpush2.msra.mxu0 0.0
        %3689 = vmatprep.subr.mxu0 0.0
        %3690 = vmatpush2.msra.mxu0 0.0
        %3691 = vmatprep.subr.mxu0 0.0
        %3692 = vmatpush2.msra.mxu0 0.0
        %3693 = vmatprep.subr.mxu0 0.0
        %3694 = vmatpush2.msra.mxu0 0.0
        %3695 = vmatprep.subr.mxu0 0.0
        %3696 = vmatpush2.msra.mxu0 0.0
        %3697 = vmatprep.mubr.f32.mxu0 0.0
        %3698 = vmatmul.mubr.f32.gmra.mxu0 %v3374
        %v3699 = vpop.f32.mrf.mxu0
        %v3700 = vadd.f32 %v3539, %v3699
        %v3701 = vpop.f32.mrf.mxu0
        %v3702 = vadd.f32 %v3541, %v3701
        %3703 = vmatprep.mubr.f32.mxu0 0.0
        %3704 = vmatmul.mubr.f32.gmra.mxu0 %v3375
        %v3705 = vpop.f32.mrf.mxu0
        %v3706 = vadd.f32 %v3545, %v3705
        %v3707 = vpop.f32.mrf.mxu0
        %v3708 = vadd.f32 %v3547, %v3707
        %3709 = vmatprep.mubr.f32.mxu0 0.0
        %3710 = vmatmul.mubr.f32.gmra.mxu0 %v3376
        %v3711 = vpop.f32.mrf.mxu0
        %v3712 = vadd.f32 %v3551, %v3711
        %v3713 = vpop.f32.mrf.mxu0
        %v3714 = vadd.f32 %v3553, %v3713
        %3715 = vmatprep.mubr.f32.mxu0 0.0
        %3716 = vmatmul.mubr.f32.gmra.mxu0 %v3377
        %v3717 = vpop.f32.mrf.mxu0
        %v3718 = vadd.f32 %v3557, %v3717
        %v3719 = vpop.f32.mrf.mxu0
        %v3720 = vadd.f32 %v3559, %v3719
        %3721 = vmatprep.mubr.f32.mxu0 0.0
        %3722 = vmatmul.mubr.f32.gmra.mxu0 %v3378
        %v3723 = vpop.f32.mrf.mxu0
        %v3724 = vadd.f32 %v3563, %v3723
        %v3725 = vpop.f32.mrf.mxu0
        %v3726 = vadd.f32 %v3565, %v3725
        %3727 = vmatprep.mubr.f32.mxu0 0.0
        %3728 = vmatmul.mubr.f32.gmra.mxu0 %v3379
        %v3729 = vpop.f32.mrf.mxu0
        %v3730 = vadd.f32 %v3569, %v3729
        %v3731 = vpop.f32.mrf.mxu0
        %v3732 = vadd.f32 %v3571, %v3731
        %3733 = vmatprep.mubr.f32.mxu0 0.0
        %3734 = vmatmul.mubr.f32.gmra.mxu0 %v3380
        %v3735 = vpop.f32.mrf.mxu0
        %v3736 = vadd.f32 %v3575, %v3735
        %v3737 = vpop.f32.mrf.mxu0
        %v3738 = vadd.f32 %v3577, %v3737
        %3739 = vmatprep.mubr.f32.mxu0 0.0
        %3740 = vmatmul.mubr.f32.gmra.mxu0 %v3381
        %v3741 = vpop.f32.mrf.mxu0
        %v3742 = vadd.f32 %v3581, %v3741
        %v3743 = vpop.f32.mrf.mxu0
        %v3744 = vadd.f32 %v3583, %v3743
        %3745 = vmatprep.mubr.f32.mxu0 0.0
        %3746 = vmatmul.mubr.f32.gmra.mxu0 %v3382
        %v3747 = vpop.f32.mrf.mxu0
        %v3748 = vadd.f32 %v3587, %v3747
        %v3749 = vpop.f32.mrf.mxu0
        %v3750 = vadd.f32 %v3589, %v3749
        %3751 = vmatprep.mubr.f32.mxu0 0.0
        %3752 = vmatmul.mubr.f32.gmra.mxu0 %v3383
        %v3753 = vpop.f32.mrf.mxu0
        %v3754 = vadd.f32 %v3593, %v3753
        %v3755 = vpop.f32.mrf.mxu0
        %v3756 = vadd.f32 %v3595, %v3755
        %3757 = vmatprep.mubr.f32.mxu0 0.0
        %3758 = vmatmul.mubr.f32.gmra.mxu0 %v3384
        %v3759 = vpop.f32.mrf.mxu0
        %v3760 = vadd.f32 %v3599, %v3759
        %v3761 = vpop.f32.mrf.mxu0
        %v3762 = vadd.f32 %v3601, %v3761
        %3763 = vmatprep.mubr.f32.mxu0 0.0
        %3764 = vmatmul.mubr.f32.gmra.mxu0 %v3385
        %v3765 = vpop.f32.mrf.mxu0
        %v3766 = vadd.f32 %v3605, %v3765
        %v3767 = vpop.f32.mrf.mxu0
        %v3768 = vadd.f32 %v3607, %v3767
        %3769 = vmatprep.mubr.f32.mxu0 0.0
        %3770 = vmatmul.mubr.f32.gmra.mxu0 %v3386
        %v3771 = vpop.f32.mrf.mxu0
        %v3772 = vadd.f32 %v3611, %v3771
        %v3773 = vpop.f32.mrf.mxu0
        %v3774 = vadd.f32 %v3613, %v3773
        %3775 = vmatprep.mubr.f32.mxu0 0.0
        %3776 = vmatmul.mubr.f32.gmra.mxu0 %v3387
        %v3777 = vpop.f32.mrf.mxu0
        %v3778 = vadd.f32 %v3617, %v3777
        %v3779 = vpop.f32.mrf.mxu0
        %v3780 = vadd.f32 %v3619, %v3779
        %3781 = vmatprep.mubr.f32.mxu0 0.0
        %3782 = vmatmul.mubr.f32.gmra.mxu0 %v3388
        %v3783 = vpop.f32.mrf.mxu0
        %v3784 = vadd.f32 %v3623, %v3783
        %v3785 = vpop.f32.mrf.mxu0
        %v3786 = vadd.f32 %v3625, %v3785
        %3787 = vmatprep.mubr.f32.mxu0 0.0
        %3788 = vmatmul.mubr.f32.gmra.mxu0 %v3389
        %v3789 = vpop.f32.mrf.mxu0
        %v3790 = vadd.f32 %v3629, %v3789
        %v3791 = vpop.f32.mrf.mxu0
        %v3792 = vadd.f32 %v3631, %v3791
        %3793 = vdwg.mxu0
        %v3794 = vld [vmem:[%s3373 + $0xa] sm:$0xff]
        %v3795 = vld [vmem:[%s3373 + $0x12] sm:$0xff]
        %v3796 = vld [vmem:[%s3373 + $0x2a] sm:$0xff]
        %v3797 = vld [vmem:[%s3373 + $0x32] sm:$0xff]
        %v3798 = vld [vmem:[%s3373 + $0x4a] sm:$0xff]
        %v3799 = vld [vmem:[%s3373 + $0x52] sm:$0xff]
        %v3800 = vld [vmem:[%s3373 + $0x6a] sm:$0xff]
        %v3801 = vld [vmem:[%s3373 + $0x72] sm:$0xff]
        %v3802 = vld [vmem:[%s3373 + $0x8a] sm:$0xff]
        %v3803 = vld [vmem:[%s3373 + $0x92] sm:$0xff]
        %v3804 = vld [vmem:[%s3373 + $0xaa] sm:$0xff]
        %v3805 = vld [vmem:[%s3373 + $0xb2] sm:$0xff]
        %v3806 = vld [vmem:[%s3373 + $0xca] sm:$0xff]
        %v3807 = vld [vmem:[%s3373 + $0xd2] sm:$0xff]
        %v3808 = vld [vmem:[%s3373 + $0xea] sm:$0xff]
        %v3809 = vld [vmem:[%s3373 + $0xf2] sm:$0xff]
        %s3810 = scalar_lea.vmem %s2, 2816
        %v3811 = vld [vmem:[%s3810] sm:$0xff]
        %v3812 = vld [vmem:[%s3810 + $0x8] sm:$0xff]
        %v3813 = vld [vmem:[%s3810 + $0x10] sm:$0xff]
        %v3814 = vld [vmem:[%s3810 + $0x18] sm:$0xff]
        %v3815 = vld [vmem:[%s3810 + $0x20] sm:$0xff]
        %v3816 = vld [vmem:[%s3810 + $0x28] sm:$0xff]
        %v3817 = vld [vmem:[%s3810 + $0x30] sm:$0xff]
        %v3818 = vld [vmem:[%s3810 + $0x38] sm:$0xff]
        %v3819 = vld [vmem:[%s3810 + $0x40] sm:$0xff]
        %v3820 = vld [vmem:[%s3810 + $0x48] sm:$0xff]
        %v3821 = vld [vmem:[%s3810 + $0x50] sm:$0xff]
        %v3822 = vld [vmem:[%s3810 + $0x58] sm:$0xff]
        %v3823 = vld [vmem:[%s3810 + $0x60] sm:$0xff]
        %v3824 = vld [vmem:[%s3810 + $0x68] sm:$0xff]
        %v3825 = vld [vmem:[%s3810 + $0x70] sm:$0xff]
        %v3826 = vld [vmem:[%s3810 + $0x78] sm:$0xff]
        %v3827 = vld [vmem:[%s3810 + $0x80] sm:$0xff]
        %v3828 = vld [vmem:[%s3810 + $0x88] sm:$0xff]
        %v3829 = vld [vmem:[%s3810 + $0x90] sm:$0xff]
        %v3830 = vld [vmem:[%s3810 + $0x98] sm:$0xff]
        %v3831 = vld [vmem:[%s3810 + $0xa0] sm:$0xff]
        %v3832 = vld [vmem:[%s3810 + $0xa8] sm:$0xff]
        %v3833 = vld [vmem:[%s3810 + $0xb0] sm:$0xff]
        %v3834 = vld [vmem:[%s3810 + $0xb8] sm:$0xff]
        %v3835 = vld [vmem:[%s3810 + $0xc0] sm:$0xff]
        %v3836 = vld [vmem:[%s3810 + $0xc8] sm:$0xff]
        %v3837 = vld [vmem:[%s3810 + $0xd0] sm:$0xff]
        %v3838 = vld [vmem:[%s3810 + $0xd8] sm:$0xff]
        %v3839 = vld [vmem:[%s3810 + $0xe0] sm:$0xff]
        %v3840 = vld [vmem:[%s3810 + $0xe8] sm:$0xff]
        %v3841 = vld [vmem:[%s3810 + $0xf0] sm:$0xff]
        %v3842 = vld [vmem:[%s3810 + $0xf8] sm:$0xff]
        %3843 = vmatprep.subr.mxu0 %v3842
        %3844 = vmatpush1.msra.mxu0 %v3841
        %3845 = vmatprep.subr.mxu0 %v3840
        %3846 = vmatpush1.msra.mxu0 %v3839
        %3847 = vmatprep.subr.mxu0 %v3838
        %3848 = vmatpush1.msra.mxu0 %v3837
        %3849 = vmatprep.subr.mxu0 %v3836
        %3850 = vmatpush1.msra.mxu0 %v3835
        %3851 = vmatprep.subr.mxu0 %v3834
        %3852 = vmatpush1.msra.mxu0 %v3833
        %3853 = vmatprep.subr.mxu0 %v3832
        %3854 = vmatpush1.msra.mxu0 %v3831
        %3855 = vmatprep.subr.mxu0 %v3830
        %3856 = vmatpush1.msra.mxu0 %v3829
        %3857 = vmatprep.subr.mxu0 %v3828
        %3858 = vmatpush1.msra.mxu0 %v3827
        %3859 = vmatprep.subr.mxu0 %v3826
        %3860 = vmatpush1.msra.mxu0 %v3825
        %3861 = vmatprep.subr.mxu0 %v3824
        %3862 = vmatpush1.msra.mxu0 %v3823
        %3863 = vmatprep.subr.mxu0 %v3822
        %3864 = vmatpush1.msra.mxu0 %v3821
        %3865 = vmatprep.subr.mxu0 %v3820
        %3866 = vmatpush1.msra.mxu0 %v3819
        %3867 = vmatprep.subr.mxu0 %v3818
        %3868 = vmatpush1.msra.mxu0 %v3817
        %3869 = vmatprep.subr.mxu0 %v3816
        %3870 = vmatpush1.msra.mxu0 %v3815
        %3871 = vmatprep.subr.mxu0 %v3814
        %3872 = vmatpush1.msra.mxu0 %v3813
        %3873 = vmatprep.subr.mxu0 %v3812
        %3874 = vmatpush1.msra.mxu0 %v3811
        %3875 = vmatprep.subr.mxu0 0.0
        %3876 = vmatpush2.msra.mxu0 0.0
        %3877 = vmatprep.subr.mxu0 0.0
        %3878 = vmatpush2.msra.mxu0 0.0
        %3879 = vmatprep.subr.mxu0 0.0
        %3880 = vmatpush2.msra.mxu0 0.0
        %3881 = vmatprep.subr.mxu0 0.0
        %3882 = vmatpush2.msra.mxu0 0.0
        %3883 = vmatprep.subr.mxu0 0.0
        %3884 = vmatpush2.msra.mxu0 0.0
        %3885 = vmatprep.subr.mxu0 0.0
        %3886 = vmatpush2.msra.mxu0 0.0
        %3887 = vmatprep.subr.mxu0 0.0
        %3888 = vmatpush2.msra.mxu0 0.0
        %3889 = vmatprep.subr.mxu0 0.0
        %3890 = vmatpush2.msra.mxu0 0.0
        %3891 = vmatprep.subr.mxu0 0.0
        %3892 = vmatpush2.msra.mxu0 0.0
        %3893 = vmatprep.subr.mxu0 0.0
        %3894 = vmatpush2.msra.mxu0 0.0
        %3895 = vmatprep.subr.mxu0 0.0
        %3896 = vmatpush2.msra.mxu0 0.0
        %3897 = vmatprep.subr.mxu0 0.0
        %3898 = vmatpush2.msra.mxu0 0.0
        %3899 = vmatprep.subr.mxu0 0.0
        %3900 = vmatpush2.msra.mxu0 0.0
        %3901 = vmatprep.subr.mxu0 0.0
        %3902 = vmatpush2.msra.mxu0 0.0
        %3903 = vmatprep.subr.mxu0 0.0
        %3904 = vmatpush2.msra.mxu0 0.0
        %3905 = vmatprep.subr.mxu0 0.0
        %3906 = vmatpush2.msra.mxu0 0.0
        %3907 = vmatprep.mubr.f32.mxu0 0.0
        %3908 = vmatmul.mubr.f32.gmra.mxu0 %v3794
        %v3909 = vpop.f32.mrf.mxu0
        %v3910 = vadd.f32 0.0, %v3909
        %v3911 = vpop.f32.mrf.mxu0
        %v3912 = vadd.f32 0.0, %v3911
        %3913 = vmatprep.mubr.f32.mxu0 0.0
        %3914 = vmatmul.mubr.f32.gmra.mxu0 %v3795
        %v3915 = vpop.f32.mrf.mxu0
        %v3916 = vadd.f32 0.0, %v3915
        %v3917 = vpop.f32.mrf.mxu0
        %v3918 = vadd.f32 0.0, %v3917
        %3919 = vmatprep.mubr.f32.mxu0 0.0
        %3920 = vmatmul.mubr.f32.gmra.mxu0 %v3796
        %v3921 = vpop.f32.mrf.mxu0
        %v3922 = vadd.f32 0.0, %v3921
        %v3923 = vpop.f32.mrf.mxu0
        %v3924 = vadd.f32 0.0, %v3923
        %3925 = vmatprep.mubr.f32.mxu0 0.0
        %3926 = vmatmul.mubr.f32.gmra.mxu0 %v3797
        %v3927 = vpop.f32.mrf.mxu0
        %v3928 = vadd.f32 0.0, %v3927
        %v3929 = vpop.f32.mrf.mxu0
        %v3930 = vadd.f32 0.0, %v3929
        %3931 = vmatprep.mubr.f32.mxu0 0.0
        %3932 = vmatmul.mubr.f32.gmra.mxu0 %v3798
        %v3933 = vpop.f32.mrf.mxu0
        %v3934 = vadd.f32 0.0, %v3933
        %v3935 = vpop.f32.mrf.mxu0
        %v3936 = vadd.f32 0.0, %v3935
        %3937 = vmatprep.mubr.f32.mxu0 0.0
        %3938 = vmatmul.mubr.f32.gmra.mxu0 %v3799
        %v3939 = vpop.f32.mrf.mxu0
        %v3940 = vadd.f32 0.0, %v3939
        %v3941 = vpop.f32.mrf.mxu0
        %v3942 = vadd.f32 0.0, %v3941
        %3943 = vmatprep.mubr.f32.mxu0 0.0
        %3944 = vmatmul.mubr.f32.gmra.mxu0 %v3800
        %v3945 = vpop.f32.mrf.mxu0
        %v3946 = vadd.f32 0.0, %v3945
        %v3947 = vpop.f32.mrf.mxu0
        %v3948 = vadd.f32 0.0, %v3947
        %3949 = vmatprep.mubr.f32.mxu0 0.0
        %3950 = vmatmul.mubr.f32.gmra.mxu0 %v3801
        %v3951 = vpop.f32.mrf.mxu0
        %v3952 = vadd.f32 0.0, %v3951
        %v3953 = vpop.f32.mrf.mxu0
        %v3954 = vadd.f32 0.0, %v3953
        %3955 = vmatprep.mubr.f32.mxu0 0.0
        %3956 = vmatmul.mubr.f32.gmra.mxu0 %v3802
        %v3957 = vpop.f32.mrf.mxu0
        %v3958 = vadd.f32 0.0, %v3957
        %v3959 = vpop.f32.mrf.mxu0
        %v3960 = vadd.f32 0.0, %v3959
        %3961 = vmatprep.mubr.f32.mxu0 0.0
        %3962 = vmatmul.mubr.f32.gmra.mxu0 %v3803
        %v3963 = vpop.f32.mrf.mxu0
        %v3964 = vadd.f32 0.0, %v3963
        %v3965 = vpop.f32.mrf.mxu0
        %v3966 = vadd.f32 0.0, %v3965
        %3967 = vmatprep.mubr.f32.mxu0 0.0
        %3968 = vmatmul.mubr.f32.gmra.mxu0 %v3804
        %v3969 = vpop.f32.mrf.mxu0
        %v3970 = vadd.f32 0.0, %v3969
        %v3971 = vpop.f32.mrf.mxu0
        %v3972 = vadd.f32 0.0, %v3971
        %3973 = vmatprep.mubr.f32.mxu0 0.0
        %3974 = vmatmul.mubr.f32.gmra.mxu0 %v3805
        %v3975 = vpop.f32.mrf.mxu0
        %v3976 = vadd.f32 0.0, %v3975
        %v3977 = vpop.f32.mrf.mxu0
        %v3978 = vadd.f32 0.0, %v3977
        %3979 = vmatprep.mubr.f32.mxu0 0.0
        %3980 = vmatmul.mubr.f32.gmra.mxu0 %v3806
        %v3981 = vpop.f32.mrf.mxu0
        %v3982 = vadd.f32 0.0, %v3981
        %v3983 = vpop.f32.mrf.mxu0
        %v3984 = vadd.f32 0.0, %v3983
        %3985 = vmatprep.mubr.f32.mxu0 0.0
        %3986 = vmatmul.mubr.f32.gmra.mxu0 %v3807
        %v3987 = vpop.f32.mrf.mxu0
        %v3988 = vadd.f32 0.0, %v3987
        %v3989 = vpop.f32.mrf.mxu0
        %v3990 = vadd.f32 0.0, %v3989
        %3991 = vmatprep.mubr.f32.mxu0 0.0
        %3992 = vmatmul.mubr.f32.gmra.mxu0 %v3808
        %v3993 = vpop.f32.mrf.mxu0
        %v3994 = vadd.f32 0.0, %v3993
        %v3995 = vpop.f32.mrf.mxu0
        %v3996 = vadd.f32 0.0, %v3995
        %3997 = vmatprep.mubr.f32.mxu0 0.0
        %3998 = vmatmul.mubr.f32.gmra.mxu0 %v3809
        %v3999 = vpop.f32.mrf.mxu0
        %v4000 = vadd.f32 0.0, %v3999
        %v4001 = vpop.f32.mrf.mxu0
        %v4002 = vadd.f32 0.0, %v4001
        %4003 = vdwg.mxu0
        %v4004 = vadd.f32 %v3700, %v3910
        %v4005 = vadd.f32 %v3702, %v3912
        %v4006 = vadd.f32 %v3706, %v3916
        %v4007 = vadd.f32 %v3708, %v3918
        %v4008 = vadd.f32 %v3712, %v3922
        %v4009 = vadd.f32 %v3714, %v3924
        %v4010 = vadd.f32 %v3718, %v3928
        %v4011 = vadd.f32 %v3720, %v3930
        %v4012 = vadd.f32 %v3724, %v3934
        %v4013 = vadd.f32 %v3726, %v3936
        %v4014 = vadd.f32 %v3730, %v3940
        %v4015 = vadd.f32 %v3732, %v3942
        %v4016 = vadd.f32 %v3736, %v3946
        %v4017 = vadd.f32 %v3738, %v3948
        %v4018 = vadd.f32 %v3742, %v3952
        %v4019 = vadd.f32 %v3744, %v3954
        %v4020 = vadd.f32 %v3748, %v3958
        %v4021 = vadd.f32 %v3750, %v3960
        %v4022 = vadd.f32 %v3754, %v3964
        %v4023 = vadd.f32 %v3756, %v3966
        %v4024 = vadd.f32 %v3760, %v3970
        %v4025 = vadd.f32 %v3762, %v3972
        %v4026 = vadd.f32 %v3766, %v3976
        %v4027 = vadd.f32 %v3768, %v3978
        %v4028 = vadd.f32 %v3772, %v3982
        %v4029 = vadd.f32 %v3774, %v3984
        %v4030 = vadd.f32 %v3778, %v3988
        %v4031 = vadd.f32 %v3780, %v3990
        %v4032 = vadd.f32 %v3784, %v3994
        %v4033 = vadd.f32 %v3786, %v3996
        %v4034 = vadd.f32 %v3790, %v4000
        %v4035 = vadd.f32 %v3792, %v4002
        %v4036 = vld [vmem:[%s341 + $0x2] sm:$0xff]
        %v4037 = vld [vmem:[%s341 + $0xa] sm:$0xff]
        %v4038 = vld [vmem:[%s341 + $0x22] sm:$0xff]
        %v4039 = vld [vmem:[%s341 + $0x2a] sm:$0xff]
        %v4040 = vld [vmem:[%s341 + $0x42] sm:$0xff]
        %v4041 = vld [vmem:[%s341 + $0x4a] sm:$0xff]
        %v4042 = vld [vmem:[%s341 + $0x62] sm:$0xff]
        %v4043 = vld [vmem:[%s341 + $0x6a] sm:$0xff]
        %v4044 = vld [vmem:[%s341 + $0x82] sm:$0xff]
        %v4045 = vld [vmem:[%s341 + $0x8a] sm:$0xff]
        %v4046 = vld [vmem:[%s341 + $0xa2] sm:$0xff]
        %v4047 = vld [vmem:[%s341 + $0xaa] sm:$0xff]
        %v4048 = vld [vmem:[%s341 + $0xc2] sm:$0xff]
        %v4049 = vld [vmem:[%s341 + $0xca] sm:$0xff]
        %v4050 = vld [vmem:[%s341 + $0xe2] sm:$0xff]
        %v4051 = vld [vmem:[%s341 + $0xea] sm:$0xff]
        %s4052 = scalar_lea.vmem %s2, 3072
        %v4053 = vld [vmem:[%s4052] sm:$0xff]
        %v4054 = vld [vmem:[%s4052 + $0x8] sm:$0xff]
        %v4055 = vld [vmem:[%s4052 + $0x10] sm:$0xff]
        %v4056 = vld [vmem:[%s4052 + $0x18] sm:$0xff]
        %v4057 = vld [vmem:[%s4052 + $0x20] sm:$0xff]
        %v4058 = vld [vmem:[%s4052 + $0x28] sm:$0xff]
        %v4059 = vld [vmem:[%s4052 + $0x30] sm:$0xff]
        %v4060 = vld [vmem:[%s4052 + $0x38] sm:$0xff]
        %v4061 = vld [vmem:[%s4052 + $0x40] sm:$0xff]
        %v4062 = vld [vmem:[%s4052 + $0x48] sm:$0xff]
        %v4063 = vld [vmem:[%s4052 + $0x50] sm:$0xff]
        %v4064 = vld [vmem:[%s4052 + $0x58] sm:$0xff]
        %v4065 = vld [vmem:[%s4052 + $0x60] sm:$0xff]
        %v4066 = vld [vmem:[%s4052 + $0x68] sm:$0xff]
        %v4067 = vld [vmem:[%s4052 + $0x70] sm:$0xff]
        %v4068 = vld [vmem:[%s4052 + $0x78] sm:$0xff]
        %v4069 = vld [vmem:[%s4052 + $0x80] sm:$0xff]
        %v4070 = vld [vmem:[%s4052 + $0x88] sm:$0xff]
        %v4071 = vld [vmem:[%s4052 + $0x90] sm:$0xff]
        %v4072 = vld [vmem:[%s4052 + $0x98] sm:$0xff]
        %v4073 = vld [vmem:[%s4052 + $0xa0] sm:$0xff]
        %v4074 = vld [vmem:[%s4052 + $0xa8] sm:$0xff]
        %v4075 = vld [vmem:[%s4052 + $0xb0] sm:$0xff]
        %v4076 = vld [vmem:[%s4052 + $0xb8] sm:$0xff]
        %v4077 = vld [vmem:[%s4052 + $0xc0] sm:$0xff]
        %v4078 = vld [vmem:[%s4052 + $0xc8] sm:$0xff]
        %v4079 = vld [vmem:[%s4052 + $0xd0] sm:$0xff]
        %v4080 = vld [vmem:[%s4052 + $0xd8] sm:$0xff]
        %v4081 = vld [vmem:[%s4052 + $0xe0] sm:$0xff]
        %v4082 = vld [vmem:[%s4052 + $0xe8] sm:$0xff]
        %v4083 = vld [vmem:[%s4052 + $0xf0] sm:$0xff]
        %v4084 = vld [vmem:[%s4052 + $0xf8] sm:$0xff]
        %4085 = vmatprep.subr.mxu0 %v4084
        %4086 = vmatpush1.msra.mxu0 %v4083
        %4087 = vmatprep.subr.mxu0 %v4082
        %4088 = vmatpush1.msra.mxu0 %v4081
        %4089 = vmatprep.subr.mxu0 %v4080
        %4090 = vmatpush1.msra.mxu0 %v4079
        %4091 = vmatprep.subr.mxu0 %v4078
        %4092 = vmatpush1.msra.mxu0 %v4077
        %4093 = vmatprep.subr.mxu0 %v4076
        %4094 = vmatpush1.msra.mxu0 %v4075
        %4095 = vmatprep.subr.mxu0 %v4074
        %4096 = vmatpush1.msra.mxu0 %v4073
        %4097 = vmatprep.subr.mxu0 %v4072
        %4098 = vmatpush1.msra.mxu0 %v4071
        %4099 = vmatprep.subr.mxu0 %v4070
        %4100 = vmatpush1.msra.mxu0 %v4069
        %4101 = vmatprep.subr.mxu0 %v4068
        %4102 = vmatpush1.msra.mxu0 %v4067
        %4103 = vmatprep.subr.mxu0 %v4066
        %4104 = vmatpush1.msra.mxu0 %v4065
        %4105 = vmatprep.subr.mxu0 %v4064
        %4106 = vmatpush1.msra.mxu0 %v4063
        %4107 = vmatprep.subr.mxu0 %v4062
        %4108 = vmatpush1.msra.mxu0 %v4061
        %4109 = vmatprep.subr.mxu0 %v4060
        %4110 = vmatpush1.msra.mxu0 %v4059
        %4111 = vmatprep.subr.mxu0 %v4058
        %4112 = vmatpush1.msra.mxu0 %v4057
        %4113 = vmatprep.subr.mxu0 %v4056
        %4114 = vmatpush1.msra.mxu0 %v4055
        %4115 = vmatprep.subr.mxu0 %v4054
        %4116 = vmatpush1.msra.mxu0 %v4053
        %4117 = vmatprep.subr.mxu0 0.0
        %4118 = vmatpush2.msra.mxu0 0.0
        %4119 = vmatprep.subr.mxu0 0.0
        %4120 = vmatpush2.msra.mxu0 0.0
        %4121 = vmatprep.subr.mxu0 0.0
        %4122 = vmatpush2.msra.mxu0 0.0
        %4123 = vmatprep.subr.mxu0 0.0
        %4124 = vmatpush2.msra.mxu0 0.0
        %4125 = vmatprep.subr.mxu0 0.0
        %4126 = vmatpush2.msra.mxu0 0.0
        %4127 = vmatprep.subr.mxu0 0.0
        %4128 = vmatpush2.msra.mxu0 0.0
        %4129 = vmatprep.subr.mxu0 0.0
        %4130 = vmatpush2.msra.mxu0 0.0
        %4131 = vmatprep.subr.mxu0 0.0
        %4132 = vmatpush2.msra.mxu0 0.0
        %4133 = vmatprep.subr.mxu0 0.0
        %4134 = vmatpush2.msra.mxu0 0.0
        %4135 = vmatprep.subr.mxu0 0.0
        %4136 = vmatpush2.msra.mxu0 0.0
        %4137 = vmatprep.subr.mxu0 0.0
        %4138 = vmatpush2.msra.mxu0 0.0
        %4139 = vmatprep.subr.mxu0 0.0
        %4140 = vmatpush2.msra.mxu0 0.0
        %4141 = vmatprep.subr.mxu0 0.0
        %4142 = vmatpush2.msra.mxu0 0.0
        %4143 = vmatprep.subr.mxu0 0.0
        %4144 = vmatpush2.msra.mxu0 0.0
        %4145 = vmatprep.subr.mxu0 0.0
        %4146 = vmatpush2.msra.mxu0 0.0
        %4147 = vmatprep.subr.mxu0 0.0
        %4148 = vmatpush2.msra.mxu0 0.0
        %4149 = vmatprep.mubr.f32.mxu0 0.0
        %4150 = vmatmul.mubr.f32.gmra.mxu0 %v4036
        %v4151 = vpop.f32.mrf.mxu0
        %v4152 = vadd.f32 0.0, %v4151
        %v4153 = vpop.f32.mrf.mxu0
        %v4154 = vadd.f32 0.0, %v4153
        %4155 = vmatprep.mubr.f32.mxu0 0.0
        %4156 = vmatmul.mubr.f32.gmra.mxu0 %v4037
        %v4157 = vpop.f32.mrf.mxu0
        %v4158 = vadd.f32 0.0, %v4157
        %v4159 = vpop.f32.mrf.mxu0
        %v4160 = vadd.f32 0.0, %v4159
        %4161 = vmatprep.mubr.f32.mxu0 0.0
        %4162 = vmatmul.mubr.f32.gmra.mxu0 %v4038
        %v4163 = vpop.f32.mrf.mxu0
        %v4164 = vadd.f32 0.0, %v4163
        %v4165 = vpop.f32.mrf.mxu0
        %v4166 = vadd.f32 0.0, %v4165
        %4167 = vmatprep.mubr.f32.mxu0 0.0
        %4168 = vmatmul.mubr.f32.gmra.mxu0 %v4039
        %v4169 = vpop.f32.mrf.mxu0
        %v4170 = vadd.f32 0.0, %v4169
        %v4171 = vpop.f32.mrf.mxu0
        %v4172 = vadd.f32 0.0, %v4171
        %4173 = vmatprep.mubr.f32.mxu0 0.0
        %4174 = vmatmul.mubr.f32.gmra.mxu0 %v4040
        %v4175 = vpop.f32.mrf.mxu0
        %v4176 = vadd.f32 0.0, %v4175
        %v4177 = vpop.f32.mrf.mxu0
        %v4178 = vadd.f32 0.0, %v4177
        %4179 = vmatprep.mubr.f32.mxu0 0.0
        %4180 = vmatmul.mubr.f32.gmra.mxu0 %v4041
        %v4181 = vpop.f32.mrf.mxu0
        %v4182 = vadd.f32 0.0, %v4181
        %v4183 = vpop.f32.mrf.mxu0
        %v4184 = vadd.f32 0.0, %v4183
        %4185 = vmatprep.mubr.f32.mxu0 0.0
        %4186 = vmatmul.mubr.f32.gmra.mxu0 %v4042
        %v4187 = vpop.f32.mrf.mxu0
        %v4188 = vadd.f32 0.0, %v4187
        %v4189 = vpop.f32.mrf.mxu0
        %v4190 = vadd.f32 0.0, %v4189
        %4191 = vmatprep.mubr.f32.mxu0 0.0
        %4192 = vmatmul.mubr.f32.gmra.mxu0 %v4043
        %v4193 = vpop.f32.mrf.mxu0
        %v4194 = vadd.f32 0.0, %v4193
        %v4195 = vpop.f32.mrf.mxu0
        %v4196 = vadd.f32 0.0, %v4195
        %4197 = vmatprep.mubr.f32.mxu0 0.0
        %4198 = vmatmul.mubr.f32.gmra.mxu0 %v4044
        %v4199 = vpop.f32.mrf.mxu0
        %v4200 = vadd.f32 0.0, %v4199
        %v4201 = vpop.f32.mrf.mxu0
        %v4202 = vadd.f32 0.0, %v4201
        %4203 = vmatprep.mubr.f32.mxu0 0.0
        %4204 = vmatmul.mubr.f32.gmra.mxu0 %v4045
        %v4205 = vpop.f32.mrf.mxu0
        %v4206 = vadd.f32 0.0, %v4205
        %v4207 = vpop.f32.mrf.mxu0
        %v4208 = vadd.f32 0.0, %v4207
        %4209 = vmatprep.mubr.f32.mxu0 0.0
        %4210 = vmatmul.mubr.f32.gmra.mxu0 %v4046
        %v4211 = vpop.f32.mrf.mxu0
        %v4212 = vadd.f32 0.0, %v4211
        %v4213 = vpop.f32.mrf.mxu0
        %v4214 = vadd.f32 0.0, %v4213
        %4215 = vmatprep.mubr.f32.mxu0 0.0
        %4216 = vmatmul.mubr.f32.gmra.mxu0 %v4047
        %v4217 = vpop.f32.mrf.mxu0
        %v4218 = vadd.f32 0.0, %v4217
        %v4219 = vpop.f32.mrf.mxu0
        %v4220 = vadd.f32 0.0, %v4219
        %4221 = vmatprep.mubr.f32.mxu0 0.0
        %4222 = vmatmul.mubr.f32.gmra.mxu0 %v4048
        %v4223 = vpop.f32.mrf.mxu0
        %v4224 = vadd.f32 0.0, %v4223
        %v4225 = vpop.f32.mrf.mxu0
        %v4226 = vadd.f32 0.0, %v4225
        %4227 = vmatprep.mubr.f32.mxu0 0.0
        %4228 = vmatmul.mubr.f32.gmra.mxu0 %v4049
        %v4229 = vpop.f32.mrf.mxu0
        %v4230 = vadd.f32 0.0, %v4229
        %v4231 = vpop.f32.mrf.mxu0
        %v4232 = vadd.f32 0.0, %v4231
        %4233 = vmatprep.mubr.f32.mxu0 0.0
        %4234 = vmatmul.mubr.f32.gmra.mxu0 %v4050
        %v4235 = vpop.f32.mrf.mxu0
        %v4236 = vadd.f32 0.0, %v4235
        %v4237 = vpop.f32.mrf.mxu0
        %v4238 = vadd.f32 0.0, %v4237
        %4239 = vmatprep.mubr.f32.mxu0 0.0
        %4240 = vmatmul.mubr.f32.gmra.mxu0 %v4051
        %v4241 = vpop.f32.mrf.mxu0
        %v4242 = vadd.f32 0.0, %v4241
        %v4243 = vpop.f32.mrf.mxu0
        %v4244 = vadd.f32 0.0, %v4243
        %4245 = vdwg.mxu0
        %v4246 = vadd.f32 %v4004, %v4152
        %v4247 = vadd.f32 %v4005, %v4154
        %v4248 = vadd.f32 %v4006, %v4158
        %v4249 = vadd.f32 %v4007, %v4160
        %v4250 = vadd.f32 %v4008, %v4164
        %v4251 = vadd.f32 %v4009, %v4166
        %v4252 = vadd.f32 %v4010, %v4170
        %v4253 = vadd.f32 %v4011, %v4172
        %v4254 = vadd.f32 %v4012, %v4176
        %v4255 = vadd.f32 %v4013, %v4178
        %v4256 = vadd.f32 %v4014, %v4182
        %v4257 = vadd.f32 %v4015, %v4184
        %v4258 = vadd.f32 %v4016, %v4188
        %v4259 = vadd.f32 %v4017, %v4190
        %v4260 = vadd.f32 %v4018, %v4194
        %v4261 = vadd.f32 %v4019, %v4196
        %v4262 = vadd.f32 %v4020, %v4200
        %v4263 = vadd.f32 %v4021, %v4202
        %v4264 = vadd.f32 %v4022, %v4206
        %v4265 = vadd.f32 %v4023, %v4208
        %v4266 = vadd.f32 %v4024, %v4212
        %v4267 = vadd.f32 %v4025, %v4214
        %v4268 = vadd.f32 %v4026, %v4218
        %v4269 = vadd.f32 %v4027, %v4220
        %v4270 = vadd.f32 %v4028, %v4224
        %v4271 = vadd.f32 %v4029, %v4226
        %v4272 = vadd.f32 %v4030, %v4230
        %v4273 = vadd.f32 %v4031, %v4232
        %v4274 = vadd.f32 %v4032, %v4236
        %v4275 = vadd.f32 %v4033, %v4238
        %v4276 = vadd.f32 %v4034, %v4242
        %v4277 = vadd.f32 %v4035, %v4244
        %s4278 = scalar_lea.vmem %s2, 3328
        %v4279 = vld [vmem:[%s4278] sm:$0xff]
        %v4280 = vld [vmem:[%s4278 + $0x8] sm:$0xff]
        %v4281 = vld [vmem:[%s4278 + $0x10] sm:$0xff]
        %v4282 = vld [vmem:[%s4278 + $0x18] sm:$0xff]
        %v4283 = vld [vmem:[%s4278 + $0x20] sm:$0xff]
        %v4284 = vld [vmem:[%s4278 + $0x28] sm:$0xff]
        %v4285 = vld [vmem:[%s4278 + $0x30] sm:$0xff]
        %v4286 = vld [vmem:[%s4278 + $0x38] sm:$0xff]
        %v4287 = vld [vmem:[%s4278 + $0x40] sm:$0xff]
        %v4288 = vld [vmem:[%s4278 + $0x48] sm:$0xff]
        %v4289 = vld [vmem:[%s4278 + $0x50] sm:$0xff]
        %v4290 = vld [vmem:[%s4278 + $0x58] sm:$0xff]
        %v4291 = vld [vmem:[%s4278 + $0x60] sm:$0xff]
        %v4292 = vld [vmem:[%s4278 + $0x68] sm:$0xff]
        %v4293 = vld [vmem:[%s4278 + $0x70] sm:$0xff]
        %v4294 = vld [vmem:[%s4278 + $0x78] sm:$0xff]
        %v4295 = vld [vmem:[%s4278 + $0x80] sm:$0xff]
        %v4296 = vld [vmem:[%s4278 + $0x88] sm:$0xff]
        %v4297 = vld [vmem:[%s4278 + $0x90] sm:$0xff]
        %v4298 = vld [vmem:[%s4278 + $0x98] sm:$0xff]
        %v4299 = vld [vmem:[%s4278 + $0xa0] sm:$0xff]
        %v4300 = vld [vmem:[%s4278 + $0xa8] sm:$0xff]
        %v4301 = vld [vmem:[%s4278 + $0xb0] sm:$0xff]
        %v4302 = vld [vmem:[%s4278 + $0xb8] sm:$0xff]
        %v4303 = vld [vmem:[%s4278 + $0xc0] sm:$0xff]
        %v4304 = vld [vmem:[%s4278 + $0xc8] sm:$0xff]
        %v4305 = vld [vmem:[%s4278 + $0xd0] sm:$0xff]
        %v4306 = vld [vmem:[%s4278 + $0xd8] sm:$0xff]
        %v4307 = vld [vmem:[%s4278 + $0xe0] sm:$0xff]
        %v4308 = vld [vmem:[%s4278 + $0xe8] sm:$0xff]
        %v4309 = vld [vmem:[%s4278 + $0xf0] sm:$0xff]
        %v4310 = vld [vmem:[%s4278 + $0xf8] sm:$0xff]
        %4311 = vmatprep.subr.mxu0 %v4310
        %4312 = vmatpush1.msra.mxu0 %v4309
        %4313 = vmatprep.subr.mxu0 %v4308
        %4314 = vmatpush1.msra.mxu0 %v4307
        %4315 = vmatprep.subr.mxu0 %v4306
        %4316 = vmatpush1.msra.mxu0 %v4305
        %4317 = vmatprep.subr.mxu0 %v4304
        %4318 = vmatpush1.msra.mxu0 %v4303
        %4319 = vmatprep.subr.mxu0 %v4302
        %4320 = vmatpush1.msra.mxu0 %v4301
        %4321 = vmatprep.subr.mxu0 %v4300
        %4322 = vmatpush1.msra.mxu0 %v4299
        %4323 = vmatprep.subr.mxu0 %v4298
        %4324 = vmatpush1.msra.mxu0 %v4297
        %4325 = vmatprep.subr.mxu0 %v4296
        %4326 = vmatpush1.msra.mxu0 %v4295
        %4327 = vmatprep.subr.mxu0 %v4294
        %4328 = vmatpush1.msra.mxu0 %v4293
        %4329 = vmatprep.subr.mxu0 %v4292
        %4330 = vmatpush1.msra.mxu0 %v4291
        %4331 = vmatprep.subr.mxu0 %v4290
        %4332 = vmatpush1.msra.mxu0 %v4289
        %4333 = vmatprep.subr.mxu0 %v4288
        %4334 = vmatpush1.msra.mxu0 %v4287
        %4335 = vmatprep.subr.mxu0 %v4286
        %4336 = vmatpush1.msra.mxu0 %v4285
        %4337 = vmatprep.subr.mxu0 %v4284
        %4338 = vmatpush1.msra.mxu0 %v4283
        %4339 = vmatprep.subr.mxu0 %v4282
        %4340 = vmatpush1.msra.mxu0 %v4281
        %4341 = vmatprep.subr.mxu0 %v4280
        %4342 = vmatpush1.msra.mxu0 %v4279
        %4343 = vmatprep.subr.mxu0 0.0
        %4344 = vmatpush2.msra.mxu0 0.0
        %4345 = vmatprep.subr.mxu0 0.0
        %4346 = vmatpush2.msra.mxu0 0.0
        %4347 = vmatprep.subr.mxu0 0.0
        %4348 = vmatpush2.msra.mxu0 0.0
        %4349 = vmatprep.subr.mxu0 0.0
        %4350 = vmatpush2.msra.mxu0 0.0
        %4351 = vmatprep.subr.mxu0 0.0
        %4352 = vmatpush2.msra.mxu0 0.0
        %4353 = vmatprep.subr.mxu0 0.0
        %4354 = vmatpush2.msra.mxu0 0.0
        %4355 = vmatprep.subr.mxu0 0.0
        %4356 = vmatpush2.msra.mxu0 0.0
        %4357 = vmatprep.subr.mxu0 0.0
        %4358 = vmatpush2.msra.mxu0 0.0
        %4359 = vmatprep.subr.mxu0 0.0
        %4360 = vmatpush2.msra.mxu0 0.0
        %4361 = vmatprep.subr.mxu0 0.0
        %4362 = vmatpush2.msra.mxu0 0.0
        %4363 = vmatprep.subr.mxu0 0.0
        %4364 = vmatpush2.msra.mxu0 0.0
        %4365 = vmatprep.subr.mxu0 0.0
        %4366 = vmatpush2.msra.mxu0 0.0
        %4367 = vmatprep.subr.mxu0 0.0
        %4368 = vmatpush2.msra.mxu0 0.0
        %4369 = vmatprep.subr.mxu0 0.0
        %4370 = vmatpush2.msra.mxu0 0.0
        %4371 = vmatprep.subr.mxu0 0.0
        %4372 = vmatpush2.msra.mxu0 0.0
        %4373 = vmatprep.subr.mxu0 0.0
        %4374 = vmatpush2.msra.mxu0 0.0
        %4375 = vmatprep.mubr.f32.mxu0 0.0
        %4376 = vmatmul.mubr.f32.gmra.mxu0 %v342
        %v4377 = vpop.f32.mrf.mxu0
        %v4378 = vadd.f32 0.0, %v4377
        %v4379 = vpop.f32.mrf.mxu0
        %v4380 = vadd.f32 0.0, %v4379
        %4381 = vmatprep.mubr.f32.mxu0 0.0
        %4382 = vmatmul.mubr.f32.gmra.mxu0 %v343
        %v4383 = vpop.f32.mrf.mxu0
        %v4384 = vadd.f32 0.0, %v4383
        %v4385 = vpop.f32.mrf.mxu0
        %v4386 = vadd.f32 0.0, %v4385
        %4387 = vmatprep.mubr.f32.mxu0 0.0
        %4388 = vmatmul.mubr.f32.gmra.mxu0 %v344
        %v4389 = vpop.f32.mrf.mxu0
        %v4390 = vadd.f32 0.0, %v4389
        %v4391 = vpop.f32.mrf.mxu0
        %v4392 = vadd.f32 0.0, %v4391
        %4393 = vmatprep.mubr.f32.mxu0 0.0
        %4394 = vmatmul.mubr.f32.gmra.mxu0 %v345
        %v4395 = vpop.f32.mrf.mxu0
        %v4396 = vadd.f32 0.0, %v4395
        %v4397 = vpop.f32.mrf.mxu0
        %v4398 = vadd.f32 0.0, %v4397
        %4399 = vmatprep.mubr.f32.mxu0 0.0
        %4400 = vmatmul.mubr.f32.gmra.mxu0 %v346
        %v4401 = vpop.f32.mrf.mxu0
        %v4402 = vadd.f32 0.0, %v4401
        %v4403 = vpop.f32.mrf.mxu0
        %v4404 = vadd.f32 0.0, %v4403
        %4405 = vmatprep.mubr.f32.mxu0 0.0
        %4406 = vmatmul.mubr.f32.gmra.mxu0 %v347
        %v4407 = vpop.f32.mrf.mxu0
        %v4408 = vadd.f32 0.0, %v4407
        %v4409 = vpop.f32.mrf.mxu0
        %v4410 = vadd.f32 0.0, %v4409
        %4411 = vmatprep.mubr.f32.mxu0 0.0
        %4412 = vmatmul.mubr.f32.gmra.mxu0 %v348
        %v4413 = vpop.f32.mrf.mxu0
        %v4414 = vadd.f32 0.0, %v4413
        %v4415 = vpop.f32.mrf.mxu0
        %v4416 = vadd.f32 0.0, %v4415
        %4417 = vmatprep.mubr.f32.mxu0 0.0
        %4418 = vmatmul.mubr.f32.gmra.mxu0 %v349
        %v4419 = vpop.f32.mrf.mxu0
        %v4420 = vadd.f32 0.0, %v4419
        %v4421 = vpop.f32.mrf.mxu0
        %v4422 = vadd.f32 0.0, %v4421
        %4423 = vmatprep.mubr.f32.mxu0 0.0
        %4424 = vmatmul.mubr.f32.gmra.mxu0 %v350
        %v4425 = vpop.f32.mrf.mxu0
        %v4426 = vadd.f32 0.0, %v4425
        %v4427 = vpop.f32.mrf.mxu0
        %v4428 = vadd.f32 0.0, %v4427
        %4429 = vmatprep.mubr.f32.mxu0 0.0
        %4430 = vmatmul.mubr.f32.gmra.mxu0 %v351
        %v4431 = vpop.f32.mrf.mxu0
        %v4432 = vadd.f32 0.0, %v4431
        %v4433 = vpop.f32.mrf.mxu0
        %v4434 = vadd.f32 0.0, %v4433
        %4435 = vmatprep.mubr.f32.mxu0 0.0
        %4436 = vmatmul.mubr.f32.gmra.mxu0 %v352
        %v4437 = vpop.f32.mrf.mxu0
        %v4438 = vadd.f32 0.0, %v4437
        %v4439 = vpop.f32.mrf.mxu0
        %v4440 = vadd.f32 0.0, %v4439
        %4441 = vmatprep.mubr.f32.mxu0 0.0
        %4442 = vmatmul.mubr.f32.gmra.mxu0 %v353
        %v4443 = vpop.f32.mrf.mxu0
        %v4444 = vadd.f32 0.0, %v4443
        %v4445 = vpop.f32.mrf.mxu0
        %v4446 = vadd.f32 0.0, %v4445
        %4447 = vmatprep.mubr.f32.mxu0 0.0
        %4448 = vmatmul.mubr.f32.gmra.mxu0 %v354
        %v4449 = vpop.f32.mrf.mxu0
        %v4450 = vadd.f32 0.0, %v4449
        %v4451 = vpop.f32.mrf.mxu0
        %v4452 = vadd.f32 0.0, %v4451
        %4453 = vmatprep.mubr.f32.mxu0 0.0
        %4454 = vmatmul.mubr.f32.gmra.mxu0 %v355
        %v4455 = vpop.f32.mrf.mxu0
        %v4456 = vadd.f32 0.0, %v4455
        %v4457 = vpop.f32.mrf.mxu0
        %v4458 = vadd.f32 0.0, %v4457
        %4459 = vmatprep.mubr.f32.mxu0 0.0
        %4460 = vmatmul.mubr.f32.gmra.mxu0 %v356
        %v4461 = vpop.f32.mrf.mxu0
        %v4462 = vadd.f32 0.0, %v4461
        %v4463 = vpop.f32.mrf.mxu0
        %v4464 = vadd.f32 0.0, %v4463
        %4465 = vmatprep.mubr.f32.mxu0 0.0
        %4466 = vmatmul.mubr.f32.gmra.mxu0 %v357
        %v4467 = vpop.f32.mrf.mxu0
        %v4468 = vadd.f32 0.0, %v4467
        %v4469 = vpop.f32.mrf.mxu0
        %v4470 = vadd.f32 0.0, %v4469
        %4471 = vdwg.mxu0
        %v4472 = vadd.f32 %v4246, %v4378
        %v4473 = vadd.f32 %v4247, %v4380
        %v4474 = vadd.f32 %v4248, %v4384
        %v4475 = vadd.f32 %v4249, %v4386
        %v4476 = vadd.f32 %v4250, %v4390
        %v4477 = vadd.f32 %v4251, %v4392
        %v4478 = vadd.f32 %v4252, %v4396
        %v4479 = vadd.f32 %v4253, %v4398
        %v4480 = vadd.f32 %v4254, %v4402
        %v4481 = vadd.f32 %v4255, %v4404
        %v4482 = vadd.f32 %v4256, %v4408
        %v4483 = vadd.f32 %v4257, %v4410
        %v4484 = vadd.f32 %v4258, %v4414
        %v4485 = vadd.f32 %v4259, %v4416
        %v4486 = vadd.f32 %v4260, %v4420
        %v4487 = vadd.f32 %v4261, %v4422
        %v4488 = vadd.f32 %v4262, %v4426
        %v4489 = vadd.f32 %v4263, %v4428
        %v4490 = vadd.f32 %v4264, %v4432
        %v4491 = vadd.f32 %v4265, %v4434
        %v4492 = vadd.f32 %v4266, %v4438
        %v4493 = vadd.f32 %v4267, %v4440
        %v4494 = vadd.f32 %v4268, %v4444
        %v4495 = vadd.f32 %v4269, %v4446
        %v4496 = vadd.f32 %v4270, %v4450
        %v4497 = vadd.f32 %v4271, %v4452
        %v4498 = vadd.f32 %v4272, %v4456
        %v4499 = vadd.f32 %v4273, %v4458
        %v4500 = vadd.f32 %v4274, %v4462
        %v4501 = vadd.f32 %v4275, %v4464
        %v4502 = vadd.f32 %v4276, %v4468
        %v4503 = vadd.f32 %v4277, %v4470
        %v4504 = vld [vmem:[%s341 + $0xa] sm:$0xff]
        %v4505 = vld [vmem:[%s341 + $0x12] sm:$0xff]
        %v4506 = vld [vmem:[%s341 + $0x2a] sm:$0xff]
        %v4507 = vld [vmem:[%s341 + $0x32] sm:$0xff]
        %v4508 = vld [vmem:[%s341 + $0x4a] sm:$0xff]
        %v4509 = vld [vmem:[%s341 + $0x52] sm:$0xff]
        %v4510 = vld [vmem:[%s341 + $0x6a] sm:$0xff]
        %v4511 = vld [vmem:[%s341 + $0x72] sm:$0xff]
        %v4512 = vld [vmem:[%s341 + $0x8a] sm:$0xff]
        %v4513 = vld [vmem:[%s341 + $0x92] sm:$0xff]
        %v4514 = vld [vmem:[%s341 + $0xaa] sm:$0xff]
        %v4515 = vld [vmem:[%s341 + $0xb2] sm:$0xff]
        %v4516 = vld [vmem:[%s341 + $0xca] sm:$0xff]
        %v4517 = vld [vmem:[%s341 + $0xd2] sm:$0xff]
        %v4518 = vld [vmem:[%s341 + $0xea] sm:$0xff]
        %v4519 = vld [vmem:[%s341 + $0xf2] sm:$0xff]
        %s4520 = scalar_lea.vmem %s2, 3584
        %v4521 = vld [vmem:[%s4520] sm:$0xff]
        %v4522 = vld [vmem:[%s4520 + $0x8] sm:$0xff]
        %v4523 = vld [vmem:[%s4520 + $0x10] sm:$0xff]
        %v4524 = vld [vmem:[%s4520 + $0x18] sm:$0xff]
        %v4525 = vld [vmem:[%s4520 + $0x20] sm:$0xff]
        %v4526 = vld [vmem:[%s4520 + $0x28] sm:$0xff]
        %v4527 = vld [vmem:[%s4520 + $0x30] sm:$0xff]
        %v4528 = vld [vmem:[%s4520 + $0x38] sm:$0xff]
        %v4529 = vld [vmem:[%s4520 + $0x40] sm:$0xff]
        %v4530 = vld [vmem:[%s4520 + $0x48] sm:$0xff]
        %v4531 = vld [vmem:[%s4520 + $0x50] sm:$0xff]
        %v4532 = vld [vmem:[%s4520 + $0x58] sm:$0xff]
        %v4533 = vld [vmem:[%s4520 + $0x60] sm:$0xff]
        %v4534 = vld [vmem:[%s4520 + $0x68] sm:$0xff]
        %v4535 = vld [vmem:[%s4520 + $0x70] sm:$0xff]
        %v4536 = vld [vmem:[%s4520 + $0x78] sm:$0xff]
        %v4537 = vld [vmem:[%s4520 + $0x80] sm:$0xff]
        %v4538 = vld [vmem:[%s4520 + $0x88] sm:$0xff]
        %v4539 = vld [vmem:[%s4520 + $0x90] sm:$0xff]
        %v4540 = vld [vmem:[%s4520 + $0x98] sm:$0xff]
        %v4541 = vld [vmem:[%s4520 + $0xa0] sm:$0xff]
        %v4542 = vld [vmem:[%s4520 + $0xa8] sm:$0xff]
        %v4543 = vld [vmem:[%s4520 + $0xb0] sm:$0xff]
        %v4544 = vld [vmem:[%s4520 + $0xb8] sm:$0xff]
        %v4545 = vld [vmem:[%s4520 + $0xc0] sm:$0xff]
        %v4546 = vld [vmem:[%s4520 + $0xc8] sm:$0xff]
        %v4547 = vld [vmem:[%s4520 + $0xd0] sm:$0xff]
        %v4548 = vld [vmem:[%s4520 + $0xd8] sm:$0xff]
        %v4549 = vld [vmem:[%s4520 + $0xe0] sm:$0xff]
        %v4550 = vld [vmem:[%s4520 + $0xe8] sm:$0xff]
        %v4551 = vld [vmem:[%s4520 + $0xf0] sm:$0xff]
        %v4552 = vld [vmem:[%s4520 + $0xf8] sm:$0xff]
        %4553 = vmatprep.subr.mxu0 %v4552
        %4554 = vmatpush1.msra.mxu0 %v4551
        %4555 = vmatprep.subr.mxu0 %v4550
        %4556 = vmatpush1.msra.mxu0 %v4549
        %4557 = vmatprep.subr.mxu0 %v4548
        %4558 = vmatpush1.msra.mxu0 %v4547
        %4559 = vmatprep.subr.mxu0 %v4546
        %4560 = vmatpush1.msra.mxu0 %v4545
        %4561 = vmatprep.subr.mxu0 %v4544
        %4562 = vmatpush1.msra.mxu0 %v4543
        %4563 = vmatprep.subr.mxu0 %v4542
        %4564 = vmatpush1.msra.mxu0 %v4541
        %4565 = vmatprep.subr.mxu0 %v4540
        %4566 = vmatpush1.msra.mxu0 %v4539
        %4567 = vmatprep.subr.mxu0 %v4538
        %4568 = vmatpush1.msra.mxu0 %v4537
        %4569 = vmatprep.subr.mxu0 %v4536
        %4570 = vmatpush1.msra.mxu0 %v4535
        %4571 = vmatprep.subr.mxu0 %v4534
        %4572 = vmatpush1.msra.mxu0 %v4533
        %4573 = vmatprep.subr.mxu0 %v4532
        %4574 = vmatpush1.msra.mxu0 %v4531
        %4575 = vmatprep.subr.mxu0 %v4530
        %4576 = vmatpush1.msra.mxu0 %v4529
        %4577 = vmatprep.subr.mxu0 %v4528
        %4578 = vmatpush1.msra.mxu0 %v4527
        %4579 = vmatprep.subr.mxu0 %v4526
        %4580 = vmatpush1.msra.mxu0 %v4525
        %4581 = vmatprep.subr.mxu0 %v4524
        %4582 = vmatpush1.msra.mxu0 %v4523
        %4583 = vmatprep.subr.mxu0 %v4522
        %4584 = vmatpush1.msra.mxu0 %v4521
        %4585 = vmatprep.subr.mxu0 0.0
        %4586 = vmatpush2.msra.mxu0 0.0
        %4587 = vmatprep.subr.mxu0 0.0
        %4588 = vmatpush2.msra.mxu0 0.0
        %4589 = vmatprep.subr.mxu0 0.0
        %4590 = vmatpush2.msra.mxu0 0.0
        %4591 = vmatprep.subr.mxu0 0.0
        %4592 = vmatpush2.msra.mxu0 0.0
        %4593 = vmatprep.subr.mxu0 0.0
        %4594 = vmatpush2.msra.mxu0 0.0
        %4595 = vmatprep.subr.mxu0 0.0
        %4596 = vmatpush2.msra.mxu0 0.0
        %4597 = vmatprep.subr.mxu0 0.0
        %4598 = vmatpush2.msra.mxu0 0.0
        %4599 = vmatprep.subr.mxu0 0.0
        %4600 = vmatpush2.msra.mxu0 0.0
        %4601 = vmatprep.subr.mxu0 0.0
        %4602 = vmatpush2.msra.mxu0 0.0
        %4603 = vmatprep.subr.mxu0 0.0
        %4604 = vmatpush2.msra.mxu0 0.0
        %4605 = vmatprep.subr.mxu0 0.0
        %4606 = vmatpush2.msra.mxu0 0.0
        %4607 = vmatprep.subr.mxu0 0.0
        %4608 = vmatpush2.msra.mxu0 0.0
        %4609 = vmatprep.subr.mxu0 0.0
        %4610 = vmatpush2.msra.mxu0 0.0
        %4611 = vmatprep.subr.mxu0 0.0
        %4612 = vmatpush2.msra.mxu0 0.0
        %4613 = vmatprep.subr.mxu0 0.0
        %4614 = vmatpush2.msra.mxu0 0.0
        %4615 = vmatprep.subr.mxu0 0.0
        %4616 = vmatpush2.msra.mxu0 0.0
        %4617 = vmatprep.mubr.f32.mxu0 0.0
        %4618 = vmatmul.mubr.f32.gmra.mxu0 %v4504
        %v4619 = vpop.f32.mrf.mxu0
        %v4620 = vadd.f32 0.0, %v4619
        %v4621 = vpop.f32.mrf.mxu0
        %v4622 = vadd.f32 0.0, %v4621
        %4623 = vmatprep.mubr.f32.mxu0 0.0
        %4624 = vmatmul.mubr.f32.gmra.mxu0 %v4505
        %v4625 = vpop.f32.mrf.mxu0
        %v4626 = vadd.f32 0.0, %v4625
        %v4627 = vpop.f32.mrf.mxu0
        %v4628 = vadd.f32 0.0, %v4627
        %4629 = vmatprep.mubr.f32.mxu0 0.0
        %4630 = vmatmul.mubr.f32.gmra.mxu0 %v4506
        %v4631 = vpop.f32.mrf.mxu0
        %v4632 = vadd.f32 0.0, %v4631
        %v4633 = vpop.f32.mrf.mxu0
        %v4634 = vadd.f32 0.0, %v4633
        %4635 = vmatprep.mubr.f32.mxu0 0.0
        %4636 = vmatmul.mubr.f32.gmra.mxu0 %v4507
        %v4637 = vpop.f32.mrf.mxu0
        %v4638 = vadd.f32 0.0, %v4637
        %v4639 = vpop.f32.mrf.mxu0
        %v4640 = vadd.f32 0.0, %v4639
        %4641 = vmatprep.mubr.f32.mxu0 0.0
        %4642 = vmatmul.mubr.f32.gmra.mxu0 %v4508
        %v4643 = vpop.f32.mrf.mxu0
        %v4644 = vadd.f32 0.0, %v4643
        %v4645 = vpop.f32.mrf.mxu0
        %v4646 = vadd.f32 0.0, %v4645
        %4647 = vmatprep.mubr.f32.mxu0 0.0
        %4648 = vmatmul.mubr.f32.gmra.mxu0 %v4509
        %v4649 = vpop.f32.mrf.mxu0
        %v4650 = vadd.f32 0.0, %v4649
        %v4651 = vpop.f32.mrf.mxu0
        %v4652 = vadd.f32 0.0, %v4651
        %4653 = vmatprep.mubr.f32.mxu0 0.0
        %4654 = vmatmul.mubr.f32.gmra.mxu0 %v4510
        %v4655 = vpop.f32.mrf.mxu0
        %v4656 = vadd.f32 0.0, %v4655
        %v4657 = vpop.f32.mrf.mxu0
        %v4658 = vadd.f32 0.0, %v4657
        %4659 = vmatprep.mubr.f32.mxu0 0.0
        %4660 = vmatmul.mubr.f32.gmra.mxu0 %v4511
        %v4661 = vpop.f32.mrf.mxu0
        %v4662 = vadd.f32 0.0, %v4661
        %v4663 = vpop.f32.mrf.mxu0
        %v4664 = vadd.f32 0.0, %v4663
        %4665 = vmatprep.mubr.f32.mxu0 0.0
        %4666 = vmatmul.mubr.f32.gmra.mxu0 %v4512
        %v4667 = vpop.f32.mrf.mxu0
        %v4668 = vadd.f32 0.0, %v4667
        %v4669 = vpop.f32.mrf.mxu0
        %v4670 = vadd.f32 0.0, %v4669
        %4671 = vmatprep.mubr.f32.mxu0 0.0
        %4672 = vmatmul.mubr.f32.gmra.mxu0 %v4513
        %v4673 = vpop.f32.mrf.mxu0
        %v4674 = vadd.f32 0.0, %v4673
        %v4675 = vpop.f32.mrf.mxu0
        %v4676 = vadd.f32 0.0, %v4675
        %4677 = vmatprep.mubr.f32.mxu0 0.0
        %4678 = vmatmul.mubr.f32.gmra.mxu0 %v4514
        %v4679 = vpop.f32.mrf.mxu0
        %v4680 = vadd.f32 0.0, %v4679
        %v4681 = vpop.f32.mrf.mxu0
        %v4682 = vadd.f32 0.0, %v4681
        %4683 = vmatprep.mubr.f32.mxu0 0.0
        %4684 = vmatmul.mubr.f32.gmra.mxu0 %v4515
        %v4685 = vpop.f32.mrf.mxu0
        %v4686 = vadd.f32 0.0, %v4685
        %v4687 = vpop.f32.mrf.mxu0
        %v4688 = vadd.f32 0.0, %v4687
        %4689 = vmatprep.mubr.f32.mxu0 0.0
        %4690 = vmatmul.mubr.f32.gmra.mxu0 %v4516
        %v4691 = vpop.f32.mrf.mxu0
        %v4692 = vadd.f32 0.0, %v4691
        %v4693 = vpop.f32.mrf.mxu0
        %v4694 = vadd.f32 0.0, %v4693
        %4695 = vmatprep.mubr.f32.mxu0 0.0
        %4696 = vmatmul.mubr.f32.gmra.mxu0 %v4517
        %v4697 = vpop.f32.mrf.mxu0
        %v4698 = vadd.f32 0.0, %v4697
        %v4699 = vpop.f32.mrf.mxu0
        %v4700 = vadd.f32 0.0, %v4699
        %4701 = vmatprep.mubr.f32.mxu0 0.0
        %4702 = vmatmul.mubr.f32.gmra.mxu0 %v4518
        %v4703 = vpop.f32.mrf.mxu0
        %v4704 = vadd.f32 0.0, %v4703
        %v4705 = vpop.f32.mrf.mxu0
        %v4706 = vadd.f32 0.0, %v4705
        %4707 = vmatprep.mubr.f32.mxu0 0.0
        %4708 = vmatmul.mubr.f32.gmra.mxu0 %v4519
        %v4709 = vpop.f32.mrf.mxu0
        %v4710 = vadd.f32 0.0, %v4709
        %v4711 = vpop.f32.mrf.mxu0
        %v4712 = vadd.f32 0.0, %v4711
        %4713 = vdwg.mxu0
        %v4714 = vadd.f32 %v4472, %v4620
        %v4715 = vadd.f32 %v4473, %v4622
        %v4716 = vadd.f32 %v4474, %v4626
        %v4717 = vadd.f32 %v4475, %v4628
        %v4718 = vadd.f32 %v4476, %v4632
        %v4719 = vadd.f32 %v4477, %v4634
        %v4720 = vadd.f32 %v4478, %v4638
        %v4721 = vadd.f32 %v4479, %v4640
        %v4722 = vadd.f32 %v4480, %v4644
        %v4723 = vadd.f32 %v4481, %v4646
        %v4724 = vadd.f32 %v4482, %v4650
        %v4725 = vadd.f32 %v4483, %v4652
        %v4726 = vadd.f32 %v4484, %v4656
        %v4727 = vadd.f32 %v4485, %v4658
        %v4728 = vadd.f32 %v4486, %v4662
        %v4729 = vadd.f32 %v4487, %v4664
        %v4730 = vadd.f32 %v4488, %v4668
        %v4731 = vadd.f32 %v4489, %v4670
        %v4732 = vadd.f32 %v4490, %v4674
        %v4733 = vadd.f32 %v4491, %v4676
        %v4734 = vadd.f32 %v4492, %v4680
        %v4735 = vadd.f32 %v4493, %v4682
        %v4736 = vadd.f32 %v4494, %v4686
        %v4737 = vadd.f32 %v4495, %v4688
        %v4738 = vadd.f32 %v4496, %v4692
        %v4739 = vadd.f32 %v4497, %v4694
        %v4740 = vadd.f32 %v4498, %v4698
        %v4741 = vadd.f32 %v4499, %v4700
        %v4742 = vadd.f32 %v4500, %v4704
        %v4743 = vadd.f32 %v4501, %v4706
        %v4744 = vadd.f32 %v4502, %v4710
        %v4745 = vadd.f32 %v4503, %v4712
        %s4746 = sadd.s32 %s336, 10
        %s4747 = smul.u32 %s4746, 32
        %s4748 = scalar_lea.vmem %s330, %s4747
        %v4749 = vld [vmem:[%s4748 + $0x2] sm:$0xff]
        %v4750 = vld [vmem:[%s4748 + $0xa] sm:$0xff]
        %v4751 = vld [vmem:[%s4748 + $0x22] sm:$0xff]
        %v4752 = vld [vmem:[%s4748 + $0x2a] sm:$0xff]
        %v4753 = vld [vmem:[%s4748 + $0x42] sm:$0xff]
        %v4754 = vld [vmem:[%s4748 + $0x4a] sm:$0xff]
        %v4755 = vld [vmem:[%s4748 + $0x62] sm:$0xff]
        %v4756 = vld [vmem:[%s4748 + $0x6a] sm:$0xff]
        %v4757 = vld [vmem:[%s4748 + $0x82] sm:$0xff]
        %v4758 = vld [vmem:[%s4748 + $0x8a] sm:$0xff]
        %v4759 = vld [vmem:[%s4748 + $0xa2] sm:$0xff]
        %v4760 = vld [vmem:[%s4748 + $0xaa] sm:$0xff]
        %v4761 = vld [vmem:[%s4748 + $0xc2] sm:$0xff]
        %v4762 = vld [vmem:[%s4748 + $0xca] sm:$0xff]
        %v4763 = vld [vmem:[%s4748 + $0xe2] sm:$0xff]
        %v4764 = vld [vmem:[%s4748 + $0xea] sm:$0xff]
        %s4765 = scalar_lea.vmem %s2, 3840
        %v4766 = vld [vmem:[%s4765] sm:$0xff]
        %v4767 = vld [vmem:[%s4765 + $0x8] sm:$0xff]
        %v4768 = vld [vmem:[%s4765 + $0x10] sm:$0xff]
        %v4769 = vld [vmem:[%s4765 + $0x18] sm:$0xff]
        %v4770 = vld [vmem:[%s4765 + $0x20] sm:$0xff]
        %v4771 = vld [vmem:[%s4765 + $0x28] sm:$0xff]
        %v4772 = vld [vmem:[%s4765 + $0x30] sm:$0xff]
        %v4773 = vld [vmem:[%s4765 + $0x38] sm:$0xff]
        %v4774 = vld [vmem:[%s4765 + $0x40] sm:$0xff]
        %v4775 = vld [vmem:[%s4765 + $0x48] sm:$0xff]
        %v4776 = vld [vmem:[%s4765 + $0x50] sm:$0xff]
        %v4777 = vld [vmem:[%s4765 + $0x58] sm:$0xff]
        %v4778 = vld [vmem:[%s4765 + $0x60] sm:$0xff]
        %v4779 = vld [vmem:[%s4765 + $0x68] sm:$0xff]
        %v4780 = vld [vmem:[%s4765 + $0x70] sm:$0xff]
        %v4781 = vld [vmem:[%s4765 + $0x78] sm:$0xff]
        %v4782 = vld [vmem:[%s4765 + $0x80] sm:$0xff]
        %v4783 = vld [vmem:[%s4765 + $0x88] sm:$0xff]
        %v4784 = vld [vmem:[%s4765 + $0x90] sm:$0xff]
        %v4785 = vld [vmem:[%s4765 + $0x98] sm:$0xff]
        %v4786 = vld [vmem:[%s4765 + $0xa0] sm:$0xff]
        %v4787 = vld [vmem:[%s4765 + $0xa8] sm:$0xff]
        %v4788 = vld [vmem:[%s4765 + $0xb0] sm:$0xff]
        %v4789 = vld [vmem:[%s4765 + $0xb8] sm:$0xff]
        %v4790 = vld [vmem:[%s4765 + $0xc0] sm:$0xff]
        %v4791 = vld [vmem:[%s4765 + $0xc8] sm:$0xff]
        %v4792 = vld [vmem:[%s4765 + $0xd0] sm:$0xff]
        %v4793 = vld [vmem:[%s4765 + $0xd8] sm:$0xff]
        %v4794 = vld [vmem:[%s4765 + $0xe0] sm:$0xff]
        %v4795 = vld [vmem:[%s4765 + $0xe8] sm:$0xff]
        %v4796 = vld [vmem:[%s4765 + $0xf0] sm:$0xff]
        %v4797 = vld [vmem:[%s4765 + $0xf8] sm:$0xff]
        %4798 = vmatprep.subr.mxu0 %v4797
        %4799 = vmatpush1.msra.mxu0 %v4796
        %4800 = vmatprep.subr.mxu0 %v4795
        %4801 = vmatpush1.msra.mxu0 %v4794
        %4802 = vmatprep.subr.mxu0 %v4793
        %4803 = vmatpush1.msra.mxu0 %v4792
        %4804 = vmatprep.subr.mxu0 %v4791
        %4805 = vmatpush1.msra.mxu0 %v4790
        %4806 = vmatprep.subr.mxu0 %v4789
        %4807 = vmatpush1.msra.mxu0 %v4788
        %4808 = vmatprep.subr.mxu0 %v4787
        %4809 = vmatpush1.msra.mxu0 %v4786
        %4810 = vmatprep.subr.mxu0 %v4785
        %4811 = vmatpush1.msra.mxu0 %v4784
        %4812 = vmatprep.subr.mxu0 %v4783
        %4813 = vmatpush1.msra.mxu0 %v4782
        %4814 = vmatprep.subr.mxu0 %v4781
        %4815 = vmatpush1.msra.mxu0 %v4780
        %4816 = vmatprep.subr.mxu0 %v4779
        %4817 = vmatpush1.msra.mxu0 %v4778
        %4818 = vmatprep.subr.mxu0 %v4777
        %4819 = vmatpush1.msra.mxu0 %v4776
        %4820 = vmatprep.subr.mxu0 %v4775
        %4821 = vmatpush1.msra.mxu0 %v4774
        %4822 = vmatprep.subr.mxu0 %v4773
        %4823 = vmatpush1.msra.mxu0 %v4772
        %4824 = vmatprep.subr.mxu0 %v4771
        %4825 = vmatpush1.msra.mxu0 %v4770
        %4826 = vmatprep.subr.mxu0 %v4769
        %4827 = vmatpush1.msra.mxu0 %v4768
        %4828 = vmatprep.subr.mxu0 %v4767
        %4829 = vmatpush1.msra.mxu0 %v4766
        %4830 = vmatprep.subr.mxu0 0.0
        %4831 = vmatpush2.msra.mxu0 0.0
        %4832 = vmatprep.subr.mxu0 0.0
        %4833 = vmatpush2.msra.mxu0 0.0
        %4834 = vmatprep.subr.mxu0 0.0
        %4835 = vmatpush2.msra.mxu0 0.0
        %4836 = vmatprep.subr.mxu0 0.0
        %4837 = vmatpush2.msra.mxu0 0.0
        %4838 = vmatprep.subr.mxu0 0.0
        %4839 = vmatpush2.msra.mxu0 0.0
        %4840 = vmatprep.subr.mxu0 0.0
        %4841 = vmatpush2.msra.mxu0 0.0
        %4842 = vmatprep.subr.mxu0 0.0
        %4843 = vmatpush2.msra.mxu0 0.0
        %4844 = vmatprep.subr.mxu0 0.0
        %4845 = vmatpush2.msra.mxu0 0.0
        %4846 = vmatprep.subr.mxu0 0.0
        %4847 = vmatpush2.msra.mxu0 0.0
        %4848 = vmatprep.subr.mxu0 0.0
        %4849 = vmatpush2.msra.mxu0 0.0
        %4850 = vmatprep.subr.mxu0 0.0
        %4851 = vmatpush2.msra.mxu0 0.0
        %4852 = vmatprep.subr.mxu0 0.0
        %4853 = vmatpush2.msra.mxu0 0.0
        %4854 = vmatprep.subr.mxu0 0.0
        %4855 = vmatpush2.msra.mxu0 0.0
        %4856 = vmatprep.subr.mxu0 0.0
        %4857 = vmatpush2.msra.mxu0 0.0
        %4858 = vmatprep.subr.mxu0 0.0
        %4859 = vmatpush2.msra.mxu0 0.0
        %4860 = vmatprep.subr.mxu0 0.0
        %4861 = vmatpush2.msra.mxu0 0.0
        %4862 = vmatprep.mubr.f32.mxu0 0.0
        %4863 = vmatmul.mubr.f32.gmra.mxu0 %v4749
        %v4864 = vpop.f32.mrf.mxu0
        %v4865 = vadd.f32 0.0, %v4864
        %v4866 = vpop.f32.mrf.mxu0
        %v4867 = vadd.f32 0.0, %v4866
        %4868 = vmatprep.mubr.f32.mxu0 0.0
        %4869 = vmatmul.mubr.f32.gmra.mxu0 %v4750
        %v4870 = vpop.f32.mrf.mxu0
        %v4871 = vadd.f32 0.0, %v4870
        %v4872 = vpop.f32.mrf.mxu0
        %v4873 = vadd.f32 0.0, %v4872
        %4874 = vmatprep.mubr.f32.mxu0 0.0
        %4875 = vmatmul.mubr.f32.gmra.mxu0 %v4751
        %v4876 = vpop.f32.mrf.mxu0
        %v4877 = vadd.f32 0.0, %v4876
        %v4878 = vpop.f32.mrf.mxu0
        %v4879 = vadd.f32 0.0, %v4878
        %4880 = vmatprep.mubr.f32.mxu0 0.0
        %4881 = vmatmul.mubr.f32.gmra.mxu0 %v4752
        %v4882 = vpop.f32.mrf.mxu0
        %v4883 = vadd.f32 0.0, %v4882
        %v4884 = vpop.f32.mrf.mxu0
        %v4885 = vadd.f32 0.0, %v4884
        %4886 = vmatprep.mubr.f32.mxu0 0.0
        %4887 = vmatmul.mubr.f32.gmra.mxu0 %v4753
        %v4888 = vpop.f32.mrf.mxu0
        %v4889 = vadd.f32 0.0, %v4888
        %v4890 = vpop.f32.mrf.mxu0
        %v4891 = vadd.f32 0.0, %v4890
        %4892 = vmatprep.mubr.f32.mxu0 0.0
        %4893 = vmatmul.mubr.f32.gmra.mxu0 %v4754
        %v4894 = vpop.f32.mrf.mxu0
        %v4895 = vadd.f32 0.0, %v4894
        %v4896 = vpop.f32.mrf.mxu0
        %v4897 = vadd.f32 0.0, %v4896
        %4898 = vmatprep.mubr.f32.mxu0 0.0
        %4899 = vmatmul.mubr.f32.gmra.mxu0 %v4755
        %v4900 = vpop.f32.mrf.mxu0
        %v4901 = vadd.f32 0.0, %v4900
        %v4902 = vpop.f32.mrf.mxu0
        %v4903 = vadd.f32 0.0, %v4902
        %4904 = vmatprep.mubr.f32.mxu0 0.0
        %4905 = vmatmul.mubr.f32.gmra.mxu0 %v4756
        %v4906 = vpop.f32.mrf.mxu0
        %v4907 = vadd.f32 0.0, %v4906
        %v4908 = vpop.f32.mrf.mxu0
        %v4909 = vadd.f32 0.0, %v4908
        %4910 = vmatprep.mubr.f32.mxu0 0.0
        %4911 = vmatmul.mubr.f32.gmra.mxu0 %v4757
        %v4912 = vpop.f32.mrf.mxu0
        %v4913 = vadd.f32 0.0, %v4912
        %v4914 = vpop.f32.mrf.mxu0
        %v4915 = vadd.f32 0.0, %v4914
        %4916 = vmatprep.mubr.f32.mxu0 0.0
        %4917 = vmatmul.mubr.f32.gmra.mxu0 %v4758
        %v4918 = vpop.f32.mrf.mxu0
        %v4919 = vadd.f32 0.0, %v4918
        %v4920 = vpop.f32.mrf.mxu0
        %v4921 = vadd.f32 0.0, %v4920
        %4922 = vmatprep.mubr.f32.mxu0 0.0
        %4923 = vmatmul.mubr.f32.gmra.mxu0 %v4759
        %v4924 = vpop.f32.mrf.mxu0
        %v4925 = vadd.f32 0.0, %v4924
        %v4926 = vpop.f32.mrf.mxu0
        %v4927 = vadd.f32 0.0, %v4926
        %4928 = vmatprep.mubr.f32.mxu0 0.0
        %4929 = vmatmul.mubr.f32.gmra.mxu0 %v4760
        %v4930 = vpop.f32.mrf.mxu0
        %v4931 = vadd.f32 0.0, %v4930
        %v4932 = vpop.f32.mrf.mxu0
        %v4933 = vadd.f32 0.0, %v4932
        %4934 = vmatprep.mubr.f32.mxu0 0.0
        %4935 = vmatmul.mubr.f32.gmra.mxu0 %v4761
        %v4936 = vpop.f32.mrf.mxu0
        %v4937 = vadd.f32 0.0, %v4936
        %v4938 = vpop.f32.mrf.mxu0
        %v4939 = vadd.f32 0.0, %v4938
        %4940 = vmatprep.mubr.f32.mxu0 0.0
        %4941 = vmatmul.mubr.f32.gmra.mxu0 %v4762
        %v4942 = vpop.f32.mrf.mxu0
        %v4943 = vadd.f32 0.0, %v4942
        %v4944 = vpop.f32.mrf.mxu0
        %v4945 = vadd.f32 0.0, %v4944
        %4946 = vmatprep.mubr.f32.mxu0 0.0
        %4947 = vmatmul.mubr.f32.gmra.mxu0 %v4763
        %v4948 = vpop.f32.mrf.mxu0
        %v4949 = vadd.f32 0.0, %v4948
        %v4950 = vpop.f32.mrf.mxu0
        %v4951 = vadd.f32 0.0, %v4950
        %4952 = vmatprep.mubr.f32.mxu0 0.0
        %4953 = vmatmul.mubr.f32.gmra.mxu0 %v4764
        %v4954 = vpop.f32.mrf.mxu0
        %v4955 = vadd.f32 0.0, %v4954
        %v4956 = vpop.f32.mrf.mxu0
        %v4957 = vadd.f32 0.0, %v4956
        %4958 = vdwg.mxu0
        %v4959 = vadd.f32 %v4714, %v4865
        %v4960 = vadd.f32 %v4715, %v4867
        %v4961 = vadd.f32 %v4716, %v4871
        %v4962 = vadd.f32 %v4717, %v4873
        %v4963 = vadd.f32 %v4718, %v4877
        %v4964 = vadd.f32 %v4719, %v4879
        %v4965 = vadd.f32 %v4720, %v4883
        %v4966 = vadd.f32 %v4721, %v4885
        %v4967 = vadd.f32 %v4722, %v4889
        %v4968 = vadd.f32 %v4723, %v4891
        %v4969 = vadd.f32 %v4724, %v4895
        %v4970 = vadd.f32 %v4725, %v4897
        %v4971 = vadd.f32 %v4726, %v4901
        %v4972 = vadd.f32 %v4727, %v4903
        %v4973 = vadd.f32 %v4728, %v4907
        %v4974 = vadd.f32 %v4729, %v4909
        %v4975 = vadd.f32 %v4730, %v4913
        %v4976 = vadd.f32 %v4731, %v4915
        %v4977 = vadd.f32 %v4732, %v4919
        %v4978 = vadd.f32 %v4733, %v4921
        %v4979 = vadd.f32 %v4734, %v4925
        %v4980 = vadd.f32 %v4735, %v4927
        %v4981 = vadd.f32 %v4736, %v4931
        %v4982 = vadd.f32 %v4737, %v4933
        %v4983 = vadd.f32 %v4738, %v4937
        %v4984 = vadd.f32 %v4739, %v4939
        %v4985 = vadd.f32 %v4740, %v4943
        %v4986 = vadd.f32 %v4741, %v4945
        %v4987 = vadd.f32 %v4742, %v4949
        %v4988 = vadd.f32 %v4743, %v4951
        %v4989 = vadd.f32 %v4744, %v4955
        %v4990 = vadd.f32 %v4745, %v4957
        %v4991 = vld [vmem:[%s4748 + $0x6] sm:$0xff]
        %v4992 = vld [vmem:[%s4748 + $0xe] sm:$0xff]
        %v4993 = vld [vmem:[%s4748 + $0x26] sm:$0xff]
        %v4994 = vld [vmem:[%s4748 + $0x2e] sm:$0xff]
        %v4995 = vld [vmem:[%s4748 + $0x46] sm:$0xff]
        %v4996 = vld [vmem:[%s4748 + $0x4e] sm:$0xff]
        %v4997 = vld [vmem:[%s4748 + $0x66] sm:$0xff]
        %v4998 = vld [vmem:[%s4748 + $0x6e] sm:$0xff]
        %v4999 = vld [vmem:[%s4748 + $0x86] sm:$0xff]
        %v5000 = vld [vmem:[%s4748 + $0x8e] sm:$0xff]
        %v5001 = vld [vmem:[%s4748 + $0xa6] sm:$0xff]
        %v5002 = vld [vmem:[%s4748 + $0xae] sm:$0xff]
        %v5003 = vld [vmem:[%s4748 + $0xc6] sm:$0xff]
        %v5004 = vld [vmem:[%s4748 + $0xce] sm:$0xff]
        %v5005 = vld [vmem:[%s4748 + $0xe6] sm:$0xff]
        %v5006 = vld [vmem:[%s4748 + $0xee] sm:$0xff]
        %s5007 = scalar_lea.vmem %s2, 4096
        %v5008 = vld [vmem:[%s5007] sm:$0xff]
        %v5009 = vld [vmem:[%s5007 + $0x8] sm:$0xff]
        %v5010 = vld [vmem:[%s5007 + $0x10] sm:$0xff]
        %v5011 = vld [vmem:[%s5007 + $0x18] sm:$0xff]
        %v5012 = vld [vmem:[%s5007 + $0x20] sm:$0xff]
        %v5013 = vld [vmem:[%s5007 + $0x28] sm:$0xff]
        %v5014 = vld [vmem:[%s5007 + $0x30] sm:$0xff]
        %v5015 = vld [vmem:[%s5007 + $0x38] sm:$0xff]
        %v5016 = vld [vmem:[%s5007 + $0x40] sm:$0xff]
        %v5017 = vld [vmem:[%s5007 + $0x48] sm:$0xff]
        %v5018 = vld [vmem:[%s5007 + $0x50] sm:$0xff]
        %v5019 = vld [vmem:[%s5007 + $0x58] sm:$0xff]
        %v5020 = vld [vmem:[%s5007 + $0x60] sm:$0xff]
        %v5021 = vld [vmem:[%s5007 + $0x68] sm:$0xff]
        %v5022 = vld [vmem:[%s5007 + $0x70] sm:$0xff]
        %v5023 = vld [vmem:[%s5007 + $0x78] sm:$0xff]
        %v5024 = vld [vmem:[%s5007 + $0x80] sm:$0xff]
        %v5025 = vld [vmem:[%s5007 + $0x88] sm:$0xff]
        %v5026 = vld [vmem:[%s5007 + $0x90] sm:$0xff]
        %v5027 = vld [vmem:[%s5007 + $0x98] sm:$0xff]
        %v5028 = vld [vmem:[%s5007 + $0xa0] sm:$0xff]
        %v5029 = vld [vmem:[%s5007 + $0xa8] sm:$0xff]
        %v5030 = vld [vmem:[%s5007 + $0xb0] sm:$0xff]
        %v5031 = vld [vmem:[%s5007 + $0xb8] sm:$0xff]
        %v5032 = vld [vmem:[%s5007 + $0xc0] sm:$0xff]
        %v5033 = vld [vmem:[%s5007 + $0xc8] sm:$0xff]
        %v5034 = vld [vmem:[%s5007 + $0xd0] sm:$0xff]
        %v5035 = vld [vmem:[%s5007 + $0xd8] sm:$0xff]
        %v5036 = vld [vmem:[%s5007 + $0xe0] sm:$0xff]
        %v5037 = vld [vmem:[%s5007 + $0xe8] sm:$0xff]
        %v5038 = vld [vmem:[%s5007 + $0xf0] sm:$0xff]
        %v5039 = vld [vmem:[%s5007 + $0xf8] sm:$0xff]
        %5040 = vmatprep.subr.mxu0 %v5039
        %5041 = vmatpush1.msra.mxu0 %v5038
        %5042 = vmatprep.subr.mxu0 %v5037
        %5043 = vmatpush1.msra.mxu0 %v5036
        %5044 = vmatprep.subr.mxu0 %v5035
        %5045 = vmatpush1.msra.mxu0 %v5034
        %5046 = vmatprep.subr.mxu0 %v5033
        %5047 = vmatpush1.msra.mxu0 %v5032
        %5048 = vmatprep.subr.mxu0 %v5031
        %5049 = vmatpush1.msra.mxu0 %v5030
        %5050 = vmatprep.subr.mxu0 %v5029
        %5051 = vmatpush1.msra.mxu0 %v5028
        %5052 = vmatprep.subr.mxu0 %v5027
        %5053 = vmatpush1.msra.mxu0 %v5026
        %5054 = vmatprep.subr.mxu0 %v5025
        %5055 = vmatpush1.msra.mxu0 %v5024
        %5056 = vmatprep.subr.mxu0 %v5023
        %5057 = vmatpush1.msra.mxu0 %v5022
        %5058 = vmatprep.subr.mxu0 %v5021
        %5059 = vmatpush1.msra.mxu0 %v5020
        %5060 = vmatprep.subr.mxu0 %v5019
        %5061 = vmatpush1.msra.mxu0 %v5018
        %5062 = vmatprep.subr.mxu0 %v5017
        %5063 = vmatpush1.msra.mxu0 %v5016
        %5064 = vmatprep.subr.mxu0 %v5015
        %5065 = vmatpush1.msra.mxu0 %v5014
        %5066 = vmatprep.subr.mxu0 %v5013
        %5067 = vmatpush1.msra.mxu0 %v5012
        %5068 = vmatprep.subr.mxu0 %v5011
        %5069 = vmatpush1.msra.mxu0 %v5010
        %5070 = vmatprep.subr.mxu0 %v5009
        %5071 = vmatpush1.msra.mxu0 %v5008
        %5072 = vmatprep.subr.mxu0 0.0
        %5073 = vmatpush2.msra.mxu0 0.0
        %5074 = vmatprep.subr.mxu0 0.0
        %5075 = vmatpush2.msra.mxu0 0.0
        %5076 = vmatprep.subr.mxu0 0.0
        %5077 = vmatpush2.msra.mxu0 0.0
        %5078 = vmatprep.subr.mxu0 0.0
        %5079 = vmatpush2.msra.mxu0 0.0
        %5080 = vmatprep.subr.mxu0 0.0
        %5081 = vmatpush2.msra.mxu0 0.0
        %5082 = vmatprep.subr.mxu0 0.0
        %5083 = vmatpush2.msra.mxu0 0.0
        %5084 = vmatprep.subr.mxu0 0.0
        %5085 = vmatpush2.msra.mxu0 0.0
        %5086 = vmatprep.subr.mxu0 0.0
        %5087 = vmatpush2.msra.mxu0 0.0
        %5088 = vmatprep.subr.mxu0 0.0
        %5089 = vmatpush2.msra.mxu0 0.0
        %5090 = vmatprep.subr.mxu0 0.0
        %5091 = vmatpush2.msra.mxu0 0.0
        %5092 = vmatprep.subr.mxu0 0.0
        %5093 = vmatpush2.msra.mxu0 0.0
        %5094 = vmatprep.subr.mxu0 0.0
        %5095 = vmatpush2.msra.mxu0 0.0
        %5096 = vmatprep.subr.mxu0 0.0
        %5097 = vmatpush2.msra.mxu0 0.0
        %5098 = vmatprep.subr.mxu0 0.0
        %5099 = vmatpush2.msra.mxu0 0.0
        %5100 = vmatprep.subr.mxu0 0.0
        %5101 = vmatpush2.msra.mxu0 0.0
        %5102 = vmatprep.subr.mxu0 0.0
        %5103 = vmatpush2.msra.mxu0 0.0
        %5104 = vmatprep.mubr.f32.mxu0 0.0
        %5105 = vmatmul.mubr.f32.gmra.mxu0 %v4991
        %v5106 = vpop.f32.mrf.mxu0
        %v5107 = vadd.f32 0.0, %v5106
        %v5108 = vpop.f32.mrf.mxu0
        %v5109 = vadd.f32 0.0, %v5108
        %5110 = vmatprep.mubr.f32.mxu0 0.0
        %5111 = vmatmul.mubr.f32.gmra.mxu0 %v4992
        %v5112 = vpop.f32.mrf.mxu0
        %v5113 = vadd.f32 0.0, %v5112
        %v5114 = vpop.f32.mrf.mxu0
        %v5115 = vadd.f32 0.0, %v5114
        %5116 = vmatprep.mubr.f32.mxu0 0.0
        %5117 = vmatmul.mubr.f32.gmra.mxu0 %v4993
        %v5118 = vpop.f32.mrf.mxu0
        %v5119 = vadd.f32 0.0, %v5118
        %v5120 = vpop.f32.mrf.mxu0
        %v5121 = vadd.f32 0.0, %v5120
        %5122 = vmatprep.mubr.f32.mxu0 0.0
        %5123 = vmatmul.mubr.f32.gmra.mxu0 %v4994
        %v5124 = vpop.f32.mrf.mxu0
        %v5125 = vadd.f32 0.0, %v5124
        %v5126 = vpop.f32.mrf.mxu0
        %v5127 = vadd.f32 0.0, %v5126
        %5128 = vmatprep.mubr.f32.mxu0 0.0
        %5129 = vmatmul.mubr.f32.gmra.mxu0 %v4995
        %v5130 = vpop.f32.mrf.mxu0
        %v5131 = vadd.f32 0.0, %v5130
        %v5132 = vpop.f32.mrf.mxu0
        %v5133 = vadd.f32 0.0, %v5132
        %5134 = vmatprep.mubr.f32.mxu0 0.0
        %5135 = vmatmul.mubr.f32.gmra.mxu0 %v4996
        %v5136 = vpop.f32.mrf.mxu0
        %v5137 = vadd.f32 0.0, %v5136
        %v5138 = vpop.f32.mrf.mxu0
        %v5139 = vadd.f32 0.0, %v5138
        %5140 = vmatprep.mubr.f32.mxu0 0.0
        %5141 = vmatmul.mubr.f32.gmra.mxu0 %v4997
        %v5142 = vpop.f32.mrf.mxu0
        %v5143 = vadd.f32 0.0, %v5142
        %v5144 = vpop.f32.mrf.mxu0
        %v5145 = vadd.f32 0.0, %v5144
        %5146 = vmatprep.mubr.f32.mxu0 0.0
        %5147 = vmatmul.mubr.f32.gmra.mxu0 %v4998
        %v5148 = vpop.f32.mrf.mxu0
        %v5149 = vadd.f32 0.0, %v5148
        %v5150 = vpop.f32.mrf.mxu0
        %v5151 = vadd.f32 0.0, %v5150
        %5152 = vmatprep.mubr.f32.mxu0 0.0
        %5153 = vmatmul.mubr.f32.gmra.mxu0 %v4999
        %v5154 = vpop.f32.mrf.mxu0
        %v5155 = vadd.f32 0.0, %v5154
        %v5156 = vpop.f32.mrf.mxu0
        %v5157 = vadd.f32 0.0, %v5156
        %5158 = vmatprep.mubr.f32.mxu0 0.0
        %5159 = vmatmul.mubr.f32.gmra.mxu0 %v5000
        %v5160 = vpop.f32.mrf.mxu0
        %v5161 = vadd.f32 0.0, %v5160
        %v5162 = vpop.f32.mrf.mxu0
        %v5163 = vadd.f32 0.0, %v5162
        %5164 = vmatprep.mubr.f32.mxu0 0.0
        %5165 = vmatmul.mubr.f32.gmra.mxu0 %v5001
        %v5166 = vpop.f32.mrf.mxu0
        %v5167 = vadd.f32 0.0, %v5166
        %v5168 = vpop.f32.mrf.mxu0
        %v5169 = vadd.f32 0.0, %v5168
        %5170 = vmatprep.mubr.f32.mxu0 0.0
        %5171 = vmatmul.mubr.f32.gmra.mxu0 %v5002
        %v5172 = vpop.f32.mrf.mxu0
        %v5173 = vadd.f32 0.0, %v5172
        %v5174 = vpop.f32.mrf.mxu0
        %v5175 = vadd.f32 0.0, %v5174
        %5176 = vmatprep.mubr.f32.mxu0 0.0
        %5177 = vmatmul.mubr.f32.gmra.mxu0 %v5003
        %v5178 = vpop.f32.mrf.mxu0
        %v5179 = vadd.f32 0.0, %v5178
        %v5180 = vpop.f32.mrf.mxu0
        %v5181 = vadd.f32 0.0, %v5180
        %5182 = vmatprep.mubr.f32.mxu0 0.0
        %5183 = vmatmul.mubr.f32.gmra.mxu0 %v5004
        %v5184 = vpop.f32.mrf.mxu0
        %v5185 = vadd.f32 0.0, %v5184
        %v5186 = vpop.f32.mrf.mxu0
        %v5187 = vadd.f32 0.0, %v5186
        %5188 = vmatprep.mubr.f32.mxu0 0.0
        %5189 = vmatmul.mubr.f32.gmra.mxu0 %v5005
        %v5190 = vpop.f32.mrf.mxu0
        %v5191 = vadd.f32 0.0, %v5190
        %v5192 = vpop.f32.mrf.mxu0
        %v5193 = vadd.f32 0.0, %v5192
        %5194 = vmatprep.mubr.f32.mxu0 0.0
        %5195 = vmatmul.mubr.f32.gmra.mxu0 %v5006
        %v5196 = vpop.f32.mrf.mxu0
        %v5197 = vadd.f32 0.0, %v5196
        %v5198 = vpop.f32.mrf.mxu0
        %v5199 = vadd.f32 0.0, %v5198
        %5200 = vdwg.mxu0
        %v5201 = vadd.f32 %v4959, %v5107
        %v5202 = vadd.f32 %v4960, %v5109
        %v5203 = vadd.f32 %v4961, %v5113
        %v5204 = vadd.f32 %v4962, %v5115
        %v5205 = vadd.f32 %v4963, %v5119
        %v5206 = vadd.f32 %v4964, %v5121
        %v5207 = vadd.f32 %v4965, %v5125
        %v5208 = vadd.f32 %v4966, %v5127
        %v5209 = vadd.f32 %v4967, %v5131
        %v5210 = vadd.f32 %v4968, %v5133
        %v5211 = vadd.f32 %v4969, %v5137
        %v5212 = vadd.f32 %v4970, %v5139
        %v5213 = vadd.f32 %v4971, %v5143
        %v5214 = vadd.f32 %v4972, %v5145
        %v5215 = vadd.f32 %v4973, %v5149
        %v5216 = vadd.f32 %v4974, %v5151
        %v5217 = vadd.f32 %v4975, %v5155
        %v5218 = vadd.f32 %v4976, %v5157
        %v5219 = vadd.f32 %v4977, %v5161
        %v5220 = vadd.f32 %v4978, %v5163
        %v5221 = vadd.f32 %v4979, %v5167
        %v5222 = vadd.f32 %v4980, %v5169
        %v5223 = vadd.f32 %v4981, %v5173
        %v5224 = vadd.f32 %v4982, %v5175
        %v5225 = vadd.f32 %v4983, %v5179
        %v5226 = vadd.f32 %v4984, %v5181
        %v5227 = vadd.f32 %v4985, %v5185
        %v5228 = vadd.f32 %v4986, %v5187
        %v5229 = vadd.f32 %v4987, %v5191
        %v5230 = vadd.f32 %v4988, %v5193
        %v5231 = vadd.f32 %v4989, %v5197
        %v5232 = vadd.f32 %v4990, %v5199
        %v5233 = vld [vmem:[%s4748 + $0xa] sm:$0xff]
        %v5234 = vld [vmem:[%s4748 + $0x12] sm:$0xff]
        %v5235 = vld [vmem:[%s4748 + $0x2a] sm:$0xff]
        %v5236 = vld [vmem:[%s4748 + $0x32] sm:$0xff]
        %v5237 = vld [vmem:[%s4748 + $0x4a] sm:$0xff]
        %v5238 = vld [vmem:[%s4748 + $0x52] sm:$0xff]
        %v5239 = vld [vmem:[%s4748 + $0x6a] sm:$0xff]
        %v5240 = vld [vmem:[%s4748 + $0x72] sm:$0xff]
        %v5241 = vld [vmem:[%s4748 + $0x8a] sm:$0xff]
        %v5242 = vld [vmem:[%s4748 + $0x92] sm:$0xff]
        %v5243 = vld [vmem:[%s4748 + $0xaa] sm:$0xff]
        %v5244 = vld [vmem:[%s4748 + $0xb2] sm:$0xff]
        %v5245 = vld [vmem:[%s4748 + $0xca] sm:$0xff]
        %v5246 = vld [vmem:[%s4748 + $0xd2] sm:$0xff]
        %v5247 = vld [vmem:[%s4748 + $0xea] sm:$0xff]
        %v5248 = vld [vmem:[%s4748 + $0xf2] sm:$0xff]
        %s5249 = scalar_lea.vmem %s2, 4352
        %v5250 = vld [vmem:[%s5249] sm:$0xff]
        %v5251 = vld [vmem:[%s5249 + $0x8] sm:$0xff]
        %v5252 = vld [vmem:[%s5249 + $0x10] sm:$0xff]
        %v5253 = vld [vmem:[%s5249 + $0x18] sm:$0xff]
        %v5254 = vld [vmem:[%s5249 + $0x20] sm:$0xff]
        %v5255 = vld [vmem:[%s5249 + $0x28] sm:$0xff]
        %v5256 = vld [vmem:[%s5249 + $0x30] sm:$0xff]
        %v5257 = vld [vmem:[%s5249 + $0x38] sm:$0xff]
        %v5258 = vld [vmem:[%s5249 + $0x40] sm:$0xff]
        %v5259 = vld [vmem:[%s5249 + $0x48] sm:$0xff]
        %v5260 = vld [vmem:[%s5249 + $0x50] sm:$0xff]
        %v5261 = vld [vmem:[%s5249 + $0x58] sm:$0xff]
        %v5262 = vld [vmem:[%s5249 + $0x60] sm:$0xff]
        %v5263 = vld [vmem:[%s5249 + $0x68] sm:$0xff]
        %v5264 = vld [vmem:[%s5249 + $0x70] sm:$0xff]
        %v5265 = vld [vmem:[%s5249 + $0x78] sm:$0xff]
        %v5266 = vld [vmem:[%s5249 + $0x80] sm:$0xff]
        %v5267 = vld [vmem:[%s5249 + $0x88] sm:$0xff]
        %v5268 = vld [vmem:[%s5249 + $0x90] sm:$0xff]
        %v5269 = vld [vmem:[%s5249 + $0x98] sm:$0xff]
        %v5270 = vld [vmem:[%s5249 + $0xa0] sm:$0xff]
        %v5271 = vld [vmem:[%s5249 + $0xa8] sm:$0xff]
        %v5272 = vld [vmem:[%s5249 + $0xb0] sm:$0xff]
        %v5273 = vld [vmem:[%s5249 + $0xb8] sm:$0xff]
        %v5274 = vld [vmem:[%s5249 + $0xc0] sm:$0xff]
        %v5275 = vld [vmem:[%s5249 + $0xc8] sm:$0xff]
        %v5276 = vld [vmem:[%s5249 + $0xd0] sm:$0xff]
        %v5277 = vld [vmem:[%s5249 + $0xd8] sm:$0xff]
        %v5278 = vld [vmem:[%s5249 + $0xe0] sm:$0xff]
        %v5279 = vld [vmem:[%s5249 + $0xe8] sm:$0xff]
        %v5280 = vld [vmem:[%s5249 + $0xf0] sm:$0xff]
        %v5281 = vld [vmem:[%s5249 + $0xf8] sm:$0xff]
        %5282 = vmatprep.subr.mxu0 %v5281
        %5283 = vmatpush1.msra.mxu0 %v5280
        %5284 = vmatprep.subr.mxu0 %v5279
        %5285 = vmatpush1.msra.mxu0 %v5278
        %5286 = vmatprep.subr.mxu0 %v5277
        %5287 = vmatpush1.msra.mxu0 %v5276
        %5288 = vmatprep.subr.mxu0 %v5275
        %5289 = vmatpush1.msra.mxu0 %v5274
        %5290 = vmatprep.subr.mxu0 %v5273
        %5291 = vmatpush1.msra.mxu0 %v5272
        %5292 = vmatprep.subr.mxu0 %v5271
        %5293 = vmatpush1.msra.mxu0 %v5270
        %5294 = vmatprep.subr.mxu0 %v5269
        %5295 = vmatpush1.msra.mxu0 %v5268
        %5296 = vmatprep.subr.mxu0 %v5267
        %5297 = vmatpush1.msra.mxu0 %v5266
        %5298 = vmatprep.subr.mxu0 %v5265
        %5299 = vmatpush1.msra.mxu0 %v5264
        %5300 = vmatprep.subr.mxu0 %v5263
        %5301 = vmatpush1.msra.mxu0 %v5262
        %5302 = vmatprep.subr.mxu0 %v5261
        %5303 = vmatpush1.msra.mxu0 %v5260
        %5304 = vmatprep.subr.mxu0 %v5259
        %5305 = vmatpush1.msra.mxu0 %v5258
        %5306 = vmatprep.subr.mxu0 %v5257
        %5307 = vmatpush1.msra.mxu0 %v5256
        %5308 = vmatprep.subr.mxu0 %v5255
        %5309 = vmatpush1.msra.mxu0 %v5254
        %5310 = vmatprep.subr.mxu0 %v5253
        %5311 = vmatpush1.msra.mxu0 %v5252
        %5312 = vmatprep.subr.mxu0 %v5251
        %5313 = vmatpush1.msra.mxu0 %v5250
        %5314 = vmatprep.subr.mxu0 0.0
        %5315 = vmatpush2.msra.mxu0 0.0
        %5316 = vmatprep.subr.mxu0 0.0
        %5317 = vmatpush2.msra.mxu0 0.0
        %5318 = vmatprep.subr.mxu0 0.0
        %5319 = vmatpush2.msra.mxu0 0.0
        %5320 = vmatprep.subr.mxu0 0.0
        %5321 = vmatpush2.msra.mxu0 0.0
        %5322 = vmatprep.subr.mxu0 0.0
        %5323 = vmatpush2.msra.mxu0 0.0
        %5324 = vmatprep.subr.mxu0 0.0
        %5325 = vmatpush2.msra.mxu0 0.0
        %5326 = vmatprep.subr.mxu0 0.0
        %5327 = vmatpush2.msra.mxu0 0.0
        %5328 = vmatprep.subr.mxu0 0.0
        %5329 = vmatpush2.msra.mxu0 0.0
        %5330 = vmatprep.subr.mxu0 0.0
        %5331 = vmatpush2.msra.mxu0 0.0
        %5332 = vmatprep.subr.mxu0 0.0
        %5333 = vmatpush2.msra.mxu0 0.0
        %5334 = vmatprep.subr.mxu0 0.0
        %5335 = vmatpush2.msra.mxu0 0.0
        %5336 = vmatprep.subr.mxu0 0.0
        %5337 = vmatpush2.msra.mxu0 0.0
        %5338 = vmatprep.subr.mxu0 0.0
        %5339 = vmatpush2.msra.mxu0 0.0
        %5340 = vmatprep.subr.mxu0 0.0
        %5341 = vmatpush2.msra.mxu0 0.0
        %5342 = vmatprep.subr.mxu0 0.0
        %5343 = vmatpush2.msra.mxu0 0.0
        %5344 = vmatprep.subr.mxu0 0.0
        %5345 = vmatpush2.msra.mxu0 0.0
        %5346 = vmatprep.mubr.f32.mxu0 0.0
        %5347 = vmatmul.mubr.f32.gmra.mxu0 %v5233
        %v5348 = vpop.f32.mrf.mxu0
        %v5349 = vadd.f32 0.0, %v5348
        %v5350 = vpop.f32.mrf.mxu0
        %v5351 = vadd.f32 0.0, %v5350
        %5352 = vmatprep.mubr.f32.mxu0 0.0
        %5353 = vmatmul.mubr.f32.gmra.mxu0 %v5234
        %v5354 = vpop.f32.mrf.mxu0
        %v5355 = vadd.f32 0.0, %v5354
        %v5356 = vpop.f32.mrf.mxu0
        %v5357 = vadd.f32 0.0, %v5356
        %5358 = vmatprep.mubr.f32.mxu0 0.0
        %5359 = vmatmul.mubr.f32.gmra.mxu0 %v5235
        %v5360 = vpop.f32.mrf.mxu0
        %v5361 = vadd.f32 0.0, %v5360
        %v5362 = vpop.f32.mrf.mxu0
        %v5363 = vadd.f32 0.0, %v5362
        %5364 = vmatprep.mubr.f32.mxu0 0.0
        %5365 = vmatmul.mubr.f32.gmra.mxu0 %v5236
        %v5366 = vpop.f32.mrf.mxu0
        %v5367 = vadd.f32 0.0, %v5366
        %v5368 = vpop.f32.mrf.mxu0
        %v5369 = vadd.f32 0.0, %v5368
        %5370 = vmatprep.mubr.f32.mxu0 0.0
        %5371 = vmatmul.mubr.f32.gmra.mxu0 %v5237
        %v5372 = vpop.f32.mrf.mxu0
        %v5373 = vadd.f32 0.0, %v5372
        %v5374 = vpop.f32.mrf.mxu0
        %v5375 = vadd.f32 0.0, %v5374
        %5376 = vmatprep.mubr.f32.mxu0 0.0
        %5377 = vmatmul.mubr.f32.gmra.mxu0 %v5238
        %v5378 = vpop.f32.mrf.mxu0
        %v5379 = vadd.f32 0.0, %v5378
        %v5380 = vpop.f32.mrf.mxu0
        %v5381 = vadd.f32 0.0, %v5380
        %5382 = vmatprep.mubr.f32.mxu0 0.0
        %5383 = vmatmul.mubr.f32.gmra.mxu0 %v5239
        %v5384 = vpop.f32.mrf.mxu0
        %v5385 = vadd.f32 0.0, %v5384
        %v5386 = vpop.f32.mrf.mxu0
        %v5387 = vadd.f32 0.0, %v5386
        %5388 = vmatprep.mubr.f32.mxu0 0.0
        %5389 = vmatmul.mubr.f32.gmra.mxu0 %v5240
        %v5390 = vpop.f32.mrf.mxu0
        %v5391 = vadd.f32 0.0, %v5390
        %v5392 = vpop.f32.mrf.mxu0
        %v5393 = vadd.f32 0.0, %v5392
        %5394 = vmatprep.mubr.f32.mxu0 0.0
        %5395 = vmatmul.mubr.f32.gmra.mxu0 %v5241
        %v5396 = vpop.f32.mrf.mxu0
        %v5397 = vadd.f32 0.0, %v5396
        %v5398 = vpop.f32.mrf.mxu0
        %v5399 = vadd.f32 0.0, %v5398
        %5400 = vmatprep.mubr.f32.mxu0 0.0
        %5401 = vmatmul.mubr.f32.gmra.mxu0 %v5242
        %v5402 = vpop.f32.mrf.mxu0
        %v5403 = vadd.f32 0.0, %v5402
        %v5404 = vpop.f32.mrf.mxu0
        %v5405 = vadd.f32 0.0, %v5404
        %5406 = vmatprep.mubr.f32.mxu0 0.0
        %5407 = vmatmul.mubr.f32.gmra.mxu0 %v5243
        %v5408 = vpop.f32.mrf.mxu0
        %v5409 = vadd.f32 0.0, %v5408
        %v5410 = vpop.f32.mrf.mxu0
        %v5411 = vadd.f32 0.0, %v5410
        %5412 = vmatprep.mubr.f32.mxu0 0.0
        %5413 = vmatmul.mubr.f32.gmra.mxu0 %v5244
        %v5414 = vpop.f32.mrf.mxu0
        %v5415 = vadd.f32 0.0, %v5414
        %v5416 = vpop.f32.mrf.mxu0
        %v5417 = vadd.f32 0.0, %v5416
        %5418 = vmatprep.mubr.f32.mxu0 0.0
        %5419 = vmatmul.mubr.f32.gmra.mxu0 %v5245
        %v5420 = vpop.f32.mrf.mxu0
        %v5421 = vadd.f32 0.0, %v5420
        %v5422 = vpop.f32.mrf.mxu0
        %v5423 = vadd.f32 0.0, %v5422
        %5424 = vmatprep.mubr.f32.mxu0 0.0
        %5425 = vmatmul.mubr.f32.gmra.mxu0 %v5246
        %v5426 = vpop.f32.mrf.mxu0
        %v5427 = vadd.f32 0.0, %v5426
        %v5428 = vpop.f32.mrf.mxu0
        %v5429 = vadd.f32 0.0, %v5428
        %5430 = vmatprep.mubr.f32.mxu0 0.0
        %5431 = vmatmul.mubr.f32.gmra.mxu0 %v5247
        %v5432 = vpop.f32.mrf.mxu0
        %v5433 = vadd.f32 0.0, %v5432
        %v5434 = vpop.f32.mrf.mxu0
        %v5435 = vadd.f32 0.0, %v5434
        %5436 = vmatprep.mubr.f32.mxu0 0.0
        %5437 = vmatmul.mubr.f32.gmra.mxu0 %v5248
        %v5438 = vpop.f32.mrf.mxu0
        %v5439 = vadd.f32 0.0, %v5438
        %v5440 = vpop.f32.mrf.mxu0
        %v5441 = vadd.f32 0.0, %v5440
        %5442 = vdwg.mxu0
        %v5443 = vadd.f32 %v5201, %v5349
        %v5444 = vadd.f32 %v5202, %v5351
        %v5445 = vadd.f32 %v5203, %v5355
        %v5446 = vadd.f32 %v5204, %v5357
        %v5447 = vadd.f32 %v5205, %v5361
        %v5448 = vadd.f32 %v5206, %v5363
        %v5449 = vadd.f32 %v5207, %v5367
        %v5450 = vadd.f32 %v5208, %v5369
        %v5451 = vadd.f32 %v5209, %v5373
        %v5452 = vadd.f32 %v5210, %v5375
        %v5453 = vadd.f32 %v5211, %v5379
        %v5454 = vadd.f32 %v5212, %v5381
        %v5455 = vadd.f32 %v5213, %v5385
        %v5456 = vadd.f32 %v5214, %v5387
        %v5457 = vadd.f32 %v5215, %v5391
        %v5458 = vadd.f32 %v5216, %v5393
        %v5459 = vadd.f32 %v5217, %v5397
        %v5460 = vadd.f32 %v5218, %v5399
        %v5461 = vadd.f32 %v5219, %v5403
        %v5462 = vadd.f32 %v5220, %v5405
        %v5463 = vadd.f32 %v5221, %v5409
        %v5464 = vadd.f32 %v5222, %v5411
        %v5465 = vadd.f32 %v5223, %v5415
        %v5466 = vadd.f32 %v5224, %v5417
        %v5467 = vadd.f32 %v5225, %v5421
        %v5468 = vadd.f32 %v5226, %v5423
        %v5469 = vadd.f32 %v5227, %v5427
        %v5470 = vadd.f32 %v5228, %v5429
        %v5471 = vadd.f32 %v5229, %v5433
        %v5472 = vadd.f32 %v5230, %v5435
        %v5473 = vadd.f32 %v5231, %v5439
        %v5474 = vadd.f32 %v5232, %v5441
        %v5475 = vlaneseq
        %v5476 = vshrl.u32 %v5475, 7
        %v5477 = vsub.s32 2, %v5476
        %v5478 = vrot.slane %v337, %v5477
        %v5479 = vlaneseq
        %v5480 = vshrl.u32 %v5479, 7
        %v5481 = vsub.s32 6, %v5480
        %v5482 = vrot.slane %v337, %v5481
        %v5485 = vlaneseq
        %v5486 = vshrl.u32 %v5485, 7
        %v5487 = vsub.s32 2, %v5486
        %v5488 = vrot.slane %v5478, %v5487
        %v5489 = vlaneseq
        %v5490 = vshrl.u32 %v5489, 7
        %v5491 = vsub.s32 2, %v5490
        %v5492 = vrot.slane %v5482, %v5491
        %v5493 = vmul.f32 %v5443, %v5488
        %v5494 = vmul.f32 %v5444, %v5492
        %v5495 = vmul.f32 %v5445, %v5488
        %v5496 = vmul.f32 %v5446, %v5492
        %v5497 = vmul.f32 %v5447, %v5488
        %v5498 = vmul.f32 %v5448, %v5492
        %v5499 = vmul.f32 %v5449, %v5488
        %v5500 = vmul.f32 %v5450, %v5492
        %v5501 = vmul.f32 %v5451, %v5488
        %v5502 = vmul.f32 %v5452, %v5492
        %v5503 = vmul.f32 %v5453, %v5488
        %v5504 = vmul.f32 %v5454, %v5492
        %v5505 = vmul.f32 %v5455, %v5488
        %v5506 = vmul.f32 %v5456, %v5492
        %v5507 = vmul.f32 %v5457, %v5488
        %v5508 = vmul.f32 %v5458, %v5492
        %v5509 = vmul.f32 %v5459, %v5488
        %v5510 = vmul.f32 %v5460, %v5492
        %v5511 = vmul.f32 %v5461, %v5488
        %v5512 = vmul.f32 %v5462, %v5492
        %v5513 = vmul.f32 %v5463, %v5488
        %v5514 = vmul.f32 %v5464, %v5492
        %v5515 = vmul.f32 %v5465, %v5488
        %v5516 = vmul.f32 %v5466, %v5492
        %v5517 = vmul.f32 %v5467, %v5488
        %v5518 = vmul.f32 %v5468, %v5492
        %v5519 = vmul.f32 %v5469, %v5488
        %v5520 = vmul.f32 %v5470, %v5492
        %v5521 = vmul.f32 %v5471, %v5488
        %v5522 = vmul.f32 %v5472, %v5492
        %v5523 = vmul.f32 %v5473, %v5488
        %v5524 = vmul.f32 %v5474, %v5492
        %v5525 = vlaneseq
        %v5526 = vshrl.u32 %v5525, 7
        %v5527 = vsub.s32 2, %v5526
        %v5528 = vrot.slane %v338, %v5527
        %v5529 = vlaneseq
        %v5530 = vshrl.u32 %v5529, 7
        %v5531 = vsub.s32 6, %v5530
        %v5532 = vrot.slane %v338, %v5531
        %v5535 = vlaneseq
        %v5536 = vshrl.u32 %v5535, 7
        %v5537 = vsub.s32 2, %v5536
        %v5538 = vrot.slane %v5528, %v5537
        %v5539 = vlaneseq
        %v5540 = vshrl.u32 %v5539, 7
        %v5541 = vsub.s32 2, %v5540
        %v5542 = vrot.slane %v5532, %v5541
        %v5543 = vadd.f32 %v5493, %v5538
        %v5544 = vadd.f32 %v5494, %v5542
        %v5545 = vadd.f32 %v5495, %v5538
        %v5546 = vadd.f32 %v5496, %v5542
        %v5547 = vadd.f32 %v5497, %v5538
        %v5548 = vadd.f32 %v5498, %v5542
        %v5549 = vadd.f32 %v5499, %v5538
        %v5550 = vadd.f32 %v5500, %v5542
        %v5551 = vadd.f32 %v5501, %v5538
        %v5552 = vadd.f32 %v5502, %v5542
        %v5553 = vadd.f32 %v5503, %v5538
        %v5554 = vadd.f32 %v5504, %v5542
        %v5555 = vadd.f32 %v5505, %v5538
        %v5556 = vadd.f32 %v5506, %v5542
        %v5557 = vadd.f32 %v5507, %v5538
        %v5558 = vadd.f32 %v5508, %v5542
        %v5559 = vadd.f32 %v5509, %v5538
        %v5560 = vadd.f32 %v5510, %v5542
        %v5561 = vadd.f32 %v5511, %v5538
        %v5562 = vadd.f32 %v5512, %v5542
        %v5563 = vadd.f32 %v5513, %v5538
        %v5564 = vadd.f32 %v5514, %v5542
        %v5565 = vadd.f32 %v5515, %v5538
        %v5566 = vadd.f32 %v5516, %v5542
        %v5567 = vadd.f32 %v5517, %v5538
        %v5568 = vadd.f32 %v5518, %v5542
        %v5569 = vadd.f32 %v5519, %v5538
        %v5570 = vadd.f32 %v5520, %v5542
        %v5571 = vadd.f32 %v5521, %v5538
        %v5572 = vadd.f32 %v5522, %v5542
        %v5573 = vadd.f32 %v5523, %v5538
        %v5574 = vadd.f32 %v5524, %v5542
        %v5575 = vmax.f32 %v5543, 0.0
        %v5576 = vmax.f32 %v5544, 0.0
        %v5577 = vmax.f32 %v5545, 0.0
        %v5578 = vmax.f32 %v5546, 0.0
        %v5579 = vmax.f32 %v5547, 0.0
        %v5580 = vmax.f32 %v5548, 0.0
        %v5581 = vmax.f32 %v5549, 0.0
        %v5582 = vmax.f32 %v5550, 0.0
        %v5583 = vmax.f32 %v5551, 0.0
        %v5584 = vmax.f32 %v5552, 0.0
        %v5585 = vmax.f32 %v5553, 0.0
        %v5586 = vmax.f32 %v5554, 0.0
        %v5587 = vmax.f32 %v5555, 0.0
        %v5588 = vmax.f32 %v5556, 0.0
        %v5589 = vmax.f32 %v5557, 0.0
        %v5590 = vmax.f32 %v5558, 0.0
        %v5591 = vmax.f32 %v5559, 0.0
        %v5592 = vmax.f32 %v5560, 0.0
        %v5593 = vmax.f32 %v5561, 0.0
        %v5594 = vmax.f32 %v5562, 0.0
        %v5595 = vmax.f32 %v5563, 0.0
        %v5596 = vmax.f32 %v5564, 0.0
        %v5597 = vmax.f32 %v5565, 0.0
        %v5598 = vmax.f32 %v5566, 0.0
        %v5599 = vmax.f32 %v5567, 0.0
        %v5600 = vmax.f32 %v5568, 0.0
        %v5601 = vmax.f32 %v5569, 0.0
        %v5602 = vmax.f32 %v5570, 0.0
        %v5603 = vmax.f32 %v5571, 0.0
        %v5604 = vmax.f32 %v5572, 0.0
        %v5605 = vmax.f32 %v5573, 0.0
        %v5606 = vmax.f32 %v5574, 0.0
        %s5607 = scalar_lea.vmem %s5, 1024
        %v5608 = vld [vmem:[%s5607] sm:$0xff]
        %v5609 = vld [vmem:[%s5607 + $0x8] sm:$0xff]
        %v5610 = vld [vmem:[%s5607 + $0x10] sm:$0xff]
        %v5611 = vld [vmem:[%s5607 + $0x18] sm:$0xff]
        %v5612 = vld [vmem:[%s5607 + $0x20] sm:$0xff]
        %v5613 = vld [vmem:[%s5607 + $0x28] sm:$0xff]
        %v5614 = vld [vmem:[%s5607 + $0x30] sm:$0xff]
        %v5615 = vld [vmem:[%s5607 + $0x38] sm:$0xff]
        %v5616 = vld [vmem:[%s5607 + $0x40] sm:$0xff]
        %v5617 = vld [vmem:[%s5607 + $0x48] sm:$0xff]
        %v5618 = vld [vmem:[%s5607 + $0x50] sm:$0xff]
        %v5619 = vld [vmem:[%s5607 + $0x58] sm:$0xff]
        %v5620 = vld [vmem:[%s5607 + $0x60] sm:$0xff]
        %v5621 = vld [vmem:[%s5607 + $0x68] sm:$0xff]
        %v5622 = vld [vmem:[%s5607 + $0x70] sm:$0xff]
        %v5623 = vld [vmem:[%s5607 + $0x78] sm:$0xff]
        %v5624 = vld [vmem:[%s5607 + $0x80] sm:$0xff]
        %v5625 = vld [vmem:[%s5607 + $0x88] sm:$0xff]
        %v5626 = vld [vmem:[%s5607 + $0x90] sm:$0xff]
        %v5627 = vld [vmem:[%s5607 + $0x98] sm:$0xff]
        %v5628 = vld [vmem:[%s5607 + $0xa0] sm:$0xff]
        %v5629 = vld [vmem:[%s5607 + $0xa8] sm:$0xff]
        %v5630 = vld [vmem:[%s5607 + $0xb0] sm:$0xff]
        %v5631 = vld [vmem:[%s5607 + $0xb8] sm:$0xff]
        %v5632 = vld [vmem:[%s5607 + $0xc0] sm:$0xff]
        %v5633 = vld [vmem:[%s5607 + $0xc8] sm:$0xff]
        %v5634 = vld [vmem:[%s5607 + $0xd0] sm:$0xff]
        %v5635 = vld [vmem:[%s5607 + $0xd8] sm:$0xff]
        %v5636 = vld [vmem:[%s5607 + $0xe0] sm:$0xff]
        %v5637 = vld [vmem:[%s5607 + $0xe8] sm:$0xff]
        %v5638 = vld [vmem:[%s5607 + $0xf0] sm:$0xff]
        %v5639 = vld [vmem:[%s5607 + $0xf8] sm:$0xff]
        %v5640 = vld [vmem:[%s5607 + $0x100] sm:$0xff]
        %v5641 = vld [vmem:[%s5607 + $0x108] sm:$0xff]
        %v5642 = vld [vmem:[%s5607 + $0x110] sm:$0xff]
        %v5643 = vld [vmem:[%s5607 + $0x118] sm:$0xff]
        %v5644 = vld [vmem:[%s5607 + $0x120] sm:$0xff]
        %v5645 = vld [vmem:[%s5607 + $0x128] sm:$0xff]
        %v5646 = vld [vmem:[%s5607 + $0x130] sm:$0xff]
        %v5647 = vld [vmem:[%s5607 + $0x138] sm:$0xff]
        %v5648 = vld [vmem:[%s5607 + $0x140] sm:$0xff]
        %v5649 = vld [vmem:[%s5607 + $0x148] sm:$0xff]
        %v5650 = vld [vmem:[%s5607 + $0x150] sm:$0xff]
        %v5651 = vld [vmem:[%s5607 + $0x158] sm:$0xff]
        %v5652 = vld [vmem:[%s5607 + $0x160] sm:$0xff]
        %v5653 = vld [vmem:[%s5607 + $0x168] sm:$0xff]
        %v5654 = vld [vmem:[%s5607 + $0x170] sm:$0xff]
        %v5655 = vld [vmem:[%s5607 + $0x178] sm:$0xff]
        %v5656 = vld [vmem:[%s5607 + $0x180] sm:$0xff]
        %v5657 = vld [vmem:[%s5607 + $0x188] sm:$0xff]
        %v5658 = vld [vmem:[%s5607 + $0x190] sm:$0xff]
        %v5659 = vld [vmem:[%s5607 + $0x198] sm:$0xff]
        %v5660 = vld [vmem:[%s5607 + $0x1a0] sm:$0xff]
        %v5661 = vld [vmem:[%s5607 + $0x1a8] sm:$0xff]
        %v5662 = vld [vmem:[%s5607 + $0x1b0] sm:$0xff]
        %v5663 = vld [vmem:[%s5607 + $0x1b8] sm:$0xff]
        %v5664 = vld [vmem:[%s5607 + $0x1c0] sm:$0xff]
        %v5665 = vld [vmem:[%s5607 + $0x1c8] sm:$0xff]
        %v5666 = vld [vmem:[%s5607 + $0x1d0] sm:$0xff]
        %v5667 = vld [vmem:[%s5607 + $0x1d8] sm:$0xff]
        %v5668 = vld [vmem:[%s5607 + $0x1e0] sm:$0xff]
        %v5669 = vld [vmem:[%s5607 + $0x1e8] sm:$0xff]
        %v5670 = vld [vmem:[%s5607 + $0x1f0] sm:$0xff]
        %v5671 = vld [vmem:[%s5607 + $0x1f8] sm:$0xff]
        %5672 = vmatprep.subr.mxu0 %v5639
        %5673 = vmatpush1.msra.mxu0 %v5638
        %5674 = vmatprep.subr.mxu0 %v5637
        %5675 = vmatpush1.msra.mxu0 %v5636
        %5676 = vmatprep.subr.mxu0 %v5635
        %5677 = vmatpush1.msra.mxu0 %v5634
        %5678 = vmatprep.subr.mxu0 %v5633
        %5679 = vmatpush1.msra.mxu0 %v5632
        %5680 = vmatprep.subr.mxu0 %v5631
        %5681 = vmatpush1.msra.mxu0 %v5630
        %5682 = vmatprep.subr.mxu0 %v5629
        %5683 = vmatpush1.msra.mxu0 %v5628
        %5684 = vmatprep.subr.mxu0 %v5627
        %5685 = vmatpush1.msra.mxu0 %v5626
        %5686 = vmatprep.subr.mxu0 %v5625
        %5687 = vmatpush1.msra.mxu0 %v5624
        %5688 = vmatprep.subr.mxu0 %v5623
        %5689 = vmatpush1.msra.mxu0 %v5622
        %5690 = vmatprep.subr.mxu0 %v5621
        %5691 = vmatpush1.msra.mxu0 %v5620
        %5692 = vmatprep.subr.mxu0 %v5619
        %5693 = vmatpush1.msra.mxu0 %v5618
        %5694 = vmatprep.subr.mxu0 %v5617
        %5695 = vmatpush1.msra.mxu0 %v5616
        %5696 = vmatprep.subr.mxu0 %v5615
        %5697 = vmatpush1.msra.mxu0 %v5614
        %5698 = vmatprep.subr.mxu0 %v5613
        %5699 = vmatpush1.msra.mxu0 %v5612
        %5700 = vmatprep.subr.mxu0 %v5611
        %5701 = vmatpush1.msra.mxu0 %v5610
        %5702 = vmatprep.subr.mxu0 %v5609
        %5703 = vmatpush1.msra.mxu0 %v5608
        %5704 = vmatprep.subr.mxu0 %v5671
        %5705 = vmatpush2.msra.mxu0 %v5670
        %5706 = vmatprep.subr.mxu0 %v5669
        %5707 = vmatpush2.msra.mxu0 %v5668
        %5708 = vmatprep.subr.mxu0 %v5667
        %5709 = vmatpush2.msra.mxu0 %v5666
        %5710 = vmatprep.subr.mxu0 %v5665
        %5711 = vmatpush2.msra.mxu0 %v5664
        %5712 = vmatprep.subr.mxu0 %v5663
        %5713 = vmatpush2.msra.mxu0 %v5662
        %5714 = vmatprep.subr.mxu0 %v5661
        %5715 = vmatpush2.msra.mxu0 %v5660
        %5716 = vmatprep.subr.mxu0 %v5659
        %5717 = vmatpush2.msra.mxu0 %v5658
        %5718 = vmatprep.subr.mxu0 %v5657
        %5719 = vmatpush2.msra.mxu0 %v5656
        %5720 = vmatprep.subr.mxu0 %v5655
        %5721 = vmatpush2.msra.mxu0 %v5654
        %5722 = vmatprep.subr.mxu0 %v5653
        %5723 = vmatpush2.msra.mxu0 %v5652
        %5724 = vmatprep.subr.mxu0 %v5651
        %5725 = vmatpush2.msra.mxu0 %v5650
        %5726 = vmatprep.subr.mxu0 %v5649
        %5727 = vmatpush2.msra.mxu0 %v5648
        %5728 = vmatprep.subr.mxu0 %v5647
        %5729 = vmatpush2.msra.mxu0 %v5646
        %5730 = vmatprep.subr.mxu0 %v5645
        %5731 = vmatpush2.msra.mxu0 %v5644
        %5732 = vmatprep.subr.mxu0 %v5643
        %5733 = vmatpush2.msra.mxu0 %v5642
        %5734 = vmatprep.subr.mxu0 %v5641
        %5735 = vmatpush2.msra.mxu0 %v5640
        %5736 = vmatprep.mubr.f32.mxu0 %v5576
        %5737 = vmatmul.mubr.f32.gmra.mxu0 %v5575
        %v5738 = vpop.f32.mrf.mxu0
        %v5739 = vadd.f32 0.0, %v5738
        %v5740 = vpop.f32.mrf.mxu0
        %v5741 = vadd.f32 0.0, %v5740
        %5742 = vmatprep.mubr.f32.mxu0 %v5578
        %5743 = vmatmul.mubr.f32.gmra.mxu0 %v5577
        %v5744 = vpop.f32.mrf.mxu0
        %v5745 = vadd.f32 0.0, %v5744
        %v5746 = vpop.f32.mrf.mxu0
        %v5747 = vadd.f32 0.0, %v5746
        %5748 = vmatprep.mubr.f32.mxu0 %v5580
        %5749 = vmatmul.mubr.f32.gmra.mxu0 %v5579
        %v5750 = vpop.f32.mrf.mxu0
        %v5751 = vadd.f32 0.0, %v5750
        %v5752 = vpop.f32.mrf.mxu0
        %v5753 = vadd.f32 0.0, %v5752
        %5754 = vmatprep.mubr.f32.mxu0 %v5582
        %5755 = vmatmul.mubr.f32.gmra.mxu0 %v5581
        %v5756 = vpop.f32.mrf.mxu0
        %v5757 = vadd.f32 0.0, %v5756
        %v5758 = vpop.f32.mrf.mxu0
        %v5759 = vadd.f32 0.0, %v5758
        %5760 = vmatprep.mubr.f32.mxu0 %v5584
        %5761 = vmatmul.mubr.f32.gmra.mxu0 %v5583
        %v5762 = vpop.f32.mrf.mxu0
        %v5763 = vadd.f32 0.0, %v5762
        %v5764 = vpop.f32.mrf.mxu0
        %v5765 = vadd.f32 0.0, %v5764
        %5766 = vmatprep.mubr.f32.mxu0 %v5586
        %5767 = vmatmul.mubr.f32.gmra.mxu0 %v5585
        %v5768 = vpop.f32.mrf.mxu0
        %v5769 = vadd.f32 0.0, %v5768
        %v5770 = vpop.f32.mrf.mxu0
        %v5771 = vadd.f32 0.0, %v5770
        %5772 = vmatprep.mubr.f32.mxu0 %v5588
        %5773 = vmatmul.mubr.f32.gmra.mxu0 %v5587
        %v5774 = vpop.f32.mrf.mxu0
        %v5775 = vadd.f32 0.0, %v5774
        %v5776 = vpop.f32.mrf.mxu0
        %v5777 = vadd.f32 0.0, %v5776
        %5778 = vmatprep.mubr.f32.mxu0 %v5590
        %5779 = vmatmul.mubr.f32.gmra.mxu0 %v5589
        %v5780 = vpop.f32.mrf.mxu0
        %v5781 = vadd.f32 0.0, %v5780
        %v5782 = vpop.f32.mrf.mxu0
        %v5783 = vadd.f32 0.0, %v5782
        %5784 = vmatprep.mubr.f32.mxu0 %v5592
        %5785 = vmatmul.mubr.f32.gmra.mxu0 %v5591
        %v5786 = vpop.f32.mrf.mxu0
        %v5787 = vadd.f32 0.0, %v5786
        %v5788 = vpop.f32.mrf.mxu0
        %v5789 = vadd.f32 0.0, %v5788
        %5790 = vmatprep.mubr.f32.mxu0 %v5594
        %5791 = vmatmul.mubr.f32.gmra.mxu0 %v5593
        %v5792 = vpop.f32.mrf.mxu0
        %v5793 = vadd.f32 0.0, %v5792
        %v5794 = vpop.f32.mrf.mxu0
        %v5795 = vadd.f32 0.0, %v5794
        %5796 = vmatprep.mubr.f32.mxu0 %v5596
        %5797 = vmatmul.mubr.f32.gmra.mxu0 %v5595
        %v5798 = vpop.f32.mrf.mxu0
        %v5799 = vadd.f32 0.0, %v5798
        %v5800 = vpop.f32.mrf.mxu0
        %v5801 = vadd.f32 0.0, %v5800
        %5802 = vmatprep.mubr.f32.mxu0 %v5598
        %5803 = vmatmul.mubr.f32.gmra.mxu0 %v5597
        %v5804 = vpop.f32.mrf.mxu0
        %v5805 = vadd.f32 0.0, %v5804
        %v5806 = vpop.f32.mrf.mxu0
        %v5807 = vadd.f32 0.0, %v5806
        %5808 = vmatprep.mubr.f32.mxu0 %v5600
        %5809 = vmatmul.mubr.f32.gmra.mxu0 %v5599
        %v5810 = vpop.f32.mrf.mxu0
        %v5811 = vadd.f32 0.0, %v5810
        %v5812 = vpop.f32.mrf.mxu0
        %v5813 = vadd.f32 0.0, %v5812
        %5814 = vmatprep.mubr.f32.mxu0 %v5602
        %5815 = vmatmul.mubr.f32.gmra.mxu0 %v5601
        %v5816 = vpop.f32.mrf.mxu0
        %v5817 = vadd.f32 0.0, %v5816
        %v5818 = vpop.f32.mrf.mxu0
        %v5819 = vadd.f32 0.0, %v5818
        %5820 = vmatprep.mubr.f32.mxu0 %v5604
        %5821 = vmatmul.mubr.f32.gmra.mxu0 %v5603
        %v5822 = vpop.f32.mrf.mxu0
        %v5823 = vadd.f32 0.0, %v5822
        %v5824 = vpop.f32.mrf.mxu0
        %v5825 = vadd.f32 0.0, %v5824
        %5826 = vmatprep.mubr.f32.mxu0 %v5606
        %5827 = vmatmul.mubr.f32.gmra.mxu0 %v5605
        %v5828 = vpop.f32.mrf.mxu0
        %v5829 = vadd.f32 0.0, %v5828
        %v5830 = vpop.f32.mrf.mxu0
        %v5831 = vadd.f32 0.0, %v5830
        %5832 = vdwg.mxu0
        %v5833 = vadd.f32 %v3277, %v5739
        %v5834 = vadd.f32 %v3279, %v5741
        %v5835 = vadd.f32 %v3283, %v5745
        %v5836 = vadd.f32 %v3285, %v5747
        %v5837 = vadd.f32 %v3289, %v5751
        %v5838 = vadd.f32 %v3291, %v5753
        %v5839 = vadd.f32 %v3295, %v5757
        %v5840 = vadd.f32 %v3297, %v5759
        %v5841 = vadd.f32 %v3301, %v5763
        %v5842 = vadd.f32 %v3303, %v5765
        %v5843 = vadd.f32 %v3307, %v5769
        %v5844 = vadd.f32 %v3309, %v5771
        %v5845 = vadd.f32 %v3313, %v5775
        %v5846 = vadd.f32 %v3315, %v5777
        %v5847 = vadd.f32 %v3319, %v5781
        %v5848 = vadd.f32 %v3321, %v5783
        %v5849 = vadd.f32 %v3325, %v5787
        %v5850 = vadd.f32 %v3327, %v5789
        %v5851 = vadd.f32 %v3331, %v5793
        %v5852 = vadd.f32 %v3333, %v5795
        %v5853 = vadd.f32 %v3337, %v5799
        %v5854 = vadd.f32 %v3339, %v5801
        %v5855 = vadd.f32 %v3343, %v5805
        %v5856 = vadd.f32 %v3345, %v5807
        %v5857 = vadd.f32 %v3349, %v5811
        %v5858 = vadd.f32 %v3351, %v5813
        %v5859 = vadd.f32 %v3355, %v5817
        %v5860 = vadd.f32 %v3357, %v5819
        %v5861 = vadd.f32 %v3361, %v5823
        %v5862 = vadd.f32 %v3363, %v5825
        %v5863 = vadd.f32 %v3367, %v5829
        %v5864 = vadd.f32 %v3369, %v5831
        %s5865 = smul.u32 %s336, 32
        %s5866 = scalar_lea.vmem %s330, %s5865
        %v5867 = vld [vmem:[%s5866] sm:$0xff]
        %v5868 = vld [vmem:[%s5866 + $0x8] sm:$0xff]
        %v5869 = vld [vmem:[%s5866 + $0x20] sm:$0xff]
        %v5870 = vld [vmem:[%s5866 + $0x28] sm:$0xff]
        %v5871 = vld [vmem:[%s5866 + $0x40] sm:$0xff]
        %v5872 = vld [vmem:[%s5866 + $0x48] sm:$0xff]
        %v5873 = vld [vmem:[%s5866 + $0x60] sm:$0xff]
        %v5874 = vld [vmem:[%s5866 + $0x68] sm:$0xff]
        %v5875 = vld [vmem:[%s5866 + $0x80] sm:$0xff]
        %v5876 = vld [vmem:[%s5866 + $0x88] sm:$0xff]
        %v5877 = vld [vmem:[%s5866 + $0xa0] sm:$0xff]
        %v5878 = vld [vmem:[%s5866 + $0xa8] sm:$0xff]
        %v5879 = vld [vmem:[%s5866 + $0xc0] sm:$0xff]
        %v5880 = vld [vmem:[%s5866 + $0xc8] sm:$0xff]
        %v5881 = vld [vmem:[%s5866 + $0xe0] sm:$0xff]
        %v5882 = vld [vmem:[%s5866 + $0xe8] sm:$0xff]
        %s5883 = scalar_lea.vmem %s2, 4608
        %v5884 = vld [vmem:[%s5883] sm:$0xff]
        %v5885 = vld [vmem:[%s5883 + $0x8] sm:$0xff]
        %v5886 = vld [vmem:[%s5883 + $0x10] sm:$0xff]
        %v5887 = vld [vmem:[%s5883 + $0x18] sm:$0xff]
        %v5888 = vld [vmem:[%s5883 + $0x20] sm:$0xff]
        %v5889 = vld [vmem:[%s5883 + $0x28] sm:$0xff]
        %v5890 = vld [vmem:[%s5883 + $0x30] sm:$0xff]
        %v5891 = vld [vmem:[%s5883 + $0x38] sm:$0xff]
        %v5892 = vld [vmem:[%s5883 + $0x40] sm:$0xff]
        %v5893 = vld [vmem:[%s5883 + $0x48] sm:$0xff]
        %v5894 = vld [vmem:[%s5883 + $0x50] sm:$0xff]
        %v5895 = vld [vmem:[%s5883 + $0x58] sm:$0xff]
        %v5896 = vld [vmem:[%s5883 + $0x60] sm:$0xff]
        %v5897 = vld [vmem:[%s5883 + $0x68] sm:$0xff]
        %v5898 = vld [vmem:[%s5883 + $0x70] sm:$0xff]
        %v5899 = vld [vmem:[%s5883 + $0x78] sm:$0xff]
        %v5900 = vld [vmem:[%s5883 + $0x80] sm:$0xff]
        %v5901 = vld [vmem:[%s5883 + $0x88] sm:$0xff]
        %v5902 = vld [vmem:[%s5883 + $0x90] sm:$0xff]
        %v5903 = vld [vmem:[%s5883 + $0x98] sm:$0xff]
        %v5904 = vld [vmem:[%s5883 + $0xa0] sm:$0xff]
        %v5905 = vld [vmem:[%s5883 + $0xa8] sm:$0xff]
        %v5906 = vld [vmem:[%s5883 + $0xb0] sm:$0xff]
        %v5907 = vld [vmem:[%s5883 + $0xb8] sm:$0xff]
        %v5908 = vld [vmem:[%s5883 + $0xc0] sm:$0xff]
        %v5909 = vld [vmem:[%s5883 + $0xc8] sm:$0xff]
        %v5910 = vld [vmem:[%s5883 + $0xd0] sm:$0xff]
        %v5911 = vld [vmem:[%s5883 + $0xd8] sm:$0xff]
        %v5912 = vld [vmem:[%s5883 + $0xe0] sm:$0xff]
        %v5913 = vld [vmem:[%s5883 + $0xe8] sm:$0xff]
        %v5914 = vld [vmem:[%s5883 + $0xf0] sm:$0xff]
        %v5915 = vld [vmem:[%s5883 + $0xf8] sm:$0xff]
        %v5916 = vld [vmem:[%s5866 + $0x6] sm:$0xff]
        %v5917 = vld [vmem:[%s5866 + $0xe] sm:$0xff]
        %v5918 = vld [vmem:[%s5866 + $0x26] sm:$0xff]
        %v5919 = vld [vmem:[%s5866 + $0x2e] sm:$0xff]
        %v5920 = vld [vmem:[%s5866 + $0x46] sm:$0xff]
        %v5921 = vld [vmem:[%s5866 + $0x4e] sm:$0xff]
        %v5922 = vld [vmem:[%s5866 + $0x66] sm:$0xff]
        %v5923 = vld [vmem:[%s5866 + $0x6e] sm:$0xff]
        %v5924 = vld [vmem:[%s5866 + $0x86] sm:$0xff]
        %v5925 = vld [vmem:[%s5866 + $0x8e] sm:$0xff]
        %v5926 = vld [vmem:[%s5866 + $0xa6] sm:$0xff]
        %v5927 = vld [vmem:[%s5866 + $0xae] sm:$0xff]
        %v5928 = vld [vmem:[%s5866 + $0xc6] sm:$0xff]
        %v5929 = vld [vmem:[%s5866 + $0xce] sm:$0xff]
        %v5930 = vld [vmem:[%s5866 + $0xe6] sm:$0xff]
        %v5931 = vld [vmem:[%s5866 + $0xee] sm:$0xff]
        %s5932 = scalar_lea.vmem %s2, 4864
        %v5933 = vld [vmem:[%s5932] sm:$0xff]
        %v5934 = vld [vmem:[%s5932 + $0x8] sm:$0xff]
        %v5935 = vld [vmem:[%s5932 + $0x10] sm:$0xff]
        %v5936 = vld [vmem:[%s5932 + $0x18] sm:$0xff]
        %v5937 = vld [vmem:[%s5932 + $0x20] sm:$0xff]
        %v5938 = vld [vmem:[%s5932 + $0x28] sm:$0xff]
        %v5939 = vld [vmem:[%s5932 + $0x30] sm:$0xff]
        %v5940 = vld [vmem:[%s5932 + $0x38] sm:$0xff]
        %v5941 = vld [vmem:[%s5932 + $0x40] sm:$0xff]
        %v5942 = vld [vmem:[%s5932 + $0x48] sm:$0xff]
        %v5943 = vld [vmem:[%s5932 + $0x50] sm:$0xff]
        %v5944 = vld [vmem:[%s5932 + $0x58] sm:$0xff]
        %v5945 = vld [vmem:[%s5932 + $0x60] sm:$0xff]
        %v5946 = vld [vmem:[%s5932 + $0x68] sm:$0xff]
        %v5947 = vld [vmem:[%s5932 + $0x70] sm:$0xff]
        %v5948 = vld [vmem:[%s5932 + $0x78] sm:$0xff]
        %v5949 = vld [vmem:[%s5932 + $0x80] sm:$0xff]
        %v5950 = vld [vmem:[%s5932 + $0x88] sm:$0xff]
        %v5951 = vld [vmem:[%s5932 + $0x90] sm:$0xff]
        %v5952 = vld [vmem:[%s5932 + $0x98] sm:$0xff]
        %v5953 = vld [vmem:[%s5932 + $0xa0] sm:$0xff]
        %v5954 = vld [vmem:[%s5932 + $0xa8] sm:$0xff]
        %v5955 = vld [vmem:[%s5932 + $0xb0] sm:$0xff]
        %v5956 = vld [vmem:[%s5932 + $0xb8] sm:$0xff]
        %v5957 = vld [vmem:[%s5932 + $0xc0] sm:$0xff]
        %v5958 = vld [vmem:[%s5932 + $0xc8] sm:$0xff]
        %v5959 = vld [vmem:[%s5932 + $0xd0] sm:$0xff]
        %v5960 = vld [vmem:[%s5932 + $0xd8] sm:$0xff]
        %v5961 = vld [vmem:[%s5932 + $0xe0] sm:$0xff]
        %v5962 = vld [vmem:[%s5932 + $0xe8] sm:$0xff]
        %v5963 = vld [vmem:[%s5932 + $0xf0] sm:$0xff]
        %v5964 = vld [vmem:[%s5932 + $0xf8] sm:$0xff]
        %5965 = vmatprep.subr.mxu0 %v5964
        %5966 = vmatpush1.msra.mxu0 %v5963
        %5967 = vmatprep.subr.mxu0 %v5962
        %5968 = vmatpush1.msra.mxu0 %v5961
        %5969 = vmatprep.subr.mxu0 %v5960
        %5970 = vmatpush1.msra.mxu0 %v5959
        %5971 = vmatprep.subr.mxu0 %v5958
        %5972 = vmatpush1.msra.mxu0 %v5957
        %5973 = vmatprep.subr.mxu0 %v5956
        %5974 = vmatpush1.msra.mxu0 %v5955
        %5975 = vmatprep.subr.mxu0 %v5954
        %5976 = vmatpush1.msra.mxu0 %v5953
        %5977 = vmatprep.subr.mxu0 %v5952
        %5978 = vmatpush1.msra.mxu0 %v5951
        %5979 = vmatprep.subr.mxu0 %v5950
        %5980 = vmatpush1.msra.mxu0 %v5949
        %5981 = vmatprep.subr.mxu0 %v5948
        %5982 = vmatpush1.msra.mxu0 %v5947
        %5983 = vmatprep.subr.mxu0 %v5946
        %5984 = vmatpush1.msra.mxu0 %v5945
        %5985 = vmatprep.subr.mxu0 %v5944
        %5986 = vmatpush1.msra.mxu0 %v5943
        %5987 = vmatprep.subr.mxu0 %v5942
        %5988 = vmatpush1.msra.mxu0 %v5941
        %5989 = vmatprep.subr.mxu0 %v5940
        %5990 = vmatpush1.msra.mxu0 %v5939
        %5991 = vmatprep.subr.mxu0 %v5938
        %5992 = vmatpush1.msra.mxu0 %v5937
        %5993 = vmatprep.subr.mxu0 %v5936
        %5994 = vmatpush1.msra.mxu0 %v5935
        %5995 = vmatprep.subr.mxu0 %v5934
        %5996 = vmatpush1.msra.mxu0 %v5933
        %5997 = vmatprep.subr.mxu0 0.0
        %5998 = vmatpush2.msra.mxu0 0.0
        %5999 = vmatprep.subr.mxu0 0.0
        %6000 = vmatpush2.msra.mxu0 0.0
        %6001 = vmatprep.subr.mxu0 0.0
        %6002 = vmatpush2.msra.mxu0 0.0
        %6003 = vmatprep.subr.mxu0 0.0
        %6004 = vmatpush2.msra.mxu0 0.0
        %6005 = vmatprep.subr.mxu0 0.0
        %6006 = vmatpush2.msra.mxu0 0.0
        %6007 = vmatprep.subr.mxu0 0.0
        %6008 = vmatpush2.msra.mxu0 0.0
        %6009 = vmatprep.subr.mxu0 0.0
        %6010 = vmatpush2.msra.mxu0 0.0
        %6011 = vmatprep.subr.mxu0 0.0
        %6012 = vmatpush2.msra.mxu0 0.0
        %6013 = vmatprep.subr.mxu0 0.0
        %6014 = vmatpush2.msra.mxu0 0.0
        %6015 = vmatprep.subr.mxu0 0.0
        %6016 = vmatpush2.msra.mxu0 0.0
        %6017 = vmatprep.subr.mxu0 0.0
        %6018 = vmatpush2.msra.mxu0 0.0
        %6019 = vmatprep.subr.mxu0 0.0
        %6020 = vmatpush2.msra.mxu0 0.0
        %6021 = vmatprep.subr.mxu0 0.0
        %6022 = vmatpush2.msra.mxu0 0.0
        %6023 = vmatprep.subr.mxu0 0.0
        %6024 = vmatpush2.msra.mxu0 0.0
        %6025 = vmatprep.subr.mxu0 0.0
        %6026 = vmatpush2.msra.mxu0 0.0
        %6027 = vmatprep.subr.mxu0 0.0
        %6028 = vmatpush2.msra.mxu0 0.0
        %6029 = vmatprep.mubr.f32.mxu0 0.0
        %6030 = vmatmul.mubr.f32.gmra.mxu0 %v5916
        %v6031 = vpop.f32.mrf.mxu0
        %v6032 = vadd.f32 0.0, %v6031
        %v6033 = vpop.f32.mrf.mxu0
        %v6034 = vadd.f32 0.0, %v6033
        %6035 = vmatprep.mubr.f32.mxu0 0.0
        %6036 = vmatmul.mubr.f32.gmra.mxu0 %v5917
        %v6037 = vpop.f32.mrf.mxu0
        %v6038 = vadd.f32 0.0, %v6037
        %v6039 = vpop.f32.mrf.mxu0
        %v6040 = vadd.f32 0.0, %v6039
        %6041 = vmatprep.mubr.f32.mxu0 0.0
        %6042 = vmatmul.mubr.f32.gmra.mxu0 %v5918
        %v6043 = vpop.f32.mrf.mxu0
        %v6044 = vadd.f32 0.0, %v6043
        %v6045 = vpop.f32.mrf.mxu0
        %v6046 = vadd.f32 0.0, %v6045
        %6047 = vmatprep.mubr.f32.mxu0 0.0
        %6048 = vmatmul.mubr.f32.gmra.mxu0 %v5919
        %v6049 = vpop.f32.mrf.mxu0
        %v6050 = vadd.f32 0.0, %v6049
        %v6051 = vpop.f32.mrf.mxu0
        %v6052 = vadd.f32 0.0, %v6051
        %6053 = vmatprep.mubr.f32.mxu0 0.0
        %6054 = vmatmul.mubr.f32.gmra.mxu0 %v5920
        %v6055 = vpop.f32.mrf.mxu0
        %v6056 = vadd.f32 0.0, %v6055
        %v6057 = vpop.f32.mrf.mxu0
        %v6058 = vadd.f32 0.0, %v6057
        %6059 = vmatprep.mubr.f32.mxu0 0.0
        %6060 = vmatmul.mubr.f32.gmra.mxu0 %v5921
        %v6061 = vpop.f32.mrf.mxu0
        %v6062 = vadd.f32 0.0, %v6061
        %v6063 = vpop.f32.mrf.mxu0
        %v6064 = vadd.f32 0.0, %v6063
        %6065 = vmatprep.mubr.f32.mxu0 0.0
        %6066 = vmatmul.mubr.f32.gmra.mxu0 %v5922
        %v6067 = vpop.f32.mrf.mxu0
        %v6068 = vadd.f32 0.0, %v6067
        %v6069 = vpop.f32.mrf.mxu0
        %v6070 = vadd.f32 0.0, %v6069
        %6071 = vmatprep.mubr.f32.mxu0 0.0
        %6072 = vmatmul.mubr.f32.gmra.mxu0 %v5923
        %v6073 = vpop.f32.mrf.mxu0
        %v6074 = vadd.f32 0.0, %v6073
        %v6075 = vpop.f32.mrf.mxu0
        %v6076 = vadd.f32 0.0, %v6075
        %6077 = vmatprep.mubr.f32.mxu0 0.0
        %6078 = vmatmul.mubr.f32.gmra.mxu0 %v5924
        %v6079 = vpop.f32.mrf.mxu0
        %v6080 = vadd.f32 0.0, %v6079
        %v6081 = vpop.f32.mrf.mxu0
        %v6082 = vadd.f32 0.0, %v6081
        %6083 = vmatprep.mubr.f32.mxu0 0.0
        %6084 = vmatmul.mubr.f32.gmra.mxu0 %v5925
        %v6085 = vpop.f32.mrf.mxu0
        %v6086 = vadd.f32 0.0, %v6085
        %v6087 = vpop.f32.mrf.mxu0
        %v6088 = vadd.f32 0.0, %v6087
        %6089 = vmatprep.mubr.f32.mxu0 0.0
        %6090 = vmatmul.mubr.f32.gmra.mxu0 %v5926
        %v6091 = vpop.f32.mrf.mxu0
        %v6092 = vadd.f32 0.0, %v6091
        %v6093 = vpop.f32.mrf.mxu0
        %v6094 = vadd.f32 0.0, %v6093
        %6095 = vmatprep.mubr.f32.mxu0 0.0
        %6096 = vmatmul.mubr.f32.gmra.mxu0 %v5927
        %v6097 = vpop.f32.mrf.mxu0
        %v6098 = vadd.f32 0.0, %v6097
        %v6099 = vpop.f32.mrf.mxu0
        %v6100 = vadd.f32 0.0, %v6099
        %6101 = vmatprep.mubr.f32.mxu0 0.0
        %6102 = vmatmul.mubr.f32.gmra.mxu0 %v5928
        %v6103 = vpop.f32.mrf.mxu0
        %v6104 = vadd.f32 0.0, %v6103
        %v6105 = vpop.f32.mrf.mxu0
        %v6106 = vadd.f32 0.0, %v6105
        %6107 = vmatprep.mubr.f32.mxu0 0.0
        %6108 = vmatmul.mubr.f32.gmra.mxu0 %v5929
        %v6109 = vpop.f32.mrf.mxu0
        %v6110 = vadd.f32 0.0, %v6109
        %v6111 = vpop.f32.mrf.mxu0
        %v6112 = vadd.f32 0.0, %v6111
        %6113 = vmatprep.mubr.f32.mxu0 0.0
        %6114 = vmatmul.mubr.f32.gmra.mxu0 %v5930
        %v6115 = vpop.f32.mrf.mxu0
        %v6116 = vadd.f32 0.0, %v6115
        %v6117 = vpop.f32.mrf.mxu0
        %v6118 = vadd.f32 0.0, %v6117
        %6119 = vmatprep.mubr.f32.mxu0 0.0
        %6120 = vmatmul.mubr.f32.gmra.mxu0 %v5931
        %v6121 = vpop.f32.mrf.mxu0
        %v6122 = vadd.f32 0.0, %v6121
        %v6123 = vpop.f32.mrf.mxu0
        %v6124 = vadd.f32 0.0, %v6123
        %6125 = vdwg.mxu0
        %6126 = vmatprep.subr.mxu0 %v5915
        %6127 = vmatpush1.msra.mxu0 %v5914
        %6128 = vmatprep.subr.mxu0 %v5913
        %6129 = vmatpush1.msra.mxu0 %v5912
        %6130 = vmatprep.subr.mxu0 %v5911
        %6131 = vmatpush1.msra.mxu0 %v5910
        %6132 = vmatprep.subr.mxu0 %v5909
        %6133 = vmatpush1.msra.mxu0 %v5908
        %6134 = vmatprep.subr.mxu0 %v5907
        %6135 = vmatpush1.msra.mxu0 %v5906
        %6136 = vmatprep.subr.mxu0 %v5905
        %6137 = vmatpush1.msra.mxu0 %v5904
        %6138 = vmatprep.subr.mxu0 %v5903
        %6139 = vmatpush1.msra.mxu0 %v5902
        %6140 = vmatprep.subr.mxu0 %v5901
        %6141 = vmatpush1.msra.mxu0 %v5900
        %6142 = vmatprep.subr.mxu0 %v5899
        %6143 = vmatpush1.msra.mxu0 %v5898
        %6144 = vmatprep.subr.mxu0 %v5897
        %6145 = vmatpush1.msra.mxu0 %v5896
        %6146 = vmatprep.subr.mxu0 %v5895
        %6147 = vmatpush1.msra.mxu0 %v5894
        %6148 = vmatprep.subr.mxu0 %v5893
        %6149 = vmatpush1.msra.mxu0 %v5892
        %6150 = vmatprep.subr.mxu0 %v5891
        %6151 = vmatpush1.msra.mxu0 %v5890
        %6152 = vmatprep.subr.mxu0 %v5889
        %6153 = vmatpush1.msra.mxu0 %v5888
        %6154 = vmatprep.subr.mxu0 %v5887
        %6155 = vmatpush1.msra.mxu0 %v5886
        %6156 = vmatprep.subr.mxu0 %v5885
        %6157 = vmatpush1.msra.mxu0 %v5884
        %6158 = vmatprep.subr.mxu0 0.0
        %6159 = vmatpush2.msra.mxu0 0.0
        %6160 = vmatprep.subr.mxu0 0.0
        %6161 = vmatpush2.msra.mxu0 0.0
        %6162 = vmatprep.subr.mxu0 0.0
        %6163 = vmatpush2.msra.mxu0 0.0
        %6164 = vmatprep.subr.mxu0 0.0
        %6165 = vmatpush2.msra.mxu0 0.0
        %6166 = vmatprep.subr.mxu0 0.0
        %6167 = vmatpush2.msra.mxu0 0.0
        %6168 = vmatprep.subr.mxu0 0.0
        %6169 = vmatpush2.msra.mxu0 0.0
        %6170 = vmatprep.subr.mxu0 0.0
        %6171 = vmatpush2.msra.mxu0 0.0
        %6172 = vmatprep.subr.mxu0 0.0
        %6173 = vmatpush2.msra.mxu0 0.0
        %6174 = vmatprep.subr.mxu0 0.0
        %6175 = vmatpush2.msra.mxu0 0.0
        %6176 = vmatprep.subr.mxu0 0.0
        %6177 = vmatpush2.msra.mxu0 0.0
        %6178 = vmatprep.subr.mxu0 0.0
        %6179 = vmatpush2.msra.mxu0 0.0
        %6180 = vmatprep.subr.mxu0 0.0
        %6181 = vmatpush2.msra.mxu0 0.0
        %6182 = vmatprep.subr.mxu0 0.0
        %6183 = vmatpush2.msra.mxu0 0.0
        %6184 = vmatprep.subr.mxu0 0.0
        %6185 = vmatpush2.msra.mxu0 0.0
        %6186 = vmatprep.subr.mxu0 0.0
        %6187 = vmatpush2.msra.mxu0 0.0
        %6188 = vmatprep.subr.mxu0 0.0
        %6189 = vmatpush2.msra.mxu0 0.0
        %6190 = vmatprep.mubr.f32.mxu0 0.0
        %6191 = vmatmul.mubr.f32.gmra.mxu0 %v5867
        %v6192 = vpop.f32.mrf.mxu0
        %v6193 = vadd.f32 %v6032, %v6192
        %v6194 = vpop.f32.mrf.mxu0
        %v6195 = vadd.f32 %v6034, %v6194
        %6196 = vmatprep.mubr.f32.mxu0 0.0
        %6197 = vmatmul.mubr.f32.gmra.mxu0 %v5868
        %v6198 = vpop.f32.mrf.mxu0
        %v6199 = vadd.f32 %v6038, %v6198
        %v6200 = vpop.f32.mrf.mxu0
        %v6201 = vadd.f32 %v6040, %v6200
        %6202 = vmatprep.mubr.f32.mxu0 0.0
        %6203 = vmatmul.mubr.f32.gmra.mxu0 %v5869
        %v6204 = vpop.f32.mrf.mxu0
        %v6205 = vadd.f32 %v6044, %v6204
        %v6206 = vpop.f32.mrf.mxu0
        %v6207 = vadd.f32 %v6046, %v6206
        %6208 = vmatprep.mubr.f32.mxu0 0.0
        %6209 = vmatmul.mubr.f32.gmra.mxu0 %v5870
        %v6210 = vpop.f32.mrf.mxu0
        %v6211 = vadd.f32 %v6050, %v6210
        %v6212 = vpop.f32.mrf.mxu0
        %v6213 = vadd.f32 %v6052, %v6212
        %6214 = vmatprep.mubr.f32.mxu0 0.0
        %6215 = vmatmul.mubr.f32.gmra.mxu0 %v5871
        %v6216 = vpop.f32.mrf.mxu0
        %v6217 = vadd.f32 %v6056, %v6216
        %v6218 = vpop.f32.mrf.mxu0
        %v6219 = vadd.f32 %v6058, %v6218
        %6220 = vmatprep.mubr.f32.mxu0 0.0
        %6221 = vmatmul.mubr.f32.gmra.mxu0 %v5872
        %v6222 = vpop.f32.mrf.mxu0
        %v6223 = vadd.f32 %v6062, %v6222
        %v6224 = vpop.f32.mrf.mxu0
        %v6225 = vadd.f32 %v6064, %v6224
        %6226 = vmatprep.mubr.f32.mxu0 0.0
        %6227 = vmatmul.mubr.f32.gmra.mxu0 %v5873
        %v6228 = vpop.f32.mrf.mxu0
        %v6229 = vadd.f32 %v6068, %v6228
        %v6230 = vpop.f32.mrf.mxu0
        %v6231 = vadd.f32 %v6070, %v6230
        %6232 = vmatprep.mubr.f32.mxu0 0.0
        %6233 = vmatmul.mubr.f32.gmra.mxu0 %v5874
        %v6234 = vpop.f32.mrf.mxu0
        %v6235 = vadd.f32 %v6074, %v6234
        %v6236 = vpop.f32.mrf.mxu0
        %v6237 = vadd.f32 %v6076, %v6236
        %6238 = vmatprep.mubr.f32.mxu0 0.0
        %6239 = vmatmul.mubr.f32.gmra.mxu0 %v5875
        %v6240 = vpop.f32.mrf.mxu0
        %v6241 = vadd.f32 %v6080, %v6240
        %v6242 = vpop.f32.mrf.mxu0
        %v6243 = vadd.f32 %v6082, %v6242
        %6244 = vmatprep.mubr.f32.mxu0 0.0
        %6245 = vmatmul.mubr.f32.gmra.mxu0 %v5876
        %v6246 = vpop.f32.mrf.mxu0
        %v6247 = vadd.f32 %v6086, %v6246
        %v6248 = vpop.f32.mrf.mxu0
        %v6249 = vadd.f32 %v6088, %v6248
        %6250 = vmatprep.mubr.f32.mxu0 0.0
        %6251 = vmatmul.mubr.f32.gmra.mxu0 %v5877
        %v6252 = vpop.f32.mrf.mxu0
        %v6253 = vadd.f32 %v6092, %v6252
        %v6254 = vpop.f32.mrf.mxu0
        %v6255 = vadd.f32 %v6094, %v6254
        %6256 = vmatprep.mubr.f32.mxu0 0.0
        %6257 = vmatmul.mubr.f32.gmra.mxu0 %v5878
        %v6258 = vpop.f32.mrf.mxu0
        %v6259 = vadd.f32 %v6098, %v6258
        %v6260 = vpop.f32.mrf.mxu0
        %v6261 = vadd.f32 %v6100, %v6260
        %6262 = vmatprep.mubr.f32.mxu0 0.0
        %6263 = vmatmul.mubr.f32.gmra.mxu0 %v5879
        %v6264 = vpop.f32.mrf.mxu0
        %v6265 = vadd.f32 %v6104, %v6264
        %v6266 = vpop.f32.mrf.mxu0
        %v6267 = vadd.f32 %v6106, %v6266
        %6268 = vmatprep.mubr.f32.mxu0 0.0
        %6269 = vmatmul.mubr.f32.gmra.mxu0 %v5880
        %v6270 = vpop.f32.mrf.mxu0
        %v6271 = vadd.f32 %v6110, %v6270
        %v6272 = vpop.f32.mrf.mxu0
        %v6273 = vadd.f32 %v6112, %v6272
        %6274 = vmatprep.mubr.f32.mxu0 0.0
        %6275 = vmatmul.mubr.f32.gmra.mxu0 %v5881
        %v6276 = vpop.f32.mrf.mxu0
        %v6277 = vadd.f32 %v6116, %v6276
        %v6278 = vpop.f32.mrf.mxu0
        %v6279 = vadd.f32 %v6118, %v6278
        %6280 = vmatprep.mubr.f32.mxu0 0.0
        %6281 = vmatmul.mubr.f32.gmra.mxu0 %v5882
        %v6282 = vpop.f32.mrf.mxu0
        %v6283 = vadd.f32 %v6122, %v6282
        %v6284 = vpop.f32.mrf.mxu0
        %v6285 = vadd.f32 %v6124, %v6284
        %6286 = vdwg.mxu0
        %v6287 = vld [vmem:[%s5866 + $0xc] sm:$0xff]
        %v6288 = vld [vmem:[%s5866 + $0x14] sm:$0xff]
        %v6289 = vld [vmem:[%s5866 + $0x2c] sm:$0xff]
        %v6290 = vld [vmem:[%s5866 + $0x34] sm:$0xff]
        %v6291 = vld [vmem:[%s5866 + $0x4c] sm:$0xff]
        %v6292 = vld [vmem:[%s5866 + $0x54] sm:$0xff]
        %v6293 = vld [vmem:[%s5866 + $0x6c] sm:$0xff]
        %v6294 = vld [vmem:[%s5866 + $0x74] sm:$0xff]
        %v6295 = vld [vmem:[%s5866 + $0x8c] sm:$0xff]
        %v6296 = vld [vmem:[%s5866 + $0x94] sm:$0xff]
        %v6297 = vld [vmem:[%s5866 + $0xac] sm:$0xff]
        %v6298 = vld [vmem:[%s5866 + $0xb4] sm:$0xff]
        %v6299 = vld [vmem:[%s5866 + $0xcc] sm:$0xff]
        %v6300 = vld [vmem:[%s5866 + $0xd4] sm:$0xff]
        %v6301 = vld [vmem:[%s5866 + $0xec] sm:$0xff]
        %v6302 = vld [vmem:[%s5866 + $0xf4] sm:$0xff]
        %s6303 = scalar_lea.vmem %s2, 5120
        %v6304 = vld [vmem:[%s6303] sm:$0xff]
        %v6305 = vld [vmem:[%s6303 + $0x8] sm:$0xff]
        %v6306 = vld [vmem:[%s6303 + $0x10] sm:$0xff]
        %v6307 = vld [vmem:[%s6303 + $0x18] sm:$0xff]
        %v6308 = vld [vmem:[%s6303 + $0x20] sm:$0xff]
        %v6309 = vld [vmem:[%s6303 + $0x28] sm:$0xff]
        %v6310 = vld [vmem:[%s6303 + $0x30] sm:$0xff]
        %v6311 = vld [vmem:[%s6303 + $0x38] sm:$0xff]
        %v6312 = vld [vmem:[%s6303 + $0x40] sm:$0xff]
        %v6313 = vld [vmem:[%s6303 + $0x48] sm:$0xff]
        %v6314 = vld [vmem:[%s6303 + $0x50] sm:$0xff]
        %v6315 = vld [vmem:[%s6303 + $0x58] sm:$0xff]
        %v6316 = vld [vmem:[%s6303 + $0x60] sm:$0xff]
        %v6317 = vld [vmem:[%s6303 + $0x68] sm:$0xff]
        %v6318 = vld [vmem:[%s6303 + $0x70] sm:$0xff]
        %v6319 = vld [vmem:[%s6303 + $0x78] sm:$0xff]
        %v6320 = vld [vmem:[%s6303 + $0x80] sm:$0xff]
        %v6321 = vld [vmem:[%s6303 + $0x88] sm:$0xff]
        %v6322 = vld [vmem:[%s6303 + $0x90] sm:$0xff]
        %v6323 = vld [vmem:[%s6303 + $0x98] sm:$0xff]
        %v6324 = vld [vmem:[%s6303 + $0xa0] sm:$0xff]
        %v6325 = vld [vmem:[%s6303 + $0xa8] sm:$0xff]
        %v6326 = vld [vmem:[%s6303 + $0xb0] sm:$0xff]
        %v6327 = vld [vmem:[%s6303 + $0xb8] sm:$0xff]
        %v6328 = vld [vmem:[%s6303 + $0xc0] sm:$0xff]
        %v6329 = vld [vmem:[%s6303 + $0xc8] sm:$0xff]
        %v6330 = vld [vmem:[%s6303 + $0xd0] sm:$0xff]
        %v6331 = vld [vmem:[%s6303 + $0xd8] sm:$0xff]
        %v6332 = vld [vmem:[%s6303 + $0xe0] sm:$0xff]
        %v6333 = vld [vmem:[%s6303 + $0xe8] sm:$0xff]
        %v6334 = vld [vmem:[%s6303 + $0xf0] sm:$0xff]
        %v6335 = vld [vmem:[%s6303 + $0xf8] sm:$0xff]
        %6336 = vmatprep.subr.mxu0 %v6335
        %6337 = vmatpush1.msra.mxu0 %v6334
        %6338 = vmatprep.subr.mxu0 %v6333
        %6339 = vmatpush1.msra.mxu0 %v6332
        %6340 = vmatprep.subr.mxu0 %v6331
        %6341 = vmatpush1.msra.mxu0 %v6330
        %6342 = vmatprep.subr.mxu0 %v6329
        %6343 = vmatpush1.msra.mxu0 %v6328
        %6344 = vmatprep.subr.mxu0 %v6327
        %6345 = vmatpush1.msra.mxu0 %v6326
        %6346 = vmatprep.subr.mxu0 %v6325
        %6347 = vmatpush1.msra.mxu0 %v6324
        %6348 = vmatprep.subr.mxu0 %v6323
        %6349 = vmatpush1.msra.mxu0 %v6322
        %6350 = vmatprep.subr.mxu0 %v6321
        %6351 = vmatpush1.msra.mxu0 %v6320
        %6352 = vmatprep.subr.mxu0 %v6319
        %6353 = vmatpush1.msra.mxu0 %v6318
        %6354 = vmatprep.subr.mxu0 %v6317
        %6355 = vmatpush1.msra.mxu0 %v6316
        %6356 = vmatprep.subr.mxu0 %v6315
        %6357 = vmatpush1.msra.mxu0 %v6314
        %6358 = vmatprep.subr.mxu0 %v6313
        %6359 = vmatpush1.msra.mxu0 %v6312
        %6360 = vmatprep.subr.mxu0 %v6311
        %6361 = vmatpush1.msra.mxu0 %v6310
        %6362 = vmatprep.subr.mxu0 %v6309
        %6363 = vmatpush1.msra.mxu0 %v6308
        %6364 = vmatprep.subr.mxu0 %v6307
        %6365 = vmatpush1.msra.mxu0 %v6306
        %6366 = vmatprep.subr.mxu0 %v6305
        %6367 = vmatpush1.msra.mxu0 %v6304
        %6368 = vmatprep.subr.mxu0 0.0
        %6369 = vmatpush2.msra.mxu0 0.0
        %6370 = vmatprep.subr.mxu0 0.0
        %6371 = vmatpush2.msra.mxu0 0.0
        %6372 = vmatprep.subr.mxu0 0.0
        %6373 = vmatpush2.msra.mxu0 0.0
        %6374 = vmatprep.subr.mxu0 0.0
        %6375 = vmatpush2.msra.mxu0 0.0
        %6376 = vmatprep.subr.mxu0 0.0
        %6377 = vmatpush2.msra.mxu0 0.0
        %6378 = vmatprep.subr.mxu0 0.0
        %6379 = vmatpush2.msra.mxu0 0.0
        %6380 = vmatprep.subr.mxu0 0.0
        %6381 = vmatpush2.msra.mxu0 0.0
        %6382 = vmatprep.subr.mxu0 0.0
        %6383 = vmatpush2.msra.mxu0 0.0
        %6384 = vmatprep.subr.mxu0 0.0
        %6385 = vmatpush2.msra.mxu0 0.0
        %6386 = vmatprep.subr.mxu0 0.0
        %6387 = vmatpush2.msra.mxu0 0.0
        %6388 = vmatprep.subr.mxu0 0.0
        %6389 = vmatpush2.msra.mxu0 0.0
        %6390 = vmatprep.subr.mxu0 0.0
        %6391 = vmatpush2.msra.mxu0 0.0
        %6392 = vmatprep.subr.mxu0 0.0
        %6393 = vmatpush2.msra.mxu0 0.0
        %6394 = vmatprep.subr.mxu0 0.0
        %6395 = vmatpush2.msra.mxu0 0.0
        %6396 = vmatprep.subr.mxu0 0.0
        %6397 = vmatpush2.msra.mxu0 0.0
        %6398 = vmatprep.subr.mxu0 0.0
        %6399 = vmatpush2.msra.mxu0 0.0
        %6400 = vmatprep.mubr.f32.mxu0 0.0
        %6401 = vmatmul.mubr.f32.gmra.mxu0 %v6287
        %v6402 = vpop.f32.mrf.mxu0
        %v6403 = vadd.f32 0.0, %v6402
        %v6404 = vpop.f32.mrf.mxu0
        %v6405 = vadd.f32 0.0, %v6404
        %6406 = vmatprep.mubr.f32.mxu0 0.0
        %6407 = vmatmul.mubr.f32.gmra.mxu0 %v6288
        %v6408 = vpop.f32.mrf.mxu0
        %v6409 = vadd.f32 0.0, %v6408
        %v6410 = vpop.f32.mrf.mxu0
        %v6411 = vadd.f32 0.0, %v6410
        %6412 = vmatprep.mubr.f32.mxu0 0.0
        %6413 = vmatmul.mubr.f32.gmra.mxu0 %v6289
        %v6414 = vpop.f32.mrf.mxu0
        %v6415 = vadd.f32 0.0, %v6414
        %v6416 = vpop.f32.mrf.mxu0
        %v6417 = vadd.f32 0.0, %v6416
        %6418 = vmatprep.mubr.f32.mxu0 0.0
        %6419 = vmatmul.mubr.f32.gmra.mxu0 %v6290
        %v6420 = vpop.f32.mrf.mxu0
        %v6421 = vadd.f32 0.0, %v6420
        %v6422 = vpop.f32.mrf.mxu0
        %v6423 = vadd.f32 0.0, %v6422
        %6424 = vmatprep.mubr.f32.mxu0 0.0
        %6425 = vmatmul.mubr.f32.gmra.mxu0 %v6291
        %v6426 = vpop.f32.mrf.mxu0
        %v6427 = vadd.f32 0.0, %v6426
        %v6428 = vpop.f32.mrf.mxu0
        %v6429 = vadd.f32 0.0, %v6428
        %6430 = vmatprep.mubr.f32.mxu0 0.0
        %6431 = vmatmul.mubr.f32.gmra.mxu0 %v6292
        %v6432 = vpop.f32.mrf.mxu0
        %v6433 = vadd.f32 0.0, %v6432
        %v6434 = vpop.f32.mrf.mxu0
        %v6435 = vadd.f32 0.0, %v6434
        %6436 = vmatprep.mubr.f32.mxu0 0.0
        %6437 = vmatmul.mubr.f32.gmra.mxu0 %v6293
        %v6438 = vpop.f32.mrf.mxu0
        %v6439 = vadd.f32 0.0, %v6438
        %v6440 = vpop.f32.mrf.mxu0
        %v6441 = vadd.f32 0.0, %v6440
        %6442 = vmatprep.mubr.f32.mxu0 0.0
        %6443 = vmatmul.mubr.f32.gmra.mxu0 %v6294
        %v6444 = vpop.f32.mrf.mxu0
        %v6445 = vadd.f32 0.0, %v6444
        %v6446 = vpop.f32.mrf.mxu0
        %v6447 = vadd.f32 0.0, %v6446
        %6448 = vmatprep.mubr.f32.mxu0 0.0
        %6449 = vmatmul.mubr.f32.gmra.mxu0 %v6295
        %v6450 = vpop.f32.mrf.mxu0
        %v6451 = vadd.f32 0.0, %v6450
        %v6452 = vpop.f32.mrf.mxu0
        %v6453 = vadd.f32 0.0, %v6452
        %6454 = vmatprep.mubr.f32.mxu0 0.0
        %6455 = vmatmul.mubr.f32.gmra.mxu0 %v6296
        %v6456 = vpop.f32.mrf.mxu0
        %v6457 = vadd.f32 0.0, %v6456
        %v6458 = vpop.f32.mrf.mxu0
        %v6459 = vadd.f32 0.0, %v6458
        %6460 = vmatprep.mubr.f32.mxu0 0.0
        %6461 = vmatmul.mubr.f32.gmra.mxu0 %v6297
        %v6462 = vpop.f32.mrf.mxu0
        %v6463 = vadd.f32 0.0, %v6462
        %v6464 = vpop.f32.mrf.mxu0
        %v6465 = vadd.f32 0.0, %v6464
        %6466 = vmatprep.mubr.f32.mxu0 0.0
        %6467 = vmatmul.mubr.f32.gmra.mxu0 %v6298
        %v6468 = vpop.f32.mrf.mxu0
        %v6469 = vadd.f32 0.0, %v6468
        %v6470 = vpop.f32.mrf.mxu0
        %v6471 = vadd.f32 0.0, %v6470
        %6472 = vmatprep.mubr.f32.mxu0 0.0
        %6473 = vmatmul.mubr.f32.gmra.mxu0 %v6299
        %v6474 = vpop.f32.mrf.mxu0
        %v6475 = vadd.f32 0.0, %v6474
        %v6476 = vpop.f32.mrf.mxu0
        %v6477 = vadd.f32 0.0, %v6476
        %6478 = vmatprep.mubr.f32.mxu0 0.0
        %6479 = vmatmul.mubr.f32.gmra.mxu0 %v6300
        %v6480 = vpop.f32.mrf.mxu0
        %v6481 = vadd.f32 0.0, %v6480
        %v6482 = vpop.f32.mrf.mxu0
        %v6483 = vadd.f32 0.0, %v6482
        %6484 = vmatprep.mubr.f32.mxu0 0.0
        %6485 = vmatmul.mubr.f32.gmra.mxu0 %v6301
        %v6486 = vpop.f32.mrf.mxu0
        %v6487 = vadd.f32 0.0, %v6486
        %v6488 = vpop.f32.mrf.mxu0
        %v6489 = vadd.f32 0.0, %v6488
        %6490 = vmatprep.mubr.f32.mxu0 0.0
        %6491 = vmatmul.mubr.f32.gmra.mxu0 %v6302
        %v6492 = vpop.f32.mrf.mxu0
        %v6493 = vadd.f32 0.0, %v6492
        %v6494 = vpop.f32.mrf.mxu0
        %v6495 = vadd.f32 0.0, %v6494
        %6496 = vdwg.mxu0
        %v6497 = vadd.f32 %v6193, %v6403
        %v6498 = vadd.f32 %v6195, %v6405
        %v6499 = vadd.f32 %v6199, %v6409
        %v6500 = vadd.f32 %v6201, %v6411
        %v6501 = vadd.f32 %v6205, %v6415
        %v6502 = vadd.f32 %v6207, %v6417
        %v6503 = vadd.f32 %v6211, %v6421
        %v6504 = vadd.f32 %v6213, %v6423
        %v6505 = vadd.f32 %v6217, %v6427
        %v6506 = vadd.f32 %v6219, %v6429
        %v6507 = vadd.f32 %v6223, %v6433
        %v6508 = vadd.f32 %v6225, %v6435
        %v6509 = vadd.f32 %v6229, %v6439
        %v6510 = vadd.f32 %v6231, %v6441
        %v6511 = vadd.f32 %v6235, %v6445
        %v6512 = vadd.f32 %v6237, %v6447
        %v6513 = vadd.f32 %v6241, %v6451
        %v6514 = vadd.f32 %v6243, %v6453
        %v6515 = vadd.f32 %v6247, %v6457
        %v6516 = vadd.f32 %v6249, %v6459
        %v6517 = vadd.f32 %v6253, %v6463
        %v6518 = vadd.f32 %v6255, %v6465
        %v6519 = vadd.f32 %v6259, %v6469
        %v6520 = vadd.f32 %v6261, %v6471
        %v6521 = vadd.f32 %v6265, %v6475
        %v6522 = vadd.f32 %v6267, %v6477
        %v6523 = vadd.f32 %v6271, %v6481
        %v6524 = vadd.f32 %v6273, %v6483
        %v6525 = vadd.f32 %v6277, %v6487
        %v6526 = vadd.f32 %v6279, %v6489
        %v6527 = vadd.f32 %v6283, %v6493
        %v6528 = vadd.f32 %v6285, %v6495
        %v6529 = vld [vmem:[%s341] sm:$0xff]
        %v6530 = vld [vmem:[%s341 + $0x8] sm:$0xff]
        %v6531 = vld [vmem:[%s341 + $0x20] sm:$0xff]
        %v6532 = vld [vmem:[%s341 + $0x28] sm:$0xff]
        %v6533 = vld [vmem:[%s341 + $0x40] sm:$0xff]
        %v6534 = vld [vmem:[%s341 + $0x48] sm:$0xff]
        %v6535 = vld [vmem:[%s341 + $0x60] sm:$0xff]
        %v6536 = vld [vmem:[%s341 + $0x68] sm:$0xff]
        %v6537 = vld [vmem:[%s341 + $0x80] sm:$0xff]
        %v6538 = vld [vmem:[%s341 + $0x88] sm:$0xff]
        %v6539 = vld [vmem:[%s341 + $0xa0] sm:$0xff]
        %v6540 = vld [vmem:[%s341 + $0xa8] sm:$0xff]
        %v6541 = vld [vmem:[%s341 + $0xc0] sm:$0xff]
        %v6542 = vld [vmem:[%s341 + $0xc8] sm:$0xff]
        %v6543 = vld [vmem:[%s341 + $0xe0] sm:$0xff]
        %v6544 = vld [vmem:[%s341 + $0xe8] sm:$0xff]
        %s6545 = scalar_lea.vmem %s2, 5376
        %v6546 = vld [vmem:[%s6545] sm:$0xff]
        %v6547 = vld [vmem:[%s6545 + $0x8] sm:$0xff]
        %v6548 = vld [vmem:[%s6545 + $0x10] sm:$0xff]
        %v6549 = vld [vmem:[%s6545 + $0x18] sm:$0xff]
        %v6550 = vld [vmem:[%s6545 + $0x20] sm:$0xff]
        %v6551 = vld [vmem:[%s6545 + $0x28] sm:$0xff]
        %v6552 = vld [vmem:[%s6545 + $0x30] sm:$0xff]
        %v6553 = vld [vmem:[%s6545 + $0x38] sm:$0xff]
        %v6554 = vld [vmem:[%s6545 + $0x40] sm:$0xff]
        %v6555 = vld [vmem:[%s6545 + $0x48] sm:$0xff]
        %v6556 = vld [vmem:[%s6545 + $0x50] sm:$0xff]
        %v6557 = vld [vmem:[%s6545 + $0x58] sm:$0xff]
        %v6558 = vld [vmem:[%s6545 + $0x60] sm:$0xff]
        %v6559 = vld [vmem:[%s6545 + $0x68] sm:$0xff]
        %v6560 = vld [vmem:[%s6545 + $0x70] sm:$0xff]
        %v6561 = vld [vmem:[%s6545 + $0x78] sm:$0xff]
        %v6562 = vld [vmem:[%s6545 + $0x80] sm:$0xff]
        %v6563 = vld [vmem:[%s6545 + $0x88] sm:$0xff]
        %v6564 = vld [vmem:[%s6545 + $0x90] sm:$0xff]
        %v6565 = vld [vmem:[%s6545 + $0x98] sm:$0xff]
        %v6566 = vld [vmem:[%s6545 + $0xa0] sm:$0xff]
        %v6567 = vld [vmem:[%s6545 + $0xa8] sm:$0xff]
        %v6568 = vld [vmem:[%s6545 + $0xb0] sm:$0xff]
        %v6569 = vld [vmem:[%s6545 + $0xb8] sm:$0xff]
        %v6570 = vld [vmem:[%s6545 + $0xc0] sm:$0xff]
        %v6571 = vld [vmem:[%s6545 + $0xc8] sm:$0xff]
        %v6572 = vld [vmem:[%s6545 + $0xd0] sm:$0xff]
        %v6573 = vld [vmem:[%s6545 + $0xd8] sm:$0xff]
        %v6574 = vld [vmem:[%s6545 + $0xe0] sm:$0xff]
        %v6575 = vld [vmem:[%s6545 + $0xe8] sm:$0xff]
        %v6576 = vld [vmem:[%s6545 + $0xf0] sm:$0xff]
        %v6577 = vld [vmem:[%s6545 + $0xf8] sm:$0xff]
        %6578 = vmatprep.subr.mxu0 %v6577
        %6579 = vmatpush1.msra.mxu0 %v6576
        %6580 = vmatprep.subr.mxu0 %v6575
        %6581 = vmatpush1.msra.mxu0 %v6574
        %6582 = vmatprep.subr.mxu0 %v6573
        %6583 = vmatpush1.msra.mxu0 %v6572
        %6584 = vmatprep.subr.mxu0 %v6571
        %6585 = vmatpush1.msra.mxu0 %v6570
        %6586 = vmatprep.subr.mxu0 %v6569
        %6587 = vmatpush1.msra.mxu0 %v6568
        %6588 = vmatprep.subr.mxu0 %v6567
        %6589 = vmatpush1.msra.mxu0 %v6566
        %6590 = vmatprep.subr.mxu0 %v6565
        %6591 = vmatpush1.msra.mxu0 %v6564
        %6592 = vmatprep.subr.mxu0 %v6563
        %6593 = vmatpush1.msra.mxu0 %v6562
        %6594 = vmatprep.subr.mxu0 %v6561
        %6595 = vmatpush1.msra.mxu0 %v6560
        %6596 = vmatprep.subr.mxu0 %v6559
        %6597 = vmatpush1.msra.mxu0 %v6558
        %6598 = vmatprep.subr.mxu0 %v6557
        %6599 = vmatpush1.msra.mxu0 %v6556
        %6600 = vmatprep.subr.mxu0 %v6555
        %6601 = vmatpush1.msra.mxu0 %v6554
        %6602 = vmatprep.subr.mxu0 %v6553
        %6603 = vmatpush1.msra.mxu0 %v6552
        %6604 = vmatprep.subr.mxu0 %v6551
        %6605 = vmatpush1.msra.mxu0 %v6550
        %6606 = vmatprep.subr.mxu0 %v6549
        %6607 = vmatpush1.msra.mxu0 %v6548
        %6608 = vmatprep.subr.mxu0 %v6547
        %6609 = vmatpush1.msra.mxu0 %v6546
        %6610 = vmatprep.subr.mxu0 0.0
        %6611 = vmatpush2.msra.mxu0 0.0
        %6612 = vmatprep.subr.mxu0 0.0
        %6613 = vmatpush2.msra.mxu0 0.0
        %6614 = vmatprep.subr.mxu0 0.0
        %6615 = vmatpush2.msra.mxu0 0.0
        %6616 = vmatprep.subr.mxu0 0.0
        %6617 = vmatpush2.msra.mxu0 0.0
        %6618 = vmatprep.subr.mxu0 0.0
        %6619 = vmatpush2.msra.mxu0 0.0
        %6620 = vmatprep.subr.mxu0 0.0
        %6621 = vmatpush2.msra.mxu0 0.0
        %6622 = vmatprep.subr.mxu0 0.0
        %6623 = vmatpush2.msra.mxu0 0.0
        %6624 = vmatprep.subr.mxu0 0.0
        %6625 = vmatpush2.msra.mxu0 0.0
        %6626 = vmatprep.subr.mxu0 0.0
        %6627 = vmatpush2.msra.mxu0 0.0
        %6628 = vmatprep.subr.mxu0 0.0
        %6629 = vmatpush2.msra.mxu0 0.0
        %6630 = vmatprep.subr.mxu0 0.0
        %6631 = vmatpush2.msra.mxu0 0.0
        %6632 = vmatprep.subr.mxu0 0.0
        %6633 = vmatpush2.msra.mxu0 0.0
        %6634 = vmatprep.subr.mxu0 0.0
        %6635 = vmatpush2.msra.mxu0 0.0
        %6636 = vmatprep.subr.mxu0 0.0
        %6637 = vmatpush2.msra.mxu0 0.0
        %6638 = vmatprep.subr.mxu0 0.0
        %6639 = vmatpush2.msra.mxu0 0.0
        %6640 = vmatprep.subr.mxu0 0.0
        %6641 = vmatpush2.msra.mxu0 0.0
        %6642 = vmatprep.mubr.f32.mxu0 0.0
        %6643 = vmatmul.mubr.f32.gmra.mxu0 %v6529
        %v6644 = vpop.f32.mrf.mxu0
        %v6645 = vadd.f32 0.0, %v6644
        %v6646 = vpop.f32.mrf.mxu0
        %v6647 = vadd.f32 0.0, %v6646
        %6648 = vmatprep.mubr.f32.mxu0 0.0
        %6649 = vmatmul.mubr.f32.gmra.mxu0 %v6530
        %v6650 = vpop.f32.mrf.mxu0
        %v6651 = vadd.f32 0.0, %v6650
        %v6652 = vpop.f32.mrf.mxu0
        %v6653 = vadd.f32 0.0, %v6652
        %6654 = vmatprep.mubr.f32.mxu0 0.0
        %6655 = vmatmul.mubr.f32.gmra.mxu0 %v6531
        %v6656 = vpop.f32.mrf.mxu0
        %v6657 = vadd.f32 0.0, %v6656
        %v6658 = vpop.f32.mrf.mxu0
        %v6659 = vadd.f32 0.0, %v6658
        %6660 = vmatprep.mubr.f32.mxu0 0.0
        %6661 = vmatmul.mubr.f32.gmra.mxu0 %v6532
        %v6662 = vpop.f32.mrf.mxu0
        %v6663 = vadd.f32 0.0, %v6662
        %v6664 = vpop.f32.mrf.mxu0
        %v6665 = vadd.f32 0.0, %v6664
        %6666 = vmatprep.mubr.f32.mxu0 0.0
        %6667 = vmatmul.mubr.f32.gmra.mxu0 %v6533
        %v6668 = vpop.f32.mrf.mxu0
        %v6669 = vadd.f32 0.0, %v6668
        %v6670 = vpop.f32.mrf.mxu0
        %v6671 = vadd.f32 0.0, %v6670
        %6672 = vmatprep.mubr.f32.mxu0 0.0
        %6673 = vmatmul.mubr.f32.gmra.mxu0 %v6534
        %v6674 = vpop.f32.mrf.mxu0
        %v6675 = vadd.f32 0.0, %v6674
        %v6676 = vpop.f32.mrf.mxu0
        %v6677 = vadd.f32 0.0, %v6676
        %6678 = vmatprep.mubr.f32.mxu0 0.0
        %6679 = vmatmul.mubr.f32.gmra.mxu0 %v6535
        %v6680 = vpop.f32.mrf.mxu0
        %v6681 = vadd.f32 0.0, %v6680
        %v6682 = vpop.f32.mrf.mxu0
        %v6683 = vadd.f32 0.0, %v6682
        %6684 = vmatprep.mubr.f32.mxu0 0.0
        %6685 = vmatmul.mubr.f32.gmra.mxu0 %v6536
        %v6686 = vpop.f32.mrf.mxu0
        %v6687 = vadd.f32 0.0, %v6686
        %v6688 = vpop.f32.mrf.mxu0
        %v6689 = vadd.f32 0.0, %v6688
        %6690 = vmatprep.mubr.f32.mxu0 0.0
        %6691 = vmatmul.mubr.f32.gmra.mxu0 %v6537
        %v6692 = vpop.f32.mrf.mxu0
        %v6693 = vadd.f32 0.0, %v6692
        %v6694 = vpop.f32.mrf.mxu0
        %v6695 = vadd.f32 0.0, %v6694
        %6696 = vmatprep.mubr.f32.mxu0 0.0
        %6697 = vmatmul.mubr.f32.gmra.mxu0 %v6538
        %v6698 = vpop.f32.mrf.mxu0
        %v6699 = vadd.f32 0.0, %v6698
        %v6700 = vpop.f32.mrf.mxu0
        %v6701 = vadd.f32 0.0, %v6700
        %6702 = vmatprep.mubr.f32.mxu0 0.0
        %6703 = vmatmul.mubr.f32.gmra.mxu0 %v6539
        %v6704 = vpop.f32.mrf.mxu0
        %v6705 = vadd.f32 0.0, %v6704
        %v6706 = vpop.f32.mrf.mxu0
        %v6707 = vadd.f32 0.0, %v6706
        %6708 = vmatprep.mubr.f32.mxu0 0.0
        %6709 = vmatmul.mubr.f32.gmra.mxu0 %v6540
        %v6710 = vpop.f32.mrf.mxu0
        %v6711 = vadd.f32 0.0, %v6710
        %v6712 = vpop.f32.mrf.mxu0
        %v6713 = vadd.f32 0.0, %v6712
        %6714 = vmatprep.mubr.f32.mxu0 0.0
        %6715 = vmatmul.mubr.f32.gmra.mxu0 %v6541
        %v6716 = vpop.f32.mrf.mxu0
        %v6717 = vadd.f32 0.0, %v6716
        %v6718 = vpop.f32.mrf.mxu0
        %v6719 = vadd.f32 0.0, %v6718
        %6720 = vmatprep.mubr.f32.mxu0 0.0
        %6721 = vmatmul.mubr.f32.gmra.mxu0 %v6542
        %v6722 = vpop.f32.mrf.mxu0
        %v6723 = vadd.f32 0.0, %v6722
        %v6724 = vpop.f32.mrf.mxu0
        %v6725 = vadd.f32 0.0, %v6724
        %6726 = vmatprep.mubr.f32.mxu0 0.0
        %6727 = vmatmul.mubr.f32.gmra.mxu0 %v6543
        %v6728 = vpop.f32.mrf.mxu0
        %v6729 = vadd.f32 0.0, %v6728
        %v6730 = vpop.f32.mrf.mxu0
        %v6731 = vadd.f32 0.0, %v6730
        %6732 = vmatprep.mubr.f32.mxu0 0.0
        %6733 = vmatmul.mubr.f32.gmra.mxu0 %v6544
        %v6734 = vpop.f32.mrf.mxu0
        %v6735 = vadd.f32 0.0, %v6734
        %v6736 = vpop.f32.mrf.mxu0
        %v6737 = vadd.f32 0.0, %v6736
        %6738 = vdwg.mxu0
        %v6739 = vadd.f32 %v6497, %v6645
        %v6740 = vadd.f32 %v6498, %v6647
        %v6741 = vadd.f32 %v6499, %v6651
        %v6742 = vadd.f32 %v6500, %v6653
        %v6743 = vadd.f32 %v6501, %v6657
        %v6744 = vadd.f32 %v6502, %v6659
        %v6745 = vadd.f32 %v6503, %v6663
        %v6746 = vadd.f32 %v6504, %v6665
        %v6747 = vadd.f32 %v6505, %v6669
        %v6748 = vadd.f32 %v6506, %v6671
        %v6749 = vadd.f32 %v6507, %v6675
        %v6750 = vadd.f32 %v6508, %v6677
        %v6751 = vadd.f32 %v6509, %v6681
        %v6752 = vadd.f32 %v6510, %v6683
        %v6753 = vadd.f32 %v6511, %v6687
        %v6754 = vadd.f32 %v6512, %v6689
        %v6755 = vadd.f32 %v6513, %v6693
        %v6756 = vadd.f32 %v6514, %v6695
        %v6757 = vadd.f32 %v6515, %v6699
        %v6758 = vadd.f32 %v6516, %v6701
        %v6759 = vadd.f32 %v6517, %v6705
        %v6760 = vadd.f32 %v6518, %v6707
        %v6761 = vadd.f32 %v6519, %v6711
        %v6762 = vadd.f32 %v6520, %v6713
        %v6763 = vadd.f32 %v6521, %v6717
        %v6764 = vadd.f32 %v6522, %v6719
        %v6765 = vadd.f32 %v6523, %v6723
        %v6766 = vadd.f32 %v6524, %v6725
        %v6767 = vadd.f32 %v6525, %v6729
        %v6768 = vadd.f32 %v6526, %v6731
        %v6769 = vadd.f32 %v6527, %v6735
        %v6770 = vadd.f32 %v6528, %v6737
        %s6771 = scalar_lea.vmem %s2, 5632
        %v6772 = vld [vmem:[%s6771] sm:$0xff]
        %v6773 = vld [vmem:[%s6771 + $0x8] sm:$0xff]
        %v6774 = vld [vmem:[%s6771 + $0x10] sm:$0xff]
        %v6775 = vld [vmem:[%s6771 + $0x18] sm:$0xff]
        %v6776 = vld [vmem:[%s6771 + $0x20] sm:$0xff]
        %v6777 = vld [vmem:[%s6771 + $0x28] sm:$0xff]
        %v6778 = vld [vmem:[%s6771 + $0x30] sm:$0xff]
        %v6779 = vld [vmem:[%s6771 + $0x38] sm:$0xff]
        %v6780 = vld [vmem:[%s6771 + $0x40] sm:$0xff]
        %v6781 = vld [vmem:[%s6771 + $0x48] sm:$0xff]
        %v6782 = vld [vmem:[%s6771 + $0x50] sm:$0xff]
        %v6783 = vld [vmem:[%s6771 + $0x58] sm:$0xff]
        %v6784 = vld [vmem:[%s6771 + $0x60] sm:$0xff]
        %v6785 = vld [vmem:[%s6771 + $0x68] sm:$0xff]
        %v6786 = vld [vmem:[%s6771 + $0x70] sm:$0xff]
        %v6787 = vld [vmem:[%s6771 + $0x78] sm:$0xff]
        %v6788 = vld [vmem:[%s6771 + $0x80] sm:$0xff]
        %v6789 = vld [vmem:[%s6771 + $0x88] sm:$0xff]
        %v6790 = vld [vmem:[%s6771 + $0x90] sm:$0xff]
        %v6791 = vld [vmem:[%s6771 + $0x98] sm:$0xff]
        %v6792 = vld [vmem:[%s6771 + $0xa0] sm:$0xff]
        %v6793 = vld [vmem:[%s6771 + $0xa8] sm:$0xff]
        %v6794 = vld [vmem:[%s6771 + $0xb0] sm:$0xff]
        %v6795 = vld [vmem:[%s6771 + $0xb8] sm:$0xff]
        %v6796 = vld [vmem:[%s6771 + $0xc0] sm:$0xff]
        %v6797 = vld [vmem:[%s6771 + $0xc8] sm:$0xff]
        %v6798 = vld [vmem:[%s6771 + $0xd0] sm:$0xff]
        %v6799 = vld [vmem:[%s6771 + $0xd8] sm:$0xff]
        %v6800 = vld [vmem:[%s6771 + $0xe0] sm:$0xff]
        %v6801 = vld [vmem:[%s6771 + $0xe8] sm:$0xff]
        %v6802 = vld [vmem:[%s6771 + $0xf0] sm:$0xff]
        %v6803 = vld [vmem:[%s6771 + $0xf8] sm:$0xff]
        %6804 = vmatprep.subr.mxu0 %v6803
        %6805 = vmatpush1.msra.mxu0 %v6802
        %6806 = vmatprep.subr.mxu0 %v6801
        %6807 = vmatpush1.msra.mxu0 %v6800
        %6808 = vmatprep.subr.mxu0 %v6799
        %6809 = vmatpush1.msra.mxu0 %v6798
        %6810 = vmatprep.subr.mxu0 %v6797
        %6811 = vmatpush1.msra.mxu0 %v6796
        %6812 = vmatprep.subr.mxu0 %v6795
        %6813 = vmatpush1.msra.mxu0 %v6794
        %6814 = vmatprep.subr.mxu0 %v6793
        %6815 = vmatpush1.msra.mxu0 %v6792
        %6816 = vmatprep.subr.mxu0 %v6791
        %6817 = vmatpush1.msra.mxu0 %v6790
        %6818 = vmatprep.subr.mxu0 %v6789
        %6819 = vmatpush1.msra.mxu0 %v6788
        %6820 = vmatprep.subr.mxu0 %v6787
        %6821 = vmatpush1.msra.mxu0 %v6786
        %6822 = vmatprep.subr.mxu0 %v6785
        %6823 = vmatpush1.msra.mxu0 %v6784
        %6824 = vmatprep.subr.mxu0 %v6783
        %6825 = vmatpush1.msra.mxu0 %v6782
        %6826 = vmatprep.subr.mxu0 %v6781
        %6827 = vmatpush1.msra.mxu0 %v6780
        %6828 = vmatprep.subr.mxu0 %v6779
        %6829 = vmatpush1.msra.mxu0 %v6778
        %6830 = vmatprep.subr.mxu0 %v6777
        %6831 = vmatpush1.msra.mxu0 %v6776
        %6832 = vmatprep.subr.mxu0 %v6775
        %6833 = vmatpush1.msra.mxu0 %v6774
        %6834 = vmatprep.subr.mxu0 %v6773
        %6835 = vmatpush1.msra.mxu0 %v6772
        %6836 = vmatprep.subr.mxu0 0.0
        %6837 = vmatpush2.msra.mxu0 0.0
        %6838 = vmatprep.subr.mxu0 0.0
        %6839 = vmatpush2.msra.mxu0 0.0
        %6840 = vmatprep.subr.mxu0 0.0
        %6841 = vmatpush2.msra.mxu0 0.0
        %6842 = vmatprep.subr.mxu0 0.0
        %6843 = vmatpush2.msra.mxu0 0.0
        %6844 = vmatprep.subr.mxu0 0.0
        %6845 = vmatpush2.msra.mxu0 0.0
        %6846 = vmatprep.subr.mxu0 0.0
        %6847 = vmatpush2.msra.mxu0 0.0
        %6848 = vmatprep.subr.mxu0 0.0
        %6849 = vmatpush2.msra.mxu0 0.0
        %6850 = vmatprep.subr.mxu0 0.0
        %6851 = vmatpush2.msra.mxu0 0.0
        %6852 = vmatprep.subr.mxu0 0.0
        %6853 = vmatpush2.msra.mxu0 0.0
        %6854 = vmatprep.subr.mxu0 0.0
        %6855 = vmatpush2.msra.mxu0 0.0
        %6856 = vmatprep.subr.mxu0 0.0
        %6857 = vmatpush2.msra.mxu0 0.0
        %6858 = vmatprep.subr.mxu0 0.0
        %6859 = vmatpush2.msra.mxu0 0.0
        %6860 = vmatprep.subr.mxu0 0.0
        %6861 = vmatpush2.msra.mxu0 0.0
        %6862 = vmatprep.subr.mxu0 0.0
        %6863 = vmatpush2.msra.mxu0 0.0
        %6864 = vmatprep.subr.mxu0 0.0
        %6865 = vmatpush2.msra.mxu0 0.0
        %6866 = vmatprep.subr.mxu0 0.0
        %6867 = vmatpush2.msra.mxu0 0.0
        %6868 = vmatprep.mubr.f32.mxu0 0.0
        %6869 = vmatmul.mubr.f32.gmra.mxu0 %v342
        %v6870 = vpop.f32.mrf.mxu0
        %v6871 = vadd.f32 0.0, %v6870
        %v6872 = vpop.f32.mrf.mxu0
        %v6873 = vadd.f32 0.0, %v6872
        %6874 = vmatprep.mubr.f32.mxu0 0.0
        %6875 = vmatmul.mubr.f32.gmra.mxu0 %v343
        %v6876 = vpop.f32.mrf.mxu0
        %v6877 = vadd.f32 0.0, %v6876
        %v6878 = vpop.f32.mrf.mxu0
        %v6879 = vadd.f32 0.0, %v6878
        %6880 = vmatprep.mubr.f32.mxu0 0.0
        %6881 = vmatmul.mubr.f32.gmra.mxu0 %v344
        %v6882 = vpop.f32.mrf.mxu0
        %v6883 = vadd.f32 0.0, %v6882
        %v6884 = vpop.f32.mrf.mxu0
        %v6885 = vadd.f32 0.0, %v6884
        %6886 = vmatprep.mubr.f32.mxu0 0.0
        %6887 = vmatmul.mubr.f32.gmra.mxu0 %v345
        %v6888 = vpop.f32.mrf.mxu0
        %v6889 = vadd.f32 0.0, %v6888
        %v6890 = vpop.f32.mrf.mxu0
        %v6891 = vadd.f32 0.0, %v6890
        %6892 = vmatprep.mubr.f32.mxu0 0.0
        %6893 = vmatmul.mubr.f32.gmra.mxu0 %v346
        %v6894 = vpop.f32.mrf.mxu0
        %v6895 = vadd.f32 0.0, %v6894
        %v6896 = vpop.f32.mrf.mxu0
        %v6897 = vadd.f32 0.0, %v6896
        %6898 = vmatprep.mubr.f32.mxu0 0.0
        %6899 = vmatmul.mubr.f32.gmra.mxu0 %v347
        %v6900 = vpop.f32.mrf.mxu0
        %v6901 = vadd.f32 0.0, %v6900
        %v6902 = vpop.f32.mrf.mxu0
        %v6903 = vadd.f32 0.0, %v6902
        %6904 = vmatprep.mubr.f32.mxu0 0.0
        %6905 = vmatmul.mubr.f32.gmra.mxu0 %v348
        %v6906 = vpop.f32.mrf.mxu0
        %v6907 = vadd.f32 0.0, %v6906
        %v6908 = vpop.f32.mrf.mxu0
        %v6909 = vadd.f32 0.0, %v6908
        %6910 = vmatprep.mubr.f32.mxu0 0.0
        %6911 = vmatmul.mubr.f32.gmra.mxu0 %v349
        %v6912 = vpop.f32.mrf.mxu0
        %v6913 = vadd.f32 0.0, %v6912
        %v6914 = vpop.f32.mrf.mxu0
        %v6915 = vadd.f32 0.0, %v6914
        %6916 = vmatprep.mubr.f32.mxu0 0.0
        %6917 = vmatmul.mubr.f32.gmra.mxu0 %v350
        %v6918 = vpop.f32.mrf.mxu0
        %v6919 = vadd.f32 0.0, %v6918
        %v6920 = vpop.f32.mrf.mxu0
        %v6921 = vadd.f32 0.0, %v6920
        %6922 = vmatprep.mubr.f32.mxu0 0.0
        %6923 = vmatmul.mubr.f32.gmra.mxu0 %v351
        %v6924 = vpop.f32.mrf.mxu0
        %v6925 = vadd.f32 0.0, %v6924
        %v6926 = vpop.f32.mrf.mxu0
        %v6927 = vadd.f32 0.0, %v6926
        %6928 = vmatprep.mubr.f32.mxu0 0.0
        %6929 = vmatmul.mubr.f32.gmra.mxu0 %v352
        %v6930 = vpop.f32.mrf.mxu0
        %v6931 = vadd.f32 0.0, %v6930
        %v6932 = vpop.f32.mrf.mxu0
        %v6933 = vadd.f32 0.0, %v6932
        %6934 = vmatprep.mubr.f32.mxu0 0.0
        %6935 = vmatmul.mubr.f32.gmra.mxu0 %v353
        %v6936 = vpop.f32.mrf.mxu0
        %v6937 = vadd.f32 0.0, %v6936
        %v6938 = vpop.f32.mrf.mxu0
        %v6939 = vadd.f32 0.0, %v6938
        %6940 = vmatprep.mubr.f32.mxu0 0.0
        %6941 = vmatmul.mubr.f32.gmra.mxu0 %v354
        %v6942 = vpop.f32.mrf.mxu0
        %v6943 = vadd.f32 0.0, %v6942
        %v6944 = vpop.f32.mrf.mxu0
        %v6945 = vadd.f32 0.0, %v6944
        %6946 = vmatprep.mubr.f32.mxu0 0.0
        %6947 = vmatmul.mubr.f32.gmra.mxu0 %v355
        %v6948 = vpop.f32.mrf.mxu0
        %v6949 = vadd.f32 0.0, %v6948
        %v6950 = vpop.f32.mrf.mxu0
        %v6951 = vadd.f32 0.0, %v6950
        %6952 = vmatprep.mubr.f32.mxu0 0.0
        %6953 = vmatmul.mubr.f32.gmra.mxu0 %v356
        %v6954 = vpop.f32.mrf.mxu0
        %v6955 = vadd.f32 0.0, %v6954
        %v6956 = vpop.f32.mrf.mxu0
        %v6957 = vadd.f32 0.0, %v6956
        %6958 = vmatprep.mubr.f32.mxu0 0.0
        %6959 = vmatmul.mubr.f32.gmra.mxu0 %v357
        %v6960 = vpop.f32.mrf.mxu0
        %v6961 = vadd.f32 0.0, %v6960
        %v6962 = vpop.f32.mrf.mxu0
        %v6963 = vadd.f32 0.0, %v6962
        %6964 = vdwg.mxu0
        %v6965 = vadd.f32 %v6739, %v6871
        %v6966 = vadd.f32 %v6740, %v6873
        %v6967 = vadd.f32 %v6741, %v6877
        %v6968 = vadd.f32 %v6742, %v6879
        %v6969 = vadd.f32 %v6743, %v6883
        %v6970 = vadd.f32 %v6744, %v6885
        %v6971 = vadd.f32 %v6745, %v6889
        %v6972 = vadd.f32 %v6746, %v6891
        %v6973 = vadd.f32 %v6747, %v6895
        %v6974 = vadd.f32 %v6748, %v6897
        %v6975 = vadd.f32 %v6749, %v6901
        %v6976 = vadd.f32 %v6750, %v6903
        %v6977 = vadd.f32 %v6751, %v6907
        %v6978 = vadd.f32 %v6752, %v6909
        %v6979 = vadd.f32 %v6753, %v6913
        %v6980 = vadd.f32 %v6754, %v6915
        %v6981 = vadd.f32 %v6755, %v6919
        %v6982 = vadd.f32 %v6756, %v6921
        %v6983 = vadd.f32 %v6757, %v6925
        %v6984 = vadd.f32 %v6758, %v6927
        %v6985 = vadd.f32 %v6759, %v6931
        %v6986 = vadd.f32 %v6760, %v6933
        %v6987 = vadd.f32 %v6761, %v6937
        %v6988 = vadd.f32 %v6762, %v6939
        %v6989 = vadd.f32 %v6763, %v6943
        %v6990 = vadd.f32 %v6764, %v6945
        %v6991 = vadd.f32 %v6765, %v6949
        %v6992 = vadd.f32 %v6766, %v6951
        %v6993 = vadd.f32 %v6767, %v6955
        %v6994 = vadd.f32 %v6768, %v6957
        %v6995 = vadd.f32 %v6769, %v6961
        %v6996 = vadd.f32 %v6770, %v6963
        %v6997 = vld [vmem:[%s341 + $0xc] sm:$0xff]
        %v6998 = vld [vmem:[%s341 + $0x14] sm:$0xff]
        %v6999 = vld [vmem:[%s341 + $0x2c] sm:$0xff]
        %v7000 = vld [vmem:[%s341 + $0x34] sm:$0xff]
        %v7001 = vld [vmem:[%s341 + $0x4c] sm:$0xff]
        %v7002 = vld [vmem:[%s341 + $0x54] sm:$0xff]
        %v7003 = vld [vmem:[%s341 + $0x6c] sm:$0xff]
        %v7004 = vld [vmem:[%s341 + $0x74] sm:$0xff]
        %v7005 = vld [vmem:[%s341 + $0x8c] sm:$0xff]
        %v7006 = vld [vmem:[%s341 + $0x94] sm:$0xff]
        %v7007 = vld [vmem:[%s341 + $0xac] sm:$0xff]
        %v7008 = vld [vmem:[%s341 + $0xb4] sm:$0xff]
        %v7009 = vld [vmem:[%s341 + $0xcc] sm:$0xff]
        %v7010 = vld [vmem:[%s341 + $0xd4] sm:$0xff]
        %v7011 = vld [vmem:[%s341 + $0xec] sm:$0xff]
        %v7012 = vld [vmem:[%s341 + $0xf4] sm:$0xff]
        %s7013 = scalar_lea.vmem %s2, 5888
        %v7014 = vld [vmem:[%s7013] sm:$0xff]
        %v7015 = vld [vmem:[%s7013 + $0x8] sm:$0xff]
        %v7016 = vld [vmem:[%s7013 + $0x10] sm:$0xff]
        %v7017 = vld [vmem:[%s7013 + $0x18] sm:$0xff]
        %v7018 = vld [vmem:[%s7013 + $0x20] sm:$0xff]
        %v7019 = vld [vmem:[%s7013 + $0x28] sm:$0xff]
        %v7020 = vld [vmem:[%s7013 + $0x30] sm:$0xff]
        %v7021 = vld [vmem:[%s7013 + $0x38] sm:$0xff]
        %v7022 = vld [vmem:[%s7013 + $0x40] sm:$0xff]
        %v7023 = vld [vmem:[%s7013 + $0x48] sm:$0xff]
        %v7024 = vld [vmem:[%s7013 + $0x50] sm:$0xff]
        %v7025 = vld [vmem:[%s7013 + $0x58] sm:$0xff]
        %v7026 = vld [vmem:[%s7013 + $0x60] sm:$0xff]
        %v7027 = vld [vmem:[%s7013 + $0x68] sm:$0xff]
        %v7028 = vld [vmem:[%s7013 + $0x70] sm:$0xff]
        %v7029 = vld [vmem:[%s7013 + $0x78] sm:$0xff]
        %v7030 = vld [vmem:[%s7013 + $0x80] sm:$0xff]
        %v7031 = vld [vmem:[%s7013 + $0x88] sm:$0xff]
        %v7032 = vld [vmem:[%s7013 + $0x90] sm:$0xff]
        %v7033 = vld [vmem:[%s7013 + $0x98] sm:$0xff]
        %v7034 = vld [vmem:[%s7013 + $0xa0] sm:$0xff]
        %v7035 = vld [vmem:[%s7013 + $0xa8] sm:$0xff]
        %v7036 = vld [vmem:[%s7013 + $0xb0] sm:$0xff]
        %v7037 = vld [vmem:[%s7013 + $0xb8] sm:$0xff]
        %v7038 = vld [vmem:[%s7013 + $0xc0] sm:$0xff]
        %v7039 = vld [vmem:[%s7013 + $0xc8] sm:$0xff]
        %v7040 = vld [vmem:[%s7013 + $0xd0] sm:$0xff]
        %v7041 = vld [vmem:[%s7013 + $0xd8] sm:$0xff]
        %v7042 = vld [vmem:[%s7013 + $0xe0] sm:$0xff]
        %v7043 = vld [vmem:[%s7013 + $0xe8] sm:$0xff]
        %v7044 = vld [vmem:[%s7013 + $0xf0] sm:$0xff]
        %v7045 = vld [vmem:[%s7013 + $0xf8] sm:$0xff]
        %7046 = vmatprep.subr.mxu0 %v7045
        %7047 = vmatpush1.msra.mxu0 %v7044
        %7048 = vmatprep.subr.mxu0 %v7043
        %7049 = vmatpush1.msra.mxu0 %v7042
        %7050 = vmatprep.subr.mxu0 %v7041
        %7051 = vmatpush1.msra.mxu0 %v7040
        %7052 = vmatprep.subr.mxu0 %v7039
        %7053 = vmatpush1.msra.mxu0 %v7038
        %7054 = vmatprep.subr.mxu0 %v7037
        %7055 = vmatpush1.msra.mxu0 %v7036
        %7056 = vmatprep.subr.mxu0 %v7035
        %7057 = vmatpush1.msra.mxu0 %v7034
        %7058 = vmatprep.subr.mxu0 %v7033
        %7059 = vmatpush1.msra.mxu0 %v7032
        %7060 = vmatprep.subr.mxu0 %v7031
        %7061 = vmatpush1.msra.mxu0 %v7030
        %7062 = vmatprep.subr.mxu0 %v7029
        %7063 = vmatpush1.msra.mxu0 %v7028
        %7064 = vmatprep.subr.mxu0 %v7027
        %7065 = vmatpush1.msra.mxu0 %v7026
        %7066 = vmatprep.subr.mxu0 %v7025
        %7067 = vmatpush1.msra.mxu0 %v7024
        %7068 = vmatprep.subr.mxu0 %v7023
        %7069 = vmatpush1.msra.mxu0 %v7022
        %7070 = vmatprep.subr.mxu0 %v7021
        %7071 = vmatpush1.msra.mxu0 %v7020
        %7072 = vmatprep.subr.mxu0 %v7019
        %7073 = vmatpush1.msra.mxu0 %v7018
        %7074 = vmatprep.subr.mxu0 %v7017
        %7075 = vmatpush1.msra.mxu0 %v7016
        %7076 = vmatprep.subr.mxu0 %v7015
        %7077 = vmatpush1.msra.mxu0 %v7014
        %7078 = vmatprep.subr.mxu0 0.0
        %7079 = vmatpush2.msra.mxu0 0.0
        %7080 = vmatprep.subr.mxu0 0.0
        %7081 = vmatpush2.msra.mxu0 0.0
        %7082 = vmatprep.subr.mxu0 0.0
        %7083 = vmatpush2.msra.mxu0 0.0
        %7084 = vmatprep.subr.mxu0 0.0
        %7085 = vmatpush2.msra.mxu0 0.0
        %7086 = vmatprep.subr.mxu0 0.0
        %7087 = vmatpush2.msra.mxu0 0.0
        %7088 = vmatprep.subr.mxu0 0.0
        %7089 = vmatpush2.msra.mxu0 0.0
        %7090 = vmatprep.subr.mxu0 0.0
        %7091 = vmatpush2.msra.mxu0 0.0
        %7092 = vmatprep.subr.mxu0 0.0
        %7093 = vmatpush2.msra.mxu0 0.0
        %7094 = vmatprep.subr.mxu0 0.0
        %7095 = vmatpush2.msra.mxu0 0.0
        %7096 = vmatprep.subr.mxu0 0.0
        %7097 = vmatpush2.msra.mxu0 0.0
        %7098 = vmatprep.subr.mxu0 0.0
        %7099 = vmatpush2.msra.mxu0 0.0
        %7100 = vmatprep.subr.mxu0 0.0
        %7101 = vmatpush2.msra.mxu0 0.0
        %7102 = vmatprep.subr.mxu0 0.0
        %7103 = vmatpush2.msra.mxu0 0.0
        %7104 = vmatprep.subr.mxu0 0.0
        %7105 = vmatpush2.msra.mxu0 0.0
        %7106 = vmatprep.subr.mxu0 0.0
        %7107 = vmatpush2.msra.mxu0 0.0
        %7108 = vmatprep.subr.mxu0 0.0
        %7109 = vmatpush2.msra.mxu0 0.0
        %7110 = vmatprep.mubr.f32.mxu0 0.0
        %7111 = vmatmul.mubr.f32.gmra.mxu0 %v6997
        %v7112 = vpop.f32.mrf.mxu0
        %v7113 = vadd.f32 0.0, %v7112
        %v7114 = vpop.f32.mrf.mxu0
        %v7115 = vadd.f32 0.0, %v7114
        %7116 = vmatprep.mubr.f32.mxu0 0.0
        %7117 = vmatmul.mubr.f32.gmra.mxu0 %v6998
        %v7118 = vpop.f32.mrf.mxu0
        %v7119 = vadd.f32 0.0, %v7118
        %v7120 = vpop.f32.mrf.mxu0
        %v7121 = vadd.f32 0.0, %v7120
        %7122 = vmatprep.mubr.f32.mxu0 0.0
        %7123 = vmatmul.mubr.f32.gmra.mxu0 %v6999
        %v7124 = vpop.f32.mrf.mxu0
        %v7125 = vadd.f32 0.0, %v7124
        %v7126 = vpop.f32.mrf.mxu0
        %v7127 = vadd.f32 0.0, %v7126
        %7128 = vmatprep.mubr.f32.mxu0 0.0
        %7129 = vmatmul.mubr.f32.gmra.mxu0 %v7000
        %v7130 = vpop.f32.mrf.mxu0
        %v7131 = vadd.f32 0.0, %v7130
        %v7132 = vpop.f32.mrf.mxu0
        %v7133 = vadd.f32 0.0, %v7132
        %7134 = vmatprep.mubr.f32.mxu0 0.0
        %7135 = vmatmul.mubr.f32.gmra.mxu0 %v7001
        %v7136 = vpop.f32.mrf.mxu0
        %v7137 = vadd.f32 0.0, %v7136
        %v7138 = vpop.f32.mrf.mxu0
        %v7139 = vadd.f32 0.0, %v7138
        %7140 = vmatprep.mubr.f32.mxu0 0.0
        %7141 = vmatmul.mubr.f32.gmra.mxu0 %v7002
        %v7142 = vpop.f32.mrf.mxu0
        %v7143 = vadd.f32 0.0, %v7142
        %v7144 = vpop.f32.mrf.mxu0
        %v7145 = vadd.f32 0.0, %v7144
        %7146 = vmatprep.mubr.f32.mxu0 0.0
        %7147 = vmatmul.mubr.f32.gmra.mxu0 %v7003
        %v7148 = vpop.f32.mrf.mxu0
        %v7149 = vadd.f32 0.0, %v7148
        %v7150 = vpop.f32.mrf.mxu0
        %v7151 = vadd.f32 0.0, %v7150
        %7152 = vmatprep.mubr.f32.mxu0 0.0
        %7153 = vmatmul.mubr.f32.gmra.mxu0 %v7004
        %v7154 = vpop.f32.mrf.mxu0
        %v7155 = vadd.f32 0.0, %v7154
        %v7156 = vpop.f32.mrf.mxu0
        %v7157 = vadd.f32 0.0, %v7156
        %7158 = vmatprep.mubr.f32.mxu0 0.0
        %7159 = vmatmul.mubr.f32.gmra.mxu0 %v7005
        %v7160 = vpop.f32.mrf.mxu0
        %v7161 = vadd.f32 0.0, %v7160
        %v7162 = vpop.f32.mrf.mxu0
        %v7163 = vadd.f32 0.0, %v7162
        %7164 = vmatprep.mubr.f32.mxu0 0.0
        %7165 = vmatmul.mubr.f32.gmra.mxu0 %v7006
        %v7166 = vpop.f32.mrf.mxu0
        %v7167 = vadd.f32 0.0, %v7166
        %v7168 = vpop.f32.mrf.mxu0
        %v7169 = vadd.f32 0.0, %v7168
        %7170 = vmatprep.mubr.f32.mxu0 0.0
        %7171 = vmatmul.mubr.f32.gmra.mxu0 %v7007
        %v7172 = vpop.f32.mrf.mxu0
        %v7173 = vadd.f32 0.0, %v7172
        %v7174 = vpop.f32.mrf.mxu0
        %v7175 = vadd.f32 0.0, %v7174
        %7176 = vmatprep.mubr.f32.mxu0 0.0
        %7177 = vmatmul.mubr.f32.gmra.mxu0 %v7008
        %v7178 = vpop.f32.mrf.mxu0
        %v7179 = vadd.f32 0.0, %v7178
        %v7180 = vpop.f32.mrf.mxu0
        %v7181 = vadd.f32 0.0, %v7180
        %7182 = vmatprep.mubr.f32.mxu0 0.0
        %7183 = vmatmul.mubr.f32.gmra.mxu0 %v7009
        %v7184 = vpop.f32.mrf.mxu0
        %v7185 = vadd.f32 0.0, %v7184
        %v7186 = vpop.f32.mrf.mxu0
        %v7187 = vadd.f32 0.0, %v7186
        %7188 = vmatprep.mubr.f32.mxu0 0.0
        %7189 = vmatmul.mubr.f32.gmra.mxu0 %v7010
        %v7190 = vpop.f32.mrf.mxu0
        %v7191 = vadd.f32 0.0, %v7190
        %v7192 = vpop.f32.mrf.mxu0
        %v7193 = vadd.f32 0.0, %v7192
        %7194 = vmatprep.mubr.f32.mxu0 0.0
        %7195 = vmatmul.mubr.f32.gmra.mxu0 %v7011
        %v7196 = vpop.f32.mrf.mxu0
        %v7197 = vadd.f32 0.0, %v7196
        %v7198 = vpop.f32.mrf.mxu0
        %v7199 = vadd.f32 0.0, %v7198
        %7200 = vmatprep.mubr.f32.mxu0 0.0
        %7201 = vmatmul.mubr.f32.gmra.mxu0 %v7012
        %v7202 = vpop.f32.mrf.mxu0
        %v7203 = vadd.f32 0.0, %v7202
        %v7204 = vpop.f32.mrf.mxu0
        %v7205 = vadd.f32 0.0, %v7204
        %7206 = vdwg.mxu0
        %v7207 = vadd.f32 %v6965, %v7113
        %v7208 = vadd.f32 %v6966, %v7115
        %v7209 = vadd.f32 %v6967, %v7119
        %v7210 = vadd.f32 %v6968, %v7121
        %v7211 = vadd.f32 %v6969, %v7125
        %v7212 = vadd.f32 %v6970, %v7127
        %v7213 = vadd.f32 %v6971, %v7131
        %v7214 = vadd.f32 %v6972, %v7133
        %v7215 = vadd.f32 %v6973, %v7137
        %v7216 = vadd.f32 %v6974, %v7139
        %v7217 = vadd.f32 %v6975, %v7143
        %v7218 = vadd.f32 %v6976, %v7145
        %v7219 = vadd.f32 %v6977, %v7149
        %v7220 = vadd.f32 %v6978, %v7151
        %v7221 = vadd.f32 %v6979, %v7155
        %v7222 = vadd.f32 %v6980, %v7157
        %v7223 = vadd.f32 %v6981, %v7161
        %v7224 = vadd.f32 %v6982, %v7163
        %v7225 = vadd.f32 %v6983, %v7167
        %v7226 = vadd.f32 %v6984, %v7169
        %v7227 = vadd.f32 %v6985, %v7173
        %v7228 = vadd.f32 %v6986, %v7175
        %v7229 = vadd.f32 %v6987, %v7179
        %v7230 = vadd.f32 %v6988, %v7181
        %v7231 = vadd.f32 %v6989, %v7185
        %v7232 = vadd.f32 %v6990, %v7187
        %v7233 = vadd.f32 %v6991, %v7191
        %v7234 = vadd.f32 %v6992, %v7193
        %v7235 = vadd.f32 %v6993, %v7197
        %v7236 = vadd.f32 %v6994, %v7199
        %v7237 = vadd.f32 %v6995, %v7203
        %v7238 = vadd.f32 %v6996, %v7205
        %s7239 = sadd.s32 %s336, 12
        %s7240 = smul.u32 %s7239, 32
        %s7241 = scalar_lea.vmem %s330, %s7240
        %v7242 = vld [vmem:[%s7241] sm:$0xff]
        %v7243 = vld [vmem:[%s7241 + $0x8] sm:$0xff]
        %v7244 = vld [vmem:[%s7241 + $0x20] sm:$0xff]
        %v7245 = vld [vmem:[%s7241 + $0x28] sm:$0xff]
        %v7246 = vld [vmem:[%s7241 + $0x40] sm:$0xff]
        %v7247 = vld [vmem:[%s7241 + $0x48] sm:$0xff]
        %v7248 = vld [vmem:[%s7241 + $0x60] sm:$0xff]
        %v7249 = vld [vmem:[%s7241 + $0x68] sm:$0xff]
        %v7250 = vld [vmem:[%s7241 + $0x80] sm:$0xff]
        %v7251 = vld [vmem:[%s7241 + $0x88] sm:$0xff]
        %v7252 = vld [vmem:[%s7241 + $0xa0] sm:$0xff]
        %v7253 = vld [vmem:[%s7241 + $0xa8] sm:$0xff]
        %v7254 = vld [vmem:[%s7241 + $0xc0] sm:$0xff]
        %v7255 = vld [vmem:[%s7241 + $0xc8] sm:$0xff]
        %v7256 = vld [vmem:[%s7241 + $0xe0] sm:$0xff]
        %v7257 = vld [vmem:[%s7241 + $0xe8] sm:$0xff]
        %s7258 = scalar_lea.vmem %s2, 6144
        %v7259 = vld [vmem:[%s7258] sm:$0xff]
        %v7260 = vld [vmem:[%s7258 + $0x8] sm:$0xff]
        %v7261 = vld [vmem:[%s7258 + $0x10] sm:$0xff]
        %v7262 = vld [vmem:[%s7258 + $0x18] sm:$0xff]
        %v7263 = vld [vmem:[%s7258 + $0x20] sm:$0xff]
        %v7264 = vld [vmem:[%s7258 + $0x28] sm:$0xff]
        %v7265 = vld [vmem:[%s7258 + $0x30] sm:$0xff]
        %v7266 = vld [vmem:[%s7258 + $0x38] sm:$0xff]
        %v7267 = vld [vmem:[%s7258 + $0x40] sm:$0xff]
        %v7268 = vld [vmem:[%s7258 + $0x48] sm:$0xff]
        %v7269 = vld [vmem:[%s7258 + $0x50] sm:$0xff]
        %v7270 = vld [vmem:[%s7258 + $0x58] sm:$0xff]
        %v7271 = vld [vmem:[%s7258 + $0x60] sm:$0xff]
        %v7272 = vld [vmem:[%s7258 + $0x68] sm:$0xff]
        %v7273 = vld [vmem:[%s7258 + $0x70] sm:$0xff]
        %v7274 = vld [vmem:[%s7258 + $0x78] sm:$0xff]
        %v7275 = vld [vmem:[%s7258 + $0x80] sm:$0xff]
        %v7276 = vld [vmem:[%s7258 + $0x88] sm:$0xff]
        %v7277 = vld [vmem:[%s7258 + $0x90] sm:$0xff]
        %v7278 = vld [vmem:[%s7258 + $0x98] sm:$0xff]
        %v7279 = vld [vmem:[%s7258 + $0xa0] sm:$0xff]
        %v7280 = vld [vmem:[%s7258 + $0xa8] sm:$0xff]
        %v7281 = vld [vmem:[%s7258 + $0xb0] sm:$0xff]
        %v7282 = vld [vmem:[%s7258 + $0xb8] sm:$0xff]
        %v7283 = vld [vmem:[%s7258 + $0xc0] sm:$0xff]
        %v7284 = vld [vmem:[%s7258 + $0xc8] sm:$0xff]
        %v7285 = vld [vmem:[%s7258 + $0xd0] sm:$0xff]
        %v7286 = vld [vmem:[%s7258 + $0xd8] sm:$0xff]
        %v7287 = vld [vmem:[%s7258 + $0xe0] sm:$0xff]
        %v7288 = vld [vmem:[%s7258 + $0xe8] sm:$0xff]
        %v7289 = vld [vmem:[%s7258 + $0xf0] sm:$0xff]
        %v7290 = vld [vmem:[%s7258 + $0xf8] sm:$0xff]
        %7291 = vmatprep.subr.mxu0 %v7290
        %7292 = vmatpush1.msra.mxu0 %v7289
        %7293 = vmatprep.subr.mxu0 %v7288
        %7294 = vmatpush1.msra.mxu0 %v7287
        %7295 = vmatprep.subr.mxu0 %v7286
        %7296 = vmatpush1.msra.mxu0 %v7285
        %7297 = vmatprep.subr.mxu0 %v7284
        %7298 = vmatpush1.msra.mxu0 %v7283
        %7299 = vmatprep.subr.mxu0 %v7282
        %7300 = vmatpush1.msra.mxu0 %v7281
        %7301 = vmatprep.subr.mxu0 %v7280
        %7302 = vmatpush1.msra.mxu0 %v7279
        %7303 = vmatprep.subr.mxu0 %v7278
        %7304 = vmatpush1.msra.mxu0 %v7277
        %7305 = vmatprep.subr.mxu0 %v7276
        %7306 = vmatpush1.msra.mxu0 %v7275
        %7307 = vmatprep.subr.mxu0 %v7274
        %7308 = vmatpush1.msra.mxu0 %v7273
        %7309 = vmatprep.subr.mxu0 %v7272
        %7310 = vmatpush1.msra.mxu0 %v7271
        %7311 = vmatprep.subr.mxu0 %v7270
        %7312 = vmatpush1.msra.mxu0 %v7269
        %7313 = vmatprep.subr.mxu0 %v7268
        %7314 = vmatpush1.msra.mxu0 %v7267
        %7315 = vmatprep.subr.mxu0 %v7266
        %7316 = vmatpush1.msra.mxu0 %v7265
        %7317 = vmatprep.subr.mxu0 %v7264
        %7318 = vmatpush1.msra.mxu0 %v7263
        %7319 = vmatprep.subr.mxu0 %v7262
        %7320 = vmatpush1.msra.mxu0 %v7261
        %7321 = vmatprep.subr.mxu0 %v7260
        %7322 = vmatpush1.msra.mxu0 %v7259
        %7323 = vmatprep.subr.mxu0 0.0
        %7324 = vmatpush2.msra.mxu0 0.0
        %7325 = vmatprep.subr.mxu0 0.0
        %7326 = vmatpush2.msra.mxu0 0.0
        %7327 = vmatprep.subr.mxu0 0.0
        %7328 = vmatpush2.msra.mxu0 0.0
        %7329 = vmatprep.subr.mxu0 0.0
        %7330 = vmatpush2.msra.mxu0 0.0
        %7331 = vmatprep.subr.mxu0 0.0
        %7332 = vmatpush2.msra.mxu0 0.0
        %7333 = vmatprep.subr.mxu0 0.0
        %7334 = vmatpush2.msra.mxu0 0.0
        %7335 = vmatprep.subr.mxu0 0.0
        %7336 = vmatpush2.msra.mxu0 0.0
        %7337 = vmatprep.subr.mxu0 0.0
        %7338 = vmatpush2.msra.mxu0 0.0
        %7339 = vmatprep.subr.mxu0 0.0
        %7340 = vmatpush2.msra.mxu0 0.0
        %7341 = vmatprep.subr.mxu0 0.0
        %7342 = vmatpush2.msra.mxu0 0.0
        %7343 = vmatprep.subr.mxu0 0.0
        %7344 = vmatpush2.msra.mxu0 0.0
        %7345 = vmatprep.subr.mxu0 0.0
        %7346 = vmatpush2.msra.mxu0 0.0
        %7347 = vmatprep.subr.mxu0 0.0
        %7348 = vmatpush2.msra.mxu0 0.0
        %7349 = vmatprep.subr.mxu0 0.0
        %7350 = vmatpush2.msra.mxu0 0.0
        %7351 = vmatprep.subr.mxu0 0.0
        %7352 = vmatpush2.msra.mxu0 0.0
        %7353 = vmatprep.subr.mxu0 0.0
        %7354 = vmatpush2.msra.mxu0 0.0
        %7355 = vmatprep.mubr.f32.mxu0 0.0
        %7356 = vmatmul.mubr.f32.gmra.mxu0 %v7242
        %v7357 = vpop.f32.mrf.mxu0
        %v7358 = vadd.f32 0.0, %v7357
        %v7359 = vpop.f32.mrf.mxu0
        %v7360 = vadd.f32 0.0, %v7359
        %7361 = vmatprep.mubr.f32.mxu0 0.0
        %7362 = vmatmul.mubr.f32.gmra.mxu0 %v7243
        %v7363 = vpop.f32.mrf.mxu0
        %v7364 = vadd.f32 0.0, %v7363
        %v7365 = vpop.f32.mrf.mxu0
        %v7366 = vadd.f32 0.0, %v7365
        %7367 = vmatprep.mubr.f32.mxu0 0.0
        %7368 = vmatmul.mubr.f32.gmra.mxu0 %v7244
        %v7369 = vpop.f32.mrf.mxu0
        %v7370 = vadd.f32 0.0, %v7369
        %v7371 = vpop.f32.mrf.mxu0
        %v7372 = vadd.f32 0.0, %v7371
        %7373 = vmatprep.mubr.f32.mxu0 0.0
        %7374 = vmatmul.mubr.f32.gmra.mxu0 %v7245
        %v7375 = vpop.f32.mrf.mxu0
        %v7376 = vadd.f32 0.0, %v7375
        %v7377 = vpop.f32.mrf.mxu0
        %v7378 = vadd.f32 0.0, %v7377
        %7379 = vmatprep.mubr.f32.mxu0 0.0
        %7380 = vmatmul.mubr.f32.gmra.mxu0 %v7246
        %v7381 = vpop.f32.mrf.mxu0
        %v7382 = vadd.f32 0.0, %v7381
        %v7383 = vpop.f32.mrf.mxu0
        %v7384 = vadd.f32 0.0, %v7383
        %7385 = vmatprep.mubr.f32.mxu0 0.0
        %7386 = vmatmul.mubr.f32.gmra.mxu0 %v7247
        %v7387 = vpop.f32.mrf.mxu0
        %v7388 = vadd.f32 0.0, %v7387
        %v7389 = vpop.f32.mrf.mxu0
        %v7390 = vadd.f32 0.0, %v7389
        %7391 = vmatprep.mubr.f32.mxu0 0.0
        %7392 = vmatmul.mubr.f32.gmra.mxu0 %v7248
        %v7393 = vpop.f32.mrf.mxu0
        %v7394 = vadd.f32 0.0, %v7393
        %v7395 = vpop.f32.mrf.mxu0
        %v7396 = vadd.f32 0.0, %v7395
        %7397 = vmatprep.mubr.f32.mxu0 0.0
        %7398 = vmatmul.mubr.f32.gmra.mxu0 %v7249
        %v7399 = vpop.f32.mrf.mxu0
        %v7400 = vadd.f32 0.0, %v7399
        %v7401 = vpop.f32.mrf.mxu0
        %v7402 = vadd.f32 0.0, %v7401
        %7403 = vmatprep.mubr.f32.mxu0 0.0
        %7404 = vmatmul.mubr.f32.gmra.mxu0 %v7250
        %v7405 = vpop.f32.mrf.mxu0
        %v7406 = vadd.f32 0.0, %v7405
        %v7407 = vpop.f32.mrf.mxu0
        %v7408 = vadd.f32 0.0, %v7407
        %7409 = vmatprep.mubr.f32.mxu0 0.0
        %7410 = vmatmul.mubr.f32.gmra.mxu0 %v7251
        %v7411 = vpop.f32.mrf.mxu0
        %v7412 = vadd.f32 0.0, %v7411
        %v7413 = vpop.f32.mrf.mxu0
        %v7414 = vadd.f32 0.0, %v7413
        %7415 = vmatprep.mubr.f32.mxu0 0.0
        %7416 = vmatmul.mubr.f32.gmra.mxu0 %v7252
        %v7417 = vpop.f32.mrf.mxu0
        %v7418 = vadd.f32 0.0, %v7417
        %v7419 = vpop.f32.mrf.mxu0
        %v7420 = vadd.f32 0.0, %v7419
        %7421 = vmatprep.mubr.f32.mxu0 0.0
        %7422 = vmatmul.mubr.f32.gmra.mxu0 %v7253
        %v7423 = vpop.f32.mrf.mxu0
        %v7424 = vadd.f32 0.0, %v7423
        %v7425 = vpop.f32.mrf.mxu0
        %v7426 = vadd.f32 0.0, %v7425
        %7427 = vmatprep.mubr.f32.mxu0 0.0
        %7428 = vmatmul.mubr.f32.gmra.mxu0 %v7254
        %v7429 = vpop.f32.mrf.mxu0
        %v7430 = vadd.f32 0.0, %v7429
        %v7431 = vpop.f32.mrf.mxu0
        %v7432 = vadd.f32 0.0, %v7431
        %7433 = vmatprep.mubr.f32.mxu0 0.0
        %7434 = vmatmul.mubr.f32.gmra.mxu0 %v7255
        %v7435 = vpop.f32.mrf.mxu0
        %v7436 = vadd.f32 0.0, %v7435
        %v7437 = vpop.f32.mrf.mxu0
        %v7438 = vadd.f32 0.0, %v7437
        %7439 = vmatprep.mubr.f32.mxu0 0.0
        %7440 = vmatmul.mubr.f32.gmra.mxu0 %v7256
        %v7441 = vpop.f32.mrf.mxu0
        %v7442 = vadd.f32 0.0, %v7441
        %v7443 = vpop.f32.mrf.mxu0
        %v7444 = vadd.f32 0.0, %v7443
        %7445 = vmatprep.mubr.f32.mxu0 0.0
        %7446 = vmatmul.mubr.f32.gmra.mxu0 %v7257
        %v7447 = vpop.f32.mrf.mxu0
        %v7448 = vadd.f32 0.0, %v7447
        %v7449 = vpop.f32.mrf.mxu0
        %v7450 = vadd.f32 0.0, %v7449
        %7451 = vdwg.mxu0
        %v7452 = vadd.f32 %v7207, %v7358
        %v7453 = vadd.f32 %v7208, %v7360
        %v7454 = vadd.f32 %v7209, %v7364
        %v7455 = vadd.f32 %v7210, %v7366
        %v7456 = vadd.f32 %v7211, %v7370
        %v7457 = vadd.f32 %v7212, %v7372
        %v7458 = vadd.f32 %v7213, %v7376
        %v7459 = vadd.f32 %v7214, %v7378
        %v7460 = vadd.f32 %v7215, %v7382
        %v7461 = vadd.f32 %v7216, %v7384
        %v7462 = vadd.f32 %v7217, %v7388
        %v7463 = vadd.f32 %v7218, %v7390
        %v7464 = vadd.f32 %v7219, %v7394
        %v7465 = vadd.f32 %v7220, %v7396
        %v7466 = vadd.f32 %v7221, %v7400
        %v7467 = vadd.f32 %v7222, %v7402
        %v7468 = vadd.f32 %v7223, %v7406
        %v7469 = vadd.f32 %v7224, %v7408
        %v7470 = vadd.f32 %v7225, %v7412
        %v7471 = vadd.f32 %v7226, %v7414
        %v7472 = vadd.f32 %v7227, %v7418
        %v7473 = vadd.f32 %v7228, %v7420
        %v7474 = vadd.f32 %v7229, %v7424
        %v7475 = vadd.f32 %v7230, %v7426
        %v7476 = vadd.f32 %v7231, %v7430
        %v7477 = vadd.f32 %v7232, %v7432
        %v7478 = vadd.f32 %v7233, %v7436
        %v7479 = vadd.f32 %v7234, %v7438
        %v7480 = vadd.f32 %v7235, %v7442
        %v7481 = vadd.f32 %v7236, %v7444
        %v7482 = vadd.f32 %v7237, %v7448
        %v7483 = vadd.f32 %v7238, %v7450
        %v7484 = vld [vmem:[%s7241 + $0x6] sm:$0xff]
        %v7485 = vld [vmem:[%s7241 + $0xe] sm:$0xff]
        %v7486 = vld [vmem:[%s7241 + $0x26] sm:$0xff]
        %v7487 = vld [vmem:[%s7241 + $0x2e] sm:$0xff]
        %v7488 = vld [vmem:[%s7241 + $0x46] sm:$0xff]
        %v7489 = vld [vmem:[%s7241 + $0x4e] sm:$0xff]
        %v7490 = vld [vmem:[%s7241 + $0x66] sm:$0xff]
        %v7491 = vld [vmem:[%s7241 + $0x6e] sm:$0xff]
        %v7492 = vld [vmem:[%s7241 + $0x86] sm:$0xff]
        %v7493 = vld [vmem:[%s7241 + $0x8e] sm:$0xff]
        %v7494 = vld [vmem:[%s7241 + $0xa6] sm:$0xff]
        %v7495 = vld [vmem:[%s7241 + $0xae] sm:$0xff]
        %v7496 = vld [vmem:[%s7241 + $0xc6] sm:$0xff]
        %v7497 = vld [vmem:[%s7241 + $0xce] sm:$0xff]
        %v7498 = vld [vmem:[%s7241 + $0xe6] sm:$0xff]
        %v7499 = vld [vmem:[%s7241 + $0xee] sm:$0xff]
        %s7500 = scalar_lea.vmem %s2, 6400
        %v7501 = vld [vmem:[%s7500] sm:$0xff]
        %v7502 = vld [vmem:[%s7500 + $0x8] sm:$0xff]
        %v7503 = vld [vmem:[%s7500 + $0x10] sm:$0xff]
        %v7504 = vld [vmem:[%s7500 + $0x18] sm:$0xff]
        %v7505 = vld [vmem:[%s7500 + $0x20] sm:$0xff]
        %v7506 = vld [vmem:[%s7500 + $0x28] sm:$0xff]
        %v7507 = vld [vmem:[%s7500 + $0x30] sm:$0xff]
        %v7508 = vld [vmem:[%s7500 + $0x38] sm:$0xff]
        %v7509 = vld [vmem:[%s7500 + $0x40] sm:$0xff]
        %v7510 = vld [vmem:[%s7500 + $0x48] sm:$0xff]
        %v7511 = vld [vmem:[%s7500 + $0x50] sm:$0xff]
        %v7512 = vld [vmem:[%s7500 + $0x58] sm:$0xff]
        %v7513 = vld [vmem:[%s7500 + $0x60] sm:$0xff]
        %v7514 = vld [vmem:[%s7500 + $0x68] sm:$0xff]
        %v7515 = vld [vmem:[%s7500 + $0x70] sm:$0xff]
        %v7516 = vld [vmem:[%s7500 + $0x78] sm:$0xff]
        %v7517 = vld [vmem:[%s7500 + $0x80] sm:$0xff]
        %v7518 = vld [vmem:[%s7500 + $0x88] sm:$0xff]
        %v7519 = vld [vmem:[%s7500 + $0x90] sm:$0xff]
        %v7520 = vld [vmem:[%s7500 + $0x98] sm:$0xff]
        %v7521 = vld [vmem:[%s7500 + $0xa0] sm:$0xff]
        %v7522 = vld [vmem:[%s7500 + $0xa8] sm:$0xff]
        %v7523 = vld [vmem:[%s7500 + $0xb0] sm:$0xff]
        %v7524 = vld [vmem:[%s7500 + $0xb8] sm:$0xff]
        %v7525 = vld [vmem:[%s7500 + $0xc0] sm:$0xff]
        %v7526 = vld [vmem:[%s7500 + $0xc8] sm:$0xff]
        %v7527 = vld [vmem:[%s7500 + $0xd0] sm:$0xff]
        %v7528 = vld [vmem:[%s7500 + $0xd8] sm:$0xff]
        %v7529 = vld [vmem:[%s7500 + $0xe0] sm:$0xff]
        %v7530 = vld [vmem:[%s7500 + $0xe8] sm:$0xff]
        %v7531 = vld [vmem:[%s7500 + $0xf0] sm:$0xff]
        %v7532 = vld [vmem:[%s7500 + $0xf8] sm:$0xff]
        %7533 = vmatprep.subr.mxu0 %v7532
        %7534 = vmatpush1.msra.mxu0 %v7531
        %7535 = vmatprep.subr.mxu0 %v7530
        %7536 = vmatpush1.msra.mxu0 %v7529
        %7537 = vmatprep.subr.mxu0 %v7528
        %7538 = vmatpush1.msra.mxu0 %v7527
        %7539 = vmatprep.subr.mxu0 %v7526
        %7540 = vmatpush1.msra.mxu0 %v7525
        %7541 = vmatprep.subr.mxu0 %v7524
        %7542 = vmatpush1.msra.mxu0 %v7523
        %7543 = vmatprep.subr.mxu0 %v7522
        %7544 = vmatpush1.msra.mxu0 %v7521
        %7545 = vmatprep.subr.mxu0 %v7520
        %7546 = vmatpush1.msra.mxu0 %v7519
        %7547 = vmatprep.subr.mxu0 %v7518
        %7548 = vmatpush1.msra.mxu0 %v7517
        %7549 = vmatprep.subr.mxu0 %v7516
        %7550 = vmatpush1.msra.mxu0 %v7515
        %7551 = vmatprep.subr.mxu0 %v7514
        %7552 = vmatpush1.msra.mxu0 %v7513
        %7553 = vmatprep.subr.mxu0 %v7512
        %7554 = vmatpush1.msra.mxu0 %v7511
        %7555 = vmatprep.subr.mxu0 %v7510
        %7556 = vmatpush1.msra.mxu0 %v7509
        %7557 = vmatprep.subr.mxu0 %v7508
        %7558 = vmatpush1.msra.mxu0 %v7507
        %7559 = vmatprep.subr.mxu0 %v7506
        %7560 = vmatpush1.msra.mxu0 %v7505
        %7561 = vmatprep.subr.mxu0 %v7504
        %7562 = vmatpush1.msra.mxu0 %v7503
        %7563 = vmatprep.subr.mxu0 %v7502
        %7564 = vmatpush1.msra.mxu0 %v7501
        %7565 = vmatprep.subr.mxu0 0.0
        %7566 = vmatpush2.msra.mxu0 0.0
        %7567 = vmatprep.subr.mxu0 0.0
        %7568 = vmatpush2.msra.mxu0 0.0
        %7569 = vmatprep.subr.mxu0 0.0
        %7570 = vmatpush2.msra.mxu0 0.0
        %7571 = vmatprep.subr.mxu0 0.0
        %7572 = vmatpush2.msra.mxu0 0.0
        %7573 = vmatprep.subr.mxu0 0.0
        %7574 = vmatpush2.msra.mxu0 0.0
        %7575 = vmatprep.subr.mxu0 0.0
        %7576 = vmatpush2.msra.mxu0 0.0
        %7577 = vmatprep.subr.mxu0 0.0
        %7578 = vmatpush2.msra.mxu0 0.0
        %7579 = vmatprep.subr.mxu0 0.0
        %7580 = vmatpush2.msra.mxu0 0.0
        %7581 = vmatprep.subr.mxu0 0.0
        %7582 = vmatpush2.msra.mxu0 0.0
        %7583 = vmatprep.subr.mxu0 0.0
        %7584 = vmatpush2.msra.mxu0 0.0
        %7585 = vmatprep.subr.mxu0 0.0
        %7586 = vmatpush2.msra.mxu0 0.0
        %7587 = vmatprep.subr.mxu0 0.0
        %7588 = vmatpush2.msra.mxu0 0.0
        %7589 = vmatprep.subr.mxu0 0.0
        %7590 = vmatpush2.msra.mxu0 0.0
        %7591 = vmatprep.subr.mxu0 0.0
        %7592 = vmatpush2.msra.mxu0 0.0
        %7593 = vmatprep.subr.mxu0 0.0
        %7594 = vmatpush2.msra.mxu0 0.0
        %7595 = vmatprep.subr.mxu0 0.0
        %7596 = vmatpush2.msra.mxu0 0.0
        %7597 = vmatprep.mubr.f32.mxu0 0.0
        %7598 = vmatmul.mubr.f32.gmra.mxu0 %v7484
        %v7599 = vpop.f32.mrf.mxu0
        %v7600 = vadd.f32 0.0, %v7599
        %v7601 = vpop.f32.mrf.mxu0
        %v7602 = vadd.f32 0.0, %v7601
        %7603 = vmatprep.mubr.f32.mxu0 0.0
        %7604 = vmatmul.mubr.f32.gmra.mxu0 %v7485
        %v7605 = vpop.f32.mrf.mxu0
        %v7606 = vadd.f32 0.0, %v7605
        %v7607 = vpop.f32.mrf.mxu0
        %v7608 = vadd.f32 0.0, %v7607
        %7609 = vmatprep.mubr.f32.mxu0 0.0
        %7610 = vmatmul.mubr.f32.gmra.mxu0 %v7486
        %v7611 = vpop.f32.mrf.mxu0
        %v7612 = vadd.f32 0.0, %v7611
        %v7613 = vpop.f32.mrf.mxu0
        %v7614 = vadd.f32 0.0, %v7613
        %7615 = vmatprep.mubr.f32.mxu0 0.0
        %7616 = vmatmul.mubr.f32.gmra.mxu0 %v7487
        %v7617 = vpop.f32.mrf.mxu0
        %v7618 = vadd.f32 0.0, %v7617
        %v7619 = vpop.f32.mrf.mxu0
        %v7620 = vadd.f32 0.0, %v7619
        %7621 = vmatprep.mubr.f32.mxu0 0.0
        %7622 = vmatmul.mubr.f32.gmra.mxu0 %v7488
        %v7623 = vpop.f32.mrf.mxu0
        %v7624 = vadd.f32 0.0, %v7623
        %v7625 = vpop.f32.mrf.mxu0
        %v7626 = vadd.f32 0.0, %v7625
        %7627 = vmatprep.mubr.f32.mxu0 0.0
        %7628 = vmatmul.mubr.f32.gmra.mxu0 %v7489
        %v7629 = vpop.f32.mrf.mxu0
        %v7630 = vadd.f32 0.0, %v7629
        %v7631 = vpop.f32.mrf.mxu0
        %v7632 = vadd.f32 0.0, %v7631
        %7633 = vmatprep.mubr.f32.mxu0 0.0
        %7634 = vmatmul.mubr.f32.gmra.mxu0 %v7490
        %v7635 = vpop.f32.mrf.mxu0
        %v7636 = vadd.f32 0.0, %v7635
        %v7637 = vpop.f32.mrf.mxu0
        %v7638 = vadd.f32 0.0, %v7637
        %7639 = vmatprep.mubr.f32.mxu0 0.0
        %7640 = vmatmul.mubr.f32.gmra.mxu0 %v7491
        %v7641 = vpop.f32.mrf.mxu0
        %v7642 = vadd.f32 0.0, %v7641
        %v7643 = vpop.f32.mrf.mxu0
        %v7644 = vadd.f32 0.0, %v7643
        %7645 = vmatprep.mubr.f32.mxu0 0.0
        %7646 = vmatmul.mubr.f32.gmra.mxu0 %v7492
        %v7647 = vpop.f32.mrf.mxu0
        %v7648 = vadd.f32 0.0, %v7647
        %v7649 = vpop.f32.mrf.mxu0
        %v7650 = vadd.f32 0.0, %v7649
        %7651 = vmatprep.mubr.f32.mxu0 0.0
        %7652 = vmatmul.mubr.f32.gmra.mxu0 %v7493
        %v7653 = vpop.f32.mrf.mxu0
        %v7654 = vadd.f32 0.0, %v7653
        %v7655 = vpop.f32.mrf.mxu0
        %v7656 = vadd.f32 0.0, %v7655
        %7657 = vmatprep.mubr.f32.mxu0 0.0
        %7658 = vmatmul.mubr.f32.gmra.mxu0 %v7494
        %v7659 = vpop.f32.mrf.mxu0
        %v7660 = vadd.f32 0.0, %v7659
        %v7661 = vpop.f32.mrf.mxu0
        %v7662 = vadd.f32 0.0, %v7661
        %7663 = vmatprep.mubr.f32.mxu0 0.0
        %7664 = vmatmul.mubr.f32.gmra.mxu0 %v7495
        %v7665 = vpop.f32.mrf.mxu0
        %v7666 = vadd.f32 0.0, %v7665
        %v7667 = vpop.f32.mrf.mxu0
        %v7668 = vadd.f32 0.0, %v7667
        %7669 = vmatprep.mubr.f32.mxu0 0.0
        %7670 = vmatmul.mubr.f32.gmra.mxu0 %v7496
        %v7671 = vpop.f32.mrf.mxu0
        %v7672 = vadd.f32 0.0, %v7671
        %v7673 = vpop.f32.mrf.mxu0
        %v7674 = vadd.f32 0.0, %v7673
        %7675 = vmatprep.mubr.f32.mxu0 0.0
        %7676 = vmatmul.mubr.f32.gmra.mxu0 %v7497
        %v7677 = vpop.f32.mrf.mxu0
        %v7678 = vadd.f32 0.0, %v7677
        %v7679 = vpop.f32.mrf.mxu0
        %v7680 = vadd.f32 0.0, %v7679
        %7681 = vmatprep.mubr.f32.mxu0 0.0
        %7682 = vmatmul.mubr.f32.gmra.mxu0 %v7498
        %v7683 = vpop.f32.mrf.mxu0
        %v7684 = vadd.f32 0.0, %v7683
        %v7685 = vpop.f32.mrf.mxu0
        %v7686 = vadd.f32 0.0, %v7685
        %7687 = vmatprep.mubr.f32.mxu0 0.0
        %7688 = vmatmul.mubr.f32.gmra.mxu0 %v7499
        %v7689 = vpop.f32.mrf.mxu0
        %v7690 = vadd.f32 0.0, %v7689
        %v7691 = vpop.f32.mrf.mxu0
        %v7692 = vadd.f32 0.0, %v7691
        %7693 = vdwg.mxu0
        %v7694 = vadd.f32 %v7452, %v7600
        %v7695 = vadd.f32 %v7453, %v7602
        %v7696 = vadd.f32 %v7454, %v7606
        %v7697 = vadd.f32 %v7455, %v7608
        %v7698 = vadd.f32 %v7456, %v7612
        %v7699 = vadd.f32 %v7457, %v7614
        %v7700 = vadd.f32 %v7458, %v7618
        %v7701 = vadd.f32 %v7459, %v7620
        %v7702 = vadd.f32 %v7460, %v7624
        %v7703 = vadd.f32 %v7461, %v7626
        %v7704 = vadd.f32 %v7462, %v7630
        %v7705 = vadd.f32 %v7463, %v7632
        %v7706 = vadd.f32 %v7464, %v7636
        %v7707 = vadd.f32 %v7465, %v7638
        %v7708 = vadd.f32 %v7466, %v7642
        %v7709 = vadd.f32 %v7467, %v7644
        %v7710 = vadd.f32 %v7468, %v7648
        %v7711 = vadd.f32 %v7469, %v7650
        %v7712 = vadd.f32 %v7470, %v7654
        %v7713 = vadd.f32 %v7471, %v7656
        %v7714 = vadd.f32 %v7472, %v7660
        %v7715 = vadd.f32 %v7473, %v7662
        %v7716 = vadd.f32 %v7474, %v7666
        %v7717 = vadd.f32 %v7475, %v7668
        %v7718 = vadd.f32 %v7476, %v7672
        %v7719 = vadd.f32 %v7477, %v7674
        %v7720 = vadd.f32 %v7478, %v7678
        %v7721 = vadd.f32 %v7479, %v7680
        %v7722 = vadd.f32 %v7480, %v7684
        %v7723 = vadd.f32 %v7481, %v7686
        %v7724 = vadd.f32 %v7482, %v7690
        %v7725 = vadd.f32 %v7483, %v7692
        %v7726 = vld [vmem:[%s7241 + $0xc] sm:$0xff]
        %v7727 = vld [vmem:[%s7241 + $0x14] sm:$0xff]
        %v7728 = vld [vmem:[%s7241 + $0x2c] sm:$0xff]
        %v7729 = vld [vmem:[%s7241 + $0x34] sm:$0xff]
        %v7730 = vld [vmem:[%s7241 + $0x4c] sm:$0xff]
        %v7731 = vld [vmem:[%s7241 + $0x54] sm:$0xff]
        %v7732 = vld [vmem:[%s7241 + $0x6c] sm:$0xff]
        %v7733 = vld [vmem:[%s7241 + $0x74] sm:$0xff]
        %v7734 = vld [vmem:[%s7241 + $0x8c] sm:$0xff]
        %v7735 = vld [vmem:[%s7241 + $0x94] sm:$0xff]
        %v7736 = vld [vmem:[%s7241 + $0xac] sm:$0xff]
        %v7737 = vld [vmem:[%s7241 + $0xb4] sm:$0xff]
        %v7738 = vld [vmem:[%s7241 + $0xcc] sm:$0xff]
        %v7739 = vld [vmem:[%s7241 + $0xd4] sm:$0xff]
        %v7740 = vld [vmem:[%s7241 + $0xec] sm:$0xff]
        %v7741 = vld [vmem:[%s7241 + $0xf4] sm:$0xff]
        %s7742 = scalar_lea.vmem %s2, 6656
        %v7743 = vld [vmem:[%s7742] sm:$0xff]
        %v7744 = vld [vmem:[%s7742 + $0x8] sm:$0xff]
        %v7745 = vld [vmem:[%s7742 + $0x10] sm:$0xff]
        %v7746 = vld [vmem:[%s7742 + $0x18] sm:$0xff]
        %v7747 = vld [vmem:[%s7742 + $0x20] sm:$0xff]
        %v7748 = vld [vmem:[%s7742 + $0x28] sm:$0xff]
        %v7749 = vld [vmem:[%s7742 + $0x30] sm:$0xff]
        %v7750 = vld [vmem:[%s7742 + $0x38] sm:$0xff]
        %v7751 = vld [vmem:[%s7742 + $0x40] sm:$0xff]
        %v7752 = vld [vmem:[%s7742 + $0x48] sm:$0xff]
        %v7753 = vld [vmem:[%s7742 + $0x50] sm:$0xff]
        %v7754 = vld [vmem:[%s7742 + $0x58] sm:$0xff]
        %v7755 = vld [vmem:[%s7742 + $0x60] sm:$0xff]
        %v7756 = vld [vmem:[%s7742 + $0x68] sm:$0xff]
        %v7757 = vld [vmem:[%s7742 + $0x70] sm:$0xff]
        %v7758 = vld [vmem:[%s7742 + $0x78] sm:$0xff]
        %v7759 = vld [vmem:[%s7742 + $0x80] sm:$0xff]
        %v7760 = vld [vmem:[%s7742 + $0x88] sm:$0xff]
        %v7761 = vld [vmem:[%s7742 + $0x90] sm:$0xff]
        %v7762 = vld [vmem:[%s7742 + $0x98] sm:$0xff]
        %v7763 = vld [vmem:[%s7742 + $0xa0] sm:$0xff]
        %v7764 = vld [vmem:[%s7742 + $0xa8] sm:$0xff]
        %v7765 = vld [vmem:[%s7742 + $0xb0] sm:$0xff]
        %v7766 = vld [vmem:[%s7742 + $0xb8] sm:$0xff]
        %v7767 = vld [vmem:[%s7742 + $0xc0] sm:$0xff]
        %v7768 = vld [vmem:[%s7742 + $0xc8] sm:$0xff]
        %v7769 = vld [vmem:[%s7742 + $0xd0] sm:$0xff]
        %v7770 = vld [vmem:[%s7742 + $0xd8] sm:$0xff]
        %v7771 = vld [vmem:[%s7742 + $0xe0] sm:$0xff]
        %v7772 = vld [vmem:[%s7742 + $0xe8] sm:$0xff]
        %v7773 = vld [vmem:[%s7742 + $0xf0] sm:$0xff]
        %v7774 = vld [vmem:[%s7742 + $0xf8] sm:$0xff]
        %7775 = vmatprep.subr.mxu0 %v7774
        %7776 = vmatpush1.msra.mxu0 %v7773
        %7777 = vmatprep.subr.mxu0 %v7772
        %7778 = vmatpush1.msra.mxu0 %v7771
        %7779 = vmatprep.subr.mxu0 %v7770
        %7780 = vmatpush1.msra.mxu0 %v7769
        %7781 = vmatprep.subr.mxu0 %v7768
        %7782 = vmatpush1.msra.mxu0 %v7767
        %7783 = vmatprep.subr.mxu0 %v7766
        %7784 = vmatpush1.msra.mxu0 %v7765
        %7785 = vmatprep.subr.mxu0 %v7764
        %7786 = vmatpush1.msra.mxu0 %v7763
        %7787 = vmatprep.subr.mxu0 %v7762
        %7788 = vmatpush1.msra.mxu0 %v7761
        %7789 = vmatprep.subr.mxu0 %v7760
        %7790 = vmatpush1.msra.mxu0 %v7759
        %7791 = vmatprep.subr.mxu0 %v7758
        %7792 = vmatpush1.msra.mxu0 %v7757
        %7793 = vmatprep.subr.mxu0 %v7756
        %7794 = vmatpush1.msra.mxu0 %v7755
        %7795 = vmatprep.subr.mxu0 %v7754
        %7796 = vmatpush1.msra.mxu0 %v7753
        %7797 = vmatprep.subr.mxu0 %v7752
        %7798 = vmatpush1.msra.mxu0 %v7751
        %7799 = vmatprep.subr.mxu0 %v7750
        %7800 = vmatpush1.msra.mxu0 %v7749
        %7801 = vmatprep.subr.mxu0 %v7748
        %7802 = vmatpush1.msra.mxu0 %v7747
        %7803 = vmatprep.subr.mxu0 %v7746
        %7804 = vmatpush1.msra.mxu0 %v7745
        %7805 = vmatprep.subr.mxu0 %v7744
        %7806 = vmatpush1.msra.mxu0 %v7743
        %7807 = vmatprep.subr.mxu0 0.0
        %7808 = vmatpush2.msra.mxu0 0.0
        %7809 = vmatprep.subr.mxu0 0.0
        %7810 = vmatpush2.msra.mxu0 0.0
        %7811 = vmatprep.subr.mxu0 0.0
        %7812 = vmatpush2.msra.mxu0 0.0
        %7813 = vmatprep.subr.mxu0 0.0
        %7814 = vmatpush2.msra.mxu0 0.0
        %7815 = vmatprep.subr.mxu0 0.0
        %7816 = vmatpush2.msra.mxu0 0.0
        %7817 = vmatprep.subr.mxu0 0.0
        %7818 = vmatpush2.msra.mxu0 0.0
        %7819 = vmatprep.subr.mxu0 0.0
        %7820 = vmatpush2.msra.mxu0 0.0
        %7821 = vmatprep.subr.mxu0 0.0
        %7822 = vmatpush2.msra.mxu0 0.0
        %7823 = vmatprep.subr.mxu0 0.0
        %7824 = vmatpush2.msra.mxu0 0.0
        %7825 = vmatprep.subr.mxu0 0.0
        %7826 = vmatpush2.msra.mxu0 0.0
        %7827 = vmatprep.subr.mxu0 0.0
        %7828 = vmatpush2.msra.mxu0 0.0
        %7829 = vmatprep.subr.mxu0 0.0
        %7830 = vmatpush2.msra.mxu0 0.0
        %7831 = vmatprep.subr.mxu0 0.0
        %7832 = vmatpush2.msra.mxu0 0.0
        %7833 = vmatprep.subr.mxu0 0.0
        %7834 = vmatpush2.msra.mxu0 0.0
        %7835 = vmatprep.subr.mxu0 0.0
        %7836 = vmatpush2.msra.mxu0 0.0
        %7837 = vmatprep.subr.mxu0 0.0
        %7838 = vmatpush2.msra.mxu0 0.0
        %7839 = vmatprep.mubr.f32.mxu0 0.0
        %7840 = vmatmul.mubr.f32.gmra.mxu0 %v7726
        %v7841 = vpop.f32.mrf.mxu0
        %v7842 = vadd.f32 0.0, %v7841
        %v7843 = vpop.f32.mrf.mxu0
        %v7844 = vadd.f32 0.0, %v7843
        %7845 = vmatprep.mubr.f32.mxu0 0.0
        %7846 = vmatmul.mubr.f32.gmra.mxu0 %v7727
        %v7847 = vpop.f32.mrf.mxu0
        %v7848 = vadd.f32 0.0, %v7847
        %v7849 = vpop.f32.mrf.mxu0
        %v7850 = vadd.f32 0.0, %v7849
        %7851 = vmatprep.mubr.f32.mxu0 0.0
        %7852 = vmatmul.mubr.f32.gmra.mxu0 %v7728
        %v7853 = vpop.f32.mrf.mxu0
        %v7854 = vadd.f32 0.0, %v7853
        %v7855 = vpop.f32.mrf.mxu0
        %v7856 = vadd.f32 0.0, %v7855
        %7857 = vmatprep.mubr.f32.mxu0 0.0
        %7858 = vmatmul.mubr.f32.gmra.mxu0 %v7729
        %v7859 = vpop.f32.mrf.mxu0
        %v7860 = vadd.f32 0.0, %v7859
        %v7861 = vpop.f32.mrf.mxu0
        %v7862 = vadd.f32 0.0, %v7861
        %7863 = vmatprep.mubr.f32.mxu0 0.0
        %7864 = vmatmul.mubr.f32.gmra.mxu0 %v7730
        %v7865 = vpop.f32.mrf.mxu0
        %v7866 = vadd.f32 0.0, %v7865
        %v7867 = vpop.f32.mrf.mxu0
        %v7868 = vadd.f32 0.0, %v7867
        %7869 = vmatprep.mubr.f32.mxu0 0.0
        %7870 = vmatmul.mubr.f32.gmra.mxu0 %v7731
        %v7871 = vpop.f32.mrf.mxu0
        %v7872 = vadd.f32 0.0, %v7871
        %v7873 = vpop.f32.mrf.mxu0
        %v7874 = vadd.f32 0.0, %v7873
        %7875 = vmatprep.mubr.f32.mxu0 0.0
        %7876 = vmatmul.mubr.f32.gmra.mxu0 %v7732
        %v7877 = vpop.f32.mrf.mxu0
        %v7878 = vadd.f32 0.0, %v7877
        %v7879 = vpop.f32.mrf.mxu0
        %v7880 = vadd.f32 0.0, %v7879
        %7881 = vmatprep.mubr.f32.mxu0 0.0
        %7882 = vmatmul.mubr.f32.gmra.mxu0 %v7733
        %v7883 = vpop.f32.mrf.mxu0
        %v7884 = vadd.f32 0.0, %v7883
        %v7885 = vpop.f32.mrf.mxu0
        %v7886 = vadd.f32 0.0, %v7885
        %7887 = vmatprep.mubr.f32.mxu0 0.0
        %7888 = vmatmul.mubr.f32.gmra.mxu0 %v7734
        %v7889 = vpop.f32.mrf.mxu0
        %v7890 = vadd.f32 0.0, %v7889
        %v7891 = vpop.f32.mrf.mxu0
        %v7892 = vadd.f32 0.0, %v7891
        %7893 = vmatprep.mubr.f32.mxu0 0.0
        %7894 = vmatmul.mubr.f32.gmra.mxu0 %v7735
        %v7895 = vpop.f32.mrf.mxu0
        %v7896 = vadd.f32 0.0, %v7895
        %v7897 = vpop.f32.mrf.mxu0
        %v7898 = vadd.f32 0.0, %v7897
        %7899 = vmatprep.mubr.f32.mxu0 0.0
        %7900 = vmatmul.mubr.f32.gmra.mxu0 %v7736
        %v7901 = vpop.f32.mrf.mxu0
        %v7902 = vadd.f32 0.0, %v7901
        %v7903 = vpop.f32.mrf.mxu0
        %v7904 = vadd.f32 0.0, %v7903
        %7905 = vmatprep.mubr.f32.mxu0 0.0
        %7906 = vmatmul.mubr.f32.gmra.mxu0 %v7737
        %v7907 = vpop.f32.mrf.mxu0
        %v7908 = vadd.f32 0.0, %v7907
        %v7909 = vpop.f32.mrf.mxu0
        %v7910 = vadd.f32 0.0, %v7909
        %7911 = vmatprep.mubr.f32.mxu0 0.0
        %7912 = vmatmul.mubr.f32.gmra.mxu0 %v7738
        %v7913 = vpop.f32.mrf.mxu0
        %v7914 = vadd.f32 0.0, %v7913
        %v7915 = vpop.f32.mrf.mxu0
        %v7916 = vadd.f32 0.0, %v7915
        %7917 = vmatprep.mubr.f32.mxu0 0.0
        %7918 = vmatmul.mubr.f32.gmra.mxu0 %v7739
        %v7919 = vpop.f32.mrf.mxu0
        %v7920 = vadd.f32 0.0, %v7919
        %v7921 = vpop.f32.mrf.mxu0
        %v7922 = vadd.f32 0.0, %v7921
        %7923 = vmatprep.mubr.f32.mxu0 0.0
        %7924 = vmatmul.mubr.f32.gmra.mxu0 %v7740
        %v7925 = vpop.f32.mrf.mxu0
        %v7926 = vadd.f32 0.0, %v7925
        %v7927 = vpop.f32.mrf.mxu0
        %v7928 = vadd.f32 0.0, %v7927
        %7929 = vmatprep.mubr.f32.mxu0 0.0
        %7930 = vmatmul.mubr.f32.gmra.mxu0 %v7741
        %v7931 = vpop.f32.mrf.mxu0
        %v7932 = vadd.f32 0.0, %v7931
        %v7933 = vpop.f32.mrf.mxu0
        %v7934 = vadd.f32 0.0, %v7933
        %7935 = vdwg.mxu0
        %v7936 = vadd.f32 %v7694, %v7842
        %v7937 = vadd.f32 %v7695, %v7844
        %v7938 = vadd.f32 %v7696, %v7848
        %v7939 = vadd.f32 %v7697, %v7850
        %v7940 = vadd.f32 %v7698, %v7854
        %v7941 = vadd.f32 %v7699, %v7856
        %v7942 = vadd.f32 %v7700, %v7860
        %v7943 = vadd.f32 %v7701, %v7862
        %v7944 = vadd.f32 %v7702, %v7866
        %v7945 = vadd.f32 %v7703, %v7868
        %v7946 = vadd.f32 %v7704, %v7872
        %v7947 = vadd.f32 %v7705, %v7874
        %v7948 = vadd.f32 %v7706, %v7878
        %v7949 = vadd.f32 %v7707, %v7880
        %v7950 = vadd.f32 %v7708, %v7884
        %v7951 = vadd.f32 %v7709, %v7886
        %v7952 = vadd.f32 %v7710, %v7890
        %v7953 = vadd.f32 %v7711, %v7892
        %v7954 = vadd.f32 %v7712, %v7896
        %v7955 = vadd.f32 %v7713, %v7898
        %v7956 = vadd.f32 %v7714, %v7902
        %v7957 = vadd.f32 %v7715, %v7904
        %v7958 = vadd.f32 %v7716, %v7908
        %v7959 = vadd.f32 %v7717, %v7910
        %v7960 = vadd.f32 %v7718, %v7914
        %v7961 = vadd.f32 %v7719, %v7916
        %v7962 = vadd.f32 %v7720, %v7920
        %v7963 = vadd.f32 %v7721, %v7922
        %v7964 = vadd.f32 %v7722, %v7926
        %v7965 = vadd.f32 %v7723, %v7928
        %v7966 = vadd.f32 %v7724, %v7932
        %v7967 = vadd.f32 %v7725, %v7934
        %v7968 = vlaneseq
        %v7969 = vshrl.u32 %v7968, 7
        %v7970 = vsub.s32 3, %v7969
        %v7971 = vrot.slane %v337, %v7970
        %v7972 = vlaneseq
        %v7973 = vshrl.u32 %v7972, 7
        %v7974 = vsub.s32 7, %v7973
        %v7975 = vrot.slane %v337, %v7974
        %v7978 = vlaneseq
        %v7979 = vshrl.u32 %v7978, 7
        %v7980 = vsub.s32 3, %v7979
        %v7981 = vrot.slane %v7971, %v7980
        %v7982 = vlaneseq
        %v7983 = vshrl.u32 %v7982, 7
        %v7984 = vsub.s32 3, %v7983
        %v7985 = vrot.slane %v7975, %v7984
        %v7986 = vmul.f32 %v7936, %v7981
        %v7987 = vmul.f32 %v7937, %v7985
        %v7988 = vmul.f32 %v7938, %v7981
        %v7989 = vmul.f32 %v7939, %v7985
        %v7990 = vmul.f32 %v7940, %v7981
        %v7991 = vmul.f32 %v7941, %v7985
        %v7992 = vmul.f32 %v7942, %v7981
        %v7993 = vmul.f32 %v7943, %v7985
        %v7994 = vmul.f32 %v7944, %v7981
        %v7995 = vmul.f32 %v7945, %v7985
        %v7996 = vmul.f32 %v7946, %v7981
        %v7997 = vmul.f32 %v7947, %v7985
        %v7998 = vmul.f32 %v7948, %v7981
        %v7999 = vmul.f32 %v7949, %v7985
        %v8000 = vmul.f32 %v7950, %v7981
        %v8001 = vmul.f32 %v7951, %v7985
        %v8002 = vmul.f32 %v7952, %v7981
        %v8003 = vmul.f32 %v7953, %v7985
        %v8004 = vmul.f32 %v7954, %v7981
        %v8005 = vmul.f32 %v7955, %v7985
        %v8006 = vmul.f32 %v7956, %v7981
        %v8007 = vmul.f32 %v7957, %v7985
        %v8008 = vmul.f32 %v7958, %v7981
        %v8009 = vmul.f32 %v7959, %v7985
        %v8010 = vmul.f32 %v7960, %v7981
        %v8011 = vmul.f32 %v7961, %v7985
        %v8012 = vmul.f32 %v7962, %v7981
        %v8013 = vmul.f32 %v7963, %v7985
        %v8014 = vmul.f32 %v7964, %v7981
        %v8015 = vmul.f32 %v7965, %v7985
        %v8016 = vmul.f32 %v7966, %v7981
        %v8017 = vmul.f32 %v7967, %v7985
        %v8018 = vlaneseq
        %v8019 = vshrl.u32 %v8018, 7
        %v8020 = vsub.s32 3, %v8019
        %v8021 = vrot.slane %v338, %v8020
        %v8022 = vlaneseq
        %v8023 = vshrl.u32 %v8022, 7
        %v8024 = vsub.s32 7, %v8023
        %v8025 = vrot.slane %v338, %v8024
        %v8028 = vlaneseq
        %v8029 = vshrl.u32 %v8028, 7
        %v8030 = vsub.s32 3, %v8029
        %v8031 = vrot.slane %v8021, %v8030
        %v8032 = vlaneseq
        %v8033 = vshrl.u32 %v8032, 7
        %v8034 = vsub.s32 3, %v8033
        %v8035 = vrot.slane %v8025, %v8034
        %v8036 = vadd.f32 %v7986, %v8031
        %v8037 = vadd.f32 %v7987, %v8035
        %v8038 = vadd.f32 %v7988, %v8031
        %v8039 = vadd.f32 %v7989, %v8035
        %v8040 = vadd.f32 %v7990, %v8031
        %v8041 = vadd.f32 %v7991, %v8035
        %v8042 = vadd.f32 %v7992, %v8031
        %v8043 = vadd.f32 %v7993, %v8035
        %v8044 = vadd.f32 %v7994, %v8031
        %v8045 = vadd.f32 %v7995, %v8035
        %v8046 = vadd.f32 %v7996, %v8031
        %v8047 = vadd.f32 %v7997, %v8035
        %v8048 = vadd.f32 %v7998, %v8031
        %v8049 = vadd.f32 %v7999, %v8035
        %v8050 = vadd.f32 %v8000, %v8031
        %v8051 = vadd.f32 %v8001, %v8035
        %v8052 = vadd.f32 %v8002, %v8031
        %v8053 = vadd.f32 %v8003, %v8035
        %v8054 = vadd.f32 %v8004, %v8031
        %v8055 = vadd.f32 %v8005, %v8035
        %v8056 = vadd.f32 %v8006, %v8031
        %v8057 = vadd.f32 %v8007, %v8035
        %v8058 = vadd.f32 %v8008, %v8031
        %v8059 = vadd.f32 %v8009, %v8035
        %v8060 = vadd.f32 %v8010, %v8031
        %v8061 = vadd.f32 %v8011, %v8035
        %v8062 = vadd.f32 %v8012, %v8031
        %v8063 = vadd.f32 %v8013, %v8035
        %v8064 = vadd.f32 %v8014, %v8031
        %v8065 = vadd.f32 %v8015, %v8035
        %v8066 = vadd.f32 %v8016, %v8031
        %v8067 = vadd.f32 %v8017, %v8035
        %v8068 = vmax.f32 %v8036, 0.0
        %v8069 = vmax.f32 %v8037, 0.0
        %v8070 = vmax.f32 %v8038, 0.0
        %v8071 = vmax.f32 %v8039, 0.0
        %v8072 = vmax.f32 %v8040, 0.0
        %v8073 = vmax.f32 %v8041, 0.0
        %v8074 = vmax.f32 %v8042, 0.0
        %v8075 = vmax.f32 %v8043, 0.0
        %v8076 = vmax.f32 %v8044, 0.0
        %v8077 = vmax.f32 %v8045, 0.0
        %v8078 = vmax.f32 %v8046, 0.0
        %v8079 = vmax.f32 %v8047, 0.0
        %v8080 = vmax.f32 %v8048, 0.0
        %v8081 = vmax.f32 %v8049, 0.0
        %v8082 = vmax.f32 %v8050, 0.0
        %v8083 = vmax.f32 %v8051, 0.0
        %v8084 = vmax.f32 %v8052, 0.0
        %v8085 = vmax.f32 %v8053, 0.0
        %v8086 = vmax.f32 %v8054, 0.0
        %v8087 = vmax.f32 %v8055, 0.0
        %v8088 = vmax.f32 %v8056, 0.0
        %v8089 = vmax.f32 %v8057, 0.0
        %v8090 = vmax.f32 %v8058, 0.0
        %v8091 = vmax.f32 %v8059, 0.0
        %v8092 = vmax.f32 %v8060, 0.0
        %v8093 = vmax.f32 %v8061, 0.0
        %v8094 = vmax.f32 %v8062, 0.0
        %v8095 = vmax.f32 %v8063, 0.0
        %v8096 = vmax.f32 %v8064, 0.0
        %v8097 = vmax.f32 %v8065, 0.0
        %v8098 = vmax.f32 %v8066, 0.0
        %v8099 = vmax.f32 %v8067, 0.0
        %s8100 = scalar_lea.vmem %s5, 1536
        %v8101 = vld [vmem:[%s8100] sm:$0xff]
        %v8102 = vld [vmem:[%s8100 + $0x8] sm:$0xff]
        %v8103 = vld [vmem:[%s8100 + $0x10] sm:$0xff]
        %v8104 = vld [vmem:[%s8100 + $0x18] sm:$0xff]
        %v8105 = vld [vmem:[%s8100 + $0x20] sm:$0xff]
        %v8106 = vld [vmem:[%s8100 + $0x28] sm:$0xff]
        %v8107 = vld [vmem:[%s8100 + $0x30] sm:$0xff]
        %v8108 = vld [vmem:[%s8100 + $0x38] sm:$0xff]
        %v8109 = vld [vmem:[%s8100 + $0x40] sm:$0xff]
        %v8110 = vld [vmem:[%s8100 + $0x48] sm:$0xff]
        %v8111 = vld [vmem:[%s8100 + $0x50] sm:$0xff]
        %v8112 = vld [vmem:[%s8100 + $0x58] sm:$0xff]
        %v8113 = vld [vmem:[%s8100 + $0x60] sm:$0xff]
        %v8114 = vld [vmem:[%s8100 + $0x68] sm:$0xff]
        %v8115 = vld [vmem:[%s8100 + $0x70] sm:$0xff]
        %v8116 = vld [vmem:[%s8100 + $0x78] sm:$0xff]
        %v8117 = vld [vmem:[%s8100 + $0x80] sm:$0xff]
        %v8118 = vld [vmem:[%s8100 + $0x88] sm:$0xff]
        %v8119 = vld [vmem:[%s8100 + $0x90] sm:$0xff]
        %v8120 = vld [vmem:[%s8100 + $0x98] sm:$0xff]
        %v8121 = vld [vmem:[%s8100 + $0xa0] sm:$0xff]
        %v8122 = vld [vmem:[%s8100 + $0xa8] sm:$0xff]
        %v8123 = vld [vmem:[%s8100 + $0xb0] sm:$0xff]
        %v8124 = vld [vmem:[%s8100 + $0xb8] sm:$0xff]
        %v8125 = vld [vmem:[%s8100 + $0xc0] sm:$0xff]
        %v8126 = vld [vmem:[%s8100 + $0xc8] sm:$0xff]
        %v8127 = vld [vmem:[%s8100 + $0xd0] sm:$0xff]
        %v8128 = vld [vmem:[%s8100 + $0xd8] sm:$0xff]
        %v8129 = vld [vmem:[%s8100 + $0xe0] sm:$0xff]
        %v8130 = vld [vmem:[%s8100 + $0xe8] sm:$0xff]
        %v8131 = vld [vmem:[%s8100 + $0xf0] sm:$0xff]
        %v8132 = vld [vmem:[%s8100 + $0xf8] sm:$0xff]
        %v8133 = vld [vmem:[%s8100 + $0x100] sm:$0xff]
        %v8134 = vld [vmem:[%s8100 + $0x108] sm:$0xff]
        %v8135 = vld [vmem:[%s8100 + $0x110] sm:$0xff]
        %v8136 = vld [vmem:[%s8100 + $0x118] sm:$0xff]
        %v8137 = vld [vmem:[%s8100 + $0x120] sm:$0xff]
        %v8138 = vld [vmem:[%s8100 + $0x128] sm:$0xff]
        %v8139 = vld [vmem:[%s8100 + $0x130] sm:$0xff]
        %v8140 = vld [vmem:[%s8100 + $0x138] sm:$0xff]
        %v8141 = vld [vmem:[%s8100 + $0x140] sm:$0xff]
        %v8142 = vld [vmem:[%s8100 + $0x148] sm:$0xff]
        %v8143 = vld [vmem:[%s8100 + $0x150] sm:$0xff]
        %v8144 = vld [vmem:[%s8100 + $0x158] sm:$0xff]
        %v8145 = vld [vmem:[%s8100 + $0x160] sm:$0xff]
        %v8146 = vld [vmem:[%s8100 + $0x168] sm:$0xff]
        %v8147 = vld [vmem:[%s8100 + $0x170] sm:$0xff]
        %v8148 = vld [vmem:[%s8100 + $0x178] sm:$0xff]
        %v8149 = vld [vmem:[%s8100 + $0x180] sm:$0xff]
        %v8150 = vld [vmem:[%s8100 + $0x188] sm:$0xff]
        %v8151 = vld [vmem:[%s8100 + $0x190] sm:$0xff]
        %v8152 = vld [vmem:[%s8100 + $0x198] sm:$0xff]
        %v8153 = vld [vmem:[%s8100 + $0x1a0] sm:$0xff]
        %v8154 = vld [vmem:[%s8100 + $0x1a8] sm:$0xff]
        %v8155 = vld [vmem:[%s8100 + $0x1b0] sm:$0xff]
        %v8156 = vld [vmem:[%s8100 + $0x1b8] sm:$0xff]
        %v8157 = vld [vmem:[%s8100 + $0x1c0] sm:$0xff]
        %v8158 = vld [vmem:[%s8100 + $0x1c8] sm:$0xff]
        %v8159 = vld [vmem:[%s8100 + $0x1d0] sm:$0xff]
        %v8160 = vld [vmem:[%s8100 + $0x1d8] sm:$0xff]
        %v8161 = vld [vmem:[%s8100 + $0x1e0] sm:$0xff]
        %v8162 = vld [vmem:[%s8100 + $0x1e8] sm:$0xff]
        %v8163 = vld [vmem:[%s8100 + $0x1f0] sm:$0xff]
        %v8164 = vld [vmem:[%s8100 + $0x1f8] sm:$0xff]
        %8165 = vmatprep.subr.mxu0 %v8132
        %8166 = vmatpush1.msra.mxu0 %v8131
        %8167 = vmatprep.subr.mxu0 %v8130
        %8168 = vmatpush1.msra.mxu0 %v8129
        %8169 = vmatprep.subr.mxu0 %v8128
        %8170 = vmatpush1.msra.mxu0 %v8127
        %8171 = vmatprep.subr.mxu0 %v8126
        %8172 = vmatpush1.msra.mxu0 %v8125
        %8173 = vmatprep.subr.mxu0 %v8124
        %8174 = vmatpush1.msra.mxu0 %v8123
        %8175 = vmatprep.subr.mxu0 %v8122
        %8176 = vmatpush1.msra.mxu0 %v8121
        %8177 = vmatprep.subr.mxu0 %v8120
        %8178 = vmatpush1.msra.mxu0 %v8119
        %8179 = vmatprep.subr.mxu0 %v8118
        %8180 = vmatpush1.msra.mxu0 %v8117
        %8181 = vmatprep.subr.mxu0 %v8116
        %8182 = vmatpush1.msra.mxu0 %v8115
        %8183 = vmatprep.subr.mxu0 %v8114
        %8184 = vmatpush1.msra.mxu0 %v8113
        %8185 = vmatprep.subr.mxu0 %v8112
        %8186 = vmatpush1.msra.mxu0 %v8111
        %8187 = vmatprep.subr.mxu0 %v8110
        %8188 = vmatpush1.msra.mxu0 %v8109
        %8189 = vmatprep.subr.mxu0 %v8108
        %8190 = vmatpush1.msra.mxu0 %v8107
        %8191 = vmatprep.subr.mxu0 %v8106
        %8192 = vmatpush1.msra.mxu0 %v8105
        %8193 = vmatprep.subr.mxu0 %v8104
        %8194 = vmatpush1.msra.mxu0 %v8103
        %8195 = vmatprep.subr.mxu0 %v8102
        %8196 = vmatpush1.msra.mxu0 %v8101
        %8197 = vmatprep.subr.mxu0 %v8164
        %8198 = vmatpush2.msra.mxu0 %v8163
        %8199 = vmatprep.subr.mxu0 %v8162
        %8200 = vmatpush2.msra.mxu0 %v8161
        %8201 = vmatprep.subr.mxu0 %v8160
        %8202 = vmatpush2.msra.mxu0 %v8159
        %8203 = vmatprep.subr.mxu0 %v8158
        %8204 = vmatpush2.msra.mxu0 %v8157
        %8205 = vmatprep.subr.mxu0 %v8156
        %8206 = vmatpush2.msra.mxu0 %v8155
        %8207 = vmatprep.subr.mxu0 %v8154
        %8208 = vmatpush2.msra.mxu0 %v8153
        %8209 = vmatprep.subr.mxu0 %v8152
        %8210 = vmatpush2.msra.mxu0 %v8151
        %8211 = vmatprep.subr.mxu0 %v8150
        %8212 = vmatpush2.msra.mxu0 %v8149
        %8213 = vmatprep.subr.mxu0 %v8148
        %8214 = vmatpush2.msra.mxu0 %v8147
        %8215 = vmatprep.subr.mxu0 %v8146
        %8216 = vmatpush2.msra.mxu0 %v8145
        %8217 = vmatprep.subr.mxu0 %v8144
        %8218 = vmatpush2.msra.mxu0 %v8143
        %8219 = vmatprep.subr.mxu0 %v8142
        %8220 = vmatpush2.msra.mxu0 %v8141
        %8221 = vmatprep.subr.mxu0 %v8140
        %8222 = vmatpush2.msra.mxu0 %v8139
        %8223 = vmatprep.subr.mxu0 %v8138
        %8224 = vmatpush2.msra.mxu0 %v8137
        %8225 = vmatprep.subr.mxu0 %v8136
        %8226 = vmatpush2.msra.mxu0 %v8135
        %8227 = vmatprep.subr.mxu0 %v8134
        %8228 = vmatpush2.msra.mxu0 %v8133
        %8229 = vmatprep.mubr.f32.mxu0 %v8069
        %8230 = vmatmul.mubr.f32.gmra.mxu0 %v8068
        %v8231 = vpop.f32.mrf.mxu0
        %v8232 = vadd.f32 0.0, %v8231
        %v8233 = vpop.f32.mrf.mxu0
        %v8234 = vadd.f32 0.0, %v8233
        %8235 = vmatprep.mubr.f32.mxu0 %v8071
        %8236 = vmatmul.mubr.f32.gmra.mxu0 %v8070
        %v8237 = vpop.f32.mrf.mxu0
        %v8238 = vadd.f32 0.0, %v8237
        %v8239 = vpop.f32.mrf.mxu0
        %v8240 = vadd.f32 0.0, %v8239
        %8241 = vmatprep.mubr.f32.mxu0 %v8073
        %8242 = vmatmul.mubr.f32.gmra.mxu0 %v8072
        %v8243 = vpop.f32.mrf.mxu0
        %v8244 = vadd.f32 0.0, %v8243
        %v8245 = vpop.f32.mrf.mxu0
        %v8246 = vadd.f32 0.0, %v8245
        %8247 = vmatprep.mubr.f32.mxu0 %v8075
        %8248 = vmatmul.mubr.f32.gmra.mxu0 %v8074
        %v8249 = vpop.f32.mrf.mxu0
        %v8250 = vadd.f32 0.0, %v8249
        %v8251 = vpop.f32.mrf.mxu0
        %v8252 = vadd.f32 0.0, %v8251
        %8253 = vmatprep.mubr.f32.mxu0 %v8077
        %8254 = vmatmul.mubr.f32.gmra.mxu0 %v8076
        %v8255 = vpop.f32.mrf.mxu0
        %v8256 = vadd.f32 0.0, %v8255
        %v8257 = vpop.f32.mrf.mxu0
        %v8258 = vadd.f32 0.0, %v8257
        %8259 = vmatprep.mubr.f32.mxu0 %v8079
        %8260 = vmatmul.mubr.f32.gmra.mxu0 %v8078
        %v8261 = vpop.f32.mrf.mxu0
        %v8262 = vadd.f32 0.0, %v8261
        %v8263 = vpop.f32.mrf.mxu0
        %v8264 = vadd.f32 0.0, %v8263
        %8265 = vmatprep.mubr.f32.mxu0 %v8081
        %8266 = vmatmul.mubr.f32.gmra.mxu0 %v8080
        %v8267 = vpop.f32.mrf.mxu0
        %v8268 = vadd.f32 0.0, %v8267
        %v8269 = vpop.f32.mrf.mxu0
        %v8270 = vadd.f32 0.0, %v8269
        %8271 = vmatprep.mubr.f32.mxu0 %v8083
        %8272 = vmatmul.mubr.f32.gmra.mxu0 %v8082
        %v8273 = vpop.f32.mrf.mxu0
        %v8274 = vadd.f32 0.0, %v8273
        %v8275 = vpop.f32.mrf.mxu0
        %v8276 = vadd.f32 0.0, %v8275
        %8277 = vmatprep.mubr.f32.mxu0 %v8085
        %8278 = vmatmul.mubr.f32.gmra.mxu0 %v8084
        %v8279 = vpop.f32.mrf.mxu0
        %v8280 = vadd.f32 0.0, %v8279
        %v8281 = vpop.f32.mrf.mxu0
        %v8282 = vadd.f32 0.0, %v8281
        %8283 = vmatprep.mubr.f32.mxu0 %v8087
        %8284 = vmatmul.mubr.f32.gmra.mxu0 %v8086
        %v8285 = vpop.f32.mrf.mxu0
        %v8286 = vadd.f32 0.0, %v8285
        %v8287 = vpop.f32.mrf.mxu0
        %v8288 = vadd.f32 0.0, %v8287
        %8289 = vmatprep.mubr.f32.mxu0 %v8089
        %8290 = vmatmul.mubr.f32.gmra.mxu0 %v8088
        %v8291 = vpop.f32.mrf.mxu0
        %v8292 = vadd.f32 0.0, %v8291
        %v8293 = vpop.f32.mrf.mxu0
        %v8294 = vadd.f32 0.0, %v8293
        %8295 = vmatprep.mubr.f32.mxu0 %v8091
        %8296 = vmatmul.mubr.f32.gmra.mxu0 %v8090
        %v8297 = vpop.f32.mrf.mxu0
        %v8298 = vadd.f32 0.0, %v8297
        %v8299 = vpop.f32.mrf.mxu0
        %v8300 = vadd.f32 0.0, %v8299
        %8301 = vmatprep.mubr.f32.mxu0 %v8093
        %8302 = vmatmul.mubr.f32.gmra.mxu0 %v8092
        %v8303 = vpop.f32.mrf.mxu0
        %v8304 = vadd.f32 0.0, %v8303
        %v8305 = vpop.f32.mrf.mxu0
        %v8306 = vadd.f32 0.0, %v8305
        %8307 = vmatprep.mubr.f32.mxu0 %v8095
        %8308 = vmatmul.mubr.f32.gmra.mxu0 %v8094
        %v8309 = vpop.f32.mrf.mxu0
        %v8310 = vadd.f32 0.0, %v8309
        %v8311 = vpop.f32.mrf.mxu0
        %v8312 = vadd.f32 0.0, %v8311
        %8313 = vmatprep.mubr.f32.mxu0 %v8097
        %8314 = vmatmul.mubr.f32.gmra.mxu0 %v8096
        %v8315 = vpop.f32.mrf.mxu0
        %v8316 = vadd.f32 0.0, %v8315
        %v8317 = vpop.f32.mrf.mxu0
        %v8318 = vadd.f32 0.0, %v8317
        %8319 = vmatprep.mubr.f32.mxu0 %v8099
        %8320 = vmatmul.mubr.f32.gmra.mxu0 %v8098
        %v8321 = vpop.f32.mrf.mxu0
        %v8322 = vadd.f32 0.0, %v8321
        %v8323 = vpop.f32.mrf.mxu0
        %v8324 = vadd.f32 0.0, %v8323
        %8325 = vdwg.mxu0
        %v8326 = vadd.f32 %v5833, %v8232
        %v8327 = vadd.f32 %v5834, %v8234
        %v8328 = vadd.f32 %v5835, %v8238
        %v8329 = vadd.f32 %v5836, %v8240
        %v8330 = vadd.f32 %v5837, %v8244
        %v8331 = vadd.f32 %v5838, %v8246
        %v8332 = vadd.f32 %v5839, %v8250
        %v8333 = vadd.f32 %v5840, %v8252
        %v8334 = vadd.f32 %v5841, %v8256
        %v8335 = vadd.f32 %v5842, %v8258
        %v8336 = vadd.f32 %v5843, %v8262
        %v8337 = vadd.f32 %v5844, %v8264
        %v8338 = vadd.f32 %v5845, %v8268
        %v8339 = vadd.f32 %v5846, %v8270
        %v8340 = vadd.f32 %v5847, %v8274
        %v8341 = vadd.f32 %v5848, %v8276
        %v8342 = vadd.f32 %v5849, %v8280
        %v8343 = vadd.f32 %v5850, %v8282
        %v8344 = vadd.f32 %v5851, %v8286
        %v8345 = vadd.f32 %v5852, %v8288
        %v8346 = vadd.f32 %v5853, %v8292
        %v8347 = vadd.f32 %v5854, %v8294
        %v8348 = vadd.f32 %v5855, %v8298
        %v8349 = vadd.f32 %v5856, %v8300
        %v8350 = vadd.f32 %v5857, %v8304
        %v8351 = vadd.f32 %v5858, %v8306
        %v8352 = vadd.f32 %v5859, %v8310
        %v8353 = vadd.f32 %v5860, %v8312
        %v8354 = vadd.f32 %v5861, %v8316
        %v8355 = vadd.f32 %v5862, %v8318
        %v8356 = vadd.f32 %v5863, %v8322
        %v8357 = vadd.f32 %v5864, %v8324
        %v8358 = vld [vmem:[%s6] sm:$0x3]
        %v8360 = vlaneseq
        %v8361 = vshrl.u32 %v8360, 7
        %v8362 = vsub.s32 0, %v8361
        %v8363 = vrot.slane %v8358, %v8362
        %v8364 = vlaneseq
        %v8365 = vshrl.u32 %v8364, 7
        %v8366 = vsub.s32 1, %v8365
        %v8367 = vrot.slane %v8358, %v8366
        %v8370 = vmul.f32 %v8326, %v8363
        %v8371 = vmul.f32 %v8327, %v8367
        %v8372 = vmul.f32 %v8328, %v8363
        %v8373 = vmul.f32 %v8329, %v8367
        %v8374 = vmul.f32 %v8330, %v8363
        %v8375 = vmul.f32 %v8331, %v8367
        %v8376 = vmul.f32 %v8332, %v8363
        %v8377 = vmul.f32 %v8333, %v8367
        %v8378 = vmul.f32 %v8334, %v8363
        %v8379 = vmul.f32 %v8335, %v8367
        %v8380 = vmul.f32 %v8336, %v8363
        %v8381 = vmul.f32 %v8337, %v8367
        %v8382 = vmul.f32 %v8338, %v8363
        %v8383 = vmul.f32 %v8339, %v8367
        %v8384 = vmul.f32 %v8340, %v8363
        %v8385 = vmul.f32 %v8341, %v8367
        %v8386 = vmul.f32 %v8342, %v8363
        %v8387 = vmul.f32 %v8343, %v8367
        %v8388 = vmul.f32 %v8344, %v8363
        %v8389 = vmul.f32 %v8345, %v8367
        %v8390 = vmul.f32 %v8346, %v8363
        %v8391 = vmul.f32 %v8347, %v8367
        %v8392 = vmul.f32 %v8348, %v8363
        %v8393 = vmul.f32 %v8349, %v8367
        %v8394 = vmul.f32 %v8350, %v8363
        %v8395 = vmul.f32 %v8351, %v8367
        %v8396 = vmul.f32 %v8352, %v8363
        %v8397 = vmul.f32 %v8353, %v8367
        %v8398 = vmul.f32 %v8354, %v8363
        %v8399 = vmul.f32 %v8355, %v8367
        %v8400 = vmul.f32 %v8356, %v8363
        %v8401 = vmul.f32 %v8357, %v8367
        %v8402 = vld [vmem:[%s334] sm:$0x3]
        %v8404 = vlaneseq
        %v8405 = vshrl.u32 %v8404, 7
        %v8406 = vsub.s32 0, %v8405
        %v8407 = vrot.slane %v8402, %v8406
        %v8408 = vlaneseq
        %v8409 = vshrl.u32 %v8408, 7
        %v8410 = vsub.s32 1, %v8409
        %v8411 = vrot.slane %v8402, %v8410
        %v8414 = vadd.f32 %v8370, %v8407
        %v8415 = vadd.f32 %v8371, %v8411
        %v8416 = vadd.f32 %v8372, %v8407
        %v8417 = vadd.f32 %v8373, %v8411
        %v8418 = vadd.f32 %v8374, %v8407
        %v8419 = vadd.f32 %v8375, %v8411
        %v8420 = vadd.f32 %v8376, %v8407
        %v8421 = vadd.f32 %v8377, %v8411
        %v8422 = vadd.f32 %v8378, %v8407
        %v8423 = vadd.f32 %v8379, %v8411
        %v8424 = vadd.f32 %v8380, %v8407
        %v8425 = vadd.f32 %v8381, %v8411
        %v8426 = vadd.f32 %v8382, %v8407
        %v8427 = vadd.f32 %v8383, %v8411
        %v8428 = vadd.f32 %v8384, %v8407
        %v8429 = vadd.f32 %v8385, %v8411
        %v8430 = vadd.f32 %v8386, %v8407
        %v8431 = vadd.f32 %v8387, %v8411
        %v8432 = vadd.f32 %v8388, %v8407
        %v8433 = vadd.f32 %v8389, %v8411
        %v8434 = vadd.f32 %v8390, %v8407
        %v8435 = vadd.f32 %v8391, %v8411
        %v8436 = vadd.f32 %v8392, %v8407
        %v8437 = vadd.f32 %v8393, %v8411
        %v8438 = vadd.f32 %v8394, %v8407
        %v8439 = vadd.f32 %v8395, %v8411
        %v8440 = vadd.f32 %v8396, %v8407
        %v8441 = vadd.f32 %v8397, %v8411
        %v8442 = vadd.f32 %v8398, %v8407
        %v8443 = vadd.f32 %v8399, %v8411
        %v8444 = vadd.f32 %v8400, %v8407
        %v8445 = vadd.f32 %v8401, %v8411
        %v8446 = vmax.f32 %v8414, 0.0
        %v8447 = vmax.f32 %v8415, 0.0
        %v8448 = vmax.f32 %v8416, 0.0
        %v8449 = vmax.f32 %v8417, 0.0
        %v8450 = vmax.f32 %v8418, 0.0
        %v8451 = vmax.f32 %v8419, 0.0
        %v8452 = vmax.f32 %v8420, 0.0
        %v8453 = vmax.f32 %v8421, 0.0
        %v8454 = vmax.f32 %v8422, 0.0
        %v8455 = vmax.f32 %v8423, 0.0
        %v8456 = vmax.f32 %v8424, 0.0
        %v8457 = vmax.f32 %v8425, 0.0
        %v8458 = vmax.f32 %v8426, 0.0
        %v8459 = vmax.f32 %v8427, 0.0
        %v8460 = vmax.f32 %v8428, 0.0
        %v8461 = vmax.f32 %v8429, 0.0
        %v8462 = vmax.f32 %v8430, 0.0
        %v8463 = vmax.f32 %v8431, 0.0
        %v8464 = vmax.f32 %v8432, 0.0
        %v8465 = vmax.f32 %v8433, 0.0
        %v8466 = vmax.f32 %v8434, 0.0
        %v8467 = vmax.f32 %v8435, 0.0
        %v8468 = vmax.f32 %v8436, 0.0
        %v8469 = vmax.f32 %v8437, 0.0
        %v8470 = vmax.f32 %v8438, 0.0
        %v8471 = vmax.f32 %v8439, 0.0
        %v8472 = vmax.f32 %v8440, 0.0
        %v8473 = vmax.f32 %v8441, 0.0
        %v8474 = vmax.f32 %v8442, 0.0
        %v8475 = vmax.f32 %v8443, 0.0
        %v8476 = vmax.f32 %v8444, 0.0
        %v8477 = vmax.f32 %v8445, 0.0
        %8478 = vst [vmem:[%s325] sm:$0xff] %v8446
        %8479 = vst [vmem:[%s325 + $0x8] sm:$0xff] %v8447
        %8480 = vst [vmem:[%s325 + $0x10] sm:$0xff] %v8448
        %8481 = vst [vmem:[%s325 + $0x18] sm:$0xff] %v8449
        %8482 = vst [vmem:[%s325 + $0x20] sm:$0xff] %v8450
        %8483 = vst [vmem:[%s325 + $0x28] sm:$0xff] %v8451
        %8484 = vst [vmem:[%s325 + $0x30] sm:$0xff] %v8452
        %8485 = vst [vmem:[%s325 + $0x38] sm:$0xff] %v8453
        %8486 = vst [vmem:[%s325 + $0x40] sm:$0xff] %v8454
        %8487 = vst [vmem:[%s325 + $0x48] sm:$0xff] %v8455
        %8488 = vst [vmem:[%s325 + $0x50] sm:$0xff] %v8456
        %8489 = vst [vmem:[%s325 + $0x58] sm:$0xff] %v8457
        %8490 = vst [vmem:[%s325 + $0x60] sm:$0xff] %v8458
        %8491 = vst [vmem:[%s325 + $0x68] sm:$0xff] %v8459
        %8492 = vst [vmem:[%s325 + $0x70] sm:$0xff] %v8460
        %8493 = vst [vmem:[%s325 + $0x78] sm:$0xff] %v8461
        %8494 = vst [vmem:[%s325 + $0x80] sm:$0xff] %v8462
        %8495 = vst [vmem:[%s325 + $0x88] sm:$0xff] %v8463
        %8496 = vst [vmem:[%s325 + $0x90] sm:$0xff] %v8464
        %8497 = vst [vmem:[%s325 + $0x98] sm:$0xff] %v8465
        %8498 = vst [vmem:[%s325 + $0xa0] sm:$0xff] %v8466
        %8499 = vst [vmem:[%s325 + $0xa8] sm:$0xff] %v8467
        %8500 = vst [vmem:[%s325 + $0xb0] sm:$0xff] %v8468
        %8501 = vst [vmem:[%s325 + $0xb8] sm:$0xff] %v8469
        %8502 = vst [vmem:[%s325 + $0xc0] sm:$0xff] %v8470
        %8503 = vst [vmem:[%s325 + $0xc8] sm:$0xff] %v8471
        %8504 = vst [vmem:[%s325 + $0xd0] sm:$0xff] %v8472
        %8505 = vst [vmem:[%s325 + $0xd8] sm:$0xff] %v8473
        %8506 = vst [vmem:[%s325 + $0xe0] sm:$0xff] %v8474
        %8507 = vst [vmem:[%s325 + $0xe8] sm:$0xff] %v8475
        %8508 = vst [vmem:[%s325 + $0xf0] sm:$0xff] %v8476
        %8509 = vst [vmem:[%s325 + $0xf8] sm:$0xff] %v8477
        %s8510 = sand.u32 %s222, 1
        %s8511 = scalar_lea.sflag [#allocation3], %s8510
        %s8512 = sand.u32 %s222, 1
        %s8513 = smul.addr %s8512, 256
        %s8514 = scalar_lea.vmem [#allocation2], %s8513
        // Predicated region
        $region53: #{aspp_forward.1} parent=51 // pred_check
          %p8515 = pneg %p232
        $region54: #{aspp_forward.1} parent=51 // pred_check_branch
          %8517 = sbr.rel (%p8515) target = $region56
        $region55: #{aspp_forward.1} parent=51 // pred_region
          %s8518 = smul.u32 8, %s27
          %s8520 = ssub.s32 4096, 4096
          %8521 = vsyncadd %s8511, %s8520
          %s8522 = smul.addr %s8518, 4
          %s8523 = smul.addr %s26, 64
          %s8524 = sadd.s32 %s8522, %s8523
          %s8525 = smul.addr %s8524, 128
          %s8526 = scalar_lea.hbm %s8, %s8525
          %s8527 = sshll.u32 %s8514, 4
          %s8528 = int_to_ptr.vmem [resolvable:$true] %s8527
          %8533 = dma.vmem_to_hbm [thread:$0]  %s8528, 4096, %s8526, %s8511, 256, 256, 16
        $region56: #{aspp_forward.1} parent=51 // pred_fallthru
          _
      $region52: #{aspp_forward.1} parent=5 // pred_fallthru
        _
      %p8534 = scmp.le.s32.totalorder 2, %s17
      // Predicated region
      $region57: #{aspp_forward.1} parent=5 // pred_check
        %p8535 = pneg %p8534
      $region58: #{aspp_forward.1} parent=5 // pred_check_branch
        %8537 = sbr.rel (%p8535) target = $region60
      $region59: #{aspp_forward.1} parent=5 // pred_region
        %s8538 = ssub.s32 %s17, 2
        // Predicated region
        $region61: #{aspp_forward.1} parent=59 // pred_check
          %p8539 = pneg %p238
        $region62: #{aspp_forward.1} parent=59 // pred_check_branch
          %8541 = sbr.rel (%p8539) target = $region64
        $region63: #{aspp_forward.1} parent=59 // pred_region
          %s8542 = sand.u32 %s223, 1
          %s8543 = scalar_lea.sflag [#allocation3], %s8542
          %s8544 = sand.u32 %s223, 1
          %s8545 = smul.addr %s8544, 256
          %s8546 = scalar_lea.vmem [#allocation2], %s8545
          %8547 = dma.done %s8543, 4096
        $region64: #{aspp_forward.1} parent=59 // pred_fallthru
          _
      $region60: #{aspp_forward.1} parent=5 // pred_fallthru
        _
    $region6: #{aspp_forward.1} parent=1 // loop_footer
      %s21 = sadd.s32 1, %s17
    $region7: #{aspp_forward.1} parent=1 // loop_footer_branch
      %16 = sbr.rel target = $region3
    $region8: #{aspp_forward.1} parent=1 // loop_exit
      _
    %8548 = vsyncpa [#allocation3], 1
    %s8549 = scalar_lea.sflag [#allocation3], 1
    %8550 = vsyncpa %s8549, 1

</llo_original>
